<compile_context>
chip_gen: v7x
topology: tpu7x:2x2x1
jax: 0.10.0
libtpu: 0.0.40
codegen_flags: <defaults>
</compile_context>

<pallas_src>
import jax
import jax.numpy as jnp
import numpy as np
from jax.experimental import pallas as pl
from jax.experimental.pallas import tpu as pltpu


# ---------------------------------------------------------------------------
# Scaled-down RepVGG-B1g2 config (deploy form: single 3x3 conv + bias + ReLU).
# ---------------------------------------------------------------------------
_BLOCK_CFG = (
    # name,      cin, cout, stride
    ("stage0_0",   3,    8, 2),
    ("stage1_0",   8,   16, 2), ("stage1_1", 16, 16, 1),
    ("stage2_0",  16,   32, 2), ("stage2_1", 32, 32, 1),
    ("stage3_0",  32,   64, 2), ("stage3_1", 64, 64, 1),
    ("stage4_0",  64,  128, 1),   # Net.__init__ forces stage4 convs to stride 1
)
_FINAL_C = 128


def init_params(key):
    params = {}
    for name, cin, cout, _ in _BLOCK_CFG:
        key, kw, kb = jax.random.split(key, 3)
        scale = (2.0 / (9 * cin)) ** 0.5
        params[name + "_w"] = scale * jax.random.normal(kw, (3, 3, cin, cout), jnp.float32)
        params[name + "_b"] = 0.01 * jax.random.normal(kb, (cout,), jnp.float32)
    key, kc = jax.random.split(key)
    # nn.Conv2d(C, 1, 1, bias=False): weight (1, C, 1, 1) used as a (1, C) vector.
    params["classifier_w"] = (1.0 / _FINAL_C ** 0.5) * jax.random.normal(
        kc, (1, _FINAL_C), jnp.float32)
    return params


# ---------------------------------------------------------------------------
# Geometry plan for the blocks that run INSIDE the kernel (stage1..stage4;
# stage0's im2col is computed host-side by XLA).
# ---------------------------------------------------------------------------
def _block_plan(h_in, w_in):
    s0 = _BLOCK_CFG[0][3]
    h, w = h_in // s0, w_in // s0                    # stage0 output geometry
    plan, pad_shapes = [], []
    for _name, cin, cout, stride in _BLOCK_CFG[1:]:
        shape = (h + 2, w + 2, cin)
        if shape in pad_shapes:
            pidx = pad_shapes.index(shape)
        else:
            pidx = len(pad_shapes)
            pad_shapes.append(shape)
        ho, wo = h // stride, w // stride
        plan.append((cin, cout, stride, h, w, ho, wo, pidx))
        h, w = ho, wo
    return tuple(plan), tuple(pad_shapes), (h, w)


def _stage0_im2col(x_nhwc):
    """Host-side (XLA) im2col for stage0 (stride-2, 'same' padding)."""
    n, h, w, c = x_nhwc.shape
    s = _BLOCK_CFG[0][3]
    ho, wo = h // s, w // s
    xp = jnp.pad(x_nhwc, ((0, 0), (1, 1), (1, 1), (0, 0)))
    taps = []
    for kh in range(3):
        for kw in range(3):
            taps.append(xp[:, kh:kh + s * ho:s, kw:kw + s * wo:s, :])
    col = jnp.concatenate(taps, axis=-1)              # (N, ho, wo, 9*c), tap-major
    return col.reshape(n, ho * wo, 9 * c), ho, wo


def _grid_steps(n):
    """v7x has 2 TensorCores that only share work via a 'parallel' grid axis;
    v5e/v6e are single-TC, where a full batch fold maximises matmul M."""
    try:
        kind = jax.devices()[0].device_kind.lower()
    except Exception:
        kind = ""
    steps = 2 if "v7" in kind else 1
    if steps > 1 and (n % steps) != 0:
        steps = 1
    return max(1, min(steps, n))


# ---------------------------------------------------------------------------
# Fused backbone + GAP + classifier kernel.
# ---------------------------------------------------------------------------
def _make_fused_kernel(plan, batch, h0, w0):
    n = len(plan)                                      # blocks after stage0

    def kernel(*refs):
        col0_ref = refs[0]                             # (B, h0*w0, 9*C0) stage0 im2col
        w0_ref, b0_ref = refs[1], refs[2]              # (9*C0, c0out), (1, c0out)
        w_refs = refs[3:3 + 2 * n:2]                   # (9, Cin, Cout) per block
        b_refs = refs[4:4 + 2 * n:2]                   # (1, Cout)
        cls_ref = refs[3 + 2 * n]                      # (1, C)
        logit_ref = refs[4 + 2 * n]                    # out: (B, 1)
        feat_ref = refs[5 + 2 * n]                     # out: (B, Hf, Wf, C)
        pad_refs = refs[6 + 2 * n:]                    # VMEM zero-padded scratch

        B = batch

        # Zero ONLY the 1-pixel border strips, once per grid step: interiors
        # are fully overwritten by each block, and buffers reused by several
        # blocks keep their zero borders.
        for pref in pad_refs:
            _, ph, pw, pc = pref.shape
            pref[:, 0:1, :, :] = jnp.zeros((B, 1, pw, pc), jnp.float32)
            pref[:, ph - 1:ph, :, :] = jnp.zeros((B, 1, pw, pc), jnp.float32)
            pref[:, :, 0:1, :] = jnp.zeros((B, ph, 1, pc), jnp.float32)
            pref[:, :, pw - 1:pw, :] = jnp.zeros((B, ph, 1, pc), jnp.float32)

        # ---- stage0: one MXU matmul on the host-precomputed im2col. ----
        k0 = col0_ref.shape[-1]
        c0out = w0_ref.shape[-1]
        p0 = col0_ref[...].reshape(B * h0 * w0, k0)
        y = jnp.dot(p0, w0_ref[...], preferred_element_type=jnp.float32)
        y = jnp.maximum(y + b0_ref[...], 0.0)
        act = y.reshape(B, h0, w0, c0out)

        # ---- stage1..stage4: strided pl.ds taps, 9 per-tap MXU matmuls. ----
        for bi, (cin, cout, s, h, w, ho, wo, pidx) in enumerate(plan):
            pad = pad_refs[pidx]
            pad[:, 1:h + 1, 1:w + 1, :] = act          # 'same' zero padding in VMEM
            m = B * ho * wo
            acc = jnp.zeros((m, cout), jnp.float32)
            for kh in range(3):
                for kw in range(3):
                    if s == 1:
                        p = pad[:, kh:kh + ho, kw:kw + wo, :]
                    else:
                        # Strided gather: read only the strided output pixels.
                        p = pad[:, pl.ds(kh, ho, stride=s),
                                pl.ds(kw, wo, stride=s), :]
                    acc = acc + jnp.dot(p.reshape(m, cin),
                                        w_refs[bi][kh * 3 + kw],
                                        preferred_element_type=jnp.float32)
            y = jnp.maximum(acc + b_refs[bi][...], 0.0)  # bias + ReLU
            act = y.reshape(B, ho, wo, cout)

        # gap2d(keepdims) + 1x1 classifier conv (no bias), fused.
        hf, wf, cf = act.shape[1], act.shape[2], act.shape[3]
        feat_ref[...] = act                              # saved stage4 activations
        gap = jnp.mean(act.reshape(B, hf * wf, cf), axis=1)               # (B, C)
        logit_ref[...] = jnp.sum(gap * cls_ref[...], axis=-1, keepdims=True)

    return kernel


def gradcampp_forward(params, x_nchw):
    """GradCAMPlusPlus.forward: logits (N, 1) and stage4 feature maps (NCHW)."""
    x = jnp.transpose(x_nchw, (0, 2, 3, 1)).astype(jnp.float32)   # NCHW -> NHWC
    N, H, W, C0 = x.shape
    col0, h0, w0 = _stage0_im2col(x)                   # stage0 im2col done by XLA
    plan, pad_shapes, (hf, wf) = _block_plan(H, W)

    steps = _grid_steps(N)
    B = N // steps                                     # images folded into M per step
    c0out = _BLOCK_CFG[0][2]

    inputs = [col0,
              params["stage0_0_w"].reshape(9 * C0, c0out),
              params["stage0_0_b"].reshape(1, c0out)]
    in_specs = [pl.BlockSpec((B, h0 * w0, 9 * C0), lambda b: (b, 0, 0)),
                pl.BlockSpec((9 * C0, c0out), lambda b: (0, 0)),
                pl.BlockSpec((1, c0out), lambda b: (0, 0))]
    for name, cin, cout, _s in _BLOCK_CFG[1:]:
        # (3,3,Cin,Cout) -> (9,Cin,Cout): tap-major, each tap sublane-aligned.
        inputs.append(params[name + "_w"].reshape(9, cin, cout))
        inputs.append(params[name + "_b"].reshape(1, cout))
        in_specs.append(pl.BlockSpec((9, cin, cout), lambda b: (0, 0, 0)))
        in_specs.append(pl.BlockSpec((1, cout), lambda b: (0, 0)))
    inputs.append(params["classifier_w"])
    in_specs.append(pl.BlockSpec((1, _FINAL_C), lambda b: (0, 0)))

    logits, feats_nhwc = pl.pallas_call(
        _make_fused_kernel(plan, B, h0, w0),
        out_shape=(jax.ShapeDtypeStruct((N, 1), jnp.float32),
                   jax.ShapeDtypeStruct((N, hf, wf, _FINAL_C), jnp.float32)),
        grid=(steps,),
        in_specs=in_specs,
        out_specs=(pl.BlockSpec((B, 1), lambda b: (b, 0)),
                   pl.BlockSpec((B, hf, wf, _FINAL_C), lambda b: (b, 0, 0, 0))),
        scratch_shapes=[pltpu.VMEM((B,) + s, jnp.float32) for s in pad_shapes],
        compiler_params=pltpu.CompilerParams(
            dimension_semantics=("parallel",)),        # shards over v7x's 2 TCs
    )(*inputs)

    feats_nchw = jnp.transpose(feats_nhwc, (0, 3, 1, 2))
    return logits, feats_nchw                          # logits == x_logit.view(-1, 1)


# ---------------------------------------------------------------------------
# GradCAM++ weighting kernel: natural (C, H*W) layout, lane-dense output.
# ---------------------------------------------------------------------------
def _gradcampp_cam_kernel(fm_ref, g_ref, cam_ref):
    g = g_ref[...]                                     # (C, HW): HW on lanes
    fm = fm_ref[...]
    g2 = g * g
    gsum = jnp.sum(g, axis=-1, keepdims=True)          # spatial sum, (C, 1)
    denom = 2.0 * g2 + gsum * gsum + 1e-7              # as in RepVGG_cam.py
    alpha = g2 * pl.reciprocal(denom, approx=False)    # divide on the EUP slot
    weight = jnp.sum(alpha * jnp.maximum(g, 0.0), axis=-1, keepdims=True)   # (C, 1)
    cam = jnp.sum(fm * weight, axis=0, keepdims=True)  # channel reduce -> (1, HW)
    cam_ref[...] = jnp.maximum(cam, 0.0)


def generate_cam(index, feature_maps_nchw, gradients_nchw):
    """Equivalent of GradCAMPlusPlus.generate_cam for a single hooked feature map."""
    fm = feature_maps_nchw[index]                      # (C, H, W)
    g = gradients_nchw[index]
    C, H, W = fm.shape
    cam = pl.pallas_call(
        _gradcampp_cam_kernel,
        out_shape=jax.ShapeDtypeStruct((1, H * W), jnp.float32),
        grid=(1,),
        in_specs=[pl.BlockSpec((C, H * W), lambda i: (0, 0)),
                  pl.BlockSpec((C, H * W), lambda i: (0, 0))],
        out_specs=pl.BlockSpec((1, H * W), lambda i: (0, 0)),
    )(fm.reshape(C, H * W), g.reshape(C, H * W))
    return cam.reshape(1, H, W)                        # cam.unsqueeze(0)


# ---------------------------------------------------------------------------
# Pure-JAX references (structural correctness checks).
# ---------------------------------------------------------------------------
def _reference_forward(params, x_nchw):
    x = jnp.transpose(x_nchw, (0, 2, 3, 1)).astype(jnp.float32)
    for name, _cin, _cout, stride in _BLOCK_CFG:
        x = jax.lax.conv_general_dilated(
            x, params[name + "_w"], window_strides=(stride, stride),
            padding=((1, 1), (1, 1)),
            dimension_numbers=("NHWC", "HWIO", "NHWC"),
            precision=jax.lax.Precision.HIGHEST)
        x = jnp.maximum(x + params[name + "_b"], 0.0)
    gap = jnp.mean(x, axis=(1, 2))                                       # (N, C)
    logits = jnp.sum(gap * params["classifier_w"], axis=-1, keepdims=True)
    return logits, jnp.transpose(x, (0, 3, 1, 2))


def _reference_cam(index, feats_nchw, grads_nchw):
    g = grads_nchw[index]
    fm = feats_nchw[index]
    denom = 2.0 * g * g + jnp.sum(g, axis=(1, 2), keepdims=True) ** 2 + 1e-7
    alpha = (g * g) / denom
    weight = jnp.sum(alpha * jnp.maximum(g, 0.0), axis=(1, 2), keepdims=True)
    cam = jnp.maximum(jnp.sum(fm * weight, axis=0), 0.0)
    return cam[None]


# ---------------------------------------------------------------------------
if __name__ == "__main__":
    key = jax.random.PRNGKey(0)
    kx, kp, kg = jax.random.split(key, 3)

    x = jax.random.normal(kx, (2, 3, 32, 32), jnp.float32)   # NCHW like PyTorch
    params = init_params(kp)

    fwd = jax.jit(gradcampp_forward)
    logits, feats = fwd(params, x)

    # TODO(synk): in PyTorch the gradients come from autograd (self.backward(index));
    # deterministic synthetic gradients are used here to exercise the CAM kernel.
    grads = jax.random.normal(kg, feats.shape, jnp.float32)
    cam = generate_cam(0, feats, grads)
    jax.block_until_ready((logits, feats, cam))

    assert logits.shape == (2, 1)
    assert feats.shape == (2, _FINAL_C, 2, 2)
    assert cam.shape == (1, 2, 2)

    # Structural correctness checks against pure-JAX references.  Tolerance is
    # 1e-2: tight enough to catch any im2col indexing / layout bug (those give
    # O(1) errors) while tolerating MXU multi-pass rounding of f32 matmuls.
    ref_logits, ref_feats = _reference_forward(params, x)
    np.testing.assert_allclose(np.asarray(feats), np.asarray(ref_feats),
                               rtol=1e-2, atol=1e-2)
    np.testing.assert_allclose(np.asarray(logits), np.asarray(ref_logits),
                               rtol=1e-2, atol=1e-2)
    ref_cam = _reference_cam(0, feats, grads)   # same inputs as the Pallas CAM kernel
    np.testing.assert_allclose(np.asarray(cam), np.asarray(ref_cam),
                               rtol=1e-3, atol=1e-5)

    print("KERNEL_OK")
</pallas_src>

<mosaic_0001>
module attributes {stable_mosaic.version = 11 : i64} {
  func.func @kernel(%arg0: i32, %arg1: memref<2x256x27xf32, #tpu.memory_space<vmem>>, %arg2: memref<27x8xf32, #tpu.memory_space<vmem>>, %arg3: memref<1x8xf32, #tpu.memory_space<vmem>>, %arg4: memref<9x8x16xf32, #tpu.memory_space<vmem>>, %arg5: memref<1x16xf32, #tpu.memory_space<vmem>>, %arg6: memref<9x16x16xf32, #tpu.memory_space<vmem>>, %arg7: memref<1x16xf32, #tpu.memory_space<vmem>>, %arg8: memref<9x16x32xf32, #tpu.memory_space<vmem>>, %arg9: memref<1x32xf32, #tpu.memory_space<vmem>>, %arg10: memref<9x32x32xf32, #tpu.memory_space<vmem>>, %arg11: memref<1x32xf32, #tpu.memory_space<vmem>>, %arg12: memref<9x32x64xf32, #tpu.memory_space<vmem>>, %arg13: memref<1x64xf32, #tpu.memory_space<vmem>>, %arg14: memref<9x64x64xf32, #tpu.memory_space<vmem>>, %arg15: memref<1x64xf32, #tpu.memory_space<vmem>>, %arg16: memref<9x64x128xf32, #tpu.memory_space<vmem>>, %arg17: memref<1x128xf32, #tpu.memory_space<vmem>>, %arg18: memref<1x128xf32, #tpu.memory_space<vmem>>, %arg19: memref<2x1xf32, #tpu.memory_space<vmem>>, %arg20: memref<2x2x2x128xf32, #tpu.memory_space<vmem>>, %arg21: memref<2x18x18x8xf32, #tpu.memory_space<vmem>>, %arg22: memref<2x10x10x16xf32, #tpu.memory_space<vmem>>, %arg23: memref<2x6x6x32xf32, #tpu.memory_space<vmem>>, %arg24: memref<2x4x4x64xf32, #tpu.memory_space<vmem>>) attributes {dimension_semantics = [#tpu.dimension_semantics<parallel>], iteration_bounds = array<i64: 1>, scalar_prefetch = 0 : i64, scratch_operands = 4 : i64, tpu.core_type = #tpu.core_type<tc>, window_params = [{transform_indices = @transform_0, window_bounds = array<i64: 2, 256, 27>}, {pipeline_mode = #tpu.pipeline_mode<synchronous>, transform_indices = @transform_1, window_bounds = array<i64: 27, 8>}, {pipeline_mode = #tpu.pipeline_mode<synchronous>, transform_indices = @transform_2, window_bounds = array<i64: 1, 8>}, {pipeline_mode = #tpu.pipeline_mode<synchronous>, transform_indices = @transform_3, window_bounds = array<i64: 9, 8, 16>}, {pipeline_mode = #tpu.pipeline_mode<synchronous>, transform_indices = @transform_4, window_bounds = array<i64: 1, 16>}, {pipeline_mode = #tpu.pipeline_mode<synchronous>, transform_indices = @transform_5, window_bounds = array<i64: 9, 16, 16>}, {pipeline_mode = #tpu.pipeline_mode<synchronous>, transform_indices = @transform_6, window_bounds = array<i64: 1, 16>}, {pipeline_mode = #tpu.pipeline_mode<synchronous>, transform_indices = @transform_7, window_bounds = array<i64: 9, 16, 32>}, {pipeline_mode = #tpu.pipeline_mode<synchronous>, transform_indices = @transform_8, window_bounds = array<i64: 1, 32>}, {pipeline_mode = #tpu.pipeline_mode<synchronous>, transform_indices = @transform_9, window_bounds = array<i64: 9, 32, 32>}, {pipeline_mode = #tpu.pipeline_mode<synchronous>, transform_indices = @transform_10, window_bounds = array<i64: 1, 32>}, {pipeline_mode = #tpu.pipeline_mode<synchronous>, transform_indices = @transform_11, window_bounds = array<i64: 9, 32, 64>}, {pipeline_mode = #tpu.pipeline_mode<synchronous>, transform_indices = @transform_12, window_bounds = array<i64: 1, 64>}, {pipeline_mode = #tpu.pipeline_mode<synchronous>, transform_indices = @transform_13, window_bounds = array<i64: 9, 64, 64>}, {pipeline_mode = #tpu.pipeline_mode<synchronous>, transform_indices = @transform_14, window_bounds = array<i64: 1, 64>}, {pipeline_mode = #tpu.pipeline_mode<synchronous>, transform_indices = @transform_15, window_bounds = array<i64: 9, 64, 128>}, {pipeline_mode = #tpu.pipeline_mode<synchronous>, transform_indices = @transform_16, window_bounds = array<i64: 1, 128>}, {pipeline_mode = #tpu.pipeline_mode<synchronous>, transform_indices = @transform_17, window_bounds = array<i64: 1, 128>}, {transform_indices = @transform_18, window_bounds = array<i64: 2, 1>}, {transform_indices = @transform_19, window_bounds = array<i64: 2, 2, 2, 128>}]} {
    %cst = arith.constant 0.000000e+00 : f32
    %0 = vector.broadcast %cst : f32 to vector<2x1x18x8xf32>
    %c0 = arith.constant 0 : index
    %c0_0 = arith.constant 0 : index
    %c0_1 = arith.constant 0 : index
    %c0_2 = arith.constant 0 : index
    %1 = vector.load %arg21[%c0, %c0_0, %c0_1, %c0_2] : memref<2x18x18x8xf32, #tpu.memory_space<vmem>>, vector<2x1x18x8xf32>
    tpu.vector_store %arg21[%c0, %c0_0, %c0_1, %c0_2], %0 {strides = array<i32>} : memref<2x18x18x8xf32, #tpu.memory_space<vmem>>, vector<2x1x18x8xf32>,
    %cst_3 = arith.constant 0.000000e+00 : f32
    %2 = vector.broadcast %cst_3 : f32 to vector<2x1x18x8xf32>
    %c0_4 = arith.constant 0 : index
    %c17 = arith.constant 17 : index
    %c0_5 = arith.constant 0 : index
    %c0_6 = arith.constant 0 : index
    %3 = vector.load %arg21[%c0_4, %c17, %c0_5, %c0_6] : memref<2x18x18x8xf32, #tpu.memory_space<vmem>>, vector<2x1x18x8xf32>
    tpu.vector_store %arg21[%c0_4, %c17, %c0_5, %c0_6], %2 {strides = array<i32>} : memref<2x18x18x8xf32, #tpu.memory_space<vmem>>, vector<2x1x18x8xf32>,
    %cst_7 = arith.constant 0.000000e+00 : f32
    %4 = vector.broadcast %cst_7 : f32 to vector<2x18x1x8xf32>
    %c0_8 = arith.constant 0 : index
    %c0_9 = arith.constant 0 : index
    %c0_10 = arith.constant 0 : index
    %c0_11 = arith.constant 0 : index
    %5 = vector.load %arg21[%c0_8, %c0_9, %c0_10, %c0_11] : memref<2x18x18x8xf32, #tpu.memory_space<vmem>>, vector<2x18x1x8xf32>
    tpu.vector_store %arg21[%c0_8, %c0_9, %c0_10, %c0_11], %4 {strides = array<i32>} : memref<2x18x18x8xf32, #tpu.memory_space<vmem>>, vector<2x18x1x8xf32>,
    %cst_12 = arith.constant 0.000000e+00 : f32
    %6 = vector.broadcast %cst_12 : f32 to vector<2x18x1x8xf32>
    %c0_13 = arith.constant 0 : index
    %c0_14 = arith.constant 0 : index
    %c17_15 = arith.constant 17 : index
    %c0_16 = arith.constant 0 : index
    %7 = vector.load %arg21[%c0_13, %c0_14, %c17_15, %c0_16] : memref<2x18x18x8xf32, #tpu.memory_space<vmem>>, vector<2x18x1x8xf32>
    tpu.vector_store %arg21[%c0_13, %c0_14, %c17_15, %c0_16], %6 {strides = array<i32>} : memref<2x18x18x8xf32, #tpu.memory_space<vmem>>, vector<2x18x1x8xf32>,
    %cst_17 = arith.constant 0.000000e+00 : f32
    %8 = vector.broadcast %cst_17 : f32 to vector<2x1x10x16xf32>
    %c0_18 = arith.constant 0 : index
    %c0_19 = arith.constant 0 : index
    %c0_20 = arith.constant 0 : index
    %c0_21 = arith.constant 0 : index
    %9 = vector.load %arg22[%c0_18, %c0_19, %c0_20, %c0_21] : memref<2x10x10x16xf32, #tpu.memory_space<vmem>>, vector<2x1x10x16xf32>
    tpu.vector_store %arg22[%c0_18, %c0_19, %c0_20, %c0_21], %8 {strides = array<i32>} : memref<2x10x10x16xf32, #tpu.memory_space<vmem>>, vector<2x1x10x16xf32>,
    %cst_22 = arith.constant 0.000000e+00 : f32
    %10 = vector.broadcast %cst_22 : f32 to vector<2x1x10x16xf32>
    %c0_23 = arith.constant 0 : index
    %c9 = arith.constant 9 : index
    %c0_24 = arith.constant 0 : index
    %c0_25 = arith.constant 0 : index
    %11 = vector.load %arg22[%c0_23, %c9, %c0_24, %c0_25] : memref<2x10x10x16xf32, #tpu.memory_space<vmem>>, vector<2x1x10x16xf32>
    tpu.vector_store %arg22[%c0_23, %c9, %c0_24, %c0_25], %10 {strides = array<i32>} : memref<2x10x10x16xf32, #tpu.memory_space<vmem>>, vector<2x1x10x16xf32>,
    %cst_26 = arith.constant 0.000000e+00 : f32
    %12 = vector.broadcast %cst_26 : f32 to vector<2x10x1x16xf32>
    %c0_27 = arith.constant 0 : index
    %c0_28 = arith.constant 0 : index
    %c0_29 = arith.constant 0 : index
    %c0_30 = arith.constant 0 : index
    %13 = vector.load %arg22[%c0_27, %c0_28, %c0_29, %c0_30] : memref<2x10x10x16xf32, #tpu.memory_space<vmem>>, vector<2x10x1x16xf32>
    tpu.vector_store %arg22[%c0_27, %c0_28, %c0_29, %c0_30], %12 {strides = array<i32>} : memref<2x10x10x16xf32, #tpu.memory_space<vmem>>, vector<2x10x1x16xf32>,
    %cst_31 = arith.constant 0.000000e+00 : f32
    %14 = vector.broadcast %cst_31 : f32 to vector<2x10x1x16xf32>
    %c0_32 = arith.constant 0 : index
    %c0_33 = arith.constant 0 : index
    %c9_34 = arith.constant 9 : index
    %c0_35 = arith.constant 0 : index
    %15 = vector.load %arg22[%c0_32, %c0_33, %c9_34, %c0_35] : memref<2x10x10x16xf32, #tpu.memory_space<vmem>>, vector<2x10x1x16xf32>
    tpu.vector_store %arg22[%c0_32, %c0_33, %c9_34, %c0_35], %14 {strides = array<i32>} : memref<2x10x10x16xf32, #tpu.memory_space<vmem>>, vector<2x10x1x16xf32>,
    %cst_36 = arith.constant 0.000000e+00 : f32
    %16 = vector.broadcast %cst_36 : f32 to vector<2x1x6x32xf32>
    %c0_37 = arith.constant 0 : index
    %c0_38 = arith.constant 0 : index
    %c0_39 = arith.constant 0 : index
    %c0_40 = arith.constant 0 : index
    %17 = vector.load %arg23[%c0_37, %c0_38, %c0_39, %c0_40] : memref<2x6x6x32xf32, #tpu.memory_space<vmem>>, vector<2x1x6x32xf32>
    tpu.vector_store %arg23[%c0_37, %c0_38, %c0_39, %c0_40], %16 {strides = array<i32>} : memref<2x6x6x32xf32, #tpu.memory_space<vmem>>, vector<2x1x6x32xf32>,
    %cst_41 = arith.constant 0.000000e+00 : f32
    %18 = vector.broadcast %cst_41 : f32 to vector<2x1x6x32xf32>
    %c0_42 = arith.constant 0 : index
    %c5 = arith.constant 5 : index
    %c0_43 = arith.constant 0 : index
    %c0_44 = arith.constant 0 : index
    %19 = vector.load %arg23[%c0_42, %c5, %c0_43, %c0_44] : memref<2x6x6x32xf32, #tpu.memory_space<vmem>>, vector<2x1x6x32xf32>
    tpu.vector_store %arg23[%c0_42, %c5, %c0_43, %c0_44], %18 {strides = array<i32>} : memref<2x6x6x32xf32, #tpu.memory_space<vmem>>, vector<2x1x6x32xf32>,
    %cst_45 = arith.constant 0.000000e+00 : f32
    %20 = vector.broadcast %cst_45 : f32 to vector<2x6x1x32xf32>
    %c0_46 = arith.constant 0 : index
    %c0_47 = arith.constant 0 : index
    %c0_48 = arith.constant 0 : index
    %c0_49 = arith.constant 0 : index
    %21 = vector.load %arg23[%c0_46, %c0_47, %c0_48, %c0_49] : memref<2x6x6x32xf32, #tpu.memory_space<vmem>>, vector<2x6x1x32xf32>
    tpu.vector_store %arg23[%c0_46, %c0_47, %c0_48, %c0_49], %20 {strides = array<i32>} : memref<2x6x6x32xf32, #tpu.memory_space<vmem>>, vector<2x6x1x32xf32>,
    %cst_50 = arith.constant 0.000000e+00 : f32
    %22 = vector.broadcast %cst_50 : f32 to vector<2x6x1x32xf32>
    %c0_51 = arith.constant 0 : index
    %c0_52 = arith.constant 0 : index
    %c5_53 = arith.constant 5 : index
    %c0_54 = arith.constant 0 : index
    %23 = vector.load %arg23[%c0_51, %c0_52, %c5_53, %c0_54] : memref<2x6x6x32xf32, #tpu.memory_space<vmem>>, vector<2x6x1x32xf32>
    tpu.vector_store %arg23[%c0_51, %c0_52, %c5_53, %c0_54], %22 {strides = array<i32>} : memref<2x6x6x32xf32, #tpu.memory_space<vmem>>, vector<2x6x1x32xf32>,
    %cst_55 = arith.constant 0.000000e+00 : f32
    %24 = vector.broadcast %cst_55 : f32 to vector<2x1x4x64xf32>
    %c0_56 = arith.constant 0 : index
    %c0_57 = arith.constant 0 : index
    %c0_58 = arith.constant 0 : index
    %c0_59 = arith.constant 0 : index
    %25 = vector.load %arg24[%c0_56, %c0_57, %c0_58, %c0_59] : memref<2x4x4x64xf32, #tpu.memory_space<vmem>>, vector<2x1x4x64xf32>
    tpu.vector_store %arg24[%c0_56, %c0_57, %c0_58, %c0_59], %24 {strides = array<i32>} : memref<2x4x4x64xf32, #tpu.memory_space<vmem>>, vector<2x1x4x64xf32>,
    %cst_60 = arith.constant 0.000000e+00 : f32
    %26 = vector.broadcast %cst_60 : f32 to vector<2x1x4x64xf32>
    %c0_61 = arith.constant 0 : index
    %c3 = arith.constant 3 : index
    %c0_62 = arith.constant 0 : index
    %c0_63 = arith.constant 0 : index
    %27 = vector.load %arg24[%c0_61, %c3, %c0_62, %c0_63] : memref<2x4x4x64xf32, #tpu.memory_space<vmem>>, vector<2x1x4x64xf32>
    tpu.vector_store %arg24[%c0_61, %c3, %c0_62, %c0_63], %26 {strides = array<i32>} : memref<2x4x4x64xf32, #tpu.memory_space<vmem>>, vector<2x1x4x64xf32>,
    %cst_64 = arith.constant 0.000000e+00 : f32
    %28 = vector.broadcast %cst_64 : f32 to vector<2x4x1x64xf32>
    %c0_65 = arith.constant 0 : index
    %c0_66 = arith.constant 0 : index
    %c0_67 = arith.constant 0 : index
    %c0_68 = arith.constant 0 : index
    %29 = vector.load %arg24[%c0_65, %c0_66, %c0_67, %c0_68] : memref<2x4x4x64xf32, #tpu.memory_space<vmem>>, vector<2x4x1x64xf32>
    tpu.vector_store %arg24[%c0_65, %c0_66, %c0_67, %c0_68], %28 {strides = array<i32>} : memref<2x4x4x64xf32, #tpu.memory_space<vmem>>, vector<2x4x1x64xf32>,
    %cst_69 = arith.constant 0.000000e+00 : f32
    %30 = vector.broadcast %cst_69 : f32 to vector<2x4x1x64xf32>
    %c0_70 = arith.constant 0 : index
    %c0_71 = arith.constant 0 : index
    %c3_72 = arith.constant 3 : index
    %c0_73 = arith.constant 0 : index
    %31 = vector.load %arg24[%c0_70, %c0_71, %c3_72, %c0_73] : memref<2x4x4x64xf32, #tpu.memory_space<vmem>>, vector<2x4x1x64xf32>
    tpu.vector_store %arg24[%c0_70, %c0_71, %c3_72, %c0_73], %30 {strides = array<i32>} : memref<2x4x4x64xf32, #tpu.memory_space<vmem>>, vector<2x4x1x64xf32>,
    %c0_74 = arith.constant 0 : index
    %c0_75 = arith.constant 0 : index
    %c0_76 = arith.constant 0 : index
    %32 = vector.load %arg1[%c0_74, %c0_75, %c0_76] : memref<2x256x27xf32, #tpu.memory_space<vmem>>, vector<2x256x27xf32>
    %33 = vector.shape_cast %32 : vector<2x256x27xf32> to vector<512x27xf32>
    %c0_77 = arith.constant 0 : index
    %c0_78 = arith.constant 0 : index
    %34 = vector.load %arg2[%c0_77, %c0_78] : memref<27x8xf32, #tpu.memory_space<vmem>>, vector<27x8xf32>
    %cst_79 = arith.constant dense<0.000000e+00> : vector<512x8xf32>
    %35 = tpu.matmul %33, %34, %cst_79 {dimension_numbers = #tpu.dot_dimension_numbers<[1], [0], [0], [1], [0, 0, 1, 1], [], []>} : vector<512x27xf32>, vector<27x8xf32>, vector<512x8xf32> -> vector<512x8xf32>
    %c0_80 = arith.constant 0 : index
    %c0_81 = arith.constant 0 : index
    %36 = vector.load %arg3[%c0_80, %c0_81] : memref<1x8xf32, #tpu.memory_space<vmem>>, vector<1x8xf32>
    %37 = vector.broadcast %36 : vector<1x8xf32> to vector<512x8xf32>
    %38 = arith.addf %35, %37 : vector<512x8xf32>
    %cst_82 = arith.constant 0.000000e+00 : f32
    %39 = vector.broadcast %cst_82 : f32 to vector<512x8xf32>
    %40 = arith.maximumf %38, %39 : vector<512x8xf32>
    %41 = vector.shape_cast %40 : vector<512x8xf32> to vector<2x16x16x8xf32>
    %c0_83 = arith.constant 0 : index
    %c1 = arith.constant 1 : index
    %c1_84 = arith.constant 1 : index
    %c0_85 = arith.constant 0 : index
    %42 = vector.load %arg21[%c0_83, %c1, %c1_84, %c0_85] : memref<2x18x18x8xf32, #tpu.memory_space<vmem>>, vector<2x16x16x8xf32>
    tpu.vector_store %arg21[%c0_83, %c1, %c1_84, %c0_85], %41 {strides = array<i32>} : memref<2x18x18x8xf32, #tpu.memory_space<vmem>>, vector<2x16x16x8xf32>,
    %cst_86 = arith.constant 0.000000e+00 : f32
    %43 = vector.broadcast %cst_86 : f32 to vector<128x16xf32>
    %c0_87 = arith.constant 0 : index
    %c0_88 = arith.constant 0 : index
    %c0_89 = arith.constant 0 : index
    %c0_90 = arith.constant 0 : index
    %44 = tpu.strided_load %arg21[%c0_87, %c0_88, %c0_89, %c0_90] {strides = array<i32: 1, 2, 2, 1>} : memref<2x18x18x8xf32, #tpu.memory_space<vmem>>, vector<2x8x8x8xf32>
    %45 = vector.shape_cast %44 : vector<2x8x8x8xf32> to vector<128x8xf32>
    %c0_91 = arith.constant 0 : index
    %c0_92 = arith.constant 0 : index
    %c0_93 = arith.constant 0 : index
    %46 = vector.load %arg4[%c0_91, %c0_92, %c0_93] : memref<9x8x16xf32, #tpu.memory_space<vmem>>, vector<1x8x16xf32>
    %47 = vector.shape_cast %46 : vector<1x8x16xf32> to vector<8x16xf32>
    %cst_94 = arith.constant dense<0.000000e+00> : vector<128x16xf32>
    %48 = tpu.matmul %45, %47, %cst_94 {dimension_numbers = #tpu.dot_dimension_numbers<[1], [0], [0], [1], [0, 0, 1, 1], [], []>} : vector<128x8xf32>, vector<8x16xf32>, vector<128x16xf32> -> vector<128x16xf32>
    %49 = arith.addf %43, %48 : vector<128x16xf32>
    %c0_95 = arith.constant 0 : index
    %c0_96 = arith.constant 0 : index
    %c1_97 = arith.constant 1 : index
    %c0_98 = arith.constant 0 : index
    %50 = tpu.strided_load %arg21[%c0_95, %c0_96, %c1_97, %c0_98] {strides = array<i32: 1, 2, 2, 1>} : memref<2x18x18x8xf32, #tpu.memory_space<vmem>>, vector<2x8x8x8xf32>
    %51 = vector.shape_cast %50 : vector<2x8x8x8xf32> to vector<128x8xf32>
    %c1_99 = arith.constant 1 : index
    %c0_100 = arith.constant 0 : index
    %c0_101 = arith.constant 0 : index
    %52 = vector.load %arg4[%c1_99, %c0_100, %c0_101] : memref<9x8x16xf32, #tpu.memory_space<vmem>>, vector<1x8x16xf32>
    %53 = vector.shape_cast %52 : vector<1x8x16xf32> to vector<8x16xf32>
    %cst_102 = arith.constant dense<0.000000e+00> : vector<128x16xf32>
    %54 = tpu.matmul %51, %53, %cst_102 {dimension_numbers = #tpu.dot_dimension_numbers<[1], [0], [0], [1], [0, 0, 1, 1], [], []>} : vector<128x8xf32>, vector<8x16xf32>, vector<128x16xf32> -> vector<128x16xf32>
    %55 = arith.addf %49, %54 : vector<128x16xf32>
    %c0_103 = arith.constant 0 : index
    %c0_104 = arith.constant 0 : index
    %c2 = arith.constant 2 : index
    %c0_105 = arith.constant 0 : index
    %56 = tpu.strided_load %arg21[%c0_103, %c0_104, %c2, %c0_105] {strides = array<i32: 1, 2, 2, 1>} : memref<2x18x18x8xf32, #tpu.memory_space<vmem>>, vector<2x8x8x8xf32>
    %57 = vector.shape_cast %56 : vector<2x8x8x8xf32> to vector<128x8xf32>
    %c2_106 = arith.constant 2 : index
    %c0_107 = arith.constant 0 : index
    %c0_108 = arith.constant 0 : index
    %58 = vector.load %arg4[%c2_106, %c0_107, %c0_108] : memref<9x8x16xf32, #tpu.memory_space<vmem>>, vector<1x8x16xf32>
    %59 = vector.shape_cast %58 : vector<1x8x16xf32> to vector<8x16xf32>
    %cst_109 = arith.constant dense<0.000000e+00> : vector<128x16xf32>
    %60 = tpu.matmul %57, %59, %cst_109 {dimension_numbers = #tpu.dot_dimension_numbers<[1], [0], [0], [1], [0, 0, 1, 1], [], []>} : vector<128x8xf32>, vector<8x16xf32>, vector<128x16xf32> -> vector<128x16xf32>
    %61 = arith.addf %55, %60 : vector<128x16xf32>
    %c0_110 = arith.constant 0 : index
    %c1_111 = arith.constant 1 : index
    %c0_112 = arith.constant 0 : index
    %c0_113 = arith.constant 0 : index
    %62 = tpu.strided_load %arg21[%c0_110, %c1_111, %c0_112, %c0_113] {strides = array<i32: 1, 2, 2, 1>} : memref<2x18x18x8xf32, #tpu.memory_space<vmem>>, vector<2x8x8x8xf32>
    %63 = vector.shape_cast %62 : vector<2x8x8x8xf32> to vector<128x8xf32>
    %c3_114 = arith.constant 3 : index
    %c0_115 = arith.constant 0 : index
    %c0_116 = arith.constant 0 : index
    %64 = vector.load %arg4[%c3_114, %c0_115, %c0_116] : memref<9x8x16xf32, #tpu.memory_space<vmem>>, vector<1x8x16xf32>
    %65 = vector.shape_cast %64 : vector<1x8x16xf32> to vector<8x16xf32>
    %cst_117 = arith.constant dense<0.000000e+00> : vector<128x16xf32>
    %66 = tpu.matmul %63, %65, %cst_117 {dimension_numbers = #tpu.dot_dimension_numbers<[1], [0], [0], [1], [0, 0, 1, 1], [], []>} : vector<128x8xf32>, vector<8x16xf32>, vector<128x16xf32> -> vector<128x16xf32>
    %67 = arith.addf %61, %66 : vector<128x16xf32>
    %c0_118 = arith.constant 0 : index
    %c1_119 = arith.constant 1 : index
    %c1_120 = arith.constant 1 : index
    %c0_121 = arith.constant 0 : index
    %68 = tpu.strided_load %arg21[%c0_118, %c1_119, %c1_120, %c0_121] {strides = array<i32: 1, 2, 2, 1>} : memref<2x18x18x8xf32, #tpu.memory_space<vmem>>, vector<2x8x8x8xf32>
    %69 = vector.shape_cast %68 : vector<2x8x8x8xf32> to vector<128x8xf32>
    %c4 = arith.constant 4 : index
    %c0_122 = arith.constant 0 : index
    %c0_123 = arith.constant 0 : index
    %70 = vector.load %arg4[%c4, %c0_122, %c0_123] : memref<9x8x16xf32, #tpu.memory_space<vmem>>, vector<1x8x16xf32>
    %71 = vector.shape_cast %70 : vector<1x8x16xf32> to vector<8x16xf32>
    %cst_124 = arith.constant dense<0.000000e+00> : vector<128x16xf32>
    %72 = tpu.matmul %69, %71, %cst_124 {dimension_numbers = #tpu.dot_dimension_numbers<[1], [0], [0], [1], [0, 0, 1, 1], [], []>} : vector<128x8xf32>, vector<8x16xf32>, vector<128x16xf32> -> vector<128x16xf32>
    %73 = arith.addf %67, %72 : vector<128x16xf32>
    %c0_125 = arith.constant 0 : index
    %c1_126 = arith.constant 1 : index
    %c2_127 = arith.constant 2 : index
    %c0_128 = arith.constant 0 : index
    %74 = tpu.strided_load %arg21[%c0_125, %c1_126, %c2_127, %c0_128] {strides = array<i32: 1, 2, 2, 1>} : memref<2x18x18x8xf32, #tpu.memory_space<vmem>>, vector<2x8x8x8xf32>
    %75 = vector.shape_cast %74 : vector<2x8x8x8xf32> to vector<128x8xf32>
    %c5_129 = arith.constant 5 : index
    %c0_130 = arith.constant 0 : index
    %c0_131 = arith.constant 0 : index
    %76 = vector.load %arg4[%c5_129, %c0_130, %c0_131] : memref<9x8x16xf32, #tpu.memory_space<vmem>>, vector<1x8x16xf32>
    %77 = vector.shape_cast %76 : vector<1x8x16xf32> to vector<8x16xf32>
    %cst_132 = arith.constant dense<0.000000e+00> : vector<128x16xf32>
    %78 = tpu.matmul %75, %77, %cst_132 {dimension_numbers = #tpu.dot_dimension_numbers<[1], [0], [0], [1], [0, 0, 1, 1], [], []>} : vector<128x8xf32>, vector<8x16xf32>, vector<128x16xf32> -> vector<128x16xf32>
    %79 = arith.addf %73, %78 : vector<128x16xf32>
    %c0_133 = arith.constant 0 : index
    %c2_134 = arith.constant 2 : index
    %c0_135 = arith.constant 0 : index
    %c0_136 = arith.constant 0 : index
    %80 = tpu.strided_load %arg21[%c0_133, %c2_134, %c0_135, %c0_136] {strides = array<i32: 1, 2, 2, 1>} : memref<2x18x18x8xf32, #tpu.memory_space<vmem>>, vector<2x8x8x8xf32>
    %81 = vector.shape_cast %80 : vector<2x8x8x8xf32> to vector<128x8xf32>
    %c6 = arith.constant 6 : index
    %c0_137 = arith.constant 0 : index
    %c0_138 = arith.constant 0 : index
    %82 = vector.load %arg4[%c6, %c0_137, %c0_138] : memref<9x8x16xf32, #tpu.memory_space<vmem>>, vector<1x8x16xf32>
    %83 = vector.shape_cast %82 : vector<1x8x16xf32> to vector<8x16xf32>
    %cst_139 = arith.constant dense<0.000000e+00> : vector<128x16xf32>
    %84 = tpu.matmul %81, %83, %cst_139 {dimension_numbers = #tpu.dot_dimension_numbers<[1], [0], [0], [1], [0, 0, 1, 1], [], []>} : vector<128x8xf32>, vector<8x16xf32>, vector<128x16xf32> -> vector<128x16xf32>
    %85 = arith.addf %79, %84 : vector<128x16xf32>
    %c0_140 = arith.constant 0 : index
    %c2_141 = arith.constant 2 : index
    %c1_142 = arith.constant 1 : index
    %c0_143 = arith.constant 0 : index
    %86 = tpu.strided_load %arg21[%c0_140, %c2_141, %c1_142, %c0_143] {strides = array<i32: 1, 2, 2, 1>} : memref<2x18x18x8xf32, #tpu.memory_space<vmem>>, vector<2x8x8x8xf32>
    %87 = vector.shape_cast %86 : vector<2x8x8x8xf32> to vector<128x8xf32>
    %c7 = arith.constant 7 : index
    %c0_144 = arith.constant 0 : index
    %c0_145 = arith.constant 0 : index
    %88 = vector.load %arg4[%c7, %c0_144, %c0_145] : memref<9x8x16xf32, #tpu.memory_space<vmem>>, vector<1x8x16xf32>
    %89 = vector.shape_cast %88 : vector<1x8x16xf32> to vector<8x16xf32>
    %cst_146 = arith.constant dense<0.000000e+00> : vector<128x16xf32>
    %90 = tpu.matmul %87, %89, %cst_146 {dimension_numbers = #tpu.dot_dimension_numbers<[1], [0], [0], [1], [0, 0, 1, 1], [], []>} : vector<128x8xf32>, vector<8x16xf32>, vector<128x16xf32> -> vector<128x16xf32>
    %91 = arith.addf %85, %90 : vector<128x16xf32>
    %c0_147 = arith.constant 0 : index
    %c2_148 = arith.constant 2 : index
    %c2_149 = arith.constant 2 : index
    %c0_150 = arith.constant 0 : index
    %92 = tpu.strided_load %arg21[%c0_147, %c2_148, %c2_149, %c0_150] {strides = array<i32: 1, 2, 2, 1>} : memref<2x18x18x8xf32, #tpu.memory_space<vmem>>, vector<2x8x8x8xf32>
    %93 = vector.shape_cast %92 : vector<2x8x8x8xf32> to vector<128x8xf32>
    %c8 = arith.constant 8 : index
    %c0_151 = arith.constant 0 : index
    %c0_152 = arith.constant 0 : index
    %94 = vector.load %arg4[%c8, %c0_151, %c0_152] : memref<9x8x16xf32, #tpu.memory_space<vmem>>, vector<1x8x16xf32>
    %95 = vector.shape_cast %94 : vector<1x8x16xf32> to vector<8x16xf32>
    %cst_153 = arith.constant dense<0.000000e+00> : vector<128x16xf32>
    %96 = tpu.matmul %93, %95, %cst_153 {dimension_numbers = #tpu.dot_dimension_numbers<[1], [0], [0], [1], [0, 0, 1, 1], [], []>} : vector<128x8xf32>, vector<8x16xf32>, vector<128x16xf32> -> vector<128x16xf32>
    %97 = arith.addf %91, %96 : vector<128x16xf32>
    %c0_154 = arith.constant 0 : index
    %c0_155 = arith.constant 0 : index
    %98 = vector.load %arg5[%c0_154, %c0_155] : memref<1x16xf32, #tpu.memory_space<vmem>>, vector<1x16xf32>
    %99 = vector.broadcast %98 : vector<1x16xf32> to vector<128x16xf32>
    %100 = arith.addf %97, %99 : vector<128x16xf32>
    %cst_156 = arith.constant 0.000000e+00 : f32
    %101 = vector.broadcast %cst_156 : f32 to vector<128x16xf32>
    %102 = arith.maximumf %100, %101 : vector<128x16xf32>
    %103 = vector.shape_cast %102 : vector<128x16xf32> to vector<2x8x8x16xf32>
    %c0_157 = arith.constant 0 : index
    %c1_158 = arith.constant 1 : index
    %c1_159 = arith.constant 1 : index
    %c0_160 = arith.constant 0 : index
    %104 = vector.load %arg22[%c0_157, %c1_158, %c1_159, %c0_160] : memref<2x10x10x16xf32, #tpu.memory_space<vmem>>, vector<2x8x8x16xf32>
    tpu.vector_store %arg22[%c0_157, %c1_158, %c1_159, %c0_160], %103 {strides = array<i32>} : memref<2x10x10x16xf32, #tpu.memory_space<vmem>>, vector<2x8x8x16xf32>,
    %cst_161 = arith.constant 0.000000e+00 : f32
    %105 = vector.broadcast %cst_161 : f32 to vector<128x16xf32>
    %c0_162 = arith.constant 0 : index
    %c0_163 = arith.constant 0 : index
    %c0_164 = arith.constant 0 : index
    %c0_165 = arith.constant 0 : index
    %106 = vector.load %arg22[%c0_162, %c0_163, %c0_164, %c0_165] : memref<2x10x10x16xf32, #tpu.memory_space<vmem>>, vector<2x8x8x16xf32>
    %107 = vector.shape_cast %106 : vector<2x8x8x16xf32> to vector<128x16xf32>
    %c0_166 = arith.constant 0 : index
    %c0_167 = arith.constant 0 : index
    %c0_168 = arith.constant 0 : index
    %108 = vector.load %arg6[%c0_166, %c0_167, %c0_168] : memref<9x16x16xf32, #tpu.memory_space<vmem>>, vector<1x16x16xf32>
    %109 = vector.shape_cast %108 : vector<1x16x16xf32> to vector<16x16xf32>
    %cst_169 = arith.constant dense<0.000000e+00> : vector<128x16xf32>
    %110 = tpu.matmul %107, %109, %cst_169 {dimension_numbers = #tpu.dot_dimension_numbers<[1], [0], [0], [1], [0, 0, 1, 1], [], []>} : vector<128x16xf32>, vector<16x16xf32>, vector<128x16xf32> -> vector<128x16xf32>
    %111 = arith.addf %105, %110 : vector<128x16xf32>
    %c0_170 = arith.constant 0 : index
    %c0_171 = arith.constant 0 : index
    %c1_172 = arith.constant 1 : index
    %c0_173 = arith.constant 0 : index
    %112 = vector.load %arg22[%c0_170, %c0_171, %c1_172, %c0_173] : memref<2x10x10x16xf32, #tpu.memory_space<vmem>>, vector<2x8x8x16xf32>
    %113 = vector.shape_cast %112 : vector<2x8x8x16xf32> to vector<128x16xf32>
    %c1_174 = arith.constant 1 : index
    %c0_175 = arith.constant 0 : index
    %c0_176 = arith.constant 0 : index
    %114 = vector.load %arg6[%c1_174, %c0_175, %c0_176] : memref<9x16x16xf32, #tpu.memory_space<vmem>>, vector<1x16x16xf32>
    %115 = vector.shape_cast %114 : vector<1x16x16xf32> to vector<16x16xf32>
    %cst_177 = arith.constant dense<0.000000e+00> : vector<128x16xf32>
    %116 = tpu.matmul %113, %115, %cst_177 {dimension_numbers = #tpu.dot_dimension_numbers<[1], [0], [0], [1], [0, 0, 1, 1], [], []>} : vector<128x16xf32>, vector<16x16xf32>, vector<128x16xf32> -> vector<128x16xf32>
    %117 = arith.addf %111, %116 : vector<128x16xf32>
    %c0_178 = arith.constant 0 : index
    %c0_179 = arith.constant 0 : index
    %c2_180 = arith.constant 2 : index
    %c0_181 = arith.constant 0 : index
    %118 = vector.load %arg22[%c0_178, %c0_179, %c2_180, %c0_181] : memref<2x10x10x16xf32, #tpu.memory_space<vmem>>, vector<2x8x8x16xf32>
    %119 = vector.shape_cast %118 : vector<2x8x8x16xf32> to vector<128x16xf32>
    %c2_182 = arith.constant 2 : index
    %c0_183 = arith.constant 0 : index
    %c0_184 = arith.constant 0 : index
    %120 = vector.load %arg6[%c2_182, %c0_183, %c0_184] : memref<9x16x16xf32, #tpu.memory_space<vmem>>, vector<1x16x16xf32>
    %121 = vector.shape_cast %120 : vector<1x16x16xf32> to vector<16x16xf32>
    %cst_185 = arith.constant dense<0.000000e+00> : vector<128x16xf32>
    %122 = tpu.matmul %119, %121, %cst_185 {dimension_numbers = #tpu.dot_dimension_numbers<[1], [0], [0], [1], [0, 0, 1, 1], [], []>} : vector<128x16xf32>, vector<16x16xf32>, vector<128x16xf32> -> vector<128x16xf32>
    %123 = arith.addf %117, %122 : vector<128x16xf32>
    %c0_186 = arith.constant 0 : index
    %c1_187 = arith.constant 1 : index
    %c0_188 = arith.constant 0 : index
    %c0_189 = arith.constant 0 : index
    %124 = vector.load %arg22[%c0_186, %c1_187, %c0_188, %c0_189] : memref<2x10x10x16xf32, #tpu.memory_space<vmem>>, vector<2x8x8x16xf32>
    %125 = vector.shape_cast %124 : vector<2x8x8x16xf32> to vector<128x16xf32>
    %c3_190 = arith.constant 3 : index
    %c0_191 = arith.constant 0 : index
    %c0_192 = arith.constant 0 : index
    %126 = vector.load %arg6[%c3_190, %c0_191, %c0_192] : memref<9x16x16xf32, #tpu.memory_space<vmem>>, vector<1x16x16xf32>
    %127 = vector.shape_cast %126 : vector<1x16x16xf32> to vector<16x16xf32>
    %cst_193 = arith.constant dense<0.000000e+00> : vector<128x16xf32>
    %128 = tpu.matmul %125, %127, %cst_193 {dimension_numbers = #tpu.dot_dimension_numbers<[1], [0], [0], [1], [0, 0, 1, 1], [], []>} : vector<128x16xf32>, vector<16x16xf32>, vector<128x16xf32> -> vector<128x16xf32>
    %129 = arith.addf %123, %128 : vector<128x16xf32>
    %c0_194 = arith.constant 0 : index
    %c1_195 = arith.constant 1 : index
    %c1_196 = arith.constant 1 : index
    %c0_197 = arith.constant 0 : index
    %130 = vector.load %arg22[%c0_194, %c1_195, %c1_196, %c0_197] : memref<2x10x10x16xf32, #tpu.memory_space<vmem>>, vector<2x8x8x16xf32>
    %131 = vector.shape_cast %130 : vector<2x8x8x16xf32> to vector<128x16xf32>
    %c4_198 = arith.constant 4 : index
    %c0_199 = arith.constant 0 : index
    %c0_200 = arith.constant 0 : index
    %132 = vector.load %arg6[%c4_198, %c0_199, %c0_200] : memref<9x16x16xf32, #tpu.memory_space<vmem>>, vector<1x16x16xf32>
    %133 = vector.shape_cast %132 : vector<1x16x16xf32> to vector<16x16xf32>
    %cst_201 = arith.constant dense<0.000000e+00> : vector<128x16xf32>
    %134 = tpu.matmul %131, %133, %cst_201 {dimension_numbers = #tpu.dot_dimension_numbers<[1], [0], [0], [1], [0, 0, 1, 1], [], []>} : vector<128x16xf32>, vector<16x16xf32>, vector<128x16xf32> -> vector<128x16xf32>
    %135 = arith.addf %129, %134 : vector<128x16xf32>
    %c0_202 = arith.constant 0 : index
    %c1_203 = arith.constant 1 : index
    %c2_204 = arith.constant 2 : index
    %c0_205 = arith.constant 0 : index
    %136 = vector.load %arg22[%c0_202, %c1_203, %c2_204, %c0_205] : memref<2x10x10x16xf32, #tpu.memory_space<vmem>>, vector<2x8x8x16xf32>
    %137 = vector.shape_cast %136 : vector<2x8x8x16xf32> to vector<128x16xf32>
    %c5_206 = arith.constant 5 : index
    %c0_207 = arith.constant 0 : index
    %c0_208 = arith.constant 0 : index
    %138 = vector.load %arg6[%c5_206, %c0_207, %c0_208] : memref<9x16x16xf32, #tpu.memory_space<vmem>>, vector<1x16x16xf32>
    %139 = vector.shape_cast %138 : vector<1x16x16xf32> to vector<16x16xf32>
    %cst_209 = arith.constant dense<0.000000e+00> : vector<128x16xf32>
    %140 = tpu.matmul %137, %139, %cst_209 {dimension_numbers = #tpu.dot_dimension_numbers<[1], [0], [0], [1], [0, 0, 1, 1], [], []>} : vector<128x16xf32>, vector<16x16xf32>, vector<128x16xf32> -> vector<128x16xf32>
    %141 = arith.addf %135, %140 : vector<128x16xf32>
    %c0_210 = arith.constant 0 : index
    %c2_211 = arith.constant 2 : index
    %c0_212 = arith.constant 0 : index
    %c0_213 = arith.constant 0 : index
    %142 = vector.load %arg22[%c0_210, %c2_211, %c0_212, %c0_213] : memref<2x10x10x16xf32, #tpu.memory_space<vmem>>, vector<2x8x8x16xf32>
    %143 = vector.shape_cast %142 : vector<2x8x8x16xf32> to vector<128x16xf32>
    %c6_214 = arith.constant 6 : index
    %c0_215 = arith.constant 0 : index
    %c0_216 = arith.constant 0 : index
    %144 = vector.load %arg6[%c6_214, %c0_215, %c0_216] : memref<9x16x16xf32, #tpu.memory_space<vmem>>, vector<1x16x16xf32>
    %145 = vector.shape_cast %144 : vector<1x16x16xf32> to vector<16x16xf32>
    %cst_217 = arith.constant dense<0.000000e+00> : vector<128x16xf32>
    %146 = tpu.matmul %143, %145, %cst_217 {dimension_numbers = #tpu.dot_dimension_numbers<[1], [0], [0], [1], [0, 0, 1, 1], [], []>} : vector<128x16xf32>, vector<16x16xf32>, vector<128x16xf32> -> vector<128x16xf32>
    %147 = arith.addf %141, %146 : vector<128x16xf32>
    %c0_218 = arith.constant 0 : index
    %c2_219 = arith.constant 2 : index
    %c1_220 = arith.constant 1 : index
    %c0_221 = arith.constant 0 : index
    %148 = vector.load %arg22[%c0_218, %c2_219, %c1_220, %c0_221] : memref<2x10x10x16xf32, #tpu.memory_space<vmem>>, vector<2x8x8x16xf32>
    %149 = vector.shape_cast %148 : vector<2x8x8x16xf32> to vector<128x16xf32>
    %c7_222 = arith.constant 7 : index
    %c0_223 = arith.constant 0 : index
    %c0_224 = arith.constant 0 : index
    %150 = vector.load %arg6[%c7_222, %c0_223, %c0_224] : memref<9x16x16xf32, #tpu.memory_space<vmem>>, vector<1x16x16xf32>
    %151 = vector.shape_cast %150 : vector<1x16x16xf32> to vector<16x16xf32>
    %cst_225 = arith.constant dense<0.000000e+00> : vector<128x16xf32>
    %152 = tpu.matmul %149, %151, %cst_225 {dimension_numbers = #tpu.dot_dimension_numbers<[1], [0], [0], [1], [0, 0, 1, 1], [], []>} : vector<128x16xf32>, vector<16x16xf32>, vector<128x16xf32> -> vector<128x16xf32>
    %153 = arith.addf %147, %152 : vector<128x16xf32>
    %c0_226 = arith.constant 0 : index
    %c2_227 = arith.constant 2 : index
    %c2_228 = arith.constant 2 : index
    %c0_229 = arith.constant 0 : index
    %154 = vector.load %arg22[%c0_226, %c2_227, %c2_228, %c0_229] : memref<2x10x10x16xf32, #tpu.memory_space<vmem>>, vector<2x8x8x16xf32>
    %155 = vector.shape_cast %154 : vector<2x8x8x16xf32> to vector<128x16xf32>
    %c8_230 = arith.constant 8 : index
    %c0_231 = arith.constant 0 : index
    %c0_232 = arith.constant 0 : index
    %156 = vector.load %arg6[%c8_230, %c0_231, %c0_232] : memref<9x16x16xf32, #tpu.memory_space<vmem>>, vector<1x16x16xf32>
    %157 = vector.shape_cast %156 : vector<1x16x16xf32> to vector<16x16xf32>
    %cst_233 = arith.constant dense<0.000000e+00> : vector<128x16xf32>
    %158 = tpu.matmul %155, %157, %cst_233 {dimension_numbers = #tpu.dot_dimension_numbers<[1], [0], [0], [1], [0, 0, 1, 1], [], []>} : vector<128x16xf32>, vector<16x16xf32>, vector<128x16xf32> -> vector<128x16xf32>
    %159 = arith.addf %153, %158 : vector<128x16xf32>
    %c0_234 = arith.constant 0 : index
    %c0_235 = arith.constant 0 : index
    %160 = vector.load %arg7[%c0_234, %c0_235] : memref<1x16xf32, #tpu.memory_space<vmem>>, vector<1x16xf32>
    %161 = vector.broadcast %160 : vector<1x16xf32> to vector<128x16xf32>
    %162 = arith.addf %159, %161 : vector<128x16xf32>
    %cst_236 = arith.constant 0.000000e+00 : f32
    %163 = vector.broadcast %cst_236 : f32 to vector<128x16xf32>
    %164 = arith.maximumf %162, %163 : vector<128x16xf32>
    %165 = vector.shape_cast %164 : vector<128x16xf32> to vector<2x8x8x16xf32>
    %c0_237 = arith.constant 0 : index
    %c1_238 = arith.constant 1 : index
    %c1_239 = arith.constant 1 : index
    %c0_240 = arith.constant 0 : index
    %166 = vector.load %arg22[%c0_237, %c1_238, %c1_239, %c0_240] : memref<2x10x10x16xf32, #tpu.memory_space<vmem>>, vector<2x8x8x16xf32>
    tpu.vector_store %arg22[%c0_237, %c1_238, %c1_239, %c0_240], %165 {strides = array<i32>} : memref<2x10x10x16xf32, #tpu.memory_space<vmem>>, vector<2x8x8x16xf32>,
    %cst_241 = arith.constant 0.000000e+00 : f32
    %167 = vector.broadcast %cst_241 : f32 to vector<32x32xf32>
    %c0_242 = arith.constant 0 : index
    %c0_243 = arith.constant 0 : index
    %c0_244 = arith.constant 0 : index
    %c0_245 = arith.constant 0 : index
    %168 = tpu.strided_load %arg22[%c0_242, %c0_243, %c0_244, %c0_245] {strides = array<i32: 1, 2, 2, 1>} : memref<2x10x10x16xf32, #tpu.memory_space<vmem>>, vector<2x4x4x16xf32>
    %169 = vector.shape_cast %168 : vector<2x4x4x16xf32> to vector<32x16xf32>
    %c0_246 = arith.constant 0 : index
    %c0_247 = arith.constant 0 : index
    %c0_248 = arith.constant 0 : index
    %170 = vector.load %arg8[%c0_246, %c0_247, %c0_248] : memref<9x16x32xf32, #tpu.memory_space<vmem>>, vector<1x16x32xf32>
    %171 = vector.shape_cast %170 : vector<1x16x32xf32> to vector<16x32xf32>
    %cst_249 = arith.constant dense<0.000000e+00> : vector<32x32xf32>
    %172 = tpu.matmul %169, %171, %cst_249 {dimension_numbers = #tpu.dot_dimension_numbers<[1], [0], [0], [1], [0, 0, 1, 1], [], []>} : vector<32x16xf32>, vector<16x32xf32>, vector<32x32xf32> -> vector<32x32xf32>
    %173 = arith.addf %167, %172 : vector<32x32xf32>
    %c0_250 = arith.constant 0 : index
    %c0_251 = arith.constant 0 : index
    %c1_252 = arith.constant 1 : index
    %c0_253 = arith.constant 0 : index
    %174 = tpu.strided_load %arg22[%c0_250, %c0_251, %c1_252, %c0_253] {strides = array<i32: 1, 2, 2, 1>} : memref<2x10x10x16xf32, #tpu.memory_space<vmem>>, vector<2x4x4x16xf32>
    %175 = vector.shape_cast %174 : vector<2x4x4x16xf32> to vector<32x16xf32>
    %c1_254 = arith.constant 1 : index
    %c0_255 = arith.constant 0 : index
    %c0_256 = arith.constant 0 : index
    %176 = vector.load %arg8[%c1_254, %c0_255, %c0_256] : memref<9x16x32xf32, #tpu.memory_space<vmem>>, vector<1x16x32xf32>
    %177 = vector.shape_cast %176 : vector<1x16x32xf32> to vector<16x32xf32>
    %cst_257 = arith.constant dense<0.000000e+00> : vector<32x32xf32>
    %178 = tpu.matmul %175, %177, %cst_257 {dimension_numbers = #tpu.dot_dimension_numbers<[1], [0], [0], [1], [0, 0, 1, 1], [], []>} : vector<32x16xf32>, vector<16x32xf32>, vector<32x32xf32> -> vector<32x32xf32>
    %179 = arith.addf %173, %178 : vector<32x32xf32>
    %c0_258 = arith.constant 0 : index
    %c0_259 = arith.constant 0 : index
    %c2_260 = arith.constant 2 : index
    %c0_261 = arith.constant 0 : index
    %180 = tpu.strided_load %arg22[%c0_258, %c0_259, %c2_260, %c0_261] {strides = array<i32: 1, 2, 2, 1>} : memref<2x10x10x16xf32, #tpu.memory_space<vmem>>, vector<2x4x4x16xf32>
    %181 = vector.shape_cast %180 : vector<2x4x4x16xf32> to vector<32x16xf32>
    %c2_262 = arith.constant 2 : index
    %c0_263 = arith.constant 0 : index
    %c0_264 = arith.constant 0 : index
    %182 = vector.load %arg8[%c2_262, %c0_263, %c0_264] : memref<9x16x32xf32, #tpu.memory_space<vmem>>, vector<1x16x32xf32>
    %183 = vector.shape_cast %182 : vector<1x16x32xf32> to vector<16x32xf32>
    %cst_265 = arith.constant dense<0.000000e+00> : vector<32x32xf32>
    %184 = tpu.matmul %181, %183, %cst_265 {dimension_numbers = #tpu.dot_dimension_numbers<[1], [0], [0], [1], [0, 0, 1, 1], [], []>} : vector<32x16xf32>, vector<16x32xf32>, vector<32x32xf32> -> vector<32x32xf32>
    %185 = arith.addf %179, %184 : vector<32x32xf32>
    %c0_266 = arith.constant 0 : index
    %c1_267 = arith.constant 1 : index
    %c0_268 = arith.constant 0 : index
    %c0_269 = arith.constant 0 : index
    %186 = tpu.strided_load %arg22[%c0_266, %c1_267, %c0_268, %c0_269] {strides = array<i32: 1, 2, 2, 1>} : memref<2x10x10x16xf32, #tpu.memory_space<vmem>>, vector<2x4x4x16xf32>
    %187 = vector.shape_cast %186 : vector<2x4x4x16xf32> to vector<32x16xf32>
    %c3_270 = arith.constant 3 : index
    %c0_271 = arith.constant 0 : index
    %c0_272 = arith.constant 0 : index
    %188 = vector.load %arg8[%c3_270, %c0_271, %c0_272] : memref<9x16x32xf32, #tpu.memory_space<vmem>>, vector<1x16x32xf32>
    %189 = vector.shape_cast %188 : vector<1x16x32xf32> to vector<16x32xf32>
    %cst_273 = arith.constant dense<0.000000e+00> : vector<32x32xf32>
    %190 = tpu.matmul %187, %189, %cst_273 {dimension_numbers = #tpu.dot_dimension_numbers<[1], [0], [0], [1], [0, 0, 1, 1], [], []>} : vector<32x16xf32>, vector<16x32xf32>, vector<32x32xf32> -> vector<32x32xf32>
    %191 = arith.addf %185, %190 : vector<32x32xf32>
    %c0_274 = arith.constant 0 : index
    %c1_275 = arith.constant 1 : index
    %c1_276 = arith.constant 1 : index
    %c0_277 = arith.constant 0 : index
    %192 = tpu.strided_load %arg22[%c0_274, %c1_275, %c1_276, %c0_277] {strides = array<i32: 1, 2, 2, 1>} : memref<2x10x10x16xf32, #tpu.memory_space<vmem>>, vector<2x4x4x16xf32>
    %193 = vector.shape_cast %192 : vector<2x4x4x16xf32> to vector<32x16xf32>
    %c4_278 = arith.constant 4 : index
    %c0_279 = arith.constant 0 : index
    %c0_280 = arith.constant 0 : index
    %194 = vector.load %arg8[%c4_278, %c0_279, %c0_280] : memref<9x16x32xf32, #tpu.memory_space<vmem>>, vector<1x16x32xf32>
    %195 = vector.shape_cast %194 : vector<1x16x32xf32> to vector<16x32xf32>
    %cst_281 = arith.constant dense<0.000000e+00> : vector<32x32xf32>
    %196 = tpu.matmul %193, %195, %cst_281 {dimension_numbers = #tpu.dot_dimension_numbers<[1], [0], [0], [1], [0, 0, 1, 1], [], []>} : vector<32x16xf32>, vector<16x32xf32>, vector<32x32xf32> -> vector<32x32xf32>
    %197 = arith.addf %191, %196 : vector<32x32xf32>
    %c0_282 = arith.constant 0 : index
    %c1_283 = arith.constant 1 : index
    %c2_284 = arith.constant 2 : index
    %c0_285 = arith.constant 0 : index
    %198 = tpu.strided_load %arg22[%c0_282, %c1_283, %c2_284, %c0_285] {strides = array<i32: 1, 2, 2, 1>} : memref<2x10x10x16xf32, #tpu.memory_space<vmem>>, vector<2x4x4x16xf32>
    %199 = vector.shape_cast %198 : vector<2x4x4x16xf32> to vector<32x16xf32>
    %c5_286 = arith.constant 5 : index
    %c0_287 = arith.constant 0 : index
    %c0_288 = arith.constant 0 : index
    %200 = vector.load %arg8[%c5_286, %c0_287, %c0_288] : memref<9x16x32xf32, #tpu.memory_space<vmem>>, vector<1x16x32xf32>
    %201 = vector.shape_cast %200 : vector<1x16x32xf32> to vector<16x32xf32>
    %cst_289 = arith.constant dense<0.000000e+00> : vector<32x32xf32>
    %202 = tpu.matmul %199, %201, %cst_289 {dimension_numbers = #tpu.dot_dimension_numbers<[1], [0], [0], [1], [0, 0, 1, 1], [], []>} : vector<32x16xf32>, vector<16x32xf32>, vector<32x32xf32> -> vector<32x32xf32>
    %203 = arith.addf %197, %202 : vector<32x32xf32>
    %c0_290 = arith.constant 0 : index
    %c2_291 = arith.constant 2 : index
    %c0_292 = arith.constant 0 : index
    %c0_293 = arith.constant 0 : index
    %204 = tpu.strided_load %arg22[%c0_290, %c2_291, %c0_292, %c0_293] {strides = array<i32: 1, 2, 2, 1>} : memref<2x10x10x16xf32, #tpu.memory_space<vmem>>, vector<2x4x4x16xf32>
    %205 = vector.shape_cast %204 : vector<2x4x4x16xf32> to vector<32x16xf32>
    %c6_294 = arith.constant 6 : index
    %c0_295 = arith.constant 0 : index
    %c0_296 = arith.constant 0 : index
    %206 = vector.load %arg8[%c6_294, %c0_295, %c0_296] : memref<9x16x32xf32, #tpu.memory_space<vmem>>, vector<1x16x32xf32>
    %207 = vector.shape_cast %206 : vector<1x16x32xf32> to vector<16x32xf32>
    %cst_297 = arith.constant dense<0.000000e+00> : vector<32x32xf32>
    %208 = tpu.matmul %205, %207, %cst_297 {dimension_numbers = #tpu.dot_dimension_numbers<[1], [0], [0], [1], [0, 0, 1, 1], [], []>} : vector<32x16xf32>, vector<16x32xf32>, vector<32x32xf32> -> vector<32x32xf32>
    %209 = arith.addf %203, %208 : vector<32x32xf32>
    %c0_298 = arith.constant 0 : index
    %c2_299 = arith.constant 2 : index
    %c1_300 = arith.constant 1 : index
    %c0_301 = arith.constant 0 : index
    %210 = tpu.strided_load %arg22[%c0_298, %c2_299, %c1_300, %c0_301] {strides = array<i32: 1, 2, 2, 1>} : memref<2x10x10x16xf32, #tpu.memory_space<vmem>>, vector<2x4x4x16xf32>
    %211 = vector.shape_cast %210 : vector<2x4x4x16xf32> to vector<32x16xf32>
    %c7_302 = arith.constant 7 : index
    %c0_303 = arith.constant 0 : index
    %c0_304 = arith.constant 0 : index
    %212 = vector.load %arg8[%c7_302, %c0_303, %c0_304] : memref<9x16x32xf32, #tpu.memory_space<vmem>>, vector<1x16x32xf32>
    %213 = vector.shape_cast %212 : vector<1x16x32xf32> to vector<16x32xf32>
    %cst_305 = arith.constant dense<0.000000e+00> : vector<32x32xf32>
    %214 = tpu.matmul %211, %213, %cst_305 {dimension_numbers = #tpu.dot_dimension_numbers<[1], [0], [0], [1], [0, 0, 1, 1], [], []>} : vector<32x16xf32>, vector<16x32xf32>, vector<32x32xf32> -> vector<32x32xf32>
    %215 = arith.addf %209, %214 : vector<32x32xf32>
    %c0_306 = arith.constant 0 : index
    %c2_307 = arith.constant 2 : index
    %c2_308 = arith.constant 2 : index
    %c0_309 = arith.constant 0 : index
    %216 = tpu.strided_load %arg22[%c0_306, %c2_307, %c2_308, %c0_309] {strides = array<i32: 1, 2, 2, 1>} : memref<2x10x10x16xf32, #tpu.memory_space<vmem>>, vector<2x4x4x16xf32>
    %217 = vector.shape_cast %216 : vector<2x4x4x16xf32> to vector<32x16xf32>
    %c8_310 = arith.constant 8 : index
    %c0_311 = arith.constant 0 : index
    %c0_312 = arith.constant 0 : index
    %218 = vector.load %arg8[%c8_310, %c0_311, %c0_312] : memref<9x16x32xf32, #tpu.memory_space<vmem>>, vector<1x16x32xf32>
    %219 = vector.shape_cast %218 : vector<1x16x32xf32> to vector<16x32xf32>
    %cst_313 = arith.constant dense<0.000000e+00> : vector<32x32xf32>
    %220 = tpu.matmul %217, %219, %cst_313 {dimension_numbers = #tpu.dot_dimension_numbers<[1], [0], [0], [1], [0, 0, 1, 1], [], []>} : vector<32x16xf32>, vector<16x32xf32>, vector<32x32xf32> -> vector<32x32xf32>
    %221 = arith.addf %215, %220 : vector<32x32xf32>
    %c0_314 = arith.constant 0 : index
    %c0_315 = arith.constant 0 : index
    %222 = vector.load %arg9[%c0_314, %c0_315] : memref<1x32xf32, #tpu.memory_space<vmem>>, vector<1x32xf32>
    %223 = vector.broadcast %222 : vector<1x32xf32> to vector<32x32xf32>
    %224 = arith.addf %221, %223 : vector<32x32xf32>
    %cst_316 = arith.constant 0.000000e+00 : f32
    %225 = vector.broadcast %cst_316 : f32 to vector<32x32xf32>
    %226 = arith.maximumf %224, %225 : vector<32x32xf32>
    %227 = vector.shape_cast %226 : vector<32x32xf32> to vector<2x4x4x32xf32>
    %c0_317 = arith.constant 0 : index
    %c1_318 = arith.constant 1 : index
    %c1_319 = arith.constant 1 : index
    %c0_320 = arith.constant 0 : index
    %228 = vector.load %arg23[%c0_317, %c1_318, %c1_319, %c0_320] : memref<2x6x6x32xf32, #tpu.memory_space<vmem>>, vector<2x4x4x32xf32>
    tpu.vector_store %arg23[%c0_317, %c1_318, %c1_319, %c0_320], %227 {strides = array<i32>} : memref<2x6x6x32xf32, #tpu.memory_space<vmem>>, vector<2x4x4x32xf32>,
    %cst_321 = arith.constant 0.000000e+00 : f32
    %229 = vector.broadcast %cst_321 : f32 to vector<32x32xf32>
    %c0_322 = arith.constant 0 : index
    %c0_323 = arith.constant 0 : index
    %c0_324 = arith.constant 0 : index
    %c0_325 = arith.constant 0 : index
    %230 = vector.load %arg23[%c0_322, %c0_323, %c0_324, %c0_325] : memref<2x6x6x32xf32, #tpu.memory_space<vmem>>, vector<2x4x4x32xf32>
    %231 = vector.shape_cast %230 : vector<2x4x4x32xf32> to vector<32x32xf32>
    %c0_326 = arith.constant 0 : index
    %c0_327 = arith.constant 0 : index
    %c0_328 = arith.constant 0 : index
    %232 = vector.load %arg10[%c0_326, %c0_327, %c0_328] : memref<9x32x32xf32, #tpu.memory_space<vmem>>, vector<1x32x32xf32>
    %233 = vector.shape_cast %232 : vector<1x32x32xf32> to vector<32x32xf32>
    %cst_329 = arith.constant dense<0.000000e+00> : vector<32x32xf32>
    %234 = tpu.matmul %231, %233, %cst_329 {dimension_numbers = #tpu.dot_dimension_numbers<[1], [0], [0], [1], [0, 0, 1, 1], [], []>} : vector<32x32xf32>, vector<32x32xf32>, vector<32x32xf32> -> vector<32x32xf32>
    %235 = arith.addf %229, %234 : vector<32x32xf32>
    %c0_330 = arith.constant 0 : index
    %c0_331 = arith.constant 0 : index
    %c1_332 = arith.constant 1 : index
    %c0_333 = arith.constant 0 : index
    %236 = vector.load %arg23[%c0_330, %c0_331, %c1_332, %c0_333] : memref<2x6x6x32xf32, #tpu.memory_space<vmem>>, vector<2x4x4x32xf32>
    %237 = vector.shape_cast %236 : vector<2x4x4x32xf32> to vector<32x32xf32>
    %c1_334 = arith.constant 1 : index
    %c0_335 = arith.constant 0 : index
    %c0_336 = arith.constant 0 : index
    %238 = vector.load %arg10[%c1_334, %c0_335, %c0_336] : memref<9x32x32xf32, #tpu.memory_space<vmem>>, vector<1x32x32xf32>
    %239 = vector.shape_cast %238 : vector<1x32x32xf32> to vector<32x32xf32>
    %cst_337 = arith.constant dense<0.000000e+00> : vector<32x32xf32>
    %240 = tpu.matmul %237, %239, %cst_337 {dimension_numbers = #tpu.dot_dimension_numbers<[1], [0], [0], [1], [0, 0, 1, 1], [], []>} : vector<32x32xf32>, vector<32x32xf32>, vector<32x32xf32> -> vector<32x32xf32>
    %241 = arith.addf %235, %240 : vector<32x32xf32>
    %c0_338 = arith.constant 0 : index
    %c0_339 = arith.constant 0 : index
    %c2_340 = arith.constant 2 : index
    %c0_341 = arith.constant 0 : index
    %242 = vector.load %arg23[%c0_338, %c0_339, %c2_340, %c0_341] : memref<2x6x6x32xf32, #tpu.memory_space<vmem>>, vector<2x4x4x32xf32>
    %243 = vector.shape_cast %242 : vector<2x4x4x32xf32> to vector<32x32xf32>
    %c2_342 = arith.constant 2 : index
    %c0_343 = arith.constant 0 : index
    %c0_344 = arith.constant 0 : index
    %244 = vector.load %arg10[%c2_342, %c0_343, %c0_344] : memref<9x32x32xf32, #tpu.memory_space<vmem>>, vector<1x32x32xf32>
    %245 = vector.shape_cast %244 : vector<1x32x32xf32> to vector<32x32xf32>
    %cst_345 = arith.constant dense<0.000000e+00> : vector<32x32xf32>
    %246 = tpu.matmul %243, %245, %cst_345 {dimension_numbers = #tpu.dot_dimension_numbers<[1], [0], [0], [1], [0, 0, 1, 1], [], []>} : vector<32x32xf32>, vector<32x32xf32>, vector<32x32xf32> -> vector<32x32xf32>
    %247 = arith.addf %241, %246 : vector<32x32xf32>
    %c0_346 = arith.constant 0 : index
    %c1_347 = arith.constant 1 : index
    %c0_348 = arith.constant 0 : index
    %c0_349 = arith.constant 0 : index
    %248 = vector.load %arg23[%c0_346, %c1_347, %c0_348, %c0_349] : memref<2x6x6x32xf32, #tpu.memory_space<vmem>>, vector<2x4x4x32xf32>
    %249 = vector.shape_cast %248 : vector<2x4x4x32xf32> to vector<32x32xf32>
    %c3_350 = arith.constant 3 : index
    %c0_351 = arith.constant 0 : index
    %c0_352 = arith.constant 0 : index
    %250 = vector.load %arg10[%c3_350, %c0_351, %c0_352] : memref<9x32x32xf32, #tpu.memory_space<vmem>>, vector<1x32x32xf32>
    %251 = vector.shape_cast %250 : vector<1x32x32xf32> to vector<32x32xf32>
    %cst_353 = arith.constant dense<0.000000e+00> : vector<32x32xf32>
    %252 = tpu.matmul %249, %251, %cst_353 {dimension_numbers = #tpu.dot_dimension_numbers<[1], [0], [0], [1], [0, 0, 1, 1], [], []>} : vector<32x32xf32>, vector<32x32xf32>, vector<32x32xf32> -> vector<32x32xf32>
    %253 = arith.addf %247, %252 : vector<32x32xf32>
    %c0_354 = arith.constant 0 : index
    %c1_355 = arith.constant 1 : index
    %c1_356 = arith.constant 1 : index
    %c0_357 = arith.constant 0 : index
    %254 = vector.load %arg23[%c0_354, %c1_355, %c1_356, %c0_357] : memref<2x6x6x32xf32, #tpu.memory_space<vmem>>, vector<2x4x4x32xf32>
    %255 = vector.shape_cast %254 : vector<2x4x4x32xf32> to vector<32x32xf32>
    %c4_358 = arith.constant 4 : index
    %c0_359 = arith.constant 0 : index
    %c0_360 = arith.constant 0 : index
    %256 = vector.load %arg10[%c4_358, %c0_359, %c0_360] : memref<9x32x32xf32, #tpu.memory_space<vmem>>, vector<1x32x32xf32>
    %257 = vector.shape_cast %256 : vector<1x32x32xf32> to vector<32x32xf32>
    %cst_361 = arith.constant dense<0.000000e+00> : vector<32x32xf32>
    %258 = tpu.matmul %255, %257, %cst_361 {dimension_numbers = #tpu.dot_dimension_numbers<[1], [0], [0], [1], [0, 0, 1, 1], [], []>} : vector<32x32xf32>, vector<32x32xf32>, vector<32x32xf32> -> vector<32x32xf32>
    %259 = arith.addf %253, %258 : vector<32x32xf32>
    %c0_362 = arith.constant 0 : index
    %c1_363 = arith.constant 1 : index
    %c2_364 = arith.constant 2 : index
    %c0_365 = arith.constant 0 : index
    %260 = vector.load %arg23[%c0_362, %c1_363, %c2_364, %c0_365] : memref<2x6x6x32xf32, #tpu.memory_space<vmem>>, vector<2x4x4x32xf32>
    %261 = vector.shape_cast %260 : vector<2x4x4x32xf32> to vector<32x32xf32>
    %c5_366 = arith.constant 5 : index
    %c0_367 = arith.constant 0 : index
    %c0_368 = arith.constant 0 : index
    %262 = vector.load %arg10[%c5_366, %c0_367, %c0_368] : memref<9x32x32xf32, #tpu.memory_space<vmem>>, vector<1x32x32xf32>
    %263 = vector.shape_cast %262 : vector<1x32x32xf32> to vector<32x32xf32>
    %cst_369 = arith.constant dense<0.000000e+00> : vector<32x32xf32>
    %264 = tpu.matmul %261, %263, %cst_369 {dimension_numbers = #tpu.dot_dimension_numbers<[1], [0], [0], [1], [0, 0, 1, 1], [], []>} : vector<32x32xf32>, vector<32x32xf32>, vector<32x32xf32> -> vector<32x32xf32>
    %265 = arith.addf %259, %264 : vector<32x32xf32>
    %c0_370 = arith.constant 0 : index
    %c2_371 = arith.constant 2 : index
    %c0_372 = arith.constant 0 : index
    %c0_373 = arith.constant 0 : index
    %266 = vector.load %arg23[%c0_370, %c2_371, %c0_372, %c0_373] : memref<2x6x6x32xf32, #tpu.memory_space<vmem>>, vector<2x4x4x32xf32>
    %267 = vector.shape_cast %266 : vector<2x4x4x32xf32> to vector<32x32xf32>
    %c6_374 = arith.constant 6 : index
    %c0_375 = arith.constant 0 : index
    %c0_376 = arith.constant 0 : index
    %268 = vector.load %arg10[%c6_374, %c0_375, %c0_376] : memref<9x32x32xf32, #tpu.memory_space<vmem>>, vector<1x32x32xf32>
    %269 = vector.shape_cast %268 : vector<1x32x32xf32> to vector<32x32xf32>
    %cst_377 = arith.constant dense<0.000000e+00> : vector<32x32xf32>
    %270 = tpu.matmul %267, %269, %cst_377 {dimension_numbers = #tpu.dot_dimension_numbers<[1], [0], [0], [1], [0, 0, 1, 1], [], []>} : vector<32x32xf32>, vector<32x32xf32>, vector<32x32xf32> -> vector<32x32xf32>
    %271 = arith.addf %265, %270 : vector<32x32xf32>
    %c0_378 = arith.constant 0 : index
    %c2_379 = arith.constant 2 : index
    %c1_380 = arith.constant 1 : index
    %c0_381 = arith.constant 0 : index
    %272 = vector.load %arg23[%c0_378, %c2_379, %c1_380, %c0_381] : memref<2x6x6x32xf32, #tpu.memory_space<vmem>>, vector<2x4x4x32xf32>
    %273 = vector.shape_cast %272 : vector<2x4x4x32xf32> to vector<32x32xf32>
    %c7_382 = arith.constant 7 : index
    %c0_383 = arith.constant 0 : index
    %c0_384 = arith.constant 0 : index
    %274 = vector.load %arg10[%c7_382, %c0_383, %c0_384] : memref<9x32x32xf32, #tpu.memory_space<vmem>>, vector<1x32x32xf32>
    %275 = vector.shape_cast %274 : vector<1x32x32xf32> to vector<32x32xf32>
    %cst_385 = arith.constant dense<0.000000e+00> : vector<32x32xf32>
    %276 = tpu.matmul %273, %275, %cst_385 {dimension_numbers = #tpu.dot_dimension_numbers<[1], [0], [0], [1], [0, 0, 1, 1], [], []>} : vector<32x32xf32>, vector<32x32xf32>, vector<32x32xf32> -> vector<32x32xf32>
    %277 = arith.addf %271, %276 : vector<32x32xf32>
    %c0_386 = arith.constant 0 : index
    %c2_387 = arith.constant 2 : index
    %c2_388 = arith.constant 2 : index
    %c0_389 = arith.constant 0 : index
    %278 = vector.load %arg23[%c0_386, %c2_387, %c2_388, %c0_389] : memref<2x6x6x32xf32, #tpu.memory_space<vmem>>, vector<2x4x4x32xf32>
    %279 = vector.shape_cast %278 : vector<2x4x4x32xf32> to vector<32x32xf32>
    %c8_390 = arith.constant 8 : index
    %c0_391 = arith.constant 0 : index
    %c0_392 = arith.constant 0 : index
    %280 = vector.load %arg10[%c8_390, %c0_391, %c0_392] : memref<9x32x32xf32, #tpu.memory_space<vmem>>, vector<1x32x32xf32>
    %281 = vector.shape_cast %280 : vector<1x32x32xf32> to vector<32x32xf32>
    %cst_393 = arith.constant dense<0.000000e+00> : vector<32x32xf32>
    %282 = tpu.matmul %279, %281, %cst_393 {dimension_numbers = #tpu.dot_dimension_numbers<[1], [0], [0], [1], [0, 0, 1, 1], [], []>} : vector<32x32xf32>, vector<32x32xf32>, vector<32x32xf32> -> vector<32x32xf32>
    %283 = arith.addf %277, %282 : vector<32x32xf32>
    %c0_394 = arith.constant 0 : index
    %c0_395 = arith.constant 0 : index
    %284 = vector.load %arg11[%c0_394, %c0_395] : memref<1x32xf32, #tpu.memory_space<vmem>>, vector<1x32xf32>
    %285 = vector.broadcast %284 : vector<1x32xf32> to vector<32x32xf32>
    %286 = arith.addf %283, %285 : vector<32x32xf32>
    %cst_396 = arith.constant 0.000000e+00 : f32
    %287 = vector.broadcast %cst_396 : f32 to vector<32x32xf32>
    %288 = arith.maximumf %286, %287 : vector<32x32xf32>
    %289 = vector.shape_cast %288 : vector<32x32xf32> to vector<2x4x4x32xf32>
    %c0_397 = arith.constant 0 : index
    %c1_398 = arith.constant 1 : index
    %c1_399 = arith.constant 1 : index
    %c0_400 = arith.constant 0 : index
    %290 = vector.load %arg23[%c0_397, %c1_398, %c1_399, %c0_400] : memref<2x6x6x32xf32, #tpu.memory_space<vmem>>, vector<2x4x4x32xf32>
    tpu.vector_store %arg23[%c0_397, %c1_398, %c1_399, %c0_400], %289 {strides = array<i32>} : memref<2x6x6x32xf32, #tpu.memory_space<vmem>>, vector<2x4x4x32xf32>,
    %cst_401 = arith.constant 0.000000e+00 : f32
    %291 = vector.broadcast %cst_401 : f32 to vector<8x64xf32>
    %c0_402 = arith.constant 0 : index
    %c0_403 = arith.constant 0 : index
    %c0_404 = arith.constant 0 : index
    %c0_405 = arith.constant 0 : index
    %292 = tpu.strided_load %arg23[%c0_402, %c0_403, %c0_404, %c0_405] {strides = array<i32: 1, 2, 2, 1>} : memref<2x6x6x32xf32, #tpu.memory_space<vmem>>, vector<2x2x2x32xf32>
    %293 = vector.shape_cast %292 : vector<2x2x2x32xf32> to vector<8x32xf32>
    %c0_406 = arith.constant 0 : index
    %c0_407 = arith.constant 0 : index
    %c0_408 = arith.constant 0 : index
    %294 = vector.load %arg12[%c0_406, %c0_407, %c0_408] : memref<9x32x64xf32, #tpu.memory_space<vmem>>, vector<1x32x64xf32>
    %295 = vector.shape_cast %294 : vector<1x32x64xf32> to vector<32x64xf32>
    %cst_409 = arith.constant dense<0.000000e+00> : vector<8x64xf32>
    %296 = tpu.matmul %293, %295, %cst_409 {dimension_numbers = #tpu.dot_dimension_numbers<[1], [0], [0], [1], [0, 0, 1, 1], [], []>} : vector<8x32xf32>, vector<32x64xf32>, vector<8x64xf32> -> vector<8x64xf32>
    %297 = arith.addf %291, %296 : vector<8x64xf32>
    %c0_410 = arith.constant 0 : index
    %c0_411 = arith.constant 0 : index
    %c1_412 = arith.constant 1 : index
    %c0_413 = arith.constant 0 : index
    %298 = tpu.strided_load %arg23[%c0_410, %c0_411, %c1_412, %c0_413] {strides = array<i32: 1, 2, 2, 1>} : memref<2x6x6x32xf32, #tpu.memory_space<vmem>>, vector<2x2x2x32xf32>
    %299 = vector.shape_cast %298 : vector<2x2x2x32xf32> to vector<8x32xf32>
    %c1_414 = arith.constant 1 : index
    %c0_415 = arith.constant 0 : index
    %c0_416 = arith.constant 0 : index
    %300 = vector.load %arg12[%c1_414, %c0_415, %c0_416] : memref<9x32x64xf32, #tpu.memory_space<vmem>>, vector<1x32x64xf32>
    %301 = vector.shape_cast %300 : vector<1x32x64xf32> to vector<32x64xf32>
    %cst_417 = arith.constant dense<0.000000e+00> : vector<8x64xf32>
    %302 = tpu.matmul %299, %301, %cst_417 {dimension_numbers = #tpu.dot_dimension_numbers<[1], [0], [0], [1], [0, 0, 1, 1], [], []>} : vector<8x32xf32>, vector<32x64xf32>, vector<8x64xf32> -> vector<8x64xf32>
    %303 = arith.addf %297, %302 : vector<8x64xf32>
    %c0_418 = arith.constant 0 : index
    %c0_419 = arith.constant 0 : index
    %c2_420 = arith.constant 2 : index
    %c0_421 = arith.constant 0 : index
    %304 = tpu.strided_load %arg23[%c0_418, %c0_419, %c2_420, %c0_421] {strides = array<i32: 1, 2, 2, 1>} : memref<2x6x6x32xf32, #tpu.memory_space<vmem>>, vector<2x2x2x32xf32>
    %305 = vector.shape_cast %304 : vector<2x2x2x32xf32> to vector<8x32xf32>
    %c2_422 = arith.constant 2 : index
    %c0_423 = arith.constant 0 : index
    %c0_424 = arith.constant 0 : index
    %306 = vector.load %arg12[%c2_422, %c0_423, %c0_424] : memref<9x32x64xf32, #tpu.memory_space<vmem>>, vector<1x32x64xf32>
    %307 = vector.shape_cast %306 : vector<1x32x64xf32> to vector<32x64xf32>
    %cst_425 = arith.constant dense<0.000000e+00> : vector<8x64xf32>
    %308 = tpu.matmul %305, %307, %cst_425 {dimension_numbers = #tpu.dot_dimension_numbers<[1], [0], [0], [1], [0, 0, 1, 1], [], []>} : vector<8x32xf32>, vector<32x64xf32>, vector<8x64xf32> -> vector<8x64xf32>
    %309 = arith.addf %303, %308 : vector<8x64xf32>
    %c0_426 = arith.constant 0 : index
    %c1_427 = arith.constant 1 : index
    %c0_428 = arith.constant 0 : index
    %c0_429 = arith.constant 0 : index
    %310 = tpu.strided_load %arg23[%c0_426, %c1_427, %c0_428, %c0_429] {strides = array<i32: 1, 2, 2, 1>} : memref<2x6x6x32xf32, #tpu.memory_space<vmem>>, vector<2x2x2x32xf32>
    %311 = vector.shape_cast %310 : vector<2x2x2x32xf32> to vector<8x32xf32>
    %c3_430 = arith.constant 3 : index
    %c0_431 = arith.constant 0 : index
    %c0_432 = arith.constant 0 : index
    %312 = vector.load %arg12[%c3_430, %c0_431, %c0_432] : memref<9x32x64xf32, #tpu.memory_space<vmem>>, vector<1x32x64xf32>
    %313 = vector.shape_cast %312 : vector<1x32x64xf32> to vector<32x64xf32>
    %cst_433 = arith.constant dense<0.000000e+00> : vector<8x64xf32>
    %314 = tpu.matmul %311, %313, %cst_433 {dimension_numbers = #tpu.dot_dimension_numbers<[1], [0], [0], [1], [0, 0, 1, 1], [], []>} : vector<8x32xf32>, vector<32x64xf32>, vector<8x64xf32> -> vector<8x64xf32>
    %315 = arith.addf %309, %314 : vector<8x64xf32>
    %c0_434 = arith.constant 0 : index
    %c1_435 = arith.constant 1 : index
    %c1_436 = arith.constant 1 : index
    %c0_437 = arith.constant 0 : index
    %316 = tpu.strided_load %arg23[%c0_434, %c1_435, %c1_436, %c0_437] {strides = array<i32: 1, 2, 2, 1>} : memref<2x6x6x32xf32, #tpu.memory_space<vmem>>, vector<2x2x2x32xf32>
    %317 = vector.shape_cast %316 : vector<2x2x2x32xf32> to vector<8x32xf32>
    %c4_438 = arith.constant 4 : index
    %c0_439 = arith.constant 0 : index
    %c0_440 = arith.constant 0 : index
    %318 = vector.load %arg12[%c4_438, %c0_439, %c0_440] : memref<9x32x64xf32, #tpu.memory_space<vmem>>, vector<1x32x64xf32>
    %319 = vector.shape_cast %318 : vector<1x32x64xf32> to vector<32x64xf32>
    %cst_441 = arith.constant dense<0.000000e+00> : vector<8x64xf32>
    %320 = tpu.matmul %317, %319, %cst_441 {dimension_numbers = #tpu.dot_dimension_numbers<[1], [0], [0], [1], [0, 0, 1, 1], [], []>} : vector<8x32xf32>, vector<32x64xf32>, vector<8x64xf32> -> vector<8x64xf32>
    %321 = arith.addf %315, %320 : vector<8x64xf32>
    %c0_442 = arith.constant 0 : index
    %c1_443 = arith.constant 1 : index
    %c2_444 = arith.constant 2 : index
    %c0_445 = arith.constant 0 : index
    %322 = tpu.strided_load %arg23[%c0_442, %c1_443, %c2_444, %c0_445] {strides = array<i32: 1, 2, 2, 1>} : memref<2x6x6x32xf32, #tpu.memory_space<vmem>>, vector<2x2x2x32xf32>
    %323 = vector.shape_cast %322 : vector<2x2x2x32xf32> to vector<8x32xf32>
    %c5_446 = arith.constant 5 : index
    %c0_447 = arith.constant 0 : index
    %c0_448 = arith.constant 0 : index
    %324 = vector.load %arg12[%c5_446, %c0_447, %c0_448] : memref<9x32x64xf32, #tpu.memory_space<vmem>>, vector<1x32x64xf32>
    %325 = vector.shape_cast %324 : vector<1x32x64xf32> to vector<32x64xf32>
    %cst_449 = arith.constant dense<0.000000e+00> : vector<8x64xf32>
    %326 = tpu.matmul %323, %325, %cst_449 {dimension_numbers = #tpu.dot_dimension_numbers<[1], [0], [0], [1], [0, 0, 1, 1], [], []>} : vector<8x32xf32>, vector<32x64xf32>, vector<8x64xf32> -> vector<8x64xf32>
    %327 = arith.addf %321, %326 : vector<8x64xf32>
    %c0_450 = arith.constant 0 : index
    %c2_451 = arith.constant 2 : index
    %c0_452 = arith.constant 0 : index
    %c0_453 = arith.constant 0 : index
    %328 = tpu.strided_load %arg23[%c0_450, %c2_451, %c0_452, %c0_453] {strides = array<i32: 1, 2, 2, 1>} : memref<2x6x6x32xf32, #tpu.memory_space<vmem>>, vector<2x2x2x32xf32>
    %329 = vector.shape_cast %328 : vector<2x2x2x32xf32> to vector<8x32xf32>
    %c6_454 = arith.constant 6 : index
    %c0_455 = arith.constant 0 : index
    %c0_456 = arith.constant 0 : index
    %330 = vector.load %arg12[%c6_454, %c0_455, %c0_456] : memref<9x32x64xf32, #tpu.memory_space<vmem>>, vector<1x32x64xf32>
    %331 = vector.shape_cast %330 : vector<1x32x64xf32> to vector<32x64xf32>
    %cst_457 = arith.constant dense<0.000000e+00> : vector<8x64xf32>
    %332 = tpu.matmul %329, %331, %cst_457 {dimension_numbers = #tpu.dot_dimension_numbers<[1], [0], [0], [1], [0, 0, 1, 1], [], []>} : vector<8x32xf32>, vector<32x64xf32>, vector<8x64xf32> -> vector<8x64xf32>
    %333 = arith.addf %327, %332 : vector<8x64xf32>
    %c0_458 = arith.constant 0 : index
    %c2_459 = arith.constant 2 : index
    %c1_460 = arith.constant 1 : index
    %c0_461 = arith.constant 0 : index
    %334 = tpu.strided_load %arg23[%c0_458, %c2_459, %c1_460, %c0_461] {strides = array<i32: 1, 2, 2, 1>} : memref<2x6x6x32xf32, #tpu.memory_space<vmem>>, vector<2x2x2x32xf32>
    %335 = vector.shape_cast %334 : vector<2x2x2x32xf32> to vector<8x32xf32>
    %c7_462 = arith.constant 7 : index
    %c0_463 = arith.constant 0 : index
    %c0_464 = arith.constant 0 : index
    %336 = vector.load %arg12[%c7_462, %c0_463, %c0_464] : memref<9x32x64xf32, #tpu.memory_space<vmem>>, vector<1x32x64xf32>
    %337 = vector.shape_cast %336 : vector<1x32x64xf32> to vector<32x64xf32>
    %cst_465 = arith.constant dense<0.000000e+00> : vector<8x64xf32>
    %338 = tpu.matmul %335, %337, %cst_465 {dimension_numbers = #tpu.dot_dimension_numbers<[1], [0], [0], [1], [0, 0, 1, 1], [], []>} : vector<8x32xf32>, vector<32x64xf32>, vector<8x64xf32> -> vector<8x64xf32>
    %339 = arith.addf %333, %338 : vector<8x64xf32>
    %c0_466 = arith.constant 0 : index
    %c2_467 = arith.constant 2 : index
    %c2_468 = arith.constant 2 : index
    %c0_469 = arith.constant 0 : index
    %340 = tpu.strided_load %arg23[%c0_466, %c2_467, %c2_468, %c0_469] {strides = array<i32: 1, 2, 2, 1>} : memref<2x6x6x32xf32, #tpu.memory_space<vmem>>, vector<2x2x2x32xf32>
    %341 = vector.shape_cast %340 : vector<2x2x2x32xf32> to vector<8x32xf32>
    %c8_470 = arith.constant 8 : index
    %c0_471 = arith.constant 0 : index
    %c0_472 = arith.constant 0 : index
    %342 = vector.load %arg12[%c8_470, %c0_471, %c0_472] : memref<9x32x64xf32, #tpu.memory_space<vmem>>, vector<1x32x64xf32>
    %343 = vector.shape_cast %342 : vector<1x32x64xf32> to vector<32x64xf32>
    %cst_473 = arith.constant dense<0.000000e+00> : vector<8x64xf32>
    %344 = tpu.matmul %341, %343, %cst_473 {dimension_numbers = #tpu.dot_dimension_numbers<[1], [0], [0], [1], [0, 0, 1, 1], [], []>} : vector<8x32xf32>, vector<32x64xf32>, vector<8x64xf32> -> vector<8x64xf32>
    %345 = arith.addf %339, %344 : vector<8x64xf32>
    %c0_474 = arith.constant 0 : index
    %c0_475 = arith.constant 0 : index
    %346 = vector.load %arg13[%c0_474, %c0_475] : memref<1x64xf32, #tpu.memory_space<vmem>>, vector<1x64xf32>
    %347 = vector.broadcast %346 : vector<1x64xf32> to vector<8x64xf32>
    %348 = arith.addf %345, %347 : vector<8x64xf32>
    %cst_476 = arith.constant 0.000000e+00 : f32
    %349 = vector.broadcast %cst_476 : f32 to vector<8x64xf32>
    %350 = arith.maximumf %348, %349 : vector<8x64xf32>
    %351 = vector.shape_cast %350 : vector<8x64xf32> to vector<2x2x2x64xf32>
    %c0_477 = arith.constant 0 : index
    %c1_478 = arith.constant 1 : index
    %c1_479 = arith.constant 1 : index
    %c0_480 = arith.constant 0 : index
    %352 = vector.load %arg24[%c0_477, %c1_478, %c1_479, %c0_480] : memref<2x4x4x64xf32, #tpu.memory_space<vmem>>, vector<2x2x2x64xf32>
    tpu.vector_store %arg24[%c0_477, %c1_478, %c1_479, %c0_480], %351 {strides = array<i32>} : memref<2x4x4x64xf32, #tpu.memory_space<vmem>>, vector<2x2x2x64xf32>,
    %cst_481 = arith.constant 0.000000e+00 : f32
    %353 = vector.broadcast %cst_481 : f32 to vector<8x64xf32>
    %c0_482 = arith.constant 0 : index
    %c0_483 = arith.constant 0 : index
    %c0_484 = arith.constant 0 : index
    %c0_485 = arith.constant 0 : index
    %354 = vector.load %arg24[%c0_482, %c0_483, %c0_484, %c0_485] : memref<2x4x4x64xf32, #tpu.memory_space<vmem>>, vector<2x2x2x64xf32>
    %355 = vector.shape_cast %354 : vector<2x2x2x64xf32> to vector<8x64xf32>
    %c0_486 = arith.constant 0 : index
    %c0_487 = arith.constant 0 : index
    %c0_488 = arith.constant 0 : index
    %356 = vector.load %arg14[%c0_486, %c0_487, %c0_488] : memref<9x64x64xf32, #tpu.memory_space<vmem>>, vector<1x64x64xf32>
    %357 = vector.shape_cast %356 : vector<1x64x64xf32> to vector<64x64xf32>
    %cst_489 = arith.constant dense<0.000000e+00> : vector<8x64xf32>
    %358 = tpu.matmul %355, %357, %cst_489 {dimension_numbers = #tpu.dot_dimension_numbers<[1], [0], [0], [1], [0, 0, 1, 1], [], []>} : vector<8x64xf32>, vector<64x64xf32>, vector<8x64xf32> -> vector<8x64xf32>
    %359 = arith.addf %353, %358 : vector<8x64xf32>
    %c0_490 = arith.constant 0 : index
    %c0_491 = arith.constant 0 : index
    %c1_492 = arith.constant 1 : index
    %c0_493 = arith.constant 0 : index
    %360 = vector.load %arg24[%c0_490, %c0_491, %c1_492, %c0_493] : memref<2x4x4x64xf32, #tpu.memory_space<vmem>>, vector<2x2x2x64xf32>
    %361 = vector.shape_cast %360 : vector<2x2x2x64xf32> to vector<8x64xf32>
    %c1_494 = arith.constant 1 : index
    %c0_495 = arith.constant 0 : index
    %c0_496 = arith.constant 0 : index
    %362 = vector.load %arg14[%c1_494, %c0_495, %c0_496] : memref<9x64x64xf32, #tpu.memory_space<vmem>>, vector<1x64x64xf32>
    %363 = vector.shape_cast %362 : vector<1x64x64xf32> to vector<64x64xf32>
    %cst_497 = arith.constant dense<0.000000e+00> : vector<8x64xf32>
    %364 = tpu.matmul %361, %363, %cst_497 {dimension_numbers = #tpu.dot_dimension_numbers<[1], [0], [0], [1], [0, 0, 1, 1], [], []>} : vector<8x64xf32>, vector<64x64xf32>, vector<8x64xf32> -> vector<8x64xf32>
    %365 = arith.addf %359, %364 : vector<8x64xf32>
    %c0_498 = arith.constant 0 : index
    %c0_499 = arith.constant 0 : index
    %c2_500 = arith.constant 2 : index
    %c0_501 = arith.constant 0 : index
    %366 = vector.load %arg24[%c0_498, %c0_499, %c2_500, %c0_501] : memref<2x4x4x64xf32, #tpu.memory_space<vmem>>, vector<2x2x2x64xf32>
    %367 = vector.shape_cast %366 : vector<2x2x2x64xf32> to vector<8x64xf32>
    %c2_502 = arith.constant 2 : index
    %c0_503 = arith.constant 0 : index
    %c0_504 = arith.constant 0 : index
    %368 = vector.load %arg14[%c2_502, %c0_503, %c0_504] : memref<9x64x64xf32, #tpu.memory_space<vmem>>, vector<1x64x64xf32>
    %369 = vector.shape_cast %368 : vector<1x64x64xf32> to vector<64x64xf32>
    %cst_505 = arith.constant dense<0.000000e+00> : vector<8x64xf32>
    %370 = tpu.matmul %367, %369, %cst_505 {dimension_numbers = #tpu.dot_dimension_numbers<[1], [0], [0], [1], [0, 0, 1, 1], [], []>} : vector<8x64xf32>, vector<64x64xf32>, vector<8x64xf32> -> vector<8x64xf32>
    %371 = arith.addf %365, %370 : vector<8x64xf32>
    %c0_506 = arith.constant 0 : index
    %c1_507 = arith.constant 1 : index
    %c0_508 = arith.constant 0 : index
    %c0_509 = arith.constant 0 : index
    %372 = vector.load %arg24[%c0_506, %c1_507, %c0_508, %c0_509] : memref<2x4x4x64xf32, #tpu.memory_space<vmem>>, vector<2x2x2x64xf32>
    %373 = vector.shape_cast %372 : vector<2x2x2x64xf32> to vector<8x64xf32>
    %c3_510 = arith.constant 3 : index
    %c0_511 = arith.constant 0 : index
    %c0_512 = arith.constant 0 : index
    %374 = vector.load %arg14[%c3_510, %c0_511, %c0_512] : memref<9x64x64xf32, #tpu.memory_space<vmem>>, vector<1x64x64xf32>
    %375 = vector.shape_cast %374 : vector<1x64x64xf32> to vector<64x64xf32>
    %cst_513 = arith.constant dense<0.000000e+00> : vector<8x64xf32>
    %376 = tpu.matmul %373, %375, %cst_513 {dimension_numbers = #tpu.dot_dimension_numbers<[1], [0], [0], [1], [0, 0, 1, 1], [], []>} : vector<8x64xf32>, vector<64x64xf32>, vector<8x64xf32> -> vector<8x64xf32>
    %377 = arith.addf %371, %376 : vector<8x64xf32>
    %c0_514 = arith.constant 0 : index
    %c1_515 = arith.constant 1 : index
    %c1_516 = arith.constant 1 : index
    %c0_517 = arith.constant 0 : index
    %378 = vector.load %arg24[%c0_514, %c1_515, %c1_516, %c0_517] : memref<2x4x4x64xf32, #tpu.memory_space<vmem>>, vector<2x2x2x64xf32>
    %379 = vector.shape_cast %378 : vector<2x2x2x64xf32> to vector<8x64xf32>
    %c4_518 = arith.constant 4 : index
    %c0_519 = arith.constant 0 : index
    %c0_520 = arith.constant 0 : index
    %380 = vector.load %arg14[%c4_518, %c0_519, %c0_520] : memref<9x64x64xf32, #tpu.memory_space<vmem>>, vector<1x64x64xf32>
    %381 = vector.shape_cast %380 : vector<1x64x64xf32> to vector<64x64xf32>
    %cst_521 = arith.constant dense<0.000000e+00> : vector<8x64xf32>
    %382 = tpu.matmul %379, %381, %cst_521 {dimension_numbers = #tpu.dot_dimension_numbers<[1], [0], [0], [1], [0, 0, 1, 1], [], []>} : vector<8x64xf32>, vector<64x64xf32>, vector<8x64xf32> -> vector<8x64xf32>
    %383 = arith.addf %377, %382 : vector<8x64xf32>
    %c0_522 = arith.constant 0 : index
    %c1_523 = arith.constant 1 : index
    %c2_524 = arith.constant 2 : index
    %c0_525 = arith.constant 0 : index
    %384 = vector.load %arg24[%c0_522, %c1_523, %c2_524, %c0_525] : memref<2x4x4x64xf32, #tpu.memory_space<vmem>>, vector<2x2x2x64xf32>
    %385 = vector.shape_cast %384 : vector<2x2x2x64xf32> to vector<8x64xf32>
    %c5_526 = arith.constant 5 : index
    %c0_527 = arith.constant 0 : index
    %c0_528 = arith.constant 0 : index
    %386 = vector.load %arg14[%c5_526, %c0_527, %c0_528] : memref<9x64x64xf32, #tpu.memory_space<vmem>>, vector<1x64x64xf32>
    %387 = vector.shape_cast %386 : vector<1x64x64xf32> to vector<64x64xf32>
    %cst_529 = arith.constant dense<0.000000e+00> : vector<8x64xf32>
    %388 = tpu.matmul %385, %387, %cst_529 {dimension_numbers = #tpu.dot_dimension_numbers<[1], [0], [0], [1], [0, 0, 1, 1], [], []>} : vector<8x64xf32>, vector<64x64xf32>, vector<8x64xf32> -> vector<8x64xf32>
    %389 = arith.addf %383, %388 : vector<8x64xf32>
    %c0_530 = arith.constant 0 : index
    %c2_531 = arith.constant 2 : index
    %c0_532 = arith.constant 0 : index
    %c0_533 = arith.constant 0 : index
    %390 = vector.load %arg24[%c0_530, %c2_531, %c0_532, %c0_533] : memref<2x4x4x64xf32, #tpu.memory_space<vmem>>, vector<2x2x2x64xf32>
    %391 = vector.shape_cast %390 : vector<2x2x2x64xf32> to vector<8x64xf32>
    %c6_534 = arith.constant 6 : index
    %c0_535 = arith.constant 0 : index
    %c0_536 = arith.constant 0 : index
    %392 = vector.load %arg14[%c6_534, %c0_535, %c0_536] : memref<9x64x64xf32, #tpu.memory_space<vmem>>, vector<1x64x64xf32>
    %393 = vector.shape_cast %392 : vector<1x64x64xf32> to vector<64x64xf32>
    %cst_537 = arith.constant dense<0.000000e+00> : vector<8x64xf32>
    %394 = tpu.matmul %391, %393, %cst_537 {dimension_numbers = #tpu.dot_dimension_numbers<[1], [0], [0], [1], [0, 0, 1, 1], [], []>} : vector<8x64xf32>, vector<64x64xf32>, vector<8x64xf32> -> vector<8x64xf32>
    %395 = arith.addf %389, %394 : vector<8x64xf32>
    %c0_538 = arith.constant 0 : index
    %c2_539 = arith.constant 2 : index
    %c1_540 = arith.constant 1 : index
    %c0_541 = arith.constant 0 : index
    %396 = vector.load %arg24[%c0_538, %c2_539, %c1_540, %c0_541] : memref<2x4x4x64xf32, #tpu.memory_space<vmem>>, vector<2x2x2x64xf32>
    %397 = vector.shape_cast %396 : vector<2x2x2x64xf32> to vector<8x64xf32>
    %c7_542 = arith.constant 7 : index
    %c0_543 = arith.constant 0 : index
    %c0_544 = arith.constant 0 : index
    %398 = vector.load %arg14[%c7_542, %c0_543, %c0_544] : memref<9x64x64xf32, #tpu.memory_space<vmem>>, vector<1x64x64xf32>
    %399 = vector.shape_cast %398 : vector<1x64x64xf32> to vector<64x64xf32>
    %cst_545 = arith.constant dense<0.000000e+00> : vector<8x64xf32>
    %400 = tpu.matmul %397, %399, %cst_545 {dimension_numbers = #tpu.dot_dimension_numbers<[1], [0], [0], [1], [0, 0, 1, 1], [], []>} : vector<8x64xf32>, vector<64x64xf32>, vector<8x64xf32> -> vector<8x64xf32>
    %401 = arith.addf %395, %400 : vector<8x64xf32>
    %c0_546 = arith.constant 0 : index
    %c2_547 = arith.constant 2 : index
    %c2_548 = arith.constant 2 : index
    %c0_549 = arith.constant 0 : index
    %402 = vector.load %arg24[%c0_546, %c2_547, %c2_548, %c0_549] : memref<2x4x4x64xf32, #tpu.memory_space<vmem>>, vector<2x2x2x64xf32>
    %403 = vector.shape_cast %402 : vector<2x2x2x64xf32> to vector<8x64xf32>
    %c8_550 = arith.constant 8 : index
    %c0_551 = arith.constant 0 : index
    %c0_552 = arith.constant 0 : index
    %404 = vector.load %arg14[%c8_550, %c0_551, %c0_552] : memref<9x64x64xf32, #tpu.memory_space<vmem>>, vector<1x64x64xf32>
    %405 = vector.shape_cast %404 : vector<1x64x64xf32> to vector<64x64xf32>
    %cst_553 = arith.constant dense<0.000000e+00> : vector<8x64xf32>
    %406 = tpu.matmul %403, %405, %cst_553 {dimension_numbers = #tpu.dot_dimension_numbers<[1], [0], [0], [1], [0, 0, 1, 1], [], []>} : vector<8x64xf32>, vector<64x64xf32>, vector<8x64xf32> -> vector<8x64xf32>
    %407 = arith.addf %401, %406 : vector<8x64xf32>
    %c0_554 = arith.constant 0 : index
    %c0_555 = arith.constant 0 : index
    %408 = vector.load %arg15[%c0_554, %c0_555] : memref<1x64xf32, #tpu.memory_space<vmem>>, vector<1x64xf32>
    %409 = vector.broadcast %408 : vector<1x64xf32> to vector<8x64xf32>
    %410 = arith.addf %407, %409 : vector<8x64xf32>
    %cst_556 = arith.constant 0.000000e+00 : f32
    %411 = vector.broadcast %cst_556 : f32 to vector<8x64xf32>
    %412 = arith.maximumf %410, %411 : vector<8x64xf32>
    %413 = vector.shape_cast %412 : vector<8x64xf32> to vector<2x2x2x64xf32>
    %c0_557 = arith.constant 0 : index
    %c1_558 = arith.constant 1 : index
    %c1_559 = arith.constant 1 : index
    %c0_560 = arith.constant 0 : index
    %414 = vector.load %arg24[%c0_557, %c1_558, %c1_559, %c0_560] : memref<2x4x4x64xf32, #tpu.memory_space<vmem>>, vector<2x2x2x64xf32>
    tpu.vector_store %arg24[%c0_557, %c1_558, %c1_559, %c0_560], %413 {strides = array<i32>} : memref<2x4x4x64xf32, #tpu.memory_space<vmem>>, vector<2x2x2x64xf32>,
    %cst_561 = arith.constant 0.000000e+00 : f32
    %415 = vector.broadcast %cst_561 : f32 to vector<8x128xf32>
    %c0_562 = arith.constant 0 : index
    %c0_563 = arith.constant 0 : index
    %c0_564 = arith.constant 0 : index
    %c0_565 = arith.constant 0 : index
    %416 = vector.load %arg24[%c0_562, %c0_563, %c0_564, %c0_565] : memref<2x4x4x64xf32, #tpu.memory_space<vmem>>, vector<2x2x2x64xf32>
    %417 = vector.shape_cast %416 : vector<2x2x2x64xf32> to vector<8x64xf32>
    %c0_566 = arith.constant 0 : index
    %c0_567 = arith.constant 0 : index
    %c0_568 = arith.constant 0 : index
    %418 = vector.load %arg16[%c0_566, %c0_567, %c0_568] : memref<9x64x128xf32, #tpu.memory_space<vmem>>, vector<1x64x128xf32>
    %419 = vector.shape_cast %418 : vector<1x64x128xf32> to vector<64x128xf32>
    %cst_569 = arith.constant dense<0.000000e+00> : vector<8x128xf32>
    %420 = tpu.matmul %417, %419, %cst_569 {dimension_numbers = #tpu.dot_dimension_numbers<[1], [0], [0], [1], [0, 0, 1, 1], [], []>} : vector<8x64xf32>, vector<64x128xf32>, vector<8x128xf32> -> vector<8x128xf32>
    %421 = arith.addf %415, %420 : vector<8x128xf32>
    %c0_570 = arith.constant 0 : index
    %c0_571 = arith.constant 0 : index
    %c1_572 = arith.constant 1 : index
    %c0_573 = arith.constant 0 : index
    %422 = vector.load %arg24[%c0_570, %c0_571, %c1_572, %c0_573] : memref<2x4x4x64xf32, #tpu.memory_space<vmem>>, vector<2x2x2x64xf32>
    %423 = vector.shape_cast %422 : vector<2x2x2x64xf32> to vector<8x64xf32>
    %c1_574 = arith.constant 1 : index
    %c0_575 = arith.constant 0 : index
    %c0_576 = arith.constant 0 : index
    %424 = vector.load %arg16[%c1_574, %c0_575, %c0_576] : memref<9x64x128xf32, #tpu.memory_space<vmem>>, vector<1x64x128xf32>
    %425 = vector.shape_cast %424 : vector<1x64x128xf32> to vector<64x128xf32>
    %cst_577 = arith.constant dense<0.000000e+00> : vector<8x128xf32>
    %426 = tpu.matmul %423, %425, %cst_577 {dimension_numbers = #tpu.dot_dimension_numbers<[1], [0], [0], [1], [0, 0, 1, 1], [], []>} : vector<8x64xf32>, vector<64x128xf32>, vector<8x128xf32> -> vector<8x128xf32>
    %427 = arith.addf %421, %426 : vector<8x128xf32>
    %c0_578 = arith.constant 0 : index
    %c0_579 = arith.constant 0 : index
    %c2_580 = arith.constant 2 : index
    %c0_581 = arith.constant 0 : index
    %428 = vector.load %arg24[%c0_578, %c0_579, %c2_580, %c0_581] : memref<2x4x4x64xf32, #tpu.memory_space<vmem>>, vector<2x2x2x64xf32>
    %429 = vector.shape_cast %428 : vector<2x2x2x64xf32> to vector<8x64xf32>
    %c2_582 = arith.constant 2 : index
    %c0_583 = arith.constant 0 : index
    %c0_584 = arith.constant 0 : index
    %430 = vector.load %arg16[%c2_582, %c0_583, %c0_584] : memref<9x64x128xf32, #tpu.memory_space<vmem>>, vector<1x64x128xf32>
    %431 = vector.shape_cast %430 : vector<1x64x128xf32> to vector<64x128xf32>
    %cst_585 = arith.constant dense<0.000000e+00> : vector<8x128xf32>
    %432 = tpu.matmul %429, %431, %cst_585 {dimension_numbers = #tpu.dot_dimension_numbers<[1], [0], [0], [1], [0, 0, 1, 1], [], []>} : vector<8x64xf32>, vector<64x128xf32>, vector<8x128xf32> -> vector<8x128xf32>
    %433 = arith.addf %427, %432 : vector<8x128xf32>
    %c0_586 = arith.constant 0 : index
    %c1_587 = arith.constant 1 : index
    %c0_588 = arith.constant 0 : index
    %c0_589 = arith.constant 0 : index
    %434 = vector.load %arg24[%c0_586, %c1_587, %c0_588, %c0_589] : memref<2x4x4x64xf32, #tpu.memory_space<vmem>>, vector<2x2x2x64xf32>
    %435 = vector.shape_cast %434 : vector<2x2x2x64xf32> to vector<8x64xf32>
    %c3_590 = arith.constant 3 : index
    %c0_591 = arith.constant 0 : index
    %c0_592 = arith.constant 0 : index
    %436 = vector.load %arg16[%c3_590, %c0_591, %c0_592] : memref<9x64x128xf32, #tpu.memory_space<vmem>>, vector<1x64x128xf32>
    %437 = vector.shape_cast %436 : vector<1x64x128xf32> to vector<64x128xf32>
    %cst_593 = arith.constant dense<0.000000e+00> : vector<8x128xf32>
    %438 = tpu.matmul %435, %437, %cst_593 {dimension_numbers = #tpu.dot_dimension_numbers<[1], [0], [0], [1], [0, 0, 1, 1], [], []>} : vector<8x64xf32>, vector<64x128xf32>, vector<8x128xf32> -> vector<8x128xf32>
    %439 = arith.addf %433, %438 : vector<8x128xf32>
    %c0_594 = arith.constant 0 : index
    %c1_595 = arith.constant 1 : index
    %c1_596 = arith.constant 1 : index
    %c0_597 = arith.constant 0 : index
    %440 = vector.load %arg24[%c0_594, %c1_595, %c1_596, %c0_597] : memref<2x4x4x64xf32, #tpu.memory_space<vmem>>, vector<2x2x2x64xf32>
    %441 = vector.shape_cast %440 : vector<2x2x2x64xf32> to vector<8x64xf32>
    %c4_598 = arith.constant 4 : index
    %c0_599 = arith.constant 0 : index
    %c0_600 = arith.constant 0 : index
    %442 = vector.load %arg16[%c4_598, %c0_599, %c0_600] : memref<9x64x128xf32, #tpu.memory_space<vmem>>, vector<1x64x128xf32>
    %443 = vector.shape_cast %442 : vector<1x64x128xf32> to vector<64x128xf32>
    %cst_601 = arith.constant dense<0.000000e+00> : vector<8x128xf32>
    %444 = tpu.matmul %441, %443, %cst_601 {dimension_numbers = #tpu.dot_dimension_numbers<[1], [0], [0], [1], [0, 0, 1, 1], [], []>} : vector<8x64xf32>, vector<64x128xf32>, vector<8x128xf32> -> vector<8x128xf32>
    %445 = arith.addf %439, %444 : vector<8x128xf32>
    %c0_602 = arith.constant 0 : index
    %c1_603 = arith.constant 1 : index
    %c2_604 = arith.constant 2 : index
    %c0_605 = arith.constant 0 : index
    %446 = vector.load %arg24[%c0_602, %c1_603, %c2_604, %c0_605] : memref<2x4x4x64xf32, #tpu.memory_space<vmem>>, vector<2x2x2x64xf32>
    %447 = vector.shape_cast %446 : vector<2x2x2x64xf32> to vector<8x64xf32>
    %c5_606 = arith.constant 5 : index
    %c0_607 = arith.constant 0 : index
    %c0_608 = arith.constant 0 : index
    %448 = vector.load %arg16[%c5_606, %c0_607, %c0_608] : memref<9x64x128xf32, #tpu.memory_space<vmem>>, vector<1x64x128xf32>
    %449 = vector.shape_cast %448 : vector<1x64x128xf32> to vector<64x128xf32>
    %cst_609 = arith.constant dense<0.000000e+00> : vector<8x128xf32>
    %450 = tpu.matmul %447, %449, %cst_609 {dimension_numbers = #tpu.dot_dimension_numbers<[1], [0], [0], [1], [0, 0, 1, 1], [], []>} : vector<8x64xf32>, vector<64x128xf32>, vector<8x128xf32> -> vector<8x128xf32>
    %451 = arith.addf %445, %450 : vector<8x128xf32>
    %c0_610 = arith.constant 0 : index
    %c2_611 = arith.constant 2 : index
    %c0_612 = arith.constant 0 : index
    %c0_613 = arith.constant 0 : index
    %452 = vector.load %arg24[%c0_610, %c2_611, %c0_612, %c0_613] : memref<2x4x4x64xf32, #tpu.memory_space<vmem>>, vector<2x2x2x64xf32>
    %453 = vector.shape_cast %452 : vector<2x2x2x64xf32> to vector<8x64xf32>
    %c6_614 = arith.constant 6 : index
    %c0_615 = arith.constant 0 : index
    %c0_616 = arith.constant 0 : index
    %454 = vector.load %arg16[%c6_614, %c0_615, %c0_616] : memref<9x64x128xf32, #tpu.memory_space<vmem>>, vector<1x64x128xf32>
    %455 = vector.shape_cast %454 : vector<1x64x128xf32> to vector<64x128xf32>
    %cst_617 = arith.constant dense<0.000000e+00> : vector<8x128xf32>
    %456 = tpu.matmul %453, %455, %cst_617 {dimension_numbers = #tpu.dot_dimension_numbers<[1], [0], [0], [1], [0, 0, 1, 1], [], []>} : vector<8x64xf32>, vector<64x128xf32>, vector<8x128xf32> -> vector<8x128xf32>
    %457 = arith.addf %451, %456 : vector<8x128xf32>
    %c0_618 = arith.constant 0 : index
    %c2_619 = arith.constant 2 : index
    %c1_620 = arith.constant 1 : index
    %c0_621 = arith.constant 0 : index
    %458 = vector.load %arg24[%c0_618, %c2_619, %c1_620, %c0_621] : memref<2x4x4x64xf32, #tpu.memory_space<vmem>>, vector<2x2x2x64xf32>
    %459 = vector.shape_cast %458 : vector<2x2x2x64xf32> to vector<8x64xf32>
    %c7_622 = arith.constant 7 : index
    %c0_623 = arith.constant 0 : index
    %c0_624 = arith.constant 0 : index
    %460 = vector.load %arg16[%c7_622, %c0_623, %c0_624] : memref<9x64x128xf32, #tpu.memory_space<vmem>>, vector<1x64x128xf32>
    %461 = vector.shape_cast %460 : vector<1x64x128xf32> to vector<64x128xf32>
    %cst_625 = arith.constant dense<0.000000e+00> : vector<8x128xf32>
    %462 = tpu.matmul %459, %461, %cst_625 {dimension_numbers = #tpu.dot_dimension_numbers<[1], [0], [0], [1], [0, 0, 1, 1], [], []>} : vector<8x64xf32>, vector<64x128xf32>, vector<8x128xf32> -> vector<8x128xf32>
    %463 = arith.addf %457, %462 : vector<8x128xf32>
    %c0_626 = arith.constant 0 : index
    %c2_627 = arith.constant 2 : index
    %c2_628 = arith.constant 2 : index
    %c0_629 = arith.constant 0 : index
    %464 = vector.load %arg24[%c0_626, %c2_627, %c2_628, %c0_629] : memref<2x4x4x64xf32, #tpu.memory_space<vmem>>, vector<2x2x2x64xf32>
    %465 = vector.shape_cast %464 : vector<2x2x2x64xf32> to vector<8x64xf32>
    %c8_630 = arith.constant 8 : index
    %c0_631 = arith.constant 0 : index
    %c0_632 = arith.constant 0 : index
    %466 = vector.load %arg16[%c8_630, %c0_631, %c0_632] : memref<9x64x128xf32, #tpu.memory_space<vmem>>, vector<1x64x128xf32>
    %467 = vector.shape_cast %466 : vector<1x64x128xf32> to vector<64x128xf32>
    %cst_633 = arith.constant dense<0.000000e+00> : vector<8x128xf32>
    %468 = tpu.matmul %465, %467, %cst_633 {dimension_numbers = #tpu.dot_dimension_numbers<[1], [0], [0], [1], [0, 0, 1, 1], [], []>} : vector<8x64xf32>, vector<64x128xf32>, vector<8x128xf32> -> vector<8x128xf32>
    %469 = arith.addf %463, %468 : vector<8x128xf32>
    %c0_634 = arith.constant 0 : index
    %c0_635 = arith.constant 0 : index
    %470 = vector.load %arg17[%c0_634, %c0_635] : memref<1x128xf32, #tpu.memory_space<vmem>>, vector<1x128xf32>
    %471 = vector.broadcast %470 : vector<1x128xf32> to vector<8x128xf32>
    %472 = arith.addf %469, %471 : vector<8x128xf32>
    %cst_636 = arith.constant 0.000000e+00 : f32
    %473 = vector.broadcast %cst_636 : f32 to vector<8x128xf32>
    %474 = arith.maximumf %472, %473 : vector<8x128xf32>
    %475 = vector.shape_cast %474 : vector<8x128xf32> to vector<2x2x2x128xf32>
    %c0_637 = arith.constant 0 : index
    %c0_638 = arith.constant 0 : index
    %c0_639 = arith.constant 0 : index
    %c0_640 = arith.constant 0 : index
    %476 = vector.load %arg20[%c0_637, %c0_638, %c0_639, %c0_640] : memref<2x2x2x128xf32, #tpu.memory_space<vmem>>, vector<2x2x2x128xf32>
    tpu.vector_store %arg20[%c0_637, %c0_638, %c0_639, %c0_640], %475 {strides = array<i32>} : memref<2x2x2x128xf32, #tpu.memory_space<vmem>>, vector<2x2x2x128xf32>,
    %477 = vector.shape_cast %475 : vector<2x2x2x128xf32> to vector<2x4x128xf32>
    %cst_641 = arith.constant dense<0.000000e+00> : vector<2x128xf32>
    %478 = vector.multi_reduction <add>, %477, %cst_641 [1] : vector<2x4x128xf32> to vector<2x128xf32>
    %cst_642 = arith.constant 4.000000e+00 : f32
    %479 = vector.broadcast %cst_642 : f32 to vector<2x128xf32>
    %480 = arith.divf %478, %479 : vector<2x128xf32>
    %c0_643 = arith.constant 0 : index
    %c0_644 = arith.constant 0 : index
    %481 = vector.load %arg18[%c0_643, %c0_644] : memref<1x128xf32, #tpu.memory_space<vmem>>, vector<1x128xf32>
    %482 = vector.broadcast %481 : vector<1x128xf32> to vector<2x128xf32>
    %483 = arith.mulf %480, %482 : vector<2x128xf32>
    %cst_645 = arith.constant dense<0.000000e+00> : vector<2xf32>
    %484 = vector.multi_reduction <add>, %483, %cst_645 [1] : vector<2x128xf32> to vector<2xf32>
    %485 = vector.shape_cast %484 : vector<2xf32> to vector<2x1xf32>
    %c0_646 = arith.constant 0 : index
    %c0_647 = arith.constant 0 : index
    %486 = vector.load %arg19[%c0_646, %c0_647] : memref<2x1xf32, #tpu.memory_space<vmem>>, vector<2x1xf32>
    tpu.vector_store %arg19[%c0_646, %c0_647], %485 {strides = array<i32>} : memref<2x1xf32, #tpu.memory_space<vmem>>, vector<2x1xf32>,
    return
  }
  func.func @transform_0(%arg0: i32) -> (i32, i32, i32) {
    %c0_i32 = arith.constant 0 : i32
    %c0_i32_0 = arith.constant 0 : i32
    %c0_i32_1 = arith.constant 0 : i32
    return %arg0, %c0_i32, %c0_i32_0 : i32, i32, i32
  }
  func.func @transform_1(%arg0: i32) -> (i32, i32) {
    %c0_i32 = arith.constant 0 : i32
    %c0_i32_0 = arith.constant 0 : i32
    %c0_i32_1 = arith.constant 0 : i32
    return %c0_i32, %c0_i32_0 : i32, i32
  }
  func.func @transform_2(%arg0: i32) -> (i32, i32) {
    %c0_i32 = arith.constant 0 : i32
    %c0_i32_0 = arith.constant 0 : i32
    %c0_i32_1 = arith.constant 0 : i32
    return %c0_i32, %c0_i32_0 : i32, i32
  }
  func.func @transform_3(%arg0: i32) -> (i32, i32, i32) {
    %c0_i32 = arith.constant 0 : i32
    %c0_i32_0 = arith.constant 0 : i32
    %c0_i32_1 = arith.constant 0 : i32
    %c0_i32_2 = arith.constant 0 : i32
    return %c0_i32, %c0_i32_0, %c0_i32_1 : i32, i32, i32
  }
  func.func @transform_4(%arg0: i32) -> (i32, i32) {
    %c0_i32 = arith.constant 0 : i32
    %c0_i32_0 = arith.constant 0 : i32
    %c0_i32_1 = arith.constant 0 : i32
    return %c0_i32, %c0_i32_0 : i32, i32
  }
  func.func @transform_5(%arg0: i32) -> (i32, i32, i32) {
    %c0_i32 = arith.constant 0 : i32
    %c0_i32_0 = arith.constant 0 : i32
    %c0_i32_1 = arith.constant 0 : i32
    %c0_i32_2 = arith.constant 0 : i32
    return %c0_i32, %c0_i32_0, %c0_i32_1 : i32, i32, i32
  }
  func.func @transform_6(%arg0: i32) -> (i32, i32) {
    %c0_i32 = arith.constant 0 : i32
    %c0_i32_0 = arith.constant 0 : i32
    %c0_i32_1 = arith.constant 0 : i32
    return %c0_i32, %c0_i32_0 : i32, i32
  }
  func.func @transform_7(%arg0: i32) -> (i32, i32, i32) {
    %c0_i32 = arith.constant 0 : i32
    %c0_i32_0 = arith.constant 0 : i32
    %c0_i32_1 = arith.constant 0 : i32
    %c0_i32_2 = arith.constant 0 : i32
    return %c0_i32, %c0_i32_0, %c0_i32_1 : i32, i32, i32
  }
  func.func @transform_8(%arg0: i32) -> (i32, i32) {
    %c0_i32 = arith.constant 0 : i32
    %c0_i32_0 = arith.constant 0 : i32
    %c0_i32_1 = arith.constant 0 : i32
    return %c0_i32, %c0_i32_0 : i32, i32
  }
  func.func @transform_9(%arg0: i32) -> (i32, i32, i32) {
    %c0_i32 = arith.constant 0 : i32
    %c0_i32_0 = arith.constant 0 : i32
    %c0_i32_1 = arith.constant 0 : i32
    %c0_i32_2 = arith.constant 0 : i32
    return %c0_i32, %c0_i32_0, %c0_i32_1 : i32, i32, i32
  }
  func.func @transform_10(%arg0: i32) -> (i32, i32) {
    %c0_i32 = arith.constant 0 : i32
    %c0_i32_0 = arith.constant 0 : i32
    %c0_i32_1 = arith.constant 0 : i32
    return %c0_i32, %c0_i32_0 : i32, i32
  }
  func.func @transform_11(%arg0: i32) -> (i32, i32, i32) {
    %c0_i32 = arith.constant 0 : i32
    %c0_i32_0 = arith.constant 0 : i32
    %c0_i32_1 = arith.constant 0 : i32
    %c0_i32_2 = arith.constant 0 : i32
    return %c0_i32, %c0_i32_0, %c0_i32_1 : i32, i32, i32
  }
  func.func @transform_12(%arg0: i32) -> (i32, i32) {
    %c0_i32 = arith.constant 0 : i32
    %c0_i32_0 = arith.constant 0 : i32
    %c0_i32_1 = arith.constant 0 : i32
    return %c0_i32, %c0_i32_0 : i32, i32
  }
  func.func @transform_13(%arg0: i32) -> (i32, i32, i32) {
    %c0_i32 = arith.constant 0 : i32
    %c0_i32_0 = arith.constant 0 : i32
    %c0_i32_1 = arith.constant 0 : i32
    %c0_i32_2 = arith.constant 0 : i32
    return %c0_i32, %c0_i32_0, %c0_i32_1 : i32, i32, i32
  }
  func.func @transform_14(%arg0: i32) -> (i32, i32) {
    %c0_i32 = arith.constant 0 : i32
    %c0_i32_0 = arith.constant 0 : i32
    %c0_i32_1 = arith.constant 0 : i32
    return %c0_i32, %c0_i32_0 : i32, i32
  }
  func.func @transform_15(%arg0: i32) -> (i32, i32, i32) {
    %c0_i32 = arith.constant 0 : i32
    %c0_i32_0 = arith.constant 0 : i32
    %c0_i32_1 = arith.constant 0 : i32
    %c0_i32_2 = arith.constant 0 : i32
    return %c0_i32, %c0_i32_0, %c0_i32_1 : i32, i32, i32
  }
  func.func @transform_16(%arg0: i32) -> (i32, i32) {
    %c0_i32 = arith.constant 0 : i32
    %c0_i32_0 = arith.constant 0 : i32
    %c0_i32_1 = arith.constant 0 : i32
    return %c0_i32, %c0_i32_0 : i32, i32
  }
  func.func @transform_17(%arg0: i32) -> (i32, i32) {
    %c0_i32 = arith.constant 0 : i32
    %c0_i32_0 = arith.constant 0 : i32
    %c0_i32_1 = arith.constant 0 : i32
    return %c0_i32, %c0_i32_0 : i32, i32
  }
  func.func @transform_18(%arg0: i32) -> (i32, i32) {
    %c0_i32 = arith.constant 0 : i32
    %c0_i32_0 = arith.constant 0 : i32
    return %arg0, %c0_i32 : i32, i32
  }
  func.func @transform_19(%arg0: i32) -> (i32, i32, i32, i32) {
    %c0_i32 = arith.constant 0 : i32
    %c0_i32_0 = arith.constant 0 : i32
    %c0_i32_1 = arith.constant 0 : i32
    %c0_i32_2 = arith.constant 0 : i32
    return %arg0, %c0_i32, %c0_i32_0, %c0_i32_1 : i32, i32, i32, i32
  }
}

</mosaic_0001>

<llo_original>
// kernel: gradcampp_forward.1
$region0: #{gradcampp_forward.1}
  #allocation0 [shape = 'u32[]', space=smem, size = 0x4, offset = 0x4, fixed_abs, tag = 'smem constant byte address 0x4 - core index']
  #allocation1 [shape = 'u32[144,128]{1,0:T(1,128)}', space=vmem, size = 0x12000, scoped, tag = 'internal scratch']
  #allocation2 [shape = 'f32[2,18,18,8]{3,2,1,0:T(8,128)}', space=vmem, size = 0x6c000, scoped, tag = 'scratch operand']
  #allocation3 [shape = 'f32[2,10,10,16]{3,2,1,0:T(8,128)}', space=vmem, size = 0x28000, scoped, tag = 'scratch operand']
  #allocation4 [shape = 'f32[2,6,6,32]{3,2,1,0:T(8,128)}', space=vmem, size = 0xc000, scoped, tag = 'scratch operand']
  #allocation5 [shape = 'f32[2,4,4,64]{3,2,1,0:T(4,128)}', space=vmem, size = 0x4000, scoped, tag = 'scratch operand']
  %s0 = inlined_call_operand.vmem [shape: f32[2,256,27], index: 0, kind: input, shape index: {}]
  %s1 = inlined_call_operand.vmem [shape: f32[27,8], index: 1, kind: input, shape index: {}]
  %s2 = inlined_call_operand.vmem [shape: f32[1,8], index: 2, kind: input, shape index: {}]
  %s3 = inlined_call_operand.vmem [shape: f32[9,8,16], index: 3, kind: input, shape index: {}]
  %s4 = inlined_call_operand.vmem [shape: f32[1,16], index: 4, kind: input, shape index: {}]
  %s5 = inlined_call_operand.vmem [shape: f32[9,16,16], index: 5, kind: input, shape index: {}]
  %s6 = inlined_call_operand.vmem [shape: f32[1,16], index: 6, kind: input, shape index: {}]
  %s7 = inlined_call_operand.vmem [shape: f32[9,16,32], index: 7, kind: input, shape index: {}]
  %s8 = inlined_call_operand.vmem [shape: f32[1,32], index: 8, kind: input, shape index: {}]
  %s9 = inlined_call_operand.vmem [shape: f32[9,32,32], index: 9, kind: input, shape index: {}]
  %s10 = inlined_call_operand.vmem [shape: f32[1,32], index: 10, kind: input, shape index: {}]
  %s11 = inlined_call_operand.vmem [shape: f32[9,32,64], index: 11, kind: input, shape index: {}]
  %s12 = inlined_call_operand.vmem [shape: f32[1,64], index: 12, kind: input, shape index: {}]
  %s13 = inlined_call_operand.vmem [shape: f32[9,64,64], index: 13, kind: input, shape index: {}]
  %s14 = inlined_call_operand.vmem [shape: f32[1,64], index: 14, kind: input, shape index: {}]
  %s15 = inlined_call_operand.vmem [shape: f32[9,64,128], index: 15, kind: input, shape index: {}]
  %s16 = inlined_call_operand.vmem [shape: f32[1,128], index: 16, kind: input, shape index: {}]
  %s17 = inlined_call_operand.vmem [shape: f32[1,128], index: 17, kind: input, shape index: {}]
  %s18 = inlined_call_operand.vmem [shape: f32[2,1], index: 18, kind: output, shape index: {0}]
  %s19 = inlined_call_operand.hbm [shape: f32[2,2,2,128], index: 19, kind: output, shape index: {1}]
  %20 = xla_tuple %s18, %s19
  %s21 = sld [smem:[#allocation0]]
  $region90: #{gradcampp_forward.1} parent=0
    _
  %s23 = ssub.s32 1, %s21
  %s24 = scalar_select 0, %s23, %s21
  $region1: #{gradcampp_forward.1} parent=0
    #allocation6 [shape = 'u8[4096]{0}', space=vmem, size = 0x1000, scoped, tag = 'output window, operand 1, single buffered']
    #allocation7 [shape = 's32[1]{0}', space=sflag, size = 0x4, scoped, tag = 'scoped memory for gradcampp_forward.1']
    %25 = vsyncpa [#allocation7], 0
    // Predicated region
    $region2: #{gradcampp_forward.1} parent=1 // pred_check
      _
    $region3: #{gradcampp_forward.1} parent=1 // pred_check_branch
      %27 = sbr.rel (0) target = $region5
    $region4: #{gradcampp_forward.1} parent=1 // pred_region
      _
    $region5: #{gradcampp_forward.1} parent=1 // pred_fallthru
      _
    // Predicated region
    $region6: #{gradcampp_forward.1} parent=1 // pred_check
      _
    $region7: #{gradcampp_forward.1} parent=1 // pred_check_branch
      %29 = sbr.rel (0) target = $region9
    $region8: #{gradcampp_forward.1} parent=1 // pred_region
      _
    $region9: #{gradcampp_forward.1} parent=1 // pred_fallthru
      _
    // Predicated region
    $region10: #{gradcampp_forward.1} parent=1 // pred_check
      _
    $region11: #{gradcampp_forward.1} parent=1 // pred_check_branch
      %31 = sbr.rel (0) target = $region13
    $region12: #{gradcampp_forward.1} parent=1 // pred_region
      _
    $region13: #{gradcampp_forward.1} parent=1 // pred_fallthru
      _
    // Predicated region
    $region14: #{gradcampp_forward.1} parent=1 // pred_check
      _
    $region15: #{gradcampp_forward.1} parent=1 // pred_check_branch
      %33 = sbr.rel (0) target = $region17
    $region16: #{gradcampp_forward.1} parent=1 // pred_region
      _
    $region17: #{gradcampp_forward.1} parent=1 // pred_fallthru
      _
    // Predicated region
    $region18: #{gradcampp_forward.1} parent=1 // pred_check
      _
    $region19: #{gradcampp_forward.1} parent=1 // pred_check_branch
      %35 = sbr.rel (0) target = $region21
    $region20: #{gradcampp_forward.1} parent=1 // pred_region
      _
    $region21: #{gradcampp_forward.1} parent=1 // pred_fallthru
      _
    // Predicated region
    $region22: #{gradcampp_forward.1} parent=1 // pred_check
      _
    $region23: #{gradcampp_forward.1} parent=1 // pred_check_branch
      %37 = sbr.rel (0) target = $region25
    $region24: #{gradcampp_forward.1} parent=1 // pred_region
      _
    $region25: #{gradcampp_forward.1} parent=1 // pred_fallthru
      _
    // Predicated region
    $region26: #{gradcampp_forward.1} parent=1 // pred_check
      _
    $region27: #{gradcampp_forward.1} parent=1 // pred_check_branch
      %39 = sbr.rel (0) target = $region29
    $region28: #{gradcampp_forward.1} parent=1 // pred_region
      _
    $region29: #{gradcampp_forward.1} parent=1 // pred_fallthru
      _
    // Predicated region
    $region30: #{gradcampp_forward.1} parent=1 // pred_check
      _
    $region31: #{gradcampp_forward.1} parent=1 // pred_check_branch
      %41 = sbr.rel (0) target = $region33
    $region32: #{gradcampp_forward.1} parent=1 // pred_region
      _
    $region33: #{gradcampp_forward.1} parent=1 // pred_fallthru
      _
    // Predicated region
    $region34: #{gradcampp_forward.1} parent=1 // pred_check
      _
    $region35: #{gradcampp_forward.1} parent=1 // pred_check_branch
      %43 = sbr.rel (0) target = $region37
    $region36: #{gradcampp_forward.1} parent=1 // pred_region
      _
    $region37: #{gradcampp_forward.1} parent=1 // pred_fallthru
      _
    // Predicated region
    $region38: #{gradcampp_forward.1} parent=1 // pred_check
      _
    $region39: #{gradcampp_forward.1} parent=1 // pred_check_branch
      %45 = sbr.rel (0) target = $region41
    $region40: #{gradcampp_forward.1} parent=1 // pred_region
      _
    $region41: #{gradcampp_forward.1} parent=1 // pred_fallthru
      _
    // Predicated region
    $region42: #{gradcampp_forward.1} parent=1 // pred_check
      _
    $region43: #{gradcampp_forward.1} parent=1 // pred_check_branch
      %47 = sbr.rel (0) target = $region45
    $region44: #{gradcampp_forward.1} parent=1 // pred_region
      _
    $region45: #{gradcampp_forward.1} parent=1 // pred_fallthru
      _
    // Predicated region
    $region46: #{gradcampp_forward.1} parent=1 // pred_check
      _
    $region47: #{gradcampp_forward.1} parent=1 // pred_check_branch
      %49 = sbr.rel (0) target = $region49
    $region48: #{gradcampp_forward.1} parent=1 // pred_region
      _
    $region49: #{gradcampp_forward.1} parent=1 // pred_fallthru
      _
    // Predicated region
    $region50: #{gradcampp_forward.1} parent=1 // pred_check
      _
    $region51: #{gradcampp_forward.1} parent=1 // pred_check_branch
      %51 = sbr.rel (0) target = $region53
    $region52: #{gradcampp_forward.1} parent=1 // pred_region
      _
    $region53: #{gradcampp_forward.1} parent=1 // pred_fallthru
      _
    // Predicated region
    $region54: #{gradcampp_forward.1} parent=1 // pred_check
      _
    $region55: #{gradcampp_forward.1} parent=1 // pred_check_branch
      %53 = sbr.rel (0) target = $region57
    $region56: #{gradcampp_forward.1} parent=1 // pred_region
      _
    $region57: #{gradcampp_forward.1} parent=1 // pred_fallthru
      _
    // Predicated region
    $region58: #{gradcampp_forward.1} parent=1 // pred_check
      _
    $region59: #{gradcampp_forward.1} parent=1 // pred_check_branch
      %55 = sbr.rel (0) target = $region61
    $region60: #{gradcampp_forward.1} parent=1 // pred_region
      _
    $region61: #{gradcampp_forward.1} parent=1 // pred_fallthru
      _
    // Predicated region
    $region62: #{gradcampp_forward.1} parent=1 // pred_check
      _
    $region63: #{gradcampp_forward.1} parent=1 // pred_check_branch
      %57 = sbr.rel (0) target = $region65
    $region64: #{gradcampp_forward.1} parent=1 // pred_region
      _
    $region65: #{gradcampp_forward.1} parent=1 // pred_fallthru
      _
    // Predicated region
    $region66: #{gradcampp_forward.1} parent=1 // pred_check
      _
    $region67: #{gradcampp_forward.1} parent=1 // pred_check_branch
      %59 = sbr.rel (0) target = $region69
    $region68: #{gradcampp_forward.1} parent=1 // pred_region
      _
    $region69: #{gradcampp_forward.1} parent=1 // pred_fallthru
      _
    // Predicated region
    $region70: #{gradcampp_forward.1} parent=1 // pred_check
      _
    $region71: #{gradcampp_forward.1} parent=1 // pred_check_branch
      %61 = sbr.rel (0) target = $region73
    $region72: #{gradcampp_forward.1} parent=1 // pred_region
      _
    $region73: #{gradcampp_forward.1} parent=1 // pred_fallthru
      _
    %vm62 = vcmask 64512
    %63 = vst.msk [vmem:[#allocation2] sm:$0xff] %vm62, 0.0
    %64 = vst.msk [vmem:[#allocation2 + $0x8] sm:$0xff] %vm62, 0.0
    %vm65 = vcmask 58368
    %66 = vst.msk [vmem:[#allocation2 + $0x10] sm:$0x3] %vm65, 0.0
    %67 = vst.msk [vmem:[#allocation2 + $0x1b0] sm:$0xff] %vm62, 0.0
    %68 = vst.msk [vmem:[#allocation2 + $0x1b8] sm:$0xff] %vm62, 0.0
    %69 = vst.msk [vmem:[#allocation2 + $0x1c0] sm:$0x3] %vm65, 0.0
    %s70 = scalar_lea.vmem [#allocation2], 408
    %71 = vst.msk [vmem:[%s70] sm:$0xff] %vm62, 0.0
    %72 = vst.msk [vmem:[%s70 + $0x8] sm:$0xff] %vm62, 0.0
    %73 = vst.msk [vmem:[%s70 + $0x10] sm:$0x3] %vm65, 0.0
    %74 = vst.msk [vmem:[%s70 + $0x1b0] sm:$0xff] %vm62, 0.0
    %75 = vst.msk [vmem:[%s70 + $0x1b8] sm:$0xff] %vm62, 0.0
    %76 = vst.msk [vmem:[%s70 + $0x1c0] sm:$0x3] %vm65, 0.0
    %vm77 = vcmask 57344
    %78 = vst.msk [vmem:[#allocation2] sm:$0x1] %vm77, 0.0
    %79 = vst.msk [vmem:[#allocation2 + $0x18] sm:$0x1] %vm77, 0.0
    %80 = vst.msk [vmem:[#allocation2 + $0x30] sm:$0x1] %vm77, 0.0
    %81 = vst.msk [vmem:[#allocation2 + $0x48] sm:$0x1] %vm77, 0.0
    %82 = vst.msk [vmem:[#allocation2 + $0x60] sm:$0x1] %vm77, 0.0
    %83 = vst.msk [vmem:[#allocation2 + $0x78] sm:$0x1] %vm77, 0.0
    %84 = vst.msk [vmem:[#allocation2 + $0x90] sm:$0x1] %vm77, 0.0
    %85 = vst.msk [vmem:[#allocation2 + $0xa8] sm:$0x1] %vm77, 0.0
    %86 = vst.msk [vmem:[#allocation2 + $0xc0] sm:$0x1] %vm77, 0.0
    %87 = vst.msk [vmem:[#allocation2 + $0xd8] sm:$0x1] %vm77, 0.0
    %88 = vst.msk [vmem:[#allocation2 + $0xf0] sm:$0x1] %vm77, 0.0
    %89 = vst.msk [vmem:[#allocation2 + $0x108] sm:$0x1] %vm77, 0.0
    %90 = vst.msk [vmem:[#allocation2 + $0x120] sm:$0x1] %vm77, 0.0
    %91 = vst.msk [vmem:[#allocation2 + $0x138] sm:$0x1] %vm77, 0.0
    %92 = vst.msk [vmem:[#allocation2 + $0x150] sm:$0x1] %vm77, 0.0
    %93 = vst.msk [vmem:[#allocation2 + $0x168] sm:$0x1] %vm77, 0.0
    %94 = vst.msk [vmem:[#allocation2 + $0x180] sm:$0x1] %vm77, 0.0
    %95 = vst.msk [vmem:[#allocation2 + $0x198] sm:$0x1] %vm77, 0.0
    %96 = vst.msk [vmem:[#allocation2 + $0x1b0] sm:$0x1] %vm77, 0.0
    %97 = vst.msk [vmem:[#allocation2 + $0x1c8] sm:$0x1] %vm77, 0.0
    %98 = vst.msk [vmem:[#allocation2 + $0x1e0] sm:$0x1] %vm77, 0.0
    %99 = vst.msk [vmem:[#allocation2 + $0x1f8] sm:$0x1] %vm77, 0.0
    %100 = vst.msk [vmem:[#allocation2 + $0x210] sm:$0x1] %vm77, 0.0
    %101 = vst.msk [vmem:[#allocation2 + $0x228] sm:$0x1] %vm77, 0.0
    %102 = vst.msk [vmem:[#allocation2 + $0x240] sm:$0x1] %vm77, 0.0
    %103 = vst.msk [vmem:[#allocation2 + $0x258] sm:$0x1] %vm77, 0.0
    %104 = vst.msk [vmem:[#allocation2 + $0x270] sm:$0x1] %vm77, 0.0
    %105 = vst.msk [vmem:[#allocation2 + $0x288] sm:$0x1] %vm77, 0.0
    %106 = vst.msk [vmem:[#allocation2 + $0x2a0] sm:$0x1] %vm77, 0.0
    %107 = vst.msk [vmem:[#allocation2 + $0x2b8] sm:$0x1] %vm77, 0.0
    %108 = vst.msk [vmem:[#allocation2 + $0x2d0] sm:$0x1] %vm77, 0.0
    %109 = vst.msk [vmem:[#allocation2 + $0x2e8] sm:$0x1] %vm77, 0.0
    %110 = vst.msk [vmem:[#allocation2 + $0x300] sm:$0x1] %vm77, 0.0
    %111 = vst.msk [vmem:[#allocation2 + $0x318] sm:$0x1] %vm77, 0.0
    %112 = vst.msk [vmem:[#allocation2 + $0x330] sm:$0x1] %vm77, 0.0
    %113 = vst.msk [vmem:[#allocation2 + $0x348] sm:$0x1] %vm77, 0.0
    %114 = vst.msk [vmem:[#allocation2 + $0x11] sm:$0x1] %vm77, 0.0
    %115 = vst.msk [vmem:[#allocation2 + $0x29] sm:$0x1] %vm77, 0.0
    %116 = vst.msk [vmem:[#allocation2 + $0x41] sm:$0x1] %vm77, 0.0
    %117 = vst.msk [vmem:[#allocation2 + $0x59] sm:$0x1] %vm77, 0.0
    %118 = vst.msk [vmem:[#allocation2 + $0x71] sm:$0x1] %vm77, 0.0
    %119 = vst.msk [vmem:[#allocation2 + $0x89] sm:$0x1] %vm77, 0.0
    %120 = vst.msk [vmem:[#allocation2 + $0xa1] sm:$0x1] %vm77, 0.0
    %121 = vst.msk [vmem:[#allocation2 + $0xb9] sm:$0x1] %vm77, 0.0
    %122 = vst.msk [vmem:[#allocation2 + $0xd1] sm:$0x1] %vm77, 0.0
    %123 = vst.msk [vmem:[#allocation2 + $0xe9] sm:$0x1] %vm77, 0.0
    %124 = vst.msk [vmem:[#allocation2 + $0x101] sm:$0x1] %vm77, 0.0
    %125 = vst.msk [vmem:[#allocation2 + $0x119] sm:$0x1] %vm77, 0.0
    %126 = vst.msk [vmem:[#allocation2 + $0x131] sm:$0x1] %vm77, 0.0
    %127 = vst.msk [vmem:[#allocation2 + $0x149] sm:$0x1] %vm77, 0.0
    %128 = vst.msk [vmem:[#allocation2 + $0x161] sm:$0x1] %vm77, 0.0
    %129 = vst.msk [vmem:[#allocation2 + $0x179] sm:$0x1] %vm77, 0.0
    %130 = vst.msk [vmem:[#allocation2 + $0x191] sm:$0x1] %vm77, 0.0
    %131 = vst.msk [vmem:[#allocation2 + $0x1a9] sm:$0x1] %vm77, 0.0
    %132 = vst.msk [vmem:[#allocation2 + $0x1c1] sm:$0x1] %vm77, 0.0
    %133 = vst.msk [vmem:[#allocation2 + $0x1d9] sm:$0x1] %vm77, 0.0
    %134 = vst.msk [vmem:[#allocation2 + $0x1f1] sm:$0x1] %vm77, 0.0
    %135 = vst.msk [vmem:[#allocation2 + $0x209] sm:$0x1] %vm77, 0.0
    %136 = vst.msk [vmem:[#allocation2 + $0x221] sm:$0x1] %vm77, 0.0
    %137 = vst.msk [vmem:[#allocation2 + $0x239] sm:$0x1] %vm77, 0.0
    %138 = vst.msk [vmem:[#allocation2 + $0x251] sm:$0x1] %vm77, 0.0
    %139 = vst.msk [vmem:[#allocation2 + $0x269] sm:$0x1] %vm77, 0.0
    %140 = vst.msk [vmem:[#allocation2 + $0x281] sm:$0x1] %vm77, 0.0
    %141 = vst.msk [vmem:[#allocation2 + $0x299] sm:$0x1] %vm77, 0.0
    %142 = vst.msk [vmem:[#allocation2 + $0x2b1] sm:$0x1] %vm77, 0.0
    %143 = vst.msk [vmem:[#allocation2 + $0x2c9] sm:$0x1] %vm77, 0.0
    %144 = vst.msk [vmem:[#allocation2 + $0x2e1] sm:$0x1] %vm77, 0.0
    %145 = vst.msk [vmem:[#allocation2 + $0x2f9] sm:$0x1] %vm77, 0.0
    %146 = vst.msk [vmem:[#allocation2 + $0x311] sm:$0x1] %vm77, 0.0
    %147 = vst.msk [vmem:[#allocation2 + $0x329] sm:$0x1] %vm77, 0.0
    %148 = vst.msk [vmem:[#allocation2 + $0x341] sm:$0x1] %vm77, 0.0
    %149 = vst.msk [vmem:[#allocation2 + $0x359] sm:$0x1] %vm77, 0.0
    %vm150 = vcmask 130048
    %151 = vst.msk [vmem:[#allocation3] sm:$0xff] %vm150, 0.0
    %vm152 = vcmask 123904
    %153 = vst.msk [vmem:[#allocation3 + $0x8] sm:$0x3] %vm152, 0.0
    %154 = vst.msk [vmem:[#allocation3 + $0xa0] sm:$0xff] %vm150, 0.0
    %155 = vst.msk [vmem:[#allocation3 + $0xa8] sm:$0x3] %vm152, 0.0
    %s156 = scalar_lea.vmem [#allocation3], 144
    %157 = vst.msk [vmem:[%s156] sm:$0xff] %vm150, 0.0
    %158 = vst.msk [vmem:[%s156 + $0x8] sm:$0x3] %vm152, 0.0
    %159 = vst.msk [vmem:[%s156 + $0xa0] sm:$0xff] %vm150, 0.0
    %160 = vst.msk [vmem:[%s156 + $0xa8] sm:$0x3] %vm152, 0.0
    %vm161 = vcmask 122880
    %162 = vst.msk [vmem:[#allocation3] sm:$0x1] %vm161, 0.0
    %163 = vst.msk [vmem:[#allocation3 + $0x10] sm:$0x1] %vm161, 0.0
    %164 = vst.msk [vmem:[#allocation3 + $0x20] sm:$0x1] %vm161, 0.0
    %165 = vst.msk [vmem:[#allocation3 + $0x30] sm:$0x1] %vm161, 0.0
    %166 = vst.msk [vmem:[#allocation3 + $0x40] sm:$0x1] %vm161, 0.0
    %167 = vst.msk [vmem:[#allocation3 + $0x50] sm:$0x1] %vm161, 0.0
    %168 = vst.msk [vmem:[#allocation3 + $0x60] sm:$0x1] %vm161, 0.0
    %169 = vst.msk [vmem:[#allocation3 + $0x70] sm:$0x1] %vm161, 0.0
    %170 = vst.msk [vmem:[#allocation3 + $0x80] sm:$0x1] %vm161, 0.0
    %171 = vst.msk [vmem:[#allocation3 + $0x90] sm:$0x1] %vm161, 0.0
    %172 = vst.msk [vmem:[#allocation3 + $0xa0] sm:$0x1] %vm161, 0.0
    %173 = vst.msk [vmem:[#allocation3 + $0xb0] sm:$0x1] %vm161, 0.0
    %174 = vst.msk [vmem:[#allocation3 + $0xc0] sm:$0x1] %vm161, 0.0
    %175 = vst.msk [vmem:[#allocation3 + $0xd0] sm:$0x1] %vm161, 0.0
    %176 = vst.msk [vmem:[#allocation3 + $0xe0] sm:$0x1] %vm161, 0.0
    %177 = vst.msk [vmem:[#allocation3 + $0xf0] sm:$0x1] %vm161, 0.0
    %178 = vst.msk [vmem:[#allocation3 + $0x100] sm:$0x1] %vm161, 0.0
    %179 = vst.msk [vmem:[#allocation3 + $0x110] sm:$0x1] %vm161, 0.0
    %180 = vst.msk [vmem:[#allocation3 + $0x120] sm:$0x1] %vm161, 0.0
    %181 = vst.msk [vmem:[#allocation3 + $0x130] sm:$0x1] %vm161, 0.0
    %182 = vst.msk [vmem:[#allocation3 + $0x9] sm:$0x1] %vm161, 0.0
    %183 = vst.msk [vmem:[#allocation3 + $0x19] sm:$0x1] %vm161, 0.0
    %184 = vst.msk [vmem:[#allocation3 + $0x29] sm:$0x1] %vm161, 0.0
    %185 = vst.msk [vmem:[#allocation3 + $0x39] sm:$0x1] %vm161, 0.0
    %186 = vst.msk [vmem:[#allocation3 + $0x49] sm:$0x1] %vm161, 0.0
    %187 = vst.msk [vmem:[#allocation3 + $0x59] sm:$0x1] %vm161, 0.0
    %188 = vst.msk [vmem:[#allocation3 + $0x69] sm:$0x1] %vm161, 0.0
    %189 = vst.msk [vmem:[#allocation3 + $0x79] sm:$0x1] %vm161, 0.0
    %190 = vst.msk [vmem:[#allocation3 + $0x89] sm:$0x1] %vm161, 0.0
    %191 = vst.msk [vmem:[#allocation3 + $0x99] sm:$0x1] %vm161, 0.0
    %192 = vst.msk [vmem:[#allocation3 + $0xa9] sm:$0x1] %vm161, 0.0
    %193 = vst.msk [vmem:[#allocation3 + $0xb9] sm:$0x1] %vm161, 0.0
    %194 = vst.msk [vmem:[#allocation3 + $0xc9] sm:$0x1] %vm161, 0.0
    %195 = vst.msk [vmem:[#allocation3 + $0xd9] sm:$0x1] %vm161, 0.0
    %196 = vst.msk [vmem:[#allocation3 + $0xe9] sm:$0x1] %vm161, 0.0
    %197 = vst.msk [vmem:[#allocation3 + $0xf9] sm:$0x1] %vm161, 0.0
    %198 = vst.msk [vmem:[#allocation3 + $0x109] sm:$0x1] %vm161, 0.0
    %199 = vst.msk [vmem:[#allocation3 + $0x119] sm:$0x1] %vm161, 0.0
    %200 = vst.msk [vmem:[#allocation3 + $0x129] sm:$0x1] %vm161, 0.0
    %201 = vst.msk [vmem:[#allocation3 + $0x139] sm:$0x1] %vm161, 0.0
    %vm202 = vcmask 259072
    %203 = vst.msk [vmem:[#allocation4] sm:$0x3f] %vm202, 0.0
    %204 = vst.msk [vmem:[#allocation4 + $0x30] sm:$0x3f] %vm202, 0.0
    %s205 = scalar_lea.vmem [#allocation4], 40
    %206 = vst.msk [vmem:[%s205] sm:$0x3f] %vm202, 0.0
    %207 = vst.msk [vmem:[%s205 + $0x30] sm:$0x3f] %vm202, 0.0
    %vm208 = vcmask 253952
    %209 = vst.msk [vmem:[#allocation4] sm:$0x1] %vm208, 0.0
    %210 = vst.msk [vmem:[#allocation4 + $0x8] sm:$0x1] %vm208, 0.0
    %211 = vst.msk [vmem:[#allocation4 + $0x10] sm:$0x1] %vm208, 0.0
    %212 = vst.msk [vmem:[#allocation4 + $0x18] sm:$0x1] %vm208, 0.0
    %213 = vst.msk [vmem:[#allocation4 + $0x20] sm:$0x1] %vm208, 0.0
    %214 = vst.msk [vmem:[#allocation4 + $0x28] sm:$0x1] %vm208, 0.0
    %215 = vst.msk [vmem:[#allocation4 + $0x30] sm:$0x1] %vm208, 0.0
    %216 = vst.msk [vmem:[#allocation4 + $0x38] sm:$0x1] %vm208, 0.0
    %217 = vst.msk [vmem:[#allocation4 + $0x40] sm:$0x1] %vm208, 0.0
    %218 = vst.msk [vmem:[#allocation4 + $0x48] sm:$0x1] %vm208, 0.0
    %219 = vst.msk [vmem:[#allocation4 + $0x50] sm:$0x1] %vm208, 0.0
    %220 = vst.msk [vmem:[#allocation4 + $0x58] sm:$0x1] %vm208, 0.0
    %221 = vst.msk [vmem:[#allocation4 + $0x5] sm:$0x1] %vm208, 0.0
    %222 = vst.msk [vmem:[#allocation4 + $0xd] sm:$0x1] %vm208, 0.0
    %223 = vst.msk [vmem:[#allocation4 + $0x15] sm:$0x1] %vm208, 0.0
    %224 = vst.msk [vmem:[#allocation4 + $0x1d] sm:$0x1] %vm208, 0.0
    %225 = vst.msk [vmem:[#allocation4 + $0x25] sm:$0x1] %vm208, 0.0
    %226 = vst.msk [vmem:[#allocation4 + $0x2d] sm:$0x1] %vm208, 0.0
    %227 = vst.msk [vmem:[#allocation4 + $0x35] sm:$0x1] %vm208, 0.0
    %228 = vst.msk [vmem:[#allocation4 + $0x3d] sm:$0x1] %vm208, 0.0
    %229 = vst.msk [vmem:[#allocation4 + $0x45] sm:$0x1] %vm208, 0.0
    %230 = vst.msk [vmem:[#allocation4 + $0x4d] sm:$0x1] %vm208, 0.0
    %231 = vst.msk [vmem:[#allocation4 + $0x55] sm:$0x1] %vm208, 0.0
    %232 = vst.msk [vmem:[#allocation4 + $0x5d] sm:$0x1] %vm208, 0.0
    %vm233 = vcmask 519168
    %234 = vst.msk [vmem:[#allocation5] sm:$0xf] %vm233, 0.0
    %235 = vst.msk [vmem:[#allocation5 + $0x10] sm:$0xf] %vm233, 0.0
    %s236 = scalar_lea.vmem [#allocation5], 12
    %237 = vst.msk [vmem:[%s236] sm:$0xf] %vm233, 0.0
    %238 = vst.msk [vmem:[%s236 + $0x10] sm:$0xf] %vm233, 0.0
    %vm239 = vcmask 516096
    %240 = vst.msk [vmem:[#allocation5] sm:$0x1] %vm239, 0.0
    %241 = vst.msk [vmem:[#allocation5 + $0x4] sm:$0x1] %vm239, 0.0
    %242 = vst.msk [vmem:[#allocation5 + $0x8] sm:$0x1] %vm239, 0.0
    %243 = vst.msk [vmem:[#allocation5 + $0xc] sm:$0x1] %vm239, 0.0
    %244 = vst.msk [vmem:[#allocation5 + $0x10] sm:$0x1] %vm239, 0.0
    %245 = vst.msk [vmem:[#allocation5 + $0x14] sm:$0x1] %vm239, 0.0
    %246 = vst.msk [vmem:[#allocation5 + $0x18] sm:$0x1] %vm239, 0.0
    %247 = vst.msk [vmem:[#allocation5 + $0x1c] sm:$0x1] %vm239, 0.0
    %248 = vst.msk [vmem:[#allocation5 + $0x3] sm:$0x1] %vm239, 0.0
    %249 = vst.msk [vmem:[#allocation5 + $0x7] sm:$0x1] %vm239, 0.0
    %250 = vst.msk [vmem:[#allocation5 + $0xb] sm:$0x1] %vm239, 0.0
    %251 = vst.msk [vmem:[#allocation5 + $0xf] sm:$0x1] %vm239, 0.0
    %252 = vst.msk [vmem:[#allocation5 + $0x13] sm:$0x1] %vm239, 0.0
    %253 = vst.msk [vmem:[#allocation5 + $0x17] sm:$0x1] %vm239, 0.0
    %254 = vst.msk [vmem:[#allocation5 + $0x1b] sm:$0x1] %vm239, 0.0
    %255 = vst.msk [vmem:[#allocation5 + $0x1f] sm:$0x1] %vm239, 0.0
    %v256 = vld [vmem:[%s0] sm:$0xff]
    %v257 = vld [vmem:[%s0 + $0x8] sm:$0xff]
    %v258 = vld [vmem:[%s0 + $0x10] sm:$0xff]
    %v259 = vld [vmem:[%s0 + $0x18] sm:$0xff]
    %v260 = vld [vmem:[%s0 + $0x20] sm:$0xff]
    %v261 = vld [vmem:[%s0 + $0x28] sm:$0xff]
    %v262 = vld [vmem:[%s0 + $0x30] sm:$0xff]
    %v263 = vld [vmem:[%s0 + $0x38] sm:$0xff]
    %v264 = vld [vmem:[%s0 + $0x40] sm:$0xff]
    %v265 = vld [vmem:[%s0 + $0x48] sm:$0xff]
    %v266 = vld [vmem:[%s0 + $0x50] sm:$0xff]
    %v267 = vld [vmem:[%s0 + $0x58] sm:$0xff]
    %v268 = vld [vmem:[%s0 + $0x60] sm:$0xff]
    %v269 = vld [vmem:[%s0 + $0x68] sm:$0xff]
    %v270 = vld [vmem:[%s0 + $0x70] sm:$0xff]
    %v271 = vld [vmem:[%s0 + $0x78] sm:$0xff]
    %v272 = vld [vmem:[%s0 + $0x80] sm:$0xff]
    %v273 = vld [vmem:[%s0 + $0x88] sm:$0xff]
    %v274 = vld [vmem:[%s0 + $0x90] sm:$0xff]
    %v275 = vld [vmem:[%s0 + $0x98] sm:$0xff]
    %v276 = vld [vmem:[%s0 + $0xa0] sm:$0xff]
    %v277 = vld [vmem:[%s0 + $0xa8] sm:$0xff]
    %v278 = vld [vmem:[%s0 + $0xb0] sm:$0xff]
    %v279 = vld [vmem:[%s0 + $0xb8] sm:$0xff]
    %v280 = vld [vmem:[%s0 + $0xc0] sm:$0xff]
    %v281 = vld [vmem:[%s0 + $0xc8] sm:$0xff]
    %v282 = vld [vmem:[%s0 + $0xd0] sm:$0xff]
    %v283 = vld [vmem:[%s0 + $0xd8] sm:$0xff]
    %v284 = vld [vmem:[%s0 + $0xe0] sm:$0xff]
    %v285 = vld [vmem:[%s0 + $0xe8] sm:$0xff]
    %v286 = vld [vmem:[%s0 + $0xf0] sm:$0xff]
    %v287 = vld [vmem:[%s0 + $0xf8] sm:$0xff]
    %v288 = vld [vmem:[%s0 + $0x100] sm:$0xff]
    %v289 = vld [vmem:[%s0 + $0x108] sm:$0xff]
    %v290 = vld [vmem:[%s0 + $0x110] sm:$0xff]
    %v291 = vld [vmem:[%s0 + $0x118] sm:$0xff]
    %v292 = vld [vmem:[%s0 + $0x120] sm:$0xff]
    %v293 = vld [vmem:[%s0 + $0x128] sm:$0xff]
    %v294 = vld [vmem:[%s0 + $0x130] sm:$0xff]
    %v295 = vld [vmem:[%s0 + $0x138] sm:$0xff]
    %v296 = vld [vmem:[%s0 + $0x140] sm:$0xff]
    %v297 = vld [vmem:[%s0 + $0x148] sm:$0xff]
    %v298 = vld [vmem:[%s0 + $0x150] sm:$0xff]
    %v299 = vld [vmem:[%s0 + $0x158] sm:$0xff]
    %v300 = vld [vmem:[%s0 + $0x160] sm:$0xff]
    %v301 = vld [vmem:[%s0 + $0x168] sm:$0xff]
    %v302 = vld [vmem:[%s0 + $0x170] sm:$0xff]
    %v303 = vld [vmem:[%s0 + $0x178] sm:$0xff]
    %v304 = vld [vmem:[%s0 + $0x180] sm:$0xff]
    %v305 = vld [vmem:[%s0 + $0x188] sm:$0xff]
    %v306 = vld [vmem:[%s0 + $0x190] sm:$0xff]
    %v307 = vld [vmem:[%s0 + $0x198] sm:$0xff]
    %v308 = vld [vmem:[%s0 + $0x1a0] sm:$0xff]
    %v309 = vld [vmem:[%s0 + $0x1a8] sm:$0xff]
    %v310 = vld [vmem:[%s0 + $0x1b0] sm:$0xff]
    %v311 = vld [vmem:[%s0 + $0x1b8] sm:$0xff]
    %v312 = vld [vmem:[%s0 + $0x1c0] sm:$0xff]
    %v313 = vld [vmem:[%s0 + $0x1c8] sm:$0xff]
    %v314 = vld [vmem:[%s0 + $0x1d0] sm:$0xff]
    %v315 = vld [vmem:[%s0 + $0x1d8] sm:$0xff]
    %v316 = vld [vmem:[%s0 + $0x1e0] sm:$0xff]
    %v317 = vld [vmem:[%s0 + $0x1e8] sm:$0xff]
    %v318 = vld [vmem:[%s0 + $0x1f0] sm:$0xff]
    %v319 = vld [vmem:[%s0 + $0x1f8] sm:$0xff]
    %v320 = vld [vmem:[%s1] sm:$0xff]
    %v321 = vld [vmem:[%s1 + $0x8] sm:$0xff]
    %v322 = vld [vmem:[%s1 + $0x10] sm:$0xff]
    %v323 = vld [vmem:[%s1 + $0x18] sm:$0x7]
    %v324 = vld [vmem:[%s2] sm:$0x1]
    %v326 = vlaneseq
    %v327 = vshrl.u32 %v326, 7
    %v328 = vsub.s32 0, %v327
    %v329 = vrot.slane %v324, %v328
    %vm331 = vcmask 220160
    %v333 = vsel %vm331, %v256, 0
    %v336 = vsel %vm331, %v257, 0
    %v339 = vsel %vm331, %v258, 0
    %v342 = vsel %vm331, %v259, 0
    %v345 = vsel %vm331, %v260, 0
    %v348 = vsel %vm331, %v261, 0
    %v351 = vsel %vm331, %v262, 0
    %v354 = vsel %vm331, %v263, 0
    %v357 = vsel %vm331, %v264, 0
    %v360 = vsel %vm331, %v265, 0
    %v363 = vsel %vm331, %v266, 0
    %v366 = vsel %vm331, %v267, 0
    %v369 = vsel %vm331, %v268, 0
    %v372 = vsel %vm331, %v269, 0
    %v375 = vsel %vm331, %v270, 0
    %v378 = vsel %vm331, %v271, 0
    %v381 = vsel %vm331, %v272, 0
    %v384 = vsel %vm331, %v273, 0
    %v387 = vsel %vm331, %v274, 0
    %v390 = vsel %vm331, %v275, 0
    %v393 = vsel %vm331, %v276, 0
    %v396 = vsel %vm331, %v277, 0
    %v399 = vsel %vm331, %v278, 0
    %v402 = vsel %vm331, %v279, 0
    %v405 = vsel %vm331, %v280, 0
    %v408 = vsel %vm331, %v281, 0
    %v411 = vsel %vm331, %v282, 0
    %v414 = vsel %vm331, %v283, 0
    %v417 = vsel %vm331, %v284, 0
    %v420 = vsel %vm331, %v285, 0
    %v423 = vsel %vm331, %v286, 0
    %v426 = vsel %vm331, %v287, 0
    %v429 = vsel %vm331, %v288, 0
    %v432 = vsel %vm331, %v289, 0
    %v435 = vsel %vm331, %v290, 0
    %v438 = vsel %vm331, %v291, 0
    %v441 = vsel %vm331, %v292, 0
    %v444 = vsel %vm331, %v293, 0
    %v447 = vsel %vm331, %v294, 0
    %v450 = vsel %vm331, %v295, 0
    %v453 = vsel %vm331, %v296, 0
    %v456 = vsel %vm331, %v297, 0
    %v459 = vsel %vm331, %v298, 0
    %v462 = vsel %vm331, %v299, 0
    %v465 = vsel %vm331, %v300, 0
    %v468 = vsel %vm331, %v301, 0
    %v471 = vsel %vm331, %v302, 0
    %v474 = vsel %vm331, %v303, 0
    %v477 = vsel %vm331, %v304, 0
    %v480 = vsel %vm331, %v305, 0
    %v483 = vsel %vm331, %v306, 0
    %v486 = vsel %vm331, %v307, 0
    %v489 = vsel %vm331, %v308, 0
    %v492 = vsel %vm331, %v309, 0
    %v495 = vsel %vm331, %v310, 0
    %v498 = vsel %vm331, %v311, 0
    %v501 = vsel %vm331, %v312, 0
    %v504 = vsel %vm331, %v313, 0
    %v507 = vsel %vm331, %v314, 0
    %v510 = vsel %vm331, %v315, 0
    %v513 = vsel %vm331, %v316, 0
    %v516 = vsel %vm331, %v317, 0
    %v519 = vsel %vm331, %v318, 0
    %v522 = vsel %vm331, %v319, 0
    %vm524 = vcmask 1042432
    %v526 = vsel %vm524, %v323, 0
    %528 = vmatprep.subr.mxu0 0.0
    %529 = vmatpush1.msra.mxu0 %v320
    %530 = vmatprep.subr.mxu0 0.0
    %531 = vmatpush1.msra.mxu0 %v321
    %532 = vmatprep.subr.mxu0 0.0
    %533 = vmatpush1.msra.mxu0 %v322
    %534 = vmatprep.subr.mxu0 0.0
    %535 = vmatpush1.msra.mxu0 %v526
    %536 = vmatprep.subr.mxu0 0.0
    %537 = vmatpush1.msra.mxu0 0.0
    %538 = vmatprep.subr.mxu0 0.0
    %539 = vmatpush1.msra.mxu0 0.0
    %540 = vmatprep.subr.mxu0 0.0
    %541 = vmatpush1.msra.mxu0 0.0
    %542 = vmatprep.subr.mxu0 0.0
    %543 = vmatpush1.msra.mxu0 0.0
    %544 = vmatprep.subr.mxu0 0.0
    %545 = vmatpush1.msra.mxu0 0.0
    %546 = vmatprep.subr.mxu0 0.0
    %547 = vmatpush1.msra.mxu0 0.0
    %548 = vmatprep.subr.mxu0 0.0
    %549 = vmatpush1.msra.mxu0 0.0
    %550 = vmatprep.subr.mxu0 0.0
    %551 = vmatpush1.msra.mxu0 0.0
    %552 = vmatprep.subr.mxu0 0.0
    %553 = vmatpush1.msra.mxu0 0.0
    %554 = vmatprep.subr.mxu0 0.0
    %555 = vmatpush1.msra.mxu0 0.0
    %556 = vmatprep.subr.mxu0 0.0
    %557 = vmatpush1.msra.mxu0 0.0
    %558 = vmatprep.subr.mxu0 0.0
    %559 = vmatpush1.msra.mxu0 0.0
    %560 = vmatprep.subr.mxu0 0.0
    %561 = vmatpush1.msra.mxu0 0.0
    %562 = vmatprep.subr.mxu0 0.0
    %563 = vmatpush1.msra.mxu0 0.0
    %564 = vmatprep.subr.mxu0 0.0
    %565 = vmatpush1.msra.mxu0 0.0
    %566 = vmatprep.subr.mxu0 0.0
    %567 = vmatpush1.msra.mxu0 0.0
    %568 = vmatprep.subr.mxu0 0.0
    %569 = vmatpush1.msra.mxu0 0.0
    %570 = vmatprep.subr.mxu0 0.0
    %571 = vmatpush1.msra.mxu0 0.0
    %572 = vmatprep.subr.mxu0 0.0
    %573 = vmatpush1.msra.mxu0 0.0
    %574 = vmatprep.subr.mxu0 0.0
    %575 = vmatpush1.msra.mxu0 0.0
    %576 = vmatprep.subr.mxu0 0.0
    %577 = vmatpush1.msra.mxu0 0.0
    %578 = vmatprep.subr.mxu0 0.0
    %579 = vmatpush1.msra.mxu0 0.0
    %580 = vmatprep.subr.mxu0 0.0
    %581 = vmatpush1.msra.mxu0 0.0
    %582 = vmatprep.subr.mxu0 0.0
    %583 = vmatpush1.msra.mxu0 0.0
    %584 = vmatprep.subr.mxu0 0.0
    %585 = vmatpush1.msra.mxu0 0.0
    %586 = vmatprep.subr.mxu0 0.0
    %587 = vmatpush1.msra.mxu0 0.0
    %588 = vmatprep.subr.mxu0 0.0
    %589 = vmatpush1.msra.mxu0 0.0
    %590 = vmatprep.subr.mxu0 0.0
    %591 = vmatpush1.msra.mxu0 0.0
    %592 = vmatprep.mubr.f32.mxu0 0.0
    %593 = vmatmul.mubr.f32.gmra.mrb[0].mxu0 %v333
    %v594 = vpop.f32.mrb[0].mxu0
    %v595 = vadd.f32 %v329, %v594
    %v596 = vpop.f32.mrb[0].mxu0
    %597 = vmatprep.mubr.f32.mxu0 0.0
    %598 = vmatmul.mubr.f32.gmra.mrb[0].mxu0 %v336
    %v599 = vpop.f32.mrb[0].mxu0
    %v600 = vadd.f32 %v329, %v599
    %v601 = vpop.f32.mrb[0].mxu0
    %602 = vmatprep.mubr.f32.mxu0 0.0
    %603 = vmatmul.mubr.f32.gmra.mrb[0].mxu0 %v339
    %v604 = vpop.f32.mrb[0].mxu0
    %v605 = vadd.f32 %v329, %v604
    %v606 = vpop.f32.mrb[0].mxu0
    %607 = vmatprep.mubr.f32.mxu0 0.0
    %608 = vmatmul.mubr.f32.gmra.mrb[0].mxu0 %v342
    %v609 = vpop.f32.mrb[0].mxu0
    %v610 = vadd.f32 %v329, %v609
    %v611 = vpop.f32.mrb[0].mxu0
    %612 = vmatprep.mubr.f32.mxu0 0.0
    %613 = vmatmul.mubr.f32.gmra.mrb[0].mxu0 %v345
    %v614 = vpop.f32.mrb[0].mxu0
    %v615 = vadd.f32 %v329, %v614
    %v616 = vpop.f32.mrb[0].mxu0
    %617 = vmatprep.mubr.f32.mxu0 0.0
    %618 = vmatmul.mubr.f32.gmra.mrb[0].mxu0 %v348
    %v619 = vpop.f32.mrb[0].mxu0
    %v620 = vadd.f32 %v329, %v619
    %v621 = vpop.f32.mrb[0].mxu0
    %622 = vmatprep.mubr.f32.mxu0 0.0
    %623 = vmatmul.mubr.f32.gmra.mrb[0].mxu0 %v351
    %v624 = vpop.f32.mrb[0].mxu0
    %v625 = vadd.f32 %v329, %v624
    %v626 = vpop.f32.mrb[0].mxu0
    %627 = vmatprep.mubr.f32.mxu0 0.0
    %628 = vmatmul.mubr.f32.gmra.mrb[0].mxu0 %v354
    %v629 = vpop.f32.mrb[0].mxu0
    %v630 = vadd.f32 %v329, %v629
    %v631 = vpop.f32.mrb[0].mxu0
    %632 = vmatprep.mubr.f32.mxu0 0.0
    %633 = vmatmul.mubr.f32.gmra.mrb[0].mxu0 %v357
    %v634 = vpop.f32.mrb[0].mxu0
    %v635 = vadd.f32 %v329, %v634
    %v636 = vpop.f32.mrb[0].mxu0
    %637 = vmatprep.mubr.f32.mxu0 0.0
    %638 = vmatmul.mubr.f32.gmra.mrb[0].mxu0 %v360
    %v639 = vpop.f32.mrb[0].mxu0
    %v640 = vadd.f32 %v329, %v639
    %v641 = vpop.f32.mrb[0].mxu0
    %642 = vmatprep.mubr.f32.mxu0 0.0
    %643 = vmatmul.mubr.f32.gmra.mrb[0].mxu0 %v363
    %v644 = vpop.f32.mrb[0].mxu0
    %v645 = vadd.f32 %v329, %v644
    %v646 = vpop.f32.mrb[0].mxu0
    %647 = vmatprep.mubr.f32.mxu0 0.0
    %648 = vmatmul.mubr.f32.gmra.mrb[0].mxu0 %v366
    %v649 = vpop.f32.mrb[0].mxu0
    %v650 = vadd.f32 %v329, %v649
    %v651 = vpop.f32.mrb[0].mxu0
    %652 = vmatprep.mubr.f32.mxu0 0.0
    %653 = vmatmul.mubr.f32.gmra.mrb[0].mxu0 %v369
    %v654 = vpop.f32.mrb[0].mxu0
    %v655 = vadd.f32 %v329, %v654
    %v656 = vpop.f32.mrb[0].mxu0
    %657 = vmatprep.mubr.f32.mxu0 0.0
    %658 = vmatmul.mubr.f32.gmra.mrb[0].mxu0 %v372
    %v659 = vpop.f32.mrb[0].mxu0
    %v660 = vadd.f32 %v329, %v659
    %v661 = vpop.f32.mrb[0].mxu0
    %662 = vmatprep.mubr.f32.mxu0 0.0
    %663 = vmatmul.mubr.f32.gmra.mrb[0].mxu0 %v375
    %v664 = vpop.f32.mrb[0].mxu0
    %v665 = vadd.f32 %v329, %v664
    %v666 = vpop.f32.mrb[0].mxu0
    %667 = vmatprep.mubr.f32.mxu0 0.0
    %668 = vmatmul.mubr.f32.gmra.mrb[0].mxu0 %v378
    %v669 = vpop.f32.mrb[0].mxu0
    %v670 = vadd.f32 %v329, %v669
    %v671 = vpop.f32.mrb[0].mxu0
    %672 = vmatprep.mubr.f32.mxu0 0.0
    %673 = vmatmul.mubr.f32.gmra.mrb[0].mxu0 %v381
    %v674 = vpop.f32.mrb[0].mxu0
    %v675 = vadd.f32 %v329, %v674
    %v676 = vpop.f32.mrb[0].mxu0
    %677 = vmatprep.mubr.f32.mxu0 0.0
    %678 = vmatmul.mubr.f32.gmra.mrb[0].mxu0 %v384
    %v679 = vpop.f32.mrb[0].mxu0
    %v680 = vadd.f32 %v329, %v679
    %v681 = vpop.f32.mrb[0].mxu0
    %682 = vmatprep.mubr.f32.mxu0 0.0
    %683 = vmatmul.mubr.f32.gmra.mrb[0].mxu0 %v387
    %v684 = vpop.f32.mrb[0].mxu0
    %v685 = vadd.f32 %v329, %v684
    %v686 = vpop.f32.mrb[0].mxu0
    %687 = vmatprep.mubr.f32.mxu0 0.0
    %688 = vmatmul.mubr.f32.gmra.mrb[0].mxu0 %v390
    %v689 = vpop.f32.mrb[0].mxu0
    %v690 = vadd.f32 %v329, %v689
    %v691 = vpop.f32.mrb[0].mxu0
    %692 = vmatprep.mubr.f32.mxu0 0.0
    %693 = vmatmul.mubr.f32.gmra.mrb[0].mxu0 %v393
    %v694 = vpop.f32.mrb[0].mxu0
    %v695 = vadd.f32 %v329, %v694
    %v696 = vpop.f32.mrb[0].mxu0
    %697 = vmatprep.mubr.f32.mxu0 0.0
    %698 = vmatmul.mubr.f32.gmra.mrb[0].mxu0 %v396
    %v699 = vpop.f32.mrb[0].mxu0
    %v700 = vadd.f32 %v329, %v699
    %v701 = vpop.f32.mrb[0].mxu0
    %702 = vmatprep.mubr.f32.mxu0 0.0
    %703 = vmatmul.mubr.f32.gmra.mrb[0].mxu0 %v399
    %v704 = vpop.f32.mrb[0].mxu0
    %v705 = vadd.f32 %v329, %v704
    %v706 = vpop.f32.mrb[0].mxu0
    %707 = vmatprep.mubr.f32.mxu0 0.0
    %708 = vmatmul.mubr.f32.gmra.mrb[0].mxu0 %v402
    %v709 = vpop.f32.mrb[0].mxu0
    %v710 = vadd.f32 %v329, %v709
    %v711 = vpop.f32.mrb[0].mxu0
    %712 = vmatprep.mubr.f32.mxu0 0.0
    %713 = vmatmul.mubr.f32.gmra.mrb[0].mxu0 %v405
    %v714 = vpop.f32.mrb[0].mxu0
    %v715 = vadd.f32 %v329, %v714
    %v716 = vpop.f32.mrb[0].mxu0
    %717 = vmatprep.mubr.f32.mxu0 0.0
    %718 = vmatmul.mubr.f32.gmra.mrb[0].mxu0 %v408
    %v719 = vpop.f32.mrb[0].mxu0
    %v720 = vadd.f32 %v329, %v719
    %v721 = vpop.f32.mrb[0].mxu0
    %722 = vmatprep.mubr.f32.mxu0 0.0
    %723 = vmatmul.mubr.f32.gmra.mrb[0].mxu0 %v411
    %v724 = vpop.f32.mrb[0].mxu0
    %v725 = vadd.f32 %v329, %v724
    %v726 = vpop.f32.mrb[0].mxu0
    %727 = vmatprep.mubr.f32.mxu0 0.0
    %728 = vmatmul.mubr.f32.gmra.mrb[0].mxu0 %v414
    %v729 = vpop.f32.mrb[0].mxu0
    %v730 = vadd.f32 %v329, %v729
    %v731 = vpop.f32.mrb[0].mxu0
    %732 = vmatprep.mubr.f32.mxu0 0.0
    %733 = vmatmul.mubr.f32.gmra.mrb[0].mxu0 %v417
    %v734 = vpop.f32.mrb[0].mxu0
    %v735 = vadd.f32 %v329, %v734
    %v736 = vpop.f32.mrb[0].mxu0
    %737 = vmatprep.mubr.f32.mxu0 0.0
    %738 = vmatmul.mubr.f32.gmra.mrb[0].mxu0 %v420
    %v739 = vpop.f32.mrb[0].mxu0
    %v740 = vadd.f32 %v329, %v739
    %v741 = vpop.f32.mrb[0].mxu0
    %742 = vmatprep.mubr.f32.mxu0 0.0
    %743 = vmatmul.mubr.f32.gmra.mrb[0].mxu0 %v423
    %v744 = vpop.f32.mrb[0].mxu0
    %v745 = vadd.f32 %v329, %v744
    %v746 = vpop.f32.mrb[0].mxu0
    %747 = vmatprep.mubr.f32.mxu0 0.0
    %748 = vmatmul.mubr.f32.gmra.mrb[0].mxu0 %v426
    %v749 = vpop.f32.mrb[0].mxu0
    %v750 = vadd.f32 %v329, %v749
    %v751 = vpop.f32.mrb[0].mxu0
    %752 = vmatprep.mubr.f32.mxu0 0.0
    %753 = vmatmul.mubr.f32.gmra.mrb[0].mxu0 %v429
    %v754 = vpop.f32.mrb[0].mxu0
    %v755 = vadd.f32 %v329, %v754
    %v756 = vpop.f32.mrb[0].mxu0
    %757 = vmatprep.mubr.f32.mxu0 0.0
    %758 = vmatmul.mubr.f32.gmra.mrb[0].mxu0 %v432
    %v759 = vpop.f32.mrb[0].mxu0
    %v760 = vadd.f32 %v329, %v759
    %v761 = vpop.f32.mrb[0].mxu0
    %762 = vmatprep.mubr.f32.mxu0 0.0
    %763 = vmatmul.mubr.f32.gmra.mrb[0].mxu0 %v435
    %v764 = vpop.f32.mrb[0].mxu0
    %v765 = vadd.f32 %v329, %v764
    %v766 = vpop.f32.mrb[0].mxu0
    %767 = vmatprep.mubr.f32.mxu0 0.0
    %768 = vmatmul.mubr.f32.gmra.mrb[0].mxu0 %v438
    %v769 = vpop.f32.mrb[0].mxu0
    %v770 = vadd.f32 %v329, %v769
    %v771 = vpop.f32.mrb[0].mxu0
    %772 = vmatprep.mubr.f32.mxu0 0.0
    %773 = vmatmul.mubr.f32.gmra.mrb[0].mxu0 %v441
    %v774 = vpop.f32.mrb[0].mxu0
    %v775 = vadd.f32 %v329, %v774
    %v776 = vpop.f32.mrb[0].mxu0
    %777 = vmatprep.mubr.f32.mxu0 0.0
    %778 = vmatmul.mubr.f32.gmra.mrb[0].mxu0 %v444
    %v779 = vpop.f32.mrb[0].mxu0
    %v780 = vadd.f32 %v329, %v779
    %v781 = vpop.f32.mrb[0].mxu0
    %782 = vmatprep.mubr.f32.mxu0 0.0
    %783 = vmatmul.mubr.f32.gmra.mrb[0].mxu0 %v447
    %v784 = vpop.f32.mrb[0].mxu0
    %v785 = vadd.f32 %v329, %v784
    %v786 = vpop.f32.mrb[0].mxu0
    %787 = vmatprep.mubr.f32.mxu0 0.0
    %788 = vmatmul.mubr.f32.gmra.mrb[0].mxu0 %v450
    %v789 = vpop.f32.mrb[0].mxu0
    %v790 = vadd.f32 %v329, %v789
    %v791 = vpop.f32.mrb[0].mxu0
    %792 = vmatprep.mubr.f32.mxu0 0.0
    %793 = vmatmul.mubr.f32.gmra.mrb[0].mxu0 %v453
    %v794 = vpop.f32.mrb[0].mxu0
    %v795 = vadd.f32 %v329, %v794
    %v796 = vpop.f32.mrb[0].mxu0
    %797 = vmatprep.mubr.f32.mxu0 0.0
    %798 = vmatmul.mubr.f32.gmra.mrb[0].mxu0 %v456
    %v799 = vpop.f32.mrb[0].mxu0
    %v800 = vadd.f32 %v329, %v799
    %v801 = vpop.f32.mrb[0].mxu0
    %802 = vmatprep.mubr.f32.mxu0 0.0
    %803 = vmatmul.mubr.f32.gmra.mrb[0].mxu0 %v459
    %v804 = vpop.f32.mrb[0].mxu0
    %v805 = vadd.f32 %v329, %v804
    %v806 = vpop.f32.mrb[0].mxu0
    %807 = vmatprep.mubr.f32.mxu0 0.0
    %808 = vmatmul.mubr.f32.gmra.mrb[0].mxu0 %v462
    %v809 = vpop.f32.mrb[0].mxu0
    %v810 = vadd.f32 %v329, %v809
    %v811 = vpop.f32.mrb[0].mxu0
    %812 = vmatprep.mubr.f32.mxu0 0.0
    %813 = vmatmul.mubr.f32.gmra.mrb[0].mxu0 %v465
    %v814 = vpop.f32.mrb[0].mxu0
    %v815 = vadd.f32 %v329, %v814
    %v816 = vpop.f32.mrb[0].mxu0
    %817 = vmatprep.mubr.f32.mxu0 0.0
    %818 = vmatmul.mubr.f32.gmra.mrb[0].mxu0 %v468
    %v819 = vpop.f32.mrb[0].mxu0
    %v820 = vadd.f32 %v329, %v819
    %v821 = vpop.f32.mrb[0].mxu0
    %822 = vmatprep.mubr.f32.mxu0 0.0
    %823 = vmatmul.mubr.f32.gmra.mrb[0].mxu0 %v471
    %v824 = vpop.f32.mrb[0].mxu0
    %v825 = vadd.f32 %v329, %v824
    %v826 = vpop.f32.mrb[0].mxu0
    %827 = vmatprep.mubr.f32.mxu0 0.0
    %828 = vmatmul.mubr.f32.gmra.mrb[0].mxu0 %v474
    %v829 = vpop.f32.mrb[0].mxu0
    %v830 = vadd.f32 %v329, %v829
    %v831 = vpop.f32.mrb[0].mxu0
    %832 = vmatprep.mubr.f32.mxu0 0.0
    %833 = vmatmul.mubr.f32.gmra.mrb[0].mxu0 %v477
    %v834 = vpop.f32.mrb[0].mxu0
    %v835 = vadd.f32 %v329, %v834
    %v836 = vpop.f32.mrb[0].mxu0
    %837 = vmatprep.mubr.f32.mxu0 0.0
    %838 = vmatmul.mubr.f32.gmra.mrb[0].mxu0 %v480
    %v839 = vpop.f32.mrb[0].mxu0
    %v840 = vadd.f32 %v329, %v839
    %v841 = vpop.f32.mrb[0].mxu0
    %842 = vmatprep.mubr.f32.mxu0 0.0
    %843 = vmatmul.mubr.f32.gmra.mrb[0].mxu0 %v483
    %v844 = vpop.f32.mrb[0].mxu0
    %v845 = vadd.f32 %v329, %v844
    %v846 = vpop.f32.mrb[0].mxu0
    %847 = vmatprep.mubr.f32.mxu0 0.0
    %848 = vmatmul.mubr.f32.gmra.mrb[0].mxu0 %v486
    %v849 = vpop.f32.mrb[0].mxu0
    %v850 = vadd.f32 %v329, %v849
    %v851 = vpop.f32.mrb[0].mxu0
    %852 = vmatprep.mubr.f32.mxu0 0.0
    %853 = vmatmul.mubr.f32.gmra.mrb[0].mxu0 %v489
    %v854 = vpop.f32.mrb[0].mxu0
    %v855 = vadd.f32 %v329, %v854
    %v856 = vpop.f32.mrb[0].mxu0
    %857 = vmatprep.mubr.f32.mxu0 0.0
    %858 = vmatmul.mubr.f32.gmra.mrb[0].mxu0 %v492
    %v859 = vpop.f32.mrb[0].mxu0
    %v860 = vadd.f32 %v329, %v859
    %v861 = vpop.f32.mrb[0].mxu0
    %862 = vmatprep.mubr.f32.mxu0 0.0
    %863 = vmatmul.mubr.f32.gmra.mrb[0].mxu0 %v495
    %v864 = vpop.f32.mrb[0].mxu0
    %v865 = vadd.f32 %v329, %v864
    %v866 = vpop.f32.mrb[0].mxu0
    %867 = vmatprep.mubr.f32.mxu0 0.0
    %868 = vmatmul.mubr.f32.gmra.mrb[0].mxu0 %v498
    %v869 = vpop.f32.mrb[0].mxu0
    %v870 = vadd.f32 %v329, %v869
    %v871 = vpop.f32.mrb[0].mxu0
    %872 = vmatprep.mubr.f32.mxu0 0.0
    %873 = vmatmul.mubr.f32.gmra.mrb[0].mxu0 %v501
    %v874 = vpop.f32.mrb[0].mxu0
    %v875 = vadd.f32 %v329, %v874
    %v876 = vpop.f32.mrb[0].mxu0
    %877 = vmatprep.mubr.f32.mxu0 0.0
    %878 = vmatmul.mubr.f32.gmra.mrb[0].mxu0 %v504
    %v879 = vpop.f32.mrb[0].mxu0
    %v880 = vadd.f32 %v329, %v879
    %v881 = vpop.f32.mrb[0].mxu0
    %882 = vmatprep.mubr.f32.mxu0 0.0
    %883 = vmatmul.mubr.f32.gmra.mrb[0].mxu0 %v507
    %v884 = vpop.f32.mrb[0].mxu0
    %v885 = vadd.f32 %v329, %v884
    %v886 = vpop.f32.mrb[0].mxu0
    %887 = vmatprep.mubr.f32.mxu0 0.0
    %888 = vmatmul.mubr.f32.gmra.mrb[0].mxu0 %v510
    %v889 = vpop.f32.mrb[0].mxu0
    %v890 = vadd.f32 %v329, %v889
    %v891 = vpop.f32.mrb[0].mxu0
    %892 = vmatprep.mubr.f32.mxu0 0.0
    %893 = vmatmul.mubr.f32.gmra.mrb[0].mxu0 %v513
    %v894 = vpop.f32.mrb[0].mxu0
    %v895 = vadd.f32 %v329, %v894
    %v896 = vpop.f32.mrb[0].mxu0
    %897 = vmatprep.mubr.f32.mxu0 0.0
    %898 = vmatmul.mubr.f32.gmra.mrb[0].mxu0 %v516
    %v899 = vpop.f32.mrb[0].mxu0
    %v900 = vadd.f32 %v329, %v899
    %v901 = vpop.f32.mrb[0].mxu0
    %902 = vmatprep.mubr.f32.mxu0 0.0
    %903 = vmatmul.mubr.f32.gmra.mrb[0].mxu0 %v519
    %v904 = vpop.f32.mrb[0].mxu0
    %v905 = vadd.f32 %v329, %v904
    %v906 = vpop.f32.mrb[0].mxu0
    %907 = vmatprep.mubr.f32.mxu0 0.0
    %908 = vmatmul.mubr.f32.gmra.mrb[0].mxu0 %v522
    %v909 = vpop.f32.mrb[0].mxu0
    %v910 = vadd.f32 %v329, %v909
    %v911 = vpop.f32.mrb[0].mxu0
    %912 = vdwg.mxu0
    %v913 = vmax.f32 %v595, 0.0
    %v914 = vmax.f32 %v600, 0.0
    %v915 = vmax.f32 %v605, 0.0
    %v916 = vmax.f32 %v610, 0.0
    %v917 = vmax.f32 %v615, 0.0
    %v918 = vmax.f32 %v620, 0.0
    %v919 = vmax.f32 %v625, 0.0
    %v920 = vmax.f32 %v630, 0.0
    %v921 = vmax.f32 %v635, 0.0
    %v922 = vmax.f32 %v640, 0.0
    %v923 = vmax.f32 %v645, 0.0
    %v924 = vmax.f32 %v650, 0.0
    %v925 = vmax.f32 %v655, 0.0
    %v926 = vmax.f32 %v660, 0.0
    %v927 = vmax.f32 %v665, 0.0
    %v928 = vmax.f32 %v670, 0.0
    %v929 = vmax.f32 %v675, 0.0
    %v930 = vmax.f32 %v680, 0.0
    %v931 = vmax.f32 %v685, 0.0
    %v932 = vmax.f32 %v690, 0.0
    %v933 = vmax.f32 %v695, 0.0
    %v934 = vmax.f32 %v700, 0.0
    %v935 = vmax.f32 %v705, 0.0
    %v936 = vmax.f32 %v710, 0.0
    %v937 = vmax.f32 %v715, 0.0
    %v938 = vmax.f32 %v720, 0.0
    %v939 = vmax.f32 %v725, 0.0
    %v940 = vmax.f32 %v730, 0.0
    %v941 = vmax.f32 %v735, 0.0
    %v942 = vmax.f32 %v740, 0.0
    %v943 = vmax.f32 %v745, 0.0
    %v944 = vmax.f32 %v750, 0.0
    %v945 = vmax.f32 %v755, 0.0
    %v946 = vmax.f32 %v760, 0.0
    %v947 = vmax.f32 %v765, 0.0
    %v948 = vmax.f32 %v770, 0.0
    %v949 = vmax.f32 %v775, 0.0
    %v950 = vmax.f32 %v780, 0.0
    %v951 = vmax.f32 %v785, 0.0
    %v952 = vmax.f32 %v790, 0.0
    %v953 = vmax.f32 %v795, 0.0
    %v954 = vmax.f32 %v800, 0.0
    %v955 = vmax.f32 %v805, 0.0
    %v956 = vmax.f32 %v810, 0.0
    %v957 = vmax.f32 %v815, 0.0
    %v958 = vmax.f32 %v820, 0.0
    %v959 = vmax.f32 %v825, 0.0
    %v960 = vmax.f32 %v830, 0.0
    %v961 = vmax.f32 %v835, 0.0
    %v962 = vmax.f32 %v840, 0.0
    %v963 = vmax.f32 %v845, 0.0
    %v964 = vmax.f32 %v850, 0.0
    %v965 = vmax.f32 %v855, 0.0
    %v966 = vmax.f32 %v860, 0.0
    %v967 = vmax.f32 %v865, 0.0
    %v968 = vmax.f32 %v870, 0.0
    %v969 = vmax.f32 %v875, 0.0
    %v970 = vmax.f32 %v880, 0.0
    %v971 = vmax.f32 %v885, 0.0
    %v972 = vmax.f32 %v890, 0.0
    %v973 = vmax.f32 %v895, 0.0
    %v974 = vmax.f32 %v900, 0.0
    %v975 = vmax.f32 %v905, 0.0
    %v976 = vmax.f32 %v910, 0.0
    %s977 = scalar_lea.vmem [#allocation2], 24
    %978 = vst.msk [vmem:[%s977 + $0x1] sm:$0xff] %vm62, %v913
    %979 = vst.msk [vmem:[%s977 + $0x9] sm:$0xff] %vm62, %v914
    %980 = vst.msk [vmem:[%s977 + $0x19] sm:$0xff] %vm62, %v915
    %981 = vst.msk [vmem:[%s977 + $0x21] sm:$0xff] %vm62, %v916
    %982 = vst.msk [vmem:[%s977 + $0x31] sm:$0xff] %vm62, %v917
    %983 = vst.msk [vmem:[%s977 + $0x39] sm:$0xff] %vm62, %v918
    %984 = vst.msk [vmem:[%s977 + $0x49] sm:$0xff] %vm62, %v919
    %985 = vst.msk [vmem:[%s977 + $0x51] sm:$0xff] %vm62, %v920
    %986 = vst.msk [vmem:[%s977 + $0x61] sm:$0xff] %vm62, %v921
    %987 = vst.msk [vmem:[%s977 + $0x69] sm:$0xff] %vm62, %v922
    %988 = vst.msk [vmem:[%s977 + $0x79] sm:$0xff] %vm62, %v923
    %989 = vst.msk [vmem:[%s977 + $0x81] sm:$0xff] %vm62, %v924
    %990 = vst.msk [vmem:[%s977 + $0x91] sm:$0xff] %vm62, %v925
    %991 = vst.msk [vmem:[%s977 + $0x99] sm:$0xff] %vm62, %v926
    %992 = vst.msk [vmem:[%s977 + $0xa9] sm:$0xff] %vm62, %v927
    %993 = vst.msk [vmem:[%s977 + $0xb1] sm:$0xff] %vm62, %v928
    %994 = vst.msk [vmem:[%s977 + $0xc1] sm:$0xff] %vm62, %v929
    %995 = vst.msk [vmem:[%s977 + $0xc9] sm:$0xff] %vm62, %v930
    %996 = vst.msk [vmem:[%s977 + $0xd9] sm:$0xff] %vm62, %v931
    %997 = vst.msk [vmem:[%s977 + $0xe1] sm:$0xff] %vm62, %v932
    %998 = vst.msk [vmem:[%s977 + $0xf1] sm:$0xff] %vm62, %v933
    %999 = vst.msk [vmem:[%s977 + $0xf9] sm:$0xff] %vm62, %v934
    %1000 = vst.msk [vmem:[%s977 + $0x109] sm:$0xff] %vm62, %v935
    %1001 = vst.msk [vmem:[%s977 + $0x111] sm:$0xff] %vm62, %v936
    %1002 = vst.msk [vmem:[%s977 + $0x121] sm:$0xff] %vm62, %v937
    %1003 = vst.msk [vmem:[%s977 + $0x129] sm:$0xff] %vm62, %v938
    %1004 = vst.msk [vmem:[%s977 + $0x139] sm:$0xff] %vm62, %v939
    %1005 = vst.msk [vmem:[%s977 + $0x141] sm:$0xff] %vm62, %v940
    %1006 = vst.msk [vmem:[%s977 + $0x151] sm:$0xff] %vm62, %v941
    %1007 = vst.msk [vmem:[%s977 + $0x159] sm:$0xff] %vm62, %v942
    %1008 = vst.msk [vmem:[%s977 + $0x169] sm:$0xff] %vm62, %v943
    %1009 = vst.msk [vmem:[%s977 + $0x171] sm:$0xff] %vm62, %v944
    %1010 = vst.msk [vmem:[%s977 + $0x1b1] sm:$0xff] %vm62, %v945
    %1011 = vst.msk [vmem:[%s977 + $0x1b9] sm:$0xff] %vm62, %v946
    %1012 = vst.msk [vmem:[%s977 + $0x1c9] sm:$0xff] %vm62, %v947
    %1013 = vst.msk [vmem:[%s977 + $0x1d1] sm:$0xff] %vm62, %v948
    %1014 = vst.msk [vmem:[%s977 + $0x1e1] sm:$0xff] %vm62, %v949
    %1015 = vst.msk [vmem:[%s977 + $0x1e9] sm:$0xff] %vm62, %v950
    %1016 = vst.msk [vmem:[%s977 + $0x1f9] sm:$0xff] %vm62, %v951
    %1017 = vst.msk [vmem:[%s977 + $0x201] sm:$0xff] %vm62, %v952
    %1018 = vst.msk [vmem:[%s977 + $0x211] sm:$0xff] %vm62, %v953
    %1019 = vst.msk [vmem:[%s977 + $0x219] sm:$0xff] %vm62, %v954
    %1020 = vst.msk [vmem:[%s977 + $0x229] sm:$0xff] %vm62, %v955
    %1021 = vst.msk [vmem:[%s977 + $0x231] sm:$0xff] %vm62, %v956
    %1022 = vst.msk [vmem:[%s977 + $0x241] sm:$0xff] %vm62, %v957
    %1023 = vst.msk [vmem:[%s977 + $0x249] sm:$0xff] %vm62, %v958
    %1024 = vst.msk [vmem:[%s977 + $0x259] sm:$0xff] %vm62, %v959
    %1025 = vst.msk [vmem:[%s977 + $0x261] sm:$0xff] %vm62, %v960
    %1026 = vst.msk [vmem:[%s977 + $0x271] sm:$0xff] %vm62, %v961
    %1027 = vst.msk [vmem:[%s977 + $0x279] sm:$0xff] %vm62, %v962
    %1028 = vst.msk [vmem:[%s977 + $0x289] sm:$0xff] %vm62, %v963
    %1029 = vst.msk [vmem:[%s977 + $0x291] sm:$0xff] %vm62, %v964
    %1030 = vst.msk [vmem:[%s977 + $0x2a1] sm:$0xff] %vm62, %v965
    %1031 = vst.msk [vmem:[%s977 + $0x2a9] sm:$0xff] %vm62, %v966
    %1032 = vst.msk [vmem:[%s977 + $0x2b9] sm:$0xff] %vm62, %v967
    %1033 = vst.msk [vmem:[%s977 + $0x2c1] sm:$0xff] %vm62, %v968
    %1034 = vst.msk [vmem:[%s977 + $0x2d1] sm:$0xff] %vm62, %v969
    %1035 = vst.msk [vmem:[%s977 + $0x2d9] sm:$0xff] %vm62, %v970
    %1036 = vst.msk [vmem:[%s977 + $0x2e9] sm:$0xff] %vm62, %v971
    %1037 = vst.msk [vmem:[%s977 + $0x2f1] sm:$0xff] %vm62, %v972
    %1038 = vst.msk [vmem:[%s977 + $0x301] sm:$0xff] %vm62, %v973
    %1039 = vst.msk [vmem:[%s977 + $0x309] sm:$0xff] %vm62, %v974
    %1040 = vst.msk [vmem:[%s977 + $0x319] sm:$0xff] %vm62, %v975
    %1041 = vst.msk [vmem:[%s977 + $0x321] sm:$0xff] %vm62, %v976
    %v1042 = vld [vmem:[#allocation2] ss:$2 sm:$0xff]
    %s1043 = scalar_lea.vmem [#allocation2], 48
    %v1044 = vld [vmem:[%s1043] ss:$2 sm:$0xff]
    %s1045 = scalar_lea.vmem [#allocation2], 96
    %v1046 = vld [vmem:[%s1045] ss:$2 sm:$0xff]
    %s1047 = scalar_lea.vmem [#allocation2], 144
    %v1048 = vld [vmem:[%s1047] ss:$2 sm:$0xff]
    %s1049 = scalar_lea.vmem [#allocation2], 192
    %v1050 = vld [vmem:[%s1049] ss:$2 sm:$0xff]
    %s1051 = scalar_lea.vmem [#allocation2], 240
    %v1052 = vld [vmem:[%s1051] ss:$2 sm:$0xff]
    %s1053 = scalar_lea.vmem [#allocation2], 288
    %v1054 = vld [vmem:[%s1053] ss:$2 sm:$0xff]
    %s1055 = scalar_lea.vmem [#allocation2], 336
    %v1056 = vld [vmem:[%s1055] ss:$2 sm:$0xff]
    %s1057 = scalar_lea.vmem [#allocation2], 432
    %v1058 = vld [vmem:[%s1057] ss:$2 sm:$0xff]
    %s1059 = scalar_lea.vmem [#allocation2], 480
    %v1060 = vld [vmem:[%s1059] ss:$2 sm:$0xff]
    %s1061 = scalar_lea.vmem [#allocation2], 528
    %v1062 = vld [vmem:[%s1061] ss:$2 sm:$0xff]
    %s1063 = scalar_lea.vmem [#allocation2], 576
    %v1064 = vld [vmem:[%s1063] ss:$2 sm:$0xff]
    %s1065 = scalar_lea.vmem [#allocation2], 624
    %v1066 = vld [vmem:[%s1065] ss:$2 sm:$0xff]
    %s1067 = scalar_lea.vmem [#allocation2], 672
    %v1068 = vld [vmem:[%s1067] ss:$2 sm:$0xff]
    %s1069 = scalar_lea.vmem [#allocation2], 720
    %v1070 = vld [vmem:[%s1069] ss:$2 sm:$0xff]
    %s1071 = scalar_lea.vmem [#allocation2], 768
    %v1072 = vld [vmem:[%s1071] ss:$2 sm:$0xff]
    %v1073 = vld [vmem:[%s3] sm:$0xff]
    %s1074 = scalar_lea.vmem [#allocation2], 1
    %v1075 = vld [vmem:[%s1074] ss:$2 sm:$0xff]
    %s1076 = scalar_lea.vmem [#allocation2], 49
    %v1077 = vld [vmem:[%s1076] ss:$2 sm:$0xff]
    %s1078 = scalar_lea.vmem [#allocation2], 97
    %v1079 = vld [vmem:[%s1078] ss:$2 sm:$0xff]
    %s1080 = scalar_lea.vmem [#allocation2], 145
    %v1081 = vld [vmem:[%s1080] ss:$2 sm:$0xff]
    %s1082 = scalar_lea.vmem [#allocation2], 193
    %v1083 = vld [vmem:[%s1082] ss:$2 sm:$0xff]
    %s1084 = scalar_lea.vmem [#allocation2], 241
    %v1085 = vld [vmem:[%s1084] ss:$2 sm:$0xff]
    %s1086 = scalar_lea.vmem [#allocation2], 289
    %v1087 = vld [vmem:[%s1086] ss:$2 sm:$0xff]
    %s1088 = scalar_lea.vmem [#allocation2], 337
    %v1089 = vld [vmem:[%s1088] ss:$2 sm:$0xff]
    %s1090 = scalar_lea.vmem [#allocation2], 433
    %v1091 = vld [vmem:[%s1090] ss:$2 sm:$0xff]
    %s1092 = scalar_lea.vmem [#allocation2], 481
    %v1093 = vld [vmem:[%s1092] ss:$2 sm:$0xff]
    %s1094 = scalar_lea.vmem [#allocation2], 529
    %v1095 = vld [vmem:[%s1094] ss:$2 sm:$0xff]
    %s1096 = scalar_lea.vmem [#allocation2], 577
    %v1097 = vld [vmem:[%s1096] ss:$2 sm:$0xff]
    %s1098 = scalar_lea.vmem [#allocation2], 625
    %v1099 = vld [vmem:[%s1098] ss:$2 sm:$0xff]
    %s1100 = scalar_lea.vmem [#allocation2], 673
    %v1101 = vld [vmem:[%s1100] ss:$2 sm:$0xff]
    %s1102 = scalar_lea.vmem [#allocation2], 721
    %v1103 = vld [vmem:[%s1102] ss:$2 sm:$0xff]
    %s1104 = scalar_lea.vmem [#allocation2], 769
    %v1105 = vld [vmem:[%s1104] ss:$2 sm:$0xff]
    %s1106 = scalar_lea.vmem %s3, 8
    %v1107 = vld [vmem:[%s1106] sm:$0xff]
    %v1109 = vsel %vm62, %v1075, 0
    %v1112 = vsel %vm62, %v1077, 0
    %v1115 = vsel %vm62, %v1079, 0
    %v1118 = vsel %vm62, %v1081, 0
    %v1121 = vsel %vm62, %v1083, 0
    %v1124 = vsel %vm62, %v1085, 0
    %v1127 = vsel %vm62, %v1087, 0
    %v1130 = vsel %vm62, %v1089, 0
    %v1133 = vsel %vm62, %v1091, 0
    %v1136 = vsel %vm62, %v1093, 0
    %v1139 = vsel %vm62, %v1095, 0
    %v1142 = vsel %vm62, %v1097, 0
    %v1145 = vsel %vm62, %v1099, 0
    %v1148 = vsel %vm62, %v1101, 0
    %v1151 = vsel %vm62, %v1103, 0
    %v1154 = vsel %vm62, %v1105, 0
    %1156 = vmatprep.subr.mxu0 0.0
    %1157 = vmatpush1.msra.mxu0 %v1107
    %1158 = vmatprep.subr.mxu0 0.0
    %1159 = vmatpush1.msra.mxu0 0.0
    %1160 = vmatprep.subr.mxu0 0.0
    %1161 = vmatpush1.msra.mxu0 0.0
    %1162 = vmatprep.subr.mxu0 0.0
    %1163 = vmatpush1.msra.mxu0 0.0
    %1164 = vmatprep.subr.mxu0 0.0
    %1165 = vmatpush1.msra.mxu0 0.0
    %1166 = vmatprep.subr.mxu0 0.0
    %1167 = vmatpush1.msra.mxu0 0.0
    %1168 = vmatprep.subr.mxu0 0.0
    %1169 = vmatpush1.msra.mxu0 0.0
    %1170 = vmatprep.subr.mxu0 0.0
    %1171 = vmatpush1.msra.mxu0 0.0
    %1172 = vmatprep.subr.mxu0 0.0
    %1173 = vmatpush1.msra.mxu0 0.0
    %1174 = vmatprep.subr.mxu0 0.0
    %1175 = vmatpush1.msra.mxu0 0.0
    %1176 = vmatprep.subr.mxu0 0.0
    %1177 = vmatpush1.msra.mxu0 0.0
    %1178 = vmatprep.subr.mxu0 0.0
    %1179 = vmatpush1.msra.mxu0 0.0
    %1180 = vmatprep.subr.mxu0 0.0
    %1181 = vmatpush1.msra.mxu0 0.0
    %1182 = vmatprep.subr.mxu0 0.0
    %1183 = vmatpush1.msra.mxu0 0.0
    %1184 = vmatprep.subr.mxu0 0.0
    %1185 = vmatpush1.msra.mxu0 0.0
    %1186 = vmatprep.subr.mxu0 0.0
    %1187 = vmatpush1.msra.mxu0 0.0
    %1188 = vmatprep.subr.mxu0 0.0
    %1189 = vmatpush1.msra.mxu0 0.0
    %1190 = vmatprep.subr.mxu0 0.0
    %1191 = vmatpush1.msra.mxu0 0.0
    %1192 = vmatprep.subr.mxu0 0.0
    %1193 = vmatpush1.msra.mxu0 0.0
    %1194 = vmatprep.subr.mxu0 0.0
    %1195 = vmatpush1.msra.mxu0 0.0
    %1196 = vmatprep.subr.mxu0 0.0
    %1197 = vmatpush1.msra.mxu0 0.0
    %1198 = vmatprep.subr.mxu0 0.0
    %1199 = vmatpush1.msra.mxu0 0.0
    %1200 = vmatprep.subr.mxu0 0.0
    %1201 = vmatpush1.msra.mxu0 0.0
    %1202 = vmatprep.subr.mxu0 0.0
    %1203 = vmatpush1.msra.mxu0 0.0
    %1204 = vmatprep.subr.mxu0 0.0
    %1205 = vmatpush1.msra.mxu0 0.0
    %1206 = vmatprep.subr.mxu0 0.0
    %1207 = vmatpush1.msra.mxu0 0.0
    %1208 = vmatprep.subr.mxu0 0.0
    %1209 = vmatpush1.msra.mxu0 0.0
    %1210 = vmatprep.subr.mxu0 0.0
    %1211 = vmatpush1.msra.mxu0 0.0
    %1212 = vmatprep.subr.mxu0 0.0
    %1213 = vmatpush1.msra.mxu0 0.0
    %1214 = vmatprep.subr.mxu0 0.0
    %1215 = vmatpush1.msra.mxu0 0.0
    %1216 = vmatprep.subr.mxu0 0.0
    %1217 = vmatpush1.msra.mxu0 0.0
    %1218 = vmatprep.subr.mxu0 0.0
    %1219 = vmatpush1.msra.mxu0 0.0
    %1220 = vmatprep.mubr.f32.mxu0 0.0
    %1221 = vmatmul.mubr.f32.gmra.mrb[0].mxu0 %v1109
    %v1222 = vpop.f32.mrb[0].mxu0
    %v1223 = vadd.f32 0.0, %v1222
    %v1224 = vpop.f32.mrb[0].mxu0
    %1225 = vmatprep.mubr.f32.mxu0 0.0
    %1226 = vmatmul.mubr.f32.gmra.mrb[0].mxu0 %v1112
    %v1227 = vpop.f32.mrb[0].mxu0
    %v1228 = vadd.f32 0.0, %v1227
    %v1229 = vpop.f32.mrb[0].mxu0
    %1230 = vmatprep.mubr.f32.mxu0 0.0
    %1231 = vmatmul.mubr.f32.gmra.mrb[0].mxu0 %v1115
    %v1232 = vpop.f32.mrb[0].mxu0
    %v1233 = vadd.f32 0.0, %v1232
    %v1234 = vpop.f32.mrb[0].mxu0
    %1235 = vmatprep.mubr.f32.mxu0 0.0
    %1236 = vmatmul.mubr.f32.gmra.mrb[0].mxu0 %v1118
    %v1237 = vpop.f32.mrb[0].mxu0
    %v1238 = vadd.f32 0.0, %v1237
    %v1239 = vpop.f32.mrb[0].mxu0
    %1240 = vmatprep.mubr.f32.mxu0 0.0
    %1241 = vmatmul.mubr.f32.gmra.mrb[0].mxu0 %v1121
    %v1242 = vpop.f32.mrb[0].mxu0
    %v1243 = vadd.f32 0.0, %v1242
    %v1244 = vpop.f32.mrb[0].mxu0
    %1245 = vmatprep.mubr.f32.mxu0 0.0
    %1246 = vmatmul.mubr.f32.gmra.mrb[0].mxu0 %v1124
    %v1247 = vpop.f32.mrb[0].mxu0
    %v1248 = vadd.f32 0.0, %v1247
    %v1249 = vpop.f32.mrb[0].mxu0
    %1250 = vmatprep.mubr.f32.mxu0 0.0
    %1251 = vmatmul.mubr.f32.gmra.mrb[0].mxu0 %v1127
    %v1252 = vpop.f32.mrb[0].mxu0
    %v1253 = vadd.f32 0.0, %v1252
    %v1254 = vpop.f32.mrb[0].mxu0
    %1255 = vmatprep.mubr.f32.mxu0 0.0
    %1256 = vmatmul.mubr.f32.gmra.mrb[0].mxu0 %v1130
    %v1257 = vpop.f32.mrb[0].mxu0
    %v1258 = vadd.f32 0.0, %v1257
    %v1259 = vpop.f32.mrb[0].mxu0
    %1260 = vmatprep.mubr.f32.mxu0 0.0
    %1261 = vmatmul.mubr.f32.gmra.mrb[0].mxu0 %v1133
    %v1262 = vpop.f32.mrb[0].mxu0
    %v1263 = vadd.f32 0.0, %v1262
    %v1264 = vpop.f32.mrb[0].mxu0
    %1265 = vmatprep.mubr.f32.mxu0 0.0
    %1266 = vmatmul.mubr.f32.gmra.mrb[0].mxu0 %v1136
    %v1267 = vpop.f32.mrb[0].mxu0
    %v1268 = vadd.f32 0.0, %v1267
    %v1269 = vpop.f32.mrb[0].mxu0
    %1270 = vmatprep.mubr.f32.mxu0 0.0
    %1271 = vmatmul.mubr.f32.gmra.mrb[0].mxu0 %v1139
    %v1272 = vpop.f32.mrb[0].mxu0
    %v1273 = vadd.f32 0.0, %v1272
    %v1274 = vpop.f32.mrb[0].mxu0
    %1275 = vmatprep.mubr.f32.mxu0 0.0
    %1276 = vmatmul.mubr.f32.gmra.mrb[0].mxu0 %v1142
    %v1277 = vpop.f32.mrb[0].mxu0
    %v1278 = vadd.f32 0.0, %v1277
    %v1279 = vpop.f32.mrb[0].mxu0
    %1280 = vmatprep.mubr.f32.mxu0 0.0
    %1281 = vmatmul.mubr.f32.gmra.mrb[0].mxu0 %v1145
    %v1282 = vpop.f32.mrb[0].mxu0
    %v1283 = vadd.f32 0.0, %v1282
    %v1284 = vpop.f32.mrb[0].mxu0
    %1285 = vmatprep.mubr.f32.mxu0 0.0
    %1286 = vmatmul.mubr.f32.gmra.mrb[0].mxu0 %v1148
    %v1287 = vpop.f32.mrb[0].mxu0
    %v1288 = vadd.f32 0.0, %v1287
    %v1289 = vpop.f32.mrb[0].mxu0
    %1290 = vmatprep.mubr.f32.mxu0 0.0
    %1291 = vmatmul.mubr.f32.gmra.mrb[0].mxu0 %v1151
    %v1292 = vpop.f32.mrb[0].mxu0
    %v1293 = vadd.f32 0.0, %v1292
    %v1294 = vpop.f32.mrb[0].mxu0
    %1295 = vmatprep.mubr.f32.mxu0 0.0
    %1296 = vmatmul.mubr.f32.gmra.mrb[0].mxu0 %v1154
    %v1297 = vpop.f32.mrb[0].mxu0
    %v1298 = vadd.f32 0.0, %v1297
    %v1299 = vpop.f32.mrb[0].mxu0
    %1300 = vdwg.mxu0
    %v1302 = vsel %vm62, %v1042, 0
    %v1305 = vsel %vm62, %v1044, 0
    %v1308 = vsel %vm62, %v1046, 0
    %v1311 = vsel %vm62, %v1048, 0
    %v1314 = vsel %vm62, %v1050, 0
    %v1317 = vsel %vm62, %v1052, 0
    %v1320 = vsel %vm62, %v1054, 0
    %v1323 = vsel %vm62, %v1056, 0
    %v1326 = vsel %vm62, %v1058, 0
    %v1329 = vsel %vm62, %v1060, 0
    %v1332 = vsel %vm62, %v1062, 0
    %v1335 = vsel %vm62, %v1064, 0
    %v1338 = vsel %vm62, %v1066, 0
    %v1341 = vsel %vm62, %v1068, 0
    %v1344 = vsel %vm62, %v1070, 0
    %v1347 = vsel %vm62, %v1072, 0
    %1349 = vmatprep.subr.mxu0 0.0
    %1350 = vmatpush1.msra.mxu0 %v1073
    %1351 = vmatprep.subr.mxu0 0.0
    %1352 = vmatpush1.msra.mxu0 0.0
    %1353 = vmatprep.subr.mxu0 0.0
    %1354 = vmatpush1.msra.mxu0 0.0
    %1355 = vmatprep.subr.mxu0 0.0
    %1356 = vmatpush1.msra.mxu0 0.0
    %1357 = vmatprep.subr.mxu0 0.0
    %1358 = vmatpush1.msra.mxu0 0.0
    %1359 = vmatprep.subr.mxu0 0.0
    %1360 = vmatpush1.msra.mxu0 0.0
    %1361 = vmatprep.subr.mxu0 0.0
    %1362 = vmatpush1.msra.mxu0 0.0
    %1363 = vmatprep.subr.mxu0 0.0
    %1364 = vmatpush1.msra.mxu0 0.0
    %1365 = vmatprep.subr.mxu0 0.0
    %1366 = vmatpush1.msra.mxu0 0.0
    %1367 = vmatprep.subr.mxu0 0.0
    %1368 = vmatpush1.msra.mxu0 0.0
    %1369 = vmatprep.subr.mxu0 0.0
    %1370 = vmatpush1.msra.mxu0 0.0
    %1371 = vmatprep.subr.mxu0 0.0
    %1372 = vmatpush1.msra.mxu0 0.0
    %1373 = vmatprep.subr.mxu0 0.0
    %1374 = vmatpush1.msra.mxu0 0.0
    %1375 = vmatprep.subr.mxu0 0.0
    %1376 = vmatpush1.msra.mxu0 0.0
    %1377 = vmatprep.subr.mxu0 0.0
    %1378 = vmatpush1.msra.mxu0 0.0
    %1379 = vmatprep.subr.mxu0 0.0
    %1380 = vmatpush1.msra.mxu0 0.0
    %1381 = vmatprep.subr.mxu0 0.0
    %1382 = vmatpush1.msra.mxu0 0.0
    %1383 = vmatprep.subr.mxu0 0.0
    %1384 = vmatpush1.msra.mxu0 0.0
    %1385 = vmatprep.subr.mxu0 0.0
    %1386 = vmatpush1.msra.mxu0 0.0
    %1387 = vmatprep.subr.mxu0 0.0
    %1388 = vmatpush1.msra.mxu0 0.0
    %1389 = vmatprep.subr.mxu0 0.0
    %1390 = vmatpush1.msra.mxu0 0.0
    %1391 = vmatprep.subr.mxu0 0.0
    %1392 = vmatpush1.msra.mxu0 0.0
    %1393 = vmatprep.subr.mxu0 0.0
    %1394 = vmatpush1.msra.mxu0 0.0
    %1395 = vmatprep.subr.mxu0 0.0
    %1396 = vmatpush1.msra.mxu0 0.0
    %1397 = vmatprep.subr.mxu0 0.0
    %1398 = vmatpush1.msra.mxu0 0.0
    %1399 = vmatprep.subr.mxu0 0.0
    %1400 = vmatpush1.msra.mxu0 0.0
    %1401 = vmatprep.subr.mxu0 0.0
    %1402 = vmatpush1.msra.mxu0 0.0
    %1403 = vmatprep.subr.mxu0 0.0
    %1404 = vmatpush1.msra.mxu0 0.0
    %1405 = vmatprep.subr.mxu0 0.0
    %1406 = vmatpush1.msra.mxu0 0.0
    %1407 = vmatprep.subr.mxu0 0.0
    %1408 = vmatpush1.msra.mxu0 0.0
    %1409 = vmatprep.subr.mxu0 0.0
    %1410 = vmatpush1.msra.mxu0 0.0
    %1411 = vmatprep.subr.mxu0 0.0
    %1412 = vmatpush1.msra.mxu0 0.0
    %1413 = vmatprep.mubr.f32.mxu0 0.0
    %1414 = vmatmul.mubr.f32.gmra.mrb[0].mxu0 %v1302
    %v1415 = vpop.f32.mrb[0].mxu0
    %v1416 = vadd.f32 %v1223, %v1415
    %v1417 = vpop.f32.mrb[0].mxu0
    %1418 = vmatprep.mubr.f32.mxu0 0.0
    %1419 = vmatmul.mubr.f32.gmra.mrb[0].mxu0 %v1305
    %v1420 = vpop.f32.mrb[0].mxu0
    %v1421 = vadd.f32 %v1228, %v1420
    %v1422 = vpop.f32.mrb[0].mxu0
    %1423 = vmatprep.mubr.f32.mxu0 0.0
    %1424 = vmatmul.mubr.f32.gmra.mrb[0].mxu0 %v1308
    %v1425 = vpop.f32.mrb[0].mxu0
    %v1426 = vadd.f32 %v1233, %v1425
    %v1427 = vpop.f32.mrb[0].mxu0
    %1428 = vmatprep.mubr.f32.mxu0 0.0
    %1429 = vmatmul.mubr.f32.gmra.mrb[0].mxu0 %v1311
    %v1430 = vpop.f32.mrb[0].mxu0
    %v1431 = vadd.f32 %v1238, %v1430
    %v1432 = vpop.f32.mrb[0].mxu0
    %1433 = vmatprep.mubr.f32.mxu0 0.0
    %1434 = vmatmul.mubr.f32.gmra.mrb[0].mxu0 %v1314
    %v1435 = vpop.f32.mrb[0].mxu0
    %v1436 = vadd.f32 %v1243, %v1435
    %v1437 = vpop.f32.mrb[0].mxu0
    %1438 = vmatprep.mubr.f32.mxu0 0.0
    %1439 = vmatmul.mubr.f32.gmra.mrb[0].mxu0 %v1317
    %v1440 = vpop.f32.mrb[0].mxu0
    %v1441 = vadd.f32 %v1248, %v1440
    %v1442 = vpop.f32.mrb[0].mxu0
    %1443 = vmatprep.mubr.f32.mxu0 0.0
    %1444 = vmatmul.mubr.f32.gmra.mrb[0].mxu0 %v1320
    %v1445 = vpop.f32.mrb[0].mxu0
    %v1446 = vadd.f32 %v1253, %v1445
    %v1447 = vpop.f32.mrb[0].mxu0
    %1448 = vmatprep.mubr.f32.mxu0 0.0
    %1449 = vmatmul.mubr.f32.gmra.mrb[0].mxu0 %v1323
    %v1450 = vpop.f32.mrb[0].mxu0
    %v1451 = vadd.f32 %v1258, %v1450
    %v1452 = vpop.f32.mrb[0].mxu0
    %1453 = vmatprep.mubr.f32.mxu0 0.0
    %1454 = vmatmul.mubr.f32.gmra.mrb[0].mxu0 %v1326
    %v1455 = vpop.f32.mrb[0].mxu0
    %v1456 = vadd.f32 %v1263, %v1455
    %v1457 = vpop.f32.mrb[0].mxu0
    %1458 = vmatprep.mubr.f32.mxu0 0.0
    %1459 = vmatmul.mubr.f32.gmra.mrb[0].mxu0 %v1329
    %v1460 = vpop.f32.mrb[0].mxu0
    %v1461 = vadd.f32 %v1268, %v1460
    %v1462 = vpop.f32.mrb[0].mxu0
    %1463 = vmatprep.mubr.f32.mxu0 0.0
    %1464 = vmatmul.mubr.f32.gmra.mrb[0].mxu0 %v1332
    %v1465 = vpop.f32.mrb[0].mxu0
    %v1466 = vadd.f32 %v1273, %v1465
    %v1467 = vpop.f32.mrb[0].mxu0
    %1468 = vmatprep.mubr.f32.mxu0 0.0
    %1469 = vmatmul.mubr.f32.gmra.mrb[0].mxu0 %v1335
    %v1470 = vpop.f32.mrb[0].mxu0
    %v1471 = vadd.f32 %v1278, %v1470
    %v1472 = vpop.f32.mrb[0].mxu0
    %1473 = vmatprep.mubr.f32.mxu0 0.0
    %1474 = vmatmul.mubr.f32.gmra.mrb[0].mxu0 %v1338
    %v1475 = vpop.f32.mrb[0].mxu0
    %v1476 = vadd.f32 %v1283, %v1475
    %v1477 = vpop.f32.mrb[0].mxu0
    %1478 = vmatprep.mubr.f32.mxu0 0.0
    %1479 = vmatmul.mubr.f32.gmra.mrb[0].mxu0 %v1341
    %v1480 = vpop.f32.mrb[0].mxu0
    %v1481 = vadd.f32 %v1288, %v1480
    %v1482 = vpop.f32.mrb[0].mxu0
    %1483 = vmatprep.mubr.f32.mxu0 0.0
    %1484 = vmatmul.mubr.f32.gmra.mrb[0].mxu0 %v1344
    %v1485 = vpop.f32.mrb[0].mxu0
    %v1486 = vadd.f32 %v1293, %v1485
    %v1487 = vpop.f32.mrb[0].mxu0
    %1488 = vmatprep.mubr.f32.mxu0 0.0
    %1489 = vmatmul.mubr.f32.gmra.mrb[0].mxu0 %v1347
    %v1490 = vpop.f32.mrb[0].mxu0
    %v1491 = vadd.f32 %v1298, %v1490
    %v1492 = vpop.f32.mrb[0].mxu0
    %1493 = vdwg.mxu0
    %s1494 = scalar_lea.vmem [#allocation2], 2
    %v1495 = vld [vmem:[%s1494] ss:$2 sm:$0xff]
    %s1496 = scalar_lea.vmem [#allocation2], 50
    %v1497 = vld [vmem:[%s1496] ss:$2 sm:$0xff]
    %s1498 = scalar_lea.vmem [#allocation2], 98
    %v1499 = vld [vmem:[%s1498] ss:$2 sm:$0xff]
    %s1500 = scalar_lea.vmem [#allocation2], 146
    %v1501 = vld [vmem:[%s1500] ss:$2 sm:$0xff]
    %s1502 = scalar_lea.vmem [#allocation2], 194
    %v1503 = vld [vmem:[%s1502] ss:$2 sm:$0xff]
    %s1504 = scalar_lea.vmem [#allocation2], 242
    %v1505 = vld [vmem:[%s1504] ss:$2 sm:$0xff]
    %s1506 = scalar_lea.vmem [#allocation2], 290
    %v1507 = vld [vmem:[%s1506] ss:$2 sm:$0xff]
    %s1508 = scalar_lea.vmem [#allocation2], 338
    %v1509 = vld [vmem:[%s1508] ss:$2 sm:$0xff]
    %s1510 = scalar_lea.vmem [#allocation2], 434
    %v1511 = vld [vmem:[%s1510] ss:$2 sm:$0xff]
    %s1512 = scalar_lea.vmem [#allocation2], 482
    %v1513 = vld [vmem:[%s1512] ss:$2 sm:$0xff]
    %s1514 = scalar_lea.vmem [#allocation2], 530
    %v1515 = vld [vmem:[%s1514] ss:$2 sm:$0xff]
    %s1516 = scalar_lea.vmem [#allocation2], 578
    %v1517 = vld [vmem:[%s1516] ss:$2 sm:$0xff]
    %s1518 = scalar_lea.vmem [#allocation2], 626
    %v1519 = vld [vmem:[%s1518] ss:$2 sm:$0xff]
    %s1520 = scalar_lea.vmem [#allocation2], 674
    %v1521 = vld [vmem:[%s1520] ss:$2 sm:$0xff]
    %s1522 = scalar_lea.vmem [#allocation2], 722
    %v1523 = vld [vmem:[%s1522] ss:$2 sm:$0xff]
    %s1524 = scalar_lea.vmem [#allocation2], 770
    %v1525 = vld [vmem:[%s1524] ss:$2 sm:$0xff]
    %s1526 = scalar_lea.vmem %s3, 16
    %v1527 = vld [vmem:[%s1526] sm:$0xff]
    %v1529 = vsel %vm62, %v1495, 0
    %v1532 = vsel %vm62, %v1497, 0
    %v1535 = vsel %vm62, %v1499, 0
    %v1538 = vsel %vm62, %v1501, 0
    %v1541 = vsel %vm62, %v1503, 0
    %v1544 = vsel %vm62, %v1505, 0
    %v1547 = vsel %vm62, %v1507, 0
    %v1550 = vsel %vm62, %v1509, 0
    %v1553 = vsel %vm62, %v1511, 0
    %v1556 = vsel %vm62, %v1513, 0
    %v1559 = vsel %vm62, %v1515, 0
    %v1562 = vsel %vm62, %v1517, 0
    %v1565 = vsel %vm62, %v1519, 0
    %v1568 = vsel %vm62, %v1521, 0
    %v1571 = vsel %vm62, %v1523, 0
    %v1574 = vsel %vm62, %v1525, 0
    %1576 = vmatprep.subr.mxu0 0.0
    %1577 = vmatpush1.msra.mxu0 %v1527
    %1578 = vmatprep.subr.mxu0 0.0
    %1579 = vmatpush1.msra.mxu0 0.0
    %1580 = vmatprep.subr.mxu0 0.0
    %1581 = vmatpush1.msra.mxu0 0.0
    %1582 = vmatprep.subr.mxu0 0.0
    %1583 = vmatpush1.msra.mxu0 0.0
    %1584 = vmatprep.subr.mxu0 0.0
    %1585 = vmatpush1.msra.mxu0 0.0
    %1586 = vmatprep.subr.mxu0 0.0
    %1587 = vmatpush1.msra.mxu0 0.0
    %1588 = vmatprep.subr.mxu0 0.0
    %1589 = vmatpush1.msra.mxu0 0.0
    %1590 = vmatprep.subr.mxu0 0.0
    %1591 = vmatpush1.msra.mxu0 0.0
    %1592 = vmatprep.subr.mxu0 0.0
    %1593 = vmatpush1.msra.mxu0 0.0
    %1594 = vmatprep.subr.mxu0 0.0
    %1595 = vmatpush1.msra.mxu0 0.0
    %1596 = vmatprep.subr.mxu0 0.0
    %1597 = vmatpush1.msra.mxu0 0.0
    %1598 = vmatprep.subr.mxu0 0.0
    %1599 = vmatpush1.msra.mxu0 0.0
    %1600 = vmatprep.subr.mxu0 0.0
    %1601 = vmatpush1.msra.mxu0 0.0
    %1602 = vmatprep.subr.mxu0 0.0
    %1603 = vmatpush1.msra.mxu0 0.0
    %1604 = vmatprep.subr.mxu0 0.0
    %1605 = vmatpush1.msra.mxu0 0.0
    %1606 = vmatprep.subr.mxu0 0.0
    %1607 = vmatpush1.msra.mxu0 0.0
    %1608 = vmatprep.subr.mxu0 0.0
    %1609 = vmatpush1.msra.mxu0 0.0
    %1610 = vmatprep.subr.mxu0 0.0
    %1611 = vmatpush1.msra.mxu0 0.0
    %1612 = vmatprep.subr.mxu0 0.0
    %1613 = vmatpush1.msra.mxu0 0.0
    %1614 = vmatprep.subr.mxu0 0.0
    %1615 = vmatpush1.msra.mxu0 0.0
    %1616 = vmatprep.subr.mxu0 0.0
    %1617 = vmatpush1.msra.mxu0 0.0
    %1618 = vmatprep.subr.mxu0 0.0
    %1619 = vmatpush1.msra.mxu0 0.0
    %1620 = vmatprep.subr.mxu0 0.0
    %1621 = vmatpush1.msra.mxu0 0.0
    %1622 = vmatprep.subr.mxu0 0.0
    %1623 = vmatpush1.msra.mxu0 0.0
    %1624 = vmatprep.subr.mxu0 0.0
    %1625 = vmatpush1.msra.mxu0 0.0
    %1626 = vmatprep.subr.mxu0 0.0
    %1627 = vmatpush1.msra.mxu0 0.0
    %1628 = vmatprep.subr.mxu0 0.0
    %1629 = vmatpush1.msra.mxu0 0.0
    %1630 = vmatprep.subr.mxu0 0.0
    %1631 = vmatpush1.msra.mxu0 0.0
    %1632 = vmatprep.subr.mxu0 0.0
    %1633 = vmatpush1.msra.mxu0 0.0
    %1634 = vmatprep.subr.mxu0 0.0
    %1635 = vmatpush1.msra.mxu0 0.0
    %1636 = vmatprep.subr.mxu0 0.0
    %1637 = vmatpush1.msra.mxu0 0.0
    %1638 = vmatprep.subr.mxu0 0.0
    %1639 = vmatpush1.msra.mxu0 0.0
    %1640 = vmatprep.mubr.f32.mxu0 0.0
    %1641 = vmatmul.mubr.f32.gmra.mrb[0].mxu0 %v1529
    %v1642 = vpop.f32.mrb[0].mxu0
    %v1643 = vadd.f32 0.0, %v1642
    %v1644 = vpop.f32.mrb[0].mxu0
    %1645 = vmatprep.mubr.f32.mxu0 0.0
    %1646 = vmatmul.mubr.f32.gmra.mrb[0].mxu0 %v1532
    %v1647 = vpop.f32.mrb[0].mxu0
    %v1648 = vadd.f32 0.0, %v1647
    %v1649 = vpop.f32.mrb[0].mxu0
    %1650 = vmatprep.mubr.f32.mxu0 0.0
    %1651 = vmatmul.mubr.f32.gmra.mrb[0].mxu0 %v1535
    %v1652 = vpop.f32.mrb[0].mxu0
    %v1653 = vadd.f32 0.0, %v1652
    %v1654 = vpop.f32.mrb[0].mxu0
    %1655 = vmatprep.mubr.f32.mxu0 0.0
    %1656 = vmatmul.mubr.f32.gmra.mrb[0].mxu0 %v1538
    %v1657 = vpop.f32.mrb[0].mxu0
    %v1658 = vadd.f32 0.0, %v1657
    %v1659 = vpop.f32.mrb[0].mxu0
    %1660 = vmatprep.mubr.f32.mxu0 0.0
    %1661 = vmatmul.mubr.f32.gmra.mrb[0].mxu0 %v1541
    %v1662 = vpop.f32.mrb[0].mxu0
    %v1663 = vadd.f32 0.0, %v1662
    %v1664 = vpop.f32.mrb[0].mxu0
    %1665 = vmatprep.mubr.f32.mxu0 0.0
    %1666 = vmatmul.mubr.f32.gmra.mrb[0].mxu0 %v1544
    %v1667 = vpop.f32.mrb[0].mxu0
    %v1668 = vadd.f32 0.0, %v1667
    %v1669 = vpop.f32.mrb[0].mxu0
    %1670 = vmatprep.mubr.f32.mxu0 0.0
    %1671 = vmatmul.mubr.f32.gmra.mrb[0].mxu0 %v1547
    %v1672 = vpop.f32.mrb[0].mxu0
    %v1673 = vadd.f32 0.0, %v1672
    %v1674 = vpop.f32.mrb[0].mxu0
    %1675 = vmatprep.mubr.f32.mxu0 0.0
    %1676 = vmatmul.mubr.f32.gmra.mrb[0].mxu0 %v1550
    %v1677 = vpop.f32.mrb[0].mxu0
    %v1678 = vadd.f32 0.0, %v1677
    %v1679 = vpop.f32.mrb[0].mxu0
    %1680 = vmatprep.mubr.f32.mxu0 0.0
    %1681 = vmatmul.mubr.f32.gmra.mrb[0].mxu0 %v1553
    %v1682 = vpop.f32.mrb[0].mxu0
    %v1683 = vadd.f32 0.0, %v1682
    %v1684 = vpop.f32.mrb[0].mxu0
    %1685 = vmatprep.mubr.f32.mxu0 0.0
    %1686 = vmatmul.mubr.f32.gmra.mrb[0].mxu0 %v1556
    %v1687 = vpop.f32.mrb[0].mxu0
    %v1688 = vadd.f32 0.0, %v1687
    %v1689 = vpop.f32.mrb[0].mxu0
    %1690 = vmatprep.mubr.f32.mxu0 0.0
    %1691 = vmatmul.mubr.f32.gmra.mrb[0].mxu0 %v1559
    %v1692 = vpop.f32.mrb[0].mxu0
    %v1693 = vadd.f32 0.0, %v1692
    %v1694 = vpop.f32.mrb[0].mxu0
    %1695 = vmatprep.mubr.f32.mxu0 0.0
    %1696 = vmatmul.mubr.f32.gmra.mrb[0].mxu0 %v1562
    %v1697 = vpop.f32.mrb[0].mxu0
    %v1698 = vadd.f32 0.0, %v1697
    %v1699 = vpop.f32.mrb[0].mxu0
    %1700 = vmatprep.mubr.f32.mxu0 0.0
    %1701 = vmatmul.mubr.f32.gmra.mrb[0].mxu0 %v1565
    %v1702 = vpop.f32.mrb[0].mxu0
    %v1703 = vadd.f32 0.0, %v1702
    %v1704 = vpop.f32.mrb[0].mxu0
    %1705 = vmatprep.mubr.f32.mxu0 0.0
    %1706 = vmatmul.mubr.f32.gmra.mrb[0].mxu0 %v1568
    %v1707 = vpop.f32.mrb[0].mxu0
    %v1708 = vadd.f32 0.0, %v1707
    %v1709 = vpop.f32.mrb[0].mxu0
    %1710 = vmatprep.mubr.f32.mxu0 0.0
    %1711 = vmatmul.mubr.f32.gmra.mrb[0].mxu0 %v1571
    %v1712 = vpop.f32.mrb[0].mxu0
    %v1713 = vadd.f32 0.0, %v1712
    %v1714 = vpop.f32.mrb[0].mxu0
    %1715 = vmatprep.mubr.f32.mxu0 0.0
    %1716 = vmatmul.mubr.f32.gmra.mrb[0].mxu0 %v1574
    %v1717 = vpop.f32.mrb[0].mxu0
    %v1718 = vadd.f32 0.0, %v1717
    %v1719 = vpop.f32.mrb[0].mxu0
    %1720 = vdwg.mxu0
    %v1721 = vadd.f32 %v1416, %v1643
    %v1722 = vadd.f32 %v1421, %v1648
    %v1723 = vadd.f32 %v1426, %v1653
    %v1724 = vadd.f32 %v1431, %v1658
    %v1725 = vadd.f32 %v1436, %v1663
    %v1726 = vadd.f32 %v1441, %v1668
    %v1727 = vadd.f32 %v1446, %v1673
    %v1728 = vadd.f32 %v1451, %v1678
    %v1729 = vadd.f32 %v1456, %v1683
    %v1730 = vadd.f32 %v1461, %v1688
    %v1731 = vadd.f32 %v1466, %v1693
    %v1732 = vadd.f32 %v1471, %v1698
    %v1733 = vadd.f32 %v1476, %v1703
    %v1734 = vadd.f32 %v1481, %v1708
    %v1735 = vadd.f32 %v1486, %v1713
    %v1736 = vadd.f32 %v1491, %v1718
    %v1737 = vld [vmem:[%s977] ss:$2 sm:$0xff]
    %s1738 = scalar_lea.vmem %s977, 48 [#allocation2]
    %v1739 = vld [vmem:[%s1738] ss:$2 sm:$0xff]
    %s1740 = scalar_lea.vmem %s977, 96 [#allocation2]
    %v1741 = vld [vmem:[%s1740] ss:$2 sm:$0xff]
    %s1742 = scalar_lea.vmem %s977, 144 [#allocation2]
    %v1743 = vld [vmem:[%s1742] ss:$2 sm:$0xff]
    %s1744 = scalar_lea.vmem %s977, 192 [#allocation2]
    %v1745 = vld [vmem:[%s1744] ss:$2 sm:$0xff]
    %s1746 = scalar_lea.vmem %s977, 240 [#allocation2]
    %v1747 = vld [vmem:[%s1746] ss:$2 sm:$0xff]
    %s1748 = scalar_lea.vmem %s977, 288 [#allocation2]
    %v1749 = vld [vmem:[%s1748] ss:$2 sm:$0xff]
    %s1750 = scalar_lea.vmem %s977, 336 [#allocation2]
    %v1751 = vld [vmem:[%s1750] ss:$2 sm:$0xff]
    %s1752 = scalar_lea.vmem %s977, 432 [#allocation2]
    %v1753 = vld [vmem:[%s1752] ss:$2 sm:$0xff]
    %s1754 = scalar_lea.vmem %s977, 480 [#allocation2]
    %v1755 = vld [vmem:[%s1754] ss:$2 sm:$0xff]
    %s1756 = scalar_lea.vmem %s977, 528 [#allocation2]
    %v1757 = vld [vmem:[%s1756] ss:$2 sm:$0xff]
    %s1758 = scalar_lea.vmem %s977, 576 [#allocation2]
    %v1759 = vld [vmem:[%s1758] ss:$2 sm:$0xff]
    %s1760 = scalar_lea.vmem %s977, 624 [#allocation2]
    %v1761 = vld [vmem:[%s1760] ss:$2 sm:$0xff]
    %s1762 = scalar_lea.vmem %s977, 672 [#allocation2]
    %v1763 = vld [vmem:[%s1762] ss:$2 sm:$0xff]
    %s1764 = scalar_lea.vmem %s977, 720 [#allocation2]
    %v1765 = vld [vmem:[%s1764] ss:$2 sm:$0xff]
    %s1766 = scalar_lea.vmem %s977, 768 [#allocation2]
    %v1767 = vld [vmem:[%s1766] ss:$2 sm:$0xff]
    %s1768 = scalar_lea.vmem %s3, 24
    %v1769 = vld [vmem:[%s1768] sm:$0xff]
    %v1771 = vsel %vm62, %v1737, 0
    %v1774 = vsel %vm62, %v1739, 0
    %v1777 = vsel %vm62, %v1741, 0
    %v1780 = vsel %vm62, %v1743, 0
    %v1783 = vsel %vm62, %v1745, 0
    %v1786 = vsel %vm62, %v1747, 0
    %v1789 = vsel %vm62, %v1749, 0
    %v1792 = vsel %vm62, %v1751, 0
    %v1795 = vsel %vm62, %v1753, 0
    %v1798 = vsel %vm62, %v1755, 0
    %v1801 = vsel %vm62, %v1757, 0
    %v1804 = vsel %vm62, %v1759, 0
    %v1807 = vsel %vm62, %v1761, 0
    %v1810 = vsel %vm62, %v1763, 0
    %v1813 = vsel %vm62, %v1765, 0
    %v1816 = vsel %vm62, %v1767, 0
    %1818 = vmatprep.subr.mxu0 0.0
    %1819 = vmatpush1.msra.mxu0 %v1769
    %1820 = vmatprep.subr.mxu0 0.0
    %1821 = vmatpush1.msra.mxu0 0.0
    %1822 = vmatprep.subr.mxu0 0.0
    %1823 = vmatpush1.msra.mxu0 0.0
    %1824 = vmatprep.subr.mxu0 0.0
    %1825 = vmatpush1.msra.mxu0 0.0
    %1826 = vmatprep.subr.mxu0 0.0
    %1827 = vmatpush1.msra.mxu0 0.0
    %1828 = vmatprep.subr.mxu0 0.0
    %1829 = vmatpush1.msra.mxu0 0.0
    %1830 = vmatprep.subr.mxu0 0.0
    %1831 = vmatpush1.msra.mxu0 0.0
    %1832 = vmatprep.subr.mxu0 0.0
    %1833 = vmatpush1.msra.mxu0 0.0
    %1834 = vmatprep.subr.mxu0 0.0
    %1835 = vmatpush1.msra.mxu0 0.0
    %1836 = vmatprep.subr.mxu0 0.0
    %1837 = vmatpush1.msra.mxu0 0.0
    %1838 = vmatprep.subr.mxu0 0.0
    %1839 = vmatpush1.msra.mxu0 0.0
    %1840 = vmatprep.subr.mxu0 0.0
    %1841 = vmatpush1.msra.mxu0 0.0
    %1842 = vmatprep.subr.mxu0 0.0
    %1843 = vmatpush1.msra.mxu0 0.0
    %1844 = vmatprep.subr.mxu0 0.0
    %1845 = vmatpush1.msra.mxu0 0.0
    %1846 = vmatprep.subr.mxu0 0.0
    %1847 = vmatpush1.msra.mxu0 0.0
    %1848 = vmatprep.subr.mxu0 0.0
    %1849 = vmatpush1.msra.mxu0 0.0
    %1850 = vmatprep.subr.mxu0 0.0
    %1851 = vmatpush1.msra.mxu0 0.0
    %1852 = vmatprep.subr.mxu0 0.0
    %1853 = vmatpush1.msra.mxu0 0.0
    %1854 = vmatprep.subr.mxu0 0.0
    %1855 = vmatpush1.msra.mxu0 0.0
    %1856 = vmatprep.subr.mxu0 0.0
    %1857 = vmatpush1.msra.mxu0 0.0
    %1858 = vmatprep.subr.mxu0 0.0
    %1859 = vmatpush1.msra.mxu0 0.0
    %1860 = vmatprep.subr.mxu0 0.0
    %1861 = vmatpush1.msra.mxu0 0.0
    %1862 = vmatprep.subr.mxu0 0.0
    %1863 = vmatpush1.msra.mxu0 0.0
    %1864 = vmatprep.subr.mxu0 0.0
    %1865 = vmatpush1.msra.mxu0 0.0
    %1866 = vmatprep.subr.mxu0 0.0
    %1867 = vmatpush1.msra.mxu0 0.0
    %1868 = vmatprep.subr.mxu0 0.0
    %1869 = vmatpush1.msra.mxu0 0.0
    %1870 = vmatprep.subr.mxu0 0.0
    %1871 = vmatpush1.msra.mxu0 0.0
    %1872 = vmatprep.subr.mxu0 0.0
    %1873 = vmatpush1.msra.mxu0 0.0
    %1874 = vmatprep.subr.mxu0 0.0
    %1875 = vmatpush1.msra.mxu0 0.0
    %1876 = vmatprep.subr.mxu0 0.0
    %1877 = vmatpush1.msra.mxu0 0.0
    %1878 = vmatprep.subr.mxu0 0.0
    %1879 = vmatpush1.msra.mxu0 0.0
    %1880 = vmatprep.subr.mxu0 0.0
    %1881 = vmatpush1.msra.mxu0 0.0
    %1882 = vmatprep.mubr.f32.mxu0 0.0
    %1883 = vmatmul.mubr.f32.gmra.mrb[0].mxu0 %v1771
    %v1884 = vpop.f32.mrb[0].mxu0
    %v1885 = vadd.f32 0.0, %v1884
    %v1886 = vpop.f32.mrb[0].mxu0
    %1887 = vmatprep.mubr.f32.mxu0 0.0
    %1888 = vmatmul.mubr.f32.gmra.mrb[0].mxu0 %v1774
    %v1889 = vpop.f32.mrb[0].mxu0
    %v1890 = vadd.f32 0.0, %v1889
    %v1891 = vpop.f32.mrb[0].mxu0
    %1892 = vmatprep.mubr.f32.mxu0 0.0
    %1893 = vmatmul.mubr.f32.gmra.mrb[0].mxu0 %v1777
    %v1894 = vpop.f32.mrb[0].mxu0
    %v1895 = vadd.f32 0.0, %v1894
    %v1896 = vpop.f32.mrb[0].mxu0
    %1897 = vmatprep.mubr.f32.mxu0 0.0
    %1898 = vmatmul.mubr.f32.gmra.mrb[0].mxu0 %v1780
    %v1899 = vpop.f32.mrb[0].mxu0
    %v1900 = vadd.f32 0.0, %v1899
    %v1901 = vpop.f32.mrb[0].mxu0
    %1902 = vmatprep.mubr.f32.mxu0 0.0
    %1903 = vmatmul.mubr.f32.gmra.mrb[0].mxu0 %v1783
    %v1904 = vpop.f32.mrb[0].mxu0
    %v1905 = vadd.f32 0.0, %v1904
    %v1906 = vpop.f32.mrb[0].mxu0
    %1907 = vmatprep.mubr.f32.mxu0 0.0
    %1908 = vmatmul.mubr.f32.gmra.mrb[0].mxu0 %v1786
    %v1909 = vpop.f32.mrb[0].mxu0
    %v1910 = vadd.f32 0.0, %v1909
    %v1911 = vpop.f32.mrb[0].mxu0
    %1912 = vmatprep.mubr.f32.mxu0 0.0
    %1913 = vmatmul.mubr.f32.gmra.mrb[0].mxu0 %v1789
    %v1914 = vpop.f32.mrb[0].mxu0
    %v1915 = vadd.f32 0.0, %v1914
    %v1916 = vpop.f32.mrb[0].mxu0
    %1917 = vmatprep.mubr.f32.mxu0 0.0
    %1918 = vmatmul.mubr.f32.gmra.mrb[0].mxu0 %v1792
    %v1919 = vpop.f32.mrb[0].mxu0
    %v1920 = vadd.f32 0.0, %v1919
    %v1921 = vpop.f32.mrb[0].mxu0
    %1922 = vmatprep.mubr.f32.mxu0 0.0
    %1923 = vmatmul.mubr.f32.gmra.mrb[0].mxu0 %v1795
    %v1924 = vpop.f32.mrb[0].mxu0
    %v1925 = vadd.f32 0.0, %v1924
    %v1926 = vpop.f32.mrb[0].mxu0
    %1927 = vmatprep.mubr.f32.mxu0 0.0
    %1928 = vmatmul.mubr.f32.gmra.mrb[0].mxu0 %v1798
    %v1929 = vpop.f32.mrb[0].mxu0
    %v1930 = vadd.f32 0.0, %v1929
    %v1931 = vpop.f32.mrb[0].mxu0
    %1932 = vmatprep.mubr.f32.mxu0 0.0
    %1933 = vmatmul.mubr.f32.gmra.mrb[0].mxu0 %v1801
    %v1934 = vpop.f32.mrb[0].mxu0
    %v1935 = vadd.f32 0.0, %v1934
    %v1936 = vpop.f32.mrb[0].mxu0
    %1937 = vmatprep.mubr.f32.mxu0 0.0
    %1938 = vmatmul.mubr.f32.gmra.mrb[0].mxu0 %v1804
    %v1939 = vpop.f32.mrb[0].mxu0
    %v1940 = vadd.f32 0.0, %v1939
    %v1941 = vpop.f32.mrb[0].mxu0
    %1942 = vmatprep.mubr.f32.mxu0 0.0
    %1943 = vmatmul.mubr.f32.gmra.mrb[0].mxu0 %v1807
    %v1944 = vpop.f32.mrb[0].mxu0
    %v1945 = vadd.f32 0.0, %v1944
    %v1946 = vpop.f32.mrb[0].mxu0
    %1947 = vmatprep.mubr.f32.mxu0 0.0
    %1948 = vmatmul.mubr.f32.gmra.mrb[0].mxu0 %v1810
    %v1949 = vpop.f32.mrb[0].mxu0
    %v1950 = vadd.f32 0.0, %v1949
    %v1951 = vpop.f32.mrb[0].mxu0
    %1952 = vmatprep.mubr.f32.mxu0 0.0
    %1953 = vmatmul.mubr.f32.gmra.mrb[0].mxu0 %v1813
    %v1954 = vpop.f32.mrb[0].mxu0
    %v1955 = vadd.f32 0.0, %v1954
    %v1956 = vpop.f32.mrb[0].mxu0
    %1957 = vmatprep.mubr.f32.mxu0 0.0
    %1958 = vmatmul.mubr.f32.gmra.mrb[0].mxu0 %v1816
    %v1959 = vpop.f32.mrb[0].mxu0
    %v1960 = vadd.f32 0.0, %v1959
    %v1961 = vpop.f32.mrb[0].mxu0
    %1962 = vdwg.mxu0
    %v1963 = vadd.f32 %v1721, %v1885
    %v1964 = vadd.f32 %v1722, %v1890
    %v1965 = vadd.f32 %v1723, %v1895
    %v1966 = vadd.f32 %v1724, %v1900
    %v1967 = vadd.f32 %v1725, %v1905
    %v1968 = vadd.f32 %v1726, %v1910
    %v1969 = vadd.f32 %v1727, %v1915
    %v1970 = vadd.f32 %v1728, %v1920
    %v1971 = vadd.f32 %v1729, %v1925
    %v1972 = vadd.f32 %v1730, %v1930
    %v1973 = vadd.f32 %v1731, %v1935
    %v1974 = vadd.f32 %v1732, %v1940
    %v1975 = vadd.f32 %v1733, %v1945
    %v1976 = vadd.f32 %v1734, %v1950
    %v1977 = vadd.f32 %v1735, %v1955
    %v1978 = vadd.f32 %v1736, %v1960
    %s1979 = scalar_lea.vmem %s977, 1 [#allocation2]
    %v1980 = vld [vmem:[%s1979] ss:$2 sm:$0xff]
    %s1981 = scalar_lea.vmem %s977, 49 [#allocation2]
    %v1982 = vld [vmem:[%s1981] ss:$2 sm:$0xff]
    %s1983 = scalar_lea.vmem %s977, 97 [#allocation2]
    %v1984 = vld [vmem:[%s1983] ss:$2 sm:$0xff]
    %s1985 = scalar_lea.vmem %s977, 145 [#allocation2]
    %v1986 = vld [vmem:[%s1985] ss:$2 sm:$0xff]
    %s1987 = scalar_lea.vmem %s977, 193 [#allocation2]
    %v1988 = vld [vmem:[%s1987] ss:$2 sm:$0xff]
    %s1989 = scalar_lea.vmem %s977, 241 [#allocation2]
    %v1990 = vld [vmem:[%s1989] ss:$2 sm:$0xff]
    %s1991 = scalar_lea.vmem %s977, 289 [#allocation2]
    %v1992 = vld [vmem:[%s1991] ss:$2 sm:$0xff]
    %s1993 = scalar_lea.vmem %s977, 337 [#allocation2]
    %v1994 = vld [vmem:[%s1993] ss:$2 sm:$0xff]
    %s1995 = scalar_lea.vmem %s977, 433 [#allocation2]
    %v1996 = vld [vmem:[%s1995] ss:$2 sm:$0xff]
    %s1997 = scalar_lea.vmem %s977, 481 [#allocation2]
    %v1998 = vld [vmem:[%s1997] ss:$2 sm:$0xff]
    %s1999 = scalar_lea.vmem %s977, 529 [#allocation2]
    %v2000 = vld [vmem:[%s1999] ss:$2 sm:$0xff]
    %s2001 = scalar_lea.vmem %s977, 577 [#allocation2]
    %v2002 = vld [vmem:[%s2001] ss:$2 sm:$0xff]
    %s2003 = scalar_lea.vmem %s977, 625 [#allocation2]
    %v2004 = vld [vmem:[%s2003] ss:$2 sm:$0xff]
    %s2005 = scalar_lea.vmem %s977, 673 [#allocation2]
    %v2006 = vld [vmem:[%s2005] ss:$2 sm:$0xff]
    %s2007 = scalar_lea.vmem %s977, 721 [#allocation2]
    %v2008 = vld [vmem:[%s2007] ss:$2 sm:$0xff]
    %s2009 = scalar_lea.vmem %s977, 769 [#allocation2]
    %v2010 = vld [vmem:[%s2009] ss:$2 sm:$0xff]
    %s2011 = scalar_lea.vmem %s3, 32
    %v2012 = vld [vmem:[%s2011] sm:$0xff]
    %v2014 = vsel %vm62, %v1980, 0
    %v2017 = vsel %vm62, %v1982, 0
    %v2020 = vsel %vm62, %v1984, 0
    %v2023 = vsel %vm62, %v1986, 0
    %v2026 = vsel %vm62, %v1988, 0
    %v2029 = vsel %vm62, %v1990, 0
    %v2032 = vsel %vm62, %v1992, 0
    %v2035 = vsel %vm62, %v1994, 0
    %v2038 = vsel %vm62, %v1996, 0
    %v2041 = vsel %vm62, %v1998, 0
    %v2044 = vsel %vm62, %v2000, 0
    %v2047 = vsel %vm62, %v2002, 0
    %v2050 = vsel %vm62, %v2004, 0
    %v2053 = vsel %vm62, %v2006, 0
    %v2056 = vsel %vm62, %v2008, 0
    %v2059 = vsel %vm62, %v2010, 0
    %2061 = vmatprep.subr.mxu0 0.0
    %2062 = vmatpush1.msra.mxu0 %v2012
    %2063 = vmatprep.subr.mxu0 0.0
    %2064 = vmatpush1.msra.mxu0 0.0
    %2065 = vmatprep.subr.mxu0 0.0
    %2066 = vmatpush1.msra.mxu0 0.0
    %2067 = vmatprep.subr.mxu0 0.0
    %2068 = vmatpush1.msra.mxu0 0.0
    %2069 = vmatprep.subr.mxu0 0.0
    %2070 = vmatpush1.msra.mxu0 0.0
    %2071 = vmatprep.subr.mxu0 0.0
    %2072 = vmatpush1.msra.mxu0 0.0
    %2073 = vmatprep.subr.mxu0 0.0
    %2074 = vmatpush1.msra.mxu0 0.0
    %2075 = vmatprep.subr.mxu0 0.0
    %2076 = vmatpush1.msra.mxu0 0.0
    %2077 = vmatprep.subr.mxu0 0.0
    %2078 = vmatpush1.msra.mxu0 0.0
    %2079 = vmatprep.subr.mxu0 0.0
    %2080 = vmatpush1.msra.mxu0 0.0
    %2081 = vmatprep.subr.mxu0 0.0
    %2082 = vmatpush1.msra.mxu0 0.0
    %2083 = vmatprep.subr.mxu0 0.0
    %2084 = vmatpush1.msra.mxu0 0.0
    %2085 = vmatprep.subr.mxu0 0.0
    %2086 = vmatpush1.msra.mxu0 0.0
    %2087 = vmatprep.subr.mxu0 0.0
    %2088 = vmatpush1.msra.mxu0 0.0
    %2089 = vmatprep.subr.mxu0 0.0
    %2090 = vmatpush1.msra.mxu0 0.0
    %2091 = vmatprep.subr.mxu0 0.0
    %2092 = vmatpush1.msra.mxu0 0.0
    %2093 = vmatprep.subr.mxu0 0.0
    %2094 = vmatpush1.msra.mxu0 0.0
    %2095 = vmatprep.subr.mxu0 0.0
    %2096 = vmatpush1.msra.mxu0 0.0
    %2097 = vmatprep.subr.mxu0 0.0
    %2098 = vmatpush1.msra.mxu0 0.0
    %2099 = vmatprep.subr.mxu0 0.0
    %2100 = vmatpush1.msra.mxu0 0.0
    %2101 = vmatprep.subr.mxu0 0.0
    %2102 = vmatpush1.msra.mxu0 0.0
    %2103 = vmatprep.subr.mxu0 0.0
    %2104 = vmatpush1.msra.mxu0 0.0
    %2105 = vmatprep.subr.mxu0 0.0
    %2106 = vmatpush1.msra.mxu0 0.0
    %2107 = vmatprep.subr.mxu0 0.0
    %2108 = vmatpush1.msra.mxu0 0.0
    %2109 = vmatprep.subr.mxu0 0.0
    %2110 = vmatpush1.msra.mxu0 0.0
    %2111 = vmatprep.subr.mxu0 0.0
    %2112 = vmatpush1.msra.mxu0 0.0
    %2113 = vmatprep.subr.mxu0 0.0
    %2114 = vmatpush1.msra.mxu0 0.0
    %2115 = vmatprep.subr.mxu0 0.0
    %2116 = vmatpush1.msra.mxu0 0.0
    %2117 = vmatprep.subr.mxu0 0.0
    %2118 = vmatpush1.msra.mxu0 0.0
    %2119 = vmatprep.subr.mxu0 0.0
    %2120 = vmatpush1.msra.mxu0 0.0
    %2121 = vmatprep.subr.mxu0 0.0
    %2122 = vmatpush1.msra.mxu0 0.0
    %2123 = vmatprep.subr.mxu0 0.0
    %2124 = vmatpush1.msra.mxu0 0.0
    %2125 = vmatprep.mubr.f32.mxu0 0.0
    %2126 = vmatmul.mubr.f32.gmra.mrb[0].mxu0 %v2014
    %v2127 = vpop.f32.mrb[0].mxu0
    %v2128 = vadd.f32 0.0, %v2127
    %v2129 = vpop.f32.mrb[0].mxu0
    %2130 = vmatprep.mubr.f32.mxu0 0.0
    %2131 = vmatmul.mubr.f32.gmra.mrb[0].mxu0 %v2017
    %v2132 = vpop.f32.mrb[0].mxu0
    %v2133 = vadd.f32 0.0, %v2132
    %v2134 = vpop.f32.mrb[0].mxu0
    %2135 = vmatprep.mubr.f32.mxu0 0.0
    %2136 = vmatmul.mubr.f32.gmra.mrb[0].mxu0 %v2020
    %v2137 = vpop.f32.mrb[0].mxu0
    %v2138 = vadd.f32 0.0, %v2137
    %v2139 = vpop.f32.mrb[0].mxu0
    %2140 = vmatprep.mubr.f32.mxu0 0.0
    %2141 = vmatmul.mubr.f32.gmra.mrb[0].mxu0 %v2023
    %v2142 = vpop.f32.mrb[0].mxu0
    %v2143 = vadd.f32 0.0, %v2142
    %v2144 = vpop.f32.mrb[0].mxu0
    %2145 = vmatprep.mubr.f32.mxu0 0.0
    %2146 = vmatmul.mubr.f32.gmra.mrb[0].mxu0 %v2026
    %v2147 = vpop.f32.mrb[0].mxu0
    %v2148 = vadd.f32 0.0, %v2147
    %v2149 = vpop.f32.mrb[0].mxu0
    %2150 = vmatprep.mubr.f32.mxu0 0.0
    %2151 = vmatmul.mubr.f32.gmra.mrb[0].mxu0 %v2029
    %v2152 = vpop.f32.mrb[0].mxu0
    %v2153 = vadd.f32 0.0, %v2152
    %v2154 = vpop.f32.mrb[0].mxu0
    %2155 = vmatprep.mubr.f32.mxu0 0.0
    %2156 = vmatmul.mubr.f32.gmra.mrb[0].mxu0 %v2032
    %v2157 = vpop.f32.mrb[0].mxu0
    %v2158 = vadd.f32 0.0, %v2157
    %v2159 = vpop.f32.mrb[0].mxu0
    %2160 = vmatprep.mubr.f32.mxu0 0.0
    %2161 = vmatmul.mubr.f32.gmra.mrb[0].mxu0 %v2035
    %v2162 = vpop.f32.mrb[0].mxu0
    %v2163 = vadd.f32 0.0, %v2162
    %v2164 = vpop.f32.mrb[0].mxu0
    %2165 = vmatprep.mubr.f32.mxu0 0.0
    %2166 = vmatmul.mubr.f32.gmra.mrb[0].mxu0 %v2038
    %v2167 = vpop.f32.mrb[0].mxu0
    %v2168 = vadd.f32 0.0, %v2167
    %v2169 = vpop.f32.mrb[0].mxu0
    %2170 = vmatprep.mubr.f32.mxu0 0.0
    %2171 = vmatmul.mubr.f32.gmra.mrb[0].mxu0 %v2041
    %v2172 = vpop.f32.mrb[0].mxu0
    %v2173 = vadd.f32 0.0, %v2172
    %v2174 = vpop.f32.mrb[0].mxu0
    %2175 = vmatprep.mubr.f32.mxu0 0.0
    %2176 = vmatmul.mubr.f32.gmra.mrb[0].mxu0 %v2044
    %v2177 = vpop.f32.mrb[0].mxu0
    %v2178 = vadd.f32 0.0, %v2177
    %v2179 = vpop.f32.mrb[0].mxu0
    %2180 = vmatprep.mubr.f32.mxu0 0.0
    %2181 = vmatmul.mubr.f32.gmra.mrb[0].mxu0 %v2047
    %v2182 = vpop.f32.mrb[0].mxu0
    %v2183 = vadd.f32 0.0, %v2182
    %v2184 = vpop.f32.mrb[0].mxu0
    %2185 = vmatprep.mubr.f32.mxu0 0.0
    %2186 = vmatmul.mubr.f32.gmra.mrb[0].mxu0 %v2050
    %v2187 = vpop.f32.mrb[0].mxu0
    %v2188 = vadd.f32 0.0, %v2187
    %v2189 = vpop.f32.mrb[0].mxu0
    %2190 = vmatprep.mubr.f32.mxu0 0.0
    %2191 = vmatmul.mubr.f32.gmra.mrb[0].mxu0 %v2053
    %v2192 = vpop.f32.mrb[0].mxu0
    %v2193 = vadd.f32 0.0, %v2192
    %v2194 = vpop.f32.mrb[0].mxu0
    %2195 = vmatprep.mubr.f32.mxu0 0.0
    %2196 = vmatmul.mubr.f32.gmra.mrb[0].mxu0 %v2056
    %v2197 = vpop.f32.mrb[0].mxu0
    %v2198 = vadd.f32 0.0, %v2197
    %v2199 = vpop.f32.mrb[0].mxu0
    %2200 = vmatprep.mubr.f32.mxu0 0.0
    %2201 = vmatmul.mubr.f32.gmra.mrb[0].mxu0 %v2059
    %v2202 = vpop.f32.mrb[0].mxu0
    %v2203 = vadd.f32 0.0, %v2202
    %v2204 = vpop.f32.mrb[0].mxu0
    %2205 = vdwg.mxu0
    %v2206 = vadd.f32 %v1963, %v2128
    %v2207 = vadd.f32 %v1964, %v2133
    %v2208 = vadd.f32 %v1965, %v2138
    %v2209 = vadd.f32 %v1966, %v2143
    %v2210 = vadd.f32 %v1967, %v2148
    %v2211 = vadd.f32 %v1968, %v2153
    %v2212 = vadd.f32 %v1969, %v2158
    %v2213 = vadd.f32 %v1970, %v2163
    %v2214 = vadd.f32 %v1971, %v2168
    %v2215 = vadd.f32 %v1972, %v2173
    %v2216 = vadd.f32 %v1973, %v2178
    %v2217 = vadd.f32 %v1974, %v2183
    %v2218 = vadd.f32 %v1975, %v2188
    %v2219 = vadd.f32 %v1976, %v2193
    %v2220 = vadd.f32 %v1977, %v2198
    %v2221 = vadd.f32 %v1978, %v2203
    %s2222 = scalar_lea.vmem %s977, 2 [#allocation2]
    %v2223 = vld [vmem:[%s2222] ss:$2 sm:$0xff]
    %s2224 = scalar_lea.vmem %s977, 50 [#allocation2]
    %v2225 = vld [vmem:[%s2224] ss:$2 sm:$0xff]
    %s2226 = scalar_lea.vmem %s977, 98 [#allocation2]
    %v2227 = vld [vmem:[%s2226] ss:$2 sm:$0xff]
    %s2228 = scalar_lea.vmem %s977, 146 [#allocation2]
    %v2229 = vld [vmem:[%s2228] ss:$2 sm:$0xff]
    %s2230 = scalar_lea.vmem %s977, 194 [#allocation2]
    %v2231 = vld [vmem:[%s2230] ss:$2 sm:$0xff]
    %s2232 = scalar_lea.vmem %s977, 242 [#allocation2]
    %v2233 = vld [vmem:[%s2232] ss:$2 sm:$0xff]
    %s2234 = scalar_lea.vmem %s977, 290 [#allocation2]
    %v2235 = vld [vmem:[%s2234] ss:$2 sm:$0xff]
    %s2236 = scalar_lea.vmem %s977, 338 [#allocation2]
    %v2237 = vld [vmem:[%s2236] ss:$2 sm:$0xff]
    %s2238 = scalar_lea.vmem %s977, 434 [#allocation2]
    %v2239 = vld [vmem:[%s2238] ss:$2 sm:$0xff]
    %s2240 = scalar_lea.vmem %s977, 482 [#allocation2]
    %v2241 = vld [vmem:[%s2240] ss:$2 sm:$0xff]
    %s2242 = scalar_lea.vmem %s977, 530 [#allocation2]
    %v2243 = vld [vmem:[%s2242] ss:$2 sm:$0xff]
    %s2244 = scalar_lea.vmem %s977, 578 [#allocation2]
    %v2245 = vld [vmem:[%s2244] ss:$2 sm:$0xff]
    %s2246 = scalar_lea.vmem %s977, 626 [#allocation2]
    %v2247 = vld [vmem:[%s2246] ss:$2 sm:$0xff]
    %s2248 = scalar_lea.vmem %s977, 674 [#allocation2]
    %v2249 = vld [vmem:[%s2248] ss:$2 sm:$0xff]
    %s2250 = scalar_lea.vmem %s977, 722 [#allocation2]
    %v2251 = vld [vmem:[%s2250] ss:$2 sm:$0xff]
    %s2252 = scalar_lea.vmem %s977, 770 [#allocation2]
    %v2253 = vld [vmem:[%s2252] ss:$2 sm:$0xff]
    %s2254 = scalar_lea.vmem %s3, 40
    %v2255 = vld [vmem:[%s2254] sm:$0xff]
    %v2257 = vsel %vm62, %v2223, 0
    %v2260 = vsel %vm62, %v2225, 0
    %v2263 = vsel %vm62, %v2227, 0
    %v2266 = vsel %vm62, %v2229, 0
    %v2269 = vsel %vm62, %v2231, 0
    %v2272 = vsel %vm62, %v2233, 0
    %v2275 = vsel %vm62, %v2235, 0
    %v2278 = vsel %vm62, %v2237, 0
    %v2281 = vsel %vm62, %v2239, 0
    %v2284 = vsel %vm62, %v2241, 0
    %v2287 = vsel %vm62, %v2243, 0
    %v2290 = vsel %vm62, %v2245, 0
    %v2293 = vsel %vm62, %v2247, 0
    %v2296 = vsel %vm62, %v2249, 0
    %v2299 = vsel %vm62, %v2251, 0
    %v2302 = vsel %vm62, %v2253, 0
    %2304 = vmatprep.subr.mxu0 0.0
    %2305 = vmatpush1.msra.mxu0 %v2255
    %2306 = vmatprep.subr.mxu0 0.0
    %2307 = vmatpush1.msra.mxu0 0.0
    %2308 = vmatprep.subr.mxu0 0.0
    %2309 = vmatpush1.msra.mxu0 0.0
    %2310 = vmatprep.subr.mxu0 0.0
    %2311 = vmatpush1.msra.mxu0 0.0
    %2312 = vmatprep.subr.mxu0 0.0
    %2313 = vmatpush1.msra.mxu0 0.0
    %2314 = vmatprep.subr.mxu0 0.0
    %2315 = vmatpush1.msra.mxu0 0.0
    %2316 = vmatprep.subr.mxu0 0.0
    %2317 = vmatpush1.msra.mxu0 0.0
    %2318 = vmatprep.subr.mxu0 0.0
    %2319 = vmatpush1.msra.mxu0 0.0
    %2320 = vmatprep.subr.mxu0 0.0
    %2321 = vmatpush1.msra.mxu0 0.0
    %2322 = vmatprep.subr.mxu0 0.0
    %2323 = vmatpush1.msra.mxu0 0.0
    %2324 = vmatprep.subr.mxu0 0.0
    %2325 = vmatpush1.msra.mxu0 0.0
    %2326 = vmatprep.subr.mxu0 0.0
    %2327 = vmatpush1.msra.mxu0 0.0
    %2328 = vmatprep.subr.mxu0 0.0
    %2329 = vmatpush1.msra.mxu0 0.0
    %2330 = vmatprep.subr.mxu0 0.0
    %2331 = vmatpush1.msra.mxu0 0.0
    %2332 = vmatprep.subr.mxu0 0.0
    %2333 = vmatpush1.msra.mxu0 0.0
    %2334 = vmatprep.subr.mxu0 0.0
    %2335 = vmatpush1.msra.mxu0 0.0
    %2336 = vmatprep.subr.mxu0 0.0
    %2337 = vmatpush1.msra.mxu0 0.0
    %2338 = vmatprep.subr.mxu0 0.0
    %2339 = vmatpush1.msra.mxu0 0.0
    %2340 = vmatprep.subr.mxu0 0.0
    %2341 = vmatpush1.msra.mxu0 0.0
    %2342 = vmatprep.subr.mxu0 0.0
    %2343 = vmatpush1.msra.mxu0 0.0
    %2344 = vmatprep.subr.mxu0 0.0
    %2345 = vmatpush1.msra.mxu0 0.0
    %2346 = vmatprep.subr.mxu0 0.0
    %2347 = vmatpush1.msra.mxu0 0.0
    %2348 = vmatprep.subr.mxu0 0.0
    %2349 = vmatpush1.msra.mxu0 0.0
    %2350 = vmatprep.subr.mxu0 0.0
    %2351 = vmatpush1.msra.mxu0 0.0
    %2352 = vmatprep.subr.mxu0 0.0
    %2353 = vmatpush1.msra.mxu0 0.0
    %2354 = vmatprep.subr.mxu0 0.0
    %2355 = vmatpush1.msra.mxu0 0.0
    %2356 = vmatprep.subr.mxu0 0.0
    %2357 = vmatpush1.msra.mxu0 0.0
    %2358 = vmatprep.subr.mxu0 0.0
    %2359 = vmatpush1.msra.mxu0 0.0
    %2360 = vmatprep.subr.mxu0 0.0
    %2361 = vmatpush1.msra.mxu0 0.0
    %2362 = vmatprep.subr.mxu0 0.0
    %2363 = vmatpush1.msra.mxu0 0.0
    %2364 = vmatprep.subr.mxu0 0.0
    %2365 = vmatpush1.msra.mxu0 0.0
    %2366 = vmatprep.subr.mxu0 0.0
    %2367 = vmatpush1.msra.mxu0 0.0
    %2368 = vmatprep.mubr.f32.mxu0 0.0
    %2369 = vmatmul.mubr.f32.gmra.mrb[0].mxu0 %v2257
    %v2370 = vpop.f32.mrb[0].mxu0
    %v2371 = vadd.f32 0.0, %v2370
    %v2372 = vpop.f32.mrb[0].mxu0
    %2373 = vmatprep.mubr.f32.mxu0 0.0
    %2374 = vmatmul.mubr.f32.gmra.mrb[0].mxu0 %v2260
    %v2375 = vpop.f32.mrb[0].mxu0
    %v2376 = vadd.f32 0.0, %v2375
    %v2377 = vpop.f32.mrb[0].mxu0
    %2378 = vmatprep.mubr.f32.mxu0 0.0
    %2379 = vmatmul.mubr.f32.gmra.mrb[0].mxu0 %v2263
    %v2380 = vpop.f32.mrb[0].mxu0
    %v2381 = vadd.f32 0.0, %v2380
    %v2382 = vpop.f32.mrb[0].mxu0
    %2383 = vmatprep.mubr.f32.mxu0 0.0
    %2384 = vmatmul.mubr.f32.gmra.mrb[0].mxu0 %v2266
    %v2385 = vpop.f32.mrb[0].mxu0
    %v2386 = vadd.f32 0.0, %v2385
    %v2387 = vpop.f32.mrb[0].mxu0
    %2388 = vmatprep.mubr.f32.mxu0 0.0
    %2389 = vmatmul.mubr.f32.gmra.mrb[0].mxu0 %v2269
    %v2390 = vpop.f32.mrb[0].mxu0
    %v2391 = vadd.f32 0.0, %v2390
    %v2392 = vpop.f32.mrb[0].mxu0
    %2393 = vmatprep.mubr.f32.mxu0 0.0
    %2394 = vmatmul.mubr.f32.gmra.mrb[0].mxu0 %v2272
    %v2395 = vpop.f32.mrb[0].mxu0
    %v2396 = vadd.f32 0.0, %v2395
    %v2397 = vpop.f32.mrb[0].mxu0
    %2398 = vmatprep.mubr.f32.mxu0 0.0
    %2399 = vmatmul.mubr.f32.gmra.mrb[0].mxu0 %v2275
    %v2400 = vpop.f32.mrb[0].mxu0
    %v2401 = vadd.f32 0.0, %v2400
    %v2402 = vpop.f32.mrb[0].mxu0
    %2403 = vmatprep.mubr.f32.mxu0 0.0
    %2404 = vmatmul.mubr.f32.gmra.mrb[0].mxu0 %v2278
    %v2405 = vpop.f32.mrb[0].mxu0
    %v2406 = vadd.f32 0.0, %v2405
    %v2407 = vpop.f32.mrb[0].mxu0
    %2408 = vmatprep.mubr.f32.mxu0 0.0
    %2409 = vmatmul.mubr.f32.gmra.mrb[0].mxu0 %v2281
    %v2410 = vpop.f32.mrb[0].mxu0
    %v2411 = vadd.f32 0.0, %v2410
    %v2412 = vpop.f32.mrb[0].mxu0
    %2413 = vmatprep.mubr.f32.mxu0 0.0
    %2414 = vmatmul.mubr.f32.gmra.mrb[0].mxu0 %v2284
    %v2415 = vpop.f32.mrb[0].mxu0
    %v2416 = vadd.f32 0.0, %v2415
    %v2417 = vpop.f32.mrb[0].mxu0
    %2418 = vmatprep.mubr.f32.mxu0 0.0
    %2419 = vmatmul.mubr.f32.gmra.mrb[0].mxu0 %v2287
    %v2420 = vpop.f32.mrb[0].mxu0
    %v2421 = vadd.f32 0.0, %v2420
    %v2422 = vpop.f32.mrb[0].mxu0
    %2423 = vmatprep.mubr.f32.mxu0 0.0
    %2424 = vmatmul.mubr.f32.gmra.mrb[0].mxu0 %v2290
    %v2425 = vpop.f32.mrb[0].mxu0
    %v2426 = vadd.f32 0.0, %v2425
    %v2427 = vpop.f32.mrb[0].mxu0
    %2428 = vmatprep.mubr.f32.mxu0 0.0
    %2429 = vmatmul.mubr.f32.gmra.mrb[0].mxu0 %v2293
    %v2430 = vpop.f32.mrb[0].mxu0
    %v2431 = vadd.f32 0.0, %v2430
    %v2432 = vpop.f32.mrb[0].mxu0
    %2433 = vmatprep.mubr.f32.mxu0 0.0
    %2434 = vmatmul.mubr.f32.gmra.mrb[0].mxu0 %v2296
    %v2435 = vpop.f32.mrb[0].mxu0
    %v2436 = vadd.f32 0.0, %v2435
    %v2437 = vpop.f32.mrb[0].mxu0
    %2438 = vmatprep.mubr.f32.mxu0 0.0
    %2439 = vmatmul.mubr.f32.gmra.mrb[0].mxu0 %v2299
    %v2440 = vpop.f32.mrb[0].mxu0
    %v2441 = vadd.f32 0.0, %v2440
    %v2442 = vpop.f32.mrb[0].mxu0
    %2443 = vmatprep.mubr.f32.mxu0 0.0
    %2444 = vmatmul.mubr.f32.gmra.mrb[0].mxu0 %v2302
    %v2445 = vpop.f32.mrb[0].mxu0
    %v2446 = vadd.f32 0.0, %v2445
    %v2447 = vpop.f32.mrb[0].mxu0
    %2448 = vdwg.mxu0
    %v2449 = vadd.f32 %v2206, %v2371
    %v2450 = vadd.f32 %v2207, %v2376
    %v2451 = vadd.f32 %v2208, %v2381
    %v2452 = vadd.f32 %v2209, %v2386
    %v2453 = vadd.f32 %v2210, %v2391
    %v2454 = vadd.f32 %v2211, %v2396
    %v2455 = vadd.f32 %v2212, %v2401
    %v2456 = vadd.f32 %v2213, %v2406
    %v2457 = vadd.f32 %v2214, %v2411
    %v2458 = vadd.f32 %v2215, %v2416
    %v2459 = vadd.f32 %v2216, %v2421
    %v2460 = vadd.f32 %v2217, %v2426
    %v2461 = vadd.f32 %v2218, %v2431
    %v2462 = vadd.f32 %v2219, %v2436
    %v2463 = vadd.f32 %v2220, %v2441
    %v2464 = vadd.f32 %v2221, %v2446
    %s2465 = scalar_lea.vmem [#allocation2], 48
    %v2466 = vld [vmem:[%s2465] ss:$2 sm:$0xff]
    %s2467 = scalar_lea.vmem %s2465, 48 [#allocation2]
    %v2468 = vld [vmem:[%s2467] ss:$2 sm:$0xff]
    %s2469 = scalar_lea.vmem %s2465, 96 [#allocation2]
    %v2470 = vld [vmem:[%s2469] ss:$2 sm:$0xff]
    %s2471 = scalar_lea.vmem %s2465, 144 [#allocation2]
    %v2472 = vld [vmem:[%s2471] ss:$2 sm:$0xff]
    %s2473 = scalar_lea.vmem %s2465, 192 [#allocation2]
    %v2474 = vld [vmem:[%s2473] ss:$2 sm:$0xff]
    %s2475 = scalar_lea.vmem %s2465, 240 [#allocation2]
    %v2476 = vld [vmem:[%s2475] ss:$2 sm:$0xff]
    %s2477 = scalar_lea.vmem %s2465, 288 [#allocation2]
    %v2478 = vld [vmem:[%s2477] ss:$2 sm:$0xff]
    %s2479 = scalar_lea.vmem %s2465, 336 [#allocation2]
    %v2480 = vld [vmem:[%s2479] ss:$2 sm:$0xff]
    %s2481 = scalar_lea.vmem %s2465, 432 [#allocation2]
    %v2482 = vld [vmem:[%s2481] ss:$2 sm:$0xff]
    %s2483 = scalar_lea.vmem %s2465, 480 [#allocation2]
    %v2484 = vld [vmem:[%s2483] ss:$2 sm:$0xff]
    %s2485 = scalar_lea.vmem %s2465, 528 [#allocation2]
    %v2486 = vld [vmem:[%s2485] ss:$2 sm:$0xff]
    %s2487 = scalar_lea.vmem %s2465, 576 [#allocation2]
    %v2488 = vld [vmem:[%s2487] ss:$2 sm:$0xff]
    %s2489 = scalar_lea.vmem %s2465, 624 [#allocation2]
    %v2490 = vld [vmem:[%s2489] ss:$2 sm:$0xff]
    %s2491 = scalar_lea.vmem %s2465, 672 [#allocation2]
    %v2492 = vld [vmem:[%s2491] ss:$2 sm:$0xff]
    %s2493 = scalar_lea.vmem %s2465, 720 [#allocation2]
    %v2494 = vld [vmem:[%s2493] ss:$2 sm:$0xff]
    %s2495 = scalar_lea.vmem %s2465, 768 [#allocation2]
    %v2496 = vld [vmem:[%s2495] ss:$2 sm:$0xff]
    %s2497 = scalar_lea.vmem %s3, 48
    %v2498 = vld [vmem:[%s2497] sm:$0xff]
    %v2500 = vsel %vm62, %v2466, 0
    %v2503 = vsel %vm62, %v2468, 0
    %v2506 = vsel %vm62, %v2470, 0
    %v2509 = vsel %vm62, %v2472, 0
    %v2512 = vsel %vm62, %v2474, 0
    %v2515 = vsel %vm62, %v2476, 0
    %v2518 = vsel %vm62, %v2478, 0
    %v2521 = vsel %vm62, %v2480, 0
    %v2524 = vsel %vm62, %v2482, 0
    %v2527 = vsel %vm62, %v2484, 0
    %v2530 = vsel %vm62, %v2486, 0
    %v2533 = vsel %vm62, %v2488, 0
    %v2536 = vsel %vm62, %v2490, 0
    %v2539 = vsel %vm62, %v2492, 0
    %v2542 = vsel %vm62, %v2494, 0
    %v2545 = vsel %vm62, %v2496, 0
    %2547 = vmatprep.subr.mxu0 0.0
    %2548 = vmatpush1.msra.mxu0 %v2498
    %2549 = vmatprep.subr.mxu0 0.0
    %2550 = vmatpush1.msra.mxu0 0.0
    %2551 = vmatprep.subr.mxu0 0.0
    %2552 = vmatpush1.msra.mxu0 0.0
    %2553 = vmatprep.subr.mxu0 0.0
    %2554 = vmatpush1.msra.mxu0 0.0
    %2555 = vmatprep.subr.mxu0 0.0
    %2556 = vmatpush1.msra.mxu0 0.0
    %2557 = vmatprep.subr.mxu0 0.0
    %2558 = vmatpush1.msra.mxu0 0.0
    %2559 = vmatprep.subr.mxu0 0.0
    %2560 = vmatpush1.msra.mxu0 0.0
    %2561 = vmatprep.subr.mxu0 0.0
    %2562 = vmatpush1.msra.mxu0 0.0
    %2563 = vmatprep.subr.mxu0 0.0
    %2564 = vmatpush1.msra.mxu0 0.0
    %2565 = vmatprep.subr.mxu0 0.0
    %2566 = vmatpush1.msra.mxu0 0.0
    %2567 = vmatprep.subr.mxu0 0.0
    %2568 = vmatpush1.msra.mxu0 0.0
    %2569 = vmatprep.subr.mxu0 0.0
    %2570 = vmatpush1.msra.mxu0 0.0
    %2571 = vmatprep.subr.mxu0 0.0
    %2572 = vmatpush1.msra.mxu0 0.0
    %2573 = vmatprep.subr.mxu0 0.0
    %2574 = vmatpush1.msra.mxu0 0.0
    %2575 = vmatprep.subr.mxu0 0.0
    %2576 = vmatpush1.msra.mxu0 0.0
    %2577 = vmatprep.subr.mxu0 0.0
    %2578 = vmatpush1.msra.mxu0 0.0
    %2579 = vmatprep.subr.mxu0 0.0
    %2580 = vmatpush1.msra.mxu0 0.0
    %2581 = vmatprep.subr.mxu0 0.0
    %2582 = vmatpush1.msra.mxu0 0.0
    %2583 = vmatprep.subr.mxu0 0.0
    %2584 = vmatpush1.msra.mxu0 0.0
    %2585 = vmatprep.subr.mxu0 0.0
    %2586 = vmatpush1.msra.mxu0 0.0
    %2587 = vmatprep.subr.mxu0 0.0
    %2588 = vmatpush1.msra.mxu0 0.0
    %2589 = vmatprep.subr.mxu0 0.0
    %2590 = vmatpush1.msra.mxu0 0.0
    %2591 = vmatprep.subr.mxu0 0.0
    %2592 = vmatpush1.msra.mxu0 0.0
    %2593 = vmatprep.subr.mxu0 0.0
    %2594 = vmatpush1.msra.mxu0 0.0
    %2595 = vmatprep.subr.mxu0 0.0
    %2596 = vmatpush1.msra.mxu0 0.0
    %2597 = vmatprep.subr.mxu0 0.0
    %2598 = vmatpush1.msra.mxu0 0.0
    %2599 = vmatprep.subr.mxu0 0.0
    %2600 = vmatpush1.msra.mxu0 0.0
    %2601 = vmatprep.subr.mxu0 0.0
    %2602 = vmatpush1.msra.mxu0 0.0
    %2603 = vmatprep.subr.mxu0 0.0
    %2604 = vmatpush1.msra.mxu0 0.0
    %2605 = vmatprep.subr.mxu0 0.0
    %2606 = vmatpush1.msra.mxu0 0.0
    %2607 = vmatprep.subr.mxu0 0.0
    %2608 = vmatpush1.msra.mxu0 0.0
    %2609 = vmatprep.subr.mxu0 0.0
    %2610 = vmatpush1.msra.mxu0 0.0
    %2611 = vmatprep.mubr.f32.mxu0 0.0
    %2612 = vmatmul.mubr.f32.gmra.mrb[0].mxu0 %v2500
    %v2613 = vpop.f32.mrb[0].mxu0
    %v2614 = vadd.f32 0.0, %v2613
    %v2615 = vpop.f32.mrb[0].mxu0
    %2616 = vmatprep.mubr.f32.mxu0 0.0
    %2617 = vmatmul.mubr.f32.gmra.mrb[0].mxu0 %v2503
    %v2618 = vpop.f32.mrb[0].mxu0
    %v2619 = vadd.f32 0.0, %v2618
    %v2620 = vpop.f32.mrb[0].mxu0
    %2621 = vmatprep.mubr.f32.mxu0 0.0
    %2622 = vmatmul.mubr.f32.gmra.mrb[0].mxu0 %v2506
    %v2623 = vpop.f32.mrb[0].mxu0
    %v2624 = vadd.f32 0.0, %v2623
    %v2625 = vpop.f32.mrb[0].mxu0
    %2626 = vmatprep.mubr.f32.mxu0 0.0
    %2627 = vmatmul.mubr.f32.gmra.mrb[0].mxu0 %v2509
    %v2628 = vpop.f32.mrb[0].mxu0
    %v2629 = vadd.f32 0.0, %v2628
    %v2630 = vpop.f32.mrb[0].mxu0
    %2631 = vmatprep.mubr.f32.mxu0 0.0
    %2632 = vmatmul.mubr.f32.gmra.mrb[0].mxu0 %v2512
    %v2633 = vpop.f32.mrb[0].mxu0
    %v2634 = vadd.f32 0.0, %v2633
    %v2635 = vpop.f32.mrb[0].mxu0
    %2636 = vmatprep.mubr.f32.mxu0 0.0
    %2637 = vmatmul.mubr.f32.gmra.mrb[0].mxu0 %v2515
    %v2638 = vpop.f32.mrb[0].mxu0
    %v2639 = vadd.f32 0.0, %v2638
    %v2640 = vpop.f32.mrb[0].mxu0
    %2641 = vmatprep.mubr.f32.mxu0 0.0
    %2642 = vmatmul.mubr.f32.gmra.mrb[0].mxu0 %v2518
    %v2643 = vpop.f32.mrb[0].mxu0
    %v2644 = vadd.f32 0.0, %v2643
    %v2645 = vpop.f32.mrb[0].mxu0
    %2646 = vmatprep.mubr.f32.mxu0 0.0
    %2647 = vmatmul.mubr.f32.gmra.mrb[0].mxu0 %v2521
    %v2648 = vpop.f32.mrb[0].mxu0
    %v2649 = vadd.f32 0.0, %v2648
    %v2650 = vpop.f32.mrb[0].mxu0
    %2651 = vmatprep.mubr.f32.mxu0 0.0
    %2652 = vmatmul.mubr.f32.gmra.mrb[0].mxu0 %v2524
    %v2653 = vpop.f32.mrb[0].mxu0
    %v2654 = vadd.f32 0.0, %v2653
    %v2655 = vpop.f32.mrb[0].mxu0
    %2656 = vmatprep.mubr.f32.mxu0 0.0
    %2657 = vmatmul.mubr.f32.gmra.mrb[0].mxu0 %v2527
    %v2658 = vpop.f32.mrb[0].mxu0
    %v2659 = vadd.f32 0.0, %v2658
    %v2660 = vpop.f32.mrb[0].mxu0
    %2661 = vmatprep.mubr.f32.mxu0 0.0
    %2662 = vmatmul.mubr.f32.gmra.mrb[0].mxu0 %v2530
    %v2663 = vpop.f32.mrb[0].mxu0
    %v2664 = vadd.f32 0.0, %v2663
    %v2665 = vpop.f32.mrb[0].mxu0
    %2666 = vmatprep.mubr.f32.mxu0 0.0
    %2667 = vmatmul.mubr.f32.gmra.mrb[0].mxu0 %v2533
    %v2668 = vpop.f32.mrb[0].mxu0
    %v2669 = vadd.f32 0.0, %v2668
    %v2670 = vpop.f32.mrb[0].mxu0
    %2671 = vmatprep.mubr.f32.mxu0 0.0
    %2672 = vmatmul.mubr.f32.gmra.mrb[0].mxu0 %v2536
    %v2673 = vpop.f32.mrb[0].mxu0
    %v2674 = vadd.f32 0.0, %v2673
    %v2675 = vpop.f32.mrb[0].mxu0
    %2676 = vmatprep.mubr.f32.mxu0 0.0
    %2677 = vmatmul.mubr.f32.gmra.mrb[0].mxu0 %v2539
    %v2678 = vpop.f32.mrb[0].mxu0
    %v2679 = vadd.f32 0.0, %v2678
    %v2680 = vpop.f32.mrb[0].mxu0
    %2681 = vmatprep.mubr.f32.mxu0 0.0
    %2682 = vmatmul.mubr.f32.gmra.mrb[0].mxu0 %v2542
    %v2683 = vpop.f32.mrb[0].mxu0
    %v2684 = vadd.f32 0.0, %v2683
    %v2685 = vpop.f32.mrb[0].mxu0
    %2686 = vmatprep.mubr.f32.mxu0 0.0
    %2687 = vmatmul.mubr.f32.gmra.mrb[0].mxu0 %v2545
    %v2688 = vpop.f32.mrb[0].mxu0
    %v2689 = vadd.f32 0.0, %v2688
    %v2690 = vpop.f32.mrb[0].mxu0
    %2691 = vdwg.mxu0
    %v2692 = vadd.f32 %v2449, %v2614
    %v2693 = vadd.f32 %v2450, %v2619
    %v2694 = vadd.f32 %v2451, %v2624
    %v2695 = vadd.f32 %v2452, %v2629
    %v2696 = vadd.f32 %v2453, %v2634
    %v2697 = vadd.f32 %v2454, %v2639
    %v2698 = vadd.f32 %v2455, %v2644
    %v2699 = vadd.f32 %v2456, %v2649
    %v2700 = vadd.f32 %v2457, %v2654
    %v2701 = vadd.f32 %v2458, %v2659
    %v2702 = vadd.f32 %v2459, %v2664
    %v2703 = vadd.f32 %v2460, %v2669
    %v2704 = vadd.f32 %v2461, %v2674
    %v2705 = vadd.f32 %v2462, %v2679
    %v2706 = vadd.f32 %v2463, %v2684
    %v2707 = vadd.f32 %v2464, %v2689
    %s2708 = scalar_lea.vmem %s2465, 1 [#allocation2]
    %v2709 = vld [vmem:[%s2708] ss:$2 sm:$0xff]
    %s2710 = scalar_lea.vmem %s2465, 49 [#allocation2]
    %v2711 = vld [vmem:[%s2710] ss:$2 sm:$0xff]
    %s2712 = scalar_lea.vmem %s2465, 97 [#allocation2]
    %v2713 = vld [vmem:[%s2712] ss:$2 sm:$0xff]
    %s2714 = scalar_lea.vmem %s2465, 145 [#allocation2]
    %v2715 = vld [vmem:[%s2714] ss:$2 sm:$0xff]
    %s2716 = scalar_lea.vmem %s2465, 193 [#allocation2]
    %v2717 = vld [vmem:[%s2716] ss:$2 sm:$0xff]
    %s2718 = scalar_lea.vmem %s2465, 241 [#allocation2]
    %v2719 = vld [vmem:[%s2718] ss:$2 sm:$0xff]
    %s2720 = scalar_lea.vmem %s2465, 289 [#allocation2]
    %v2721 = vld [vmem:[%s2720] ss:$2 sm:$0xff]
    %s2722 = scalar_lea.vmem %s2465, 337 [#allocation2]
    %v2723 = vld [vmem:[%s2722] ss:$2 sm:$0xff]
    %s2724 = scalar_lea.vmem %s2465, 433 [#allocation2]
    %v2725 = vld [vmem:[%s2724] ss:$2 sm:$0xff]
    %s2726 = scalar_lea.vmem %s2465, 481 [#allocation2]
    %v2727 = vld [vmem:[%s2726] ss:$2 sm:$0xff]
    %s2728 = scalar_lea.vmem %s2465, 529 [#allocation2]
    %v2729 = vld [vmem:[%s2728] ss:$2 sm:$0xff]
    %s2730 = scalar_lea.vmem %s2465, 577 [#allocation2]
    %v2731 = vld [vmem:[%s2730] ss:$2 sm:$0xff]
    %s2732 = scalar_lea.vmem %s2465, 625 [#allocation2]
    %v2733 = vld [vmem:[%s2732] ss:$2 sm:$0xff]
    %s2734 = scalar_lea.vmem %s2465, 673 [#allocation2]
    %v2735 = vld [vmem:[%s2734] ss:$2 sm:$0xff]
    %s2736 = scalar_lea.vmem %s2465, 721 [#allocation2]
    %v2737 = vld [vmem:[%s2736] ss:$2 sm:$0xff]
    %s2738 = scalar_lea.vmem %s2465, 769 [#allocation2]
    %v2739 = vld [vmem:[%s2738] ss:$2 sm:$0xff]
    %s2740 = scalar_lea.vmem %s3, 56
    %v2741 = vld [vmem:[%s2740] sm:$0xff]
    %v2743 = vsel %vm62, %v2709, 0
    %v2746 = vsel %vm62, %v2711, 0
    %v2749 = vsel %vm62, %v2713, 0
    %v2752 = vsel %vm62, %v2715, 0
    %v2755 = vsel %vm62, %v2717, 0
    %v2758 = vsel %vm62, %v2719, 0
    %v2761 = vsel %vm62, %v2721, 0
    %v2764 = vsel %vm62, %v2723, 0
    %v2767 = vsel %vm62, %v2725, 0
    %v2770 = vsel %vm62, %v2727, 0
    %v2773 = vsel %vm62, %v2729, 0
    %v2776 = vsel %vm62, %v2731, 0
    %v2779 = vsel %vm62, %v2733, 0
    %v2782 = vsel %vm62, %v2735, 0
    %v2785 = vsel %vm62, %v2737, 0
    %v2788 = vsel %vm62, %v2739, 0
    %2790 = vmatprep.subr.mxu0 0.0
    %2791 = vmatpush1.msra.mxu0 %v2741
    %2792 = vmatprep.subr.mxu0 0.0
    %2793 = vmatpush1.msra.mxu0 0.0
    %2794 = vmatprep.subr.mxu0 0.0
    %2795 = vmatpush1.msra.mxu0 0.0
    %2796 = vmatprep.subr.mxu0 0.0
    %2797 = vmatpush1.msra.mxu0 0.0
    %2798 = vmatprep.subr.mxu0 0.0
    %2799 = vmatpush1.msra.mxu0 0.0
    %2800 = vmatprep.subr.mxu0 0.0
    %2801 = vmatpush1.msra.mxu0 0.0
    %2802 = vmatprep.subr.mxu0 0.0
    %2803 = vmatpush1.msra.mxu0 0.0
    %2804 = vmatprep.subr.mxu0 0.0
    %2805 = vmatpush1.msra.mxu0 0.0
    %2806 = vmatprep.subr.mxu0 0.0
    %2807 = vmatpush1.msra.mxu0 0.0
    %2808 = vmatprep.subr.mxu0 0.0
    %2809 = vmatpush1.msra.mxu0 0.0
    %2810 = vmatprep.subr.mxu0 0.0
    %2811 = vmatpush1.msra.mxu0 0.0
    %2812 = vmatprep.subr.mxu0 0.0
    %2813 = vmatpush1.msra.mxu0 0.0
    %2814 = vmatprep.subr.mxu0 0.0
    %2815 = vmatpush1.msra.mxu0 0.0
    %2816 = vmatprep.subr.mxu0 0.0
    %2817 = vmatpush1.msra.mxu0 0.0
    %2818 = vmatprep.subr.mxu0 0.0
    %2819 = vmatpush1.msra.mxu0 0.0
    %2820 = vmatprep.subr.mxu0 0.0
    %2821 = vmatpush1.msra.mxu0 0.0
    %2822 = vmatprep.subr.mxu0 0.0
    %2823 = vmatpush1.msra.mxu0 0.0
    %2824 = vmatprep.subr.mxu0 0.0
    %2825 = vmatpush1.msra.mxu0 0.0
    %2826 = vmatprep.subr.mxu0 0.0
    %2827 = vmatpush1.msra.mxu0 0.0
    %2828 = vmatprep.subr.mxu0 0.0
    %2829 = vmatpush1.msra.mxu0 0.0
    %2830 = vmatprep.subr.mxu0 0.0
    %2831 = vmatpush1.msra.mxu0 0.0
    %2832 = vmatprep.subr.mxu0 0.0
    %2833 = vmatpush1.msra.mxu0 0.0
    %2834 = vmatprep.subr.mxu0 0.0
    %2835 = vmatpush1.msra.mxu0 0.0
    %2836 = vmatprep.subr.mxu0 0.0
    %2837 = vmatpush1.msra.mxu0 0.0
    %2838 = vmatprep.subr.mxu0 0.0
    %2839 = vmatpush1.msra.mxu0 0.0
    %2840 = vmatprep.subr.mxu0 0.0
    %2841 = vmatpush1.msra.mxu0 0.0
    %2842 = vmatprep.subr.mxu0 0.0
    %2843 = vmatpush1.msra.mxu0 0.0
    %2844 = vmatprep.subr.mxu0 0.0
    %2845 = vmatpush1.msra.mxu0 0.0
    %2846 = vmatprep.subr.mxu0 0.0
    %2847 = vmatpush1.msra.mxu0 0.0
    %2848 = vmatprep.subr.mxu0 0.0
    %2849 = vmatpush1.msra.mxu0 0.0
    %2850 = vmatprep.subr.mxu0 0.0
    %2851 = vmatpush1.msra.mxu0 0.0
    %2852 = vmatprep.subr.mxu0 0.0
    %2853 = vmatpush1.msra.mxu0 0.0
    %2854 = vmatprep.mubr.f32.mxu0 0.0
    %2855 = vmatmul.mubr.f32.gmra.mrb[0].mxu0 %v2743
    %v2856 = vpop.f32.mrb[0].mxu0
    %v2857 = vadd.f32 0.0, %v2856
    %v2858 = vpop.f32.mrb[0].mxu0
    %2859 = vmatprep.mubr.f32.mxu0 0.0
    %2860 = vmatmul.mubr.f32.gmra.mrb[0].mxu0 %v2746
    %v2861 = vpop.f32.mrb[0].mxu0
    %v2862 = vadd.f32 0.0, %v2861
    %v2863 = vpop.f32.mrb[0].mxu0
    %2864 = vmatprep.mubr.f32.mxu0 0.0
    %2865 = vmatmul.mubr.f32.gmra.mrb[0].mxu0 %v2749
    %v2866 = vpop.f32.mrb[0].mxu0
    %v2867 = vadd.f32 0.0, %v2866
    %v2868 = vpop.f32.mrb[0].mxu0
    %2869 = vmatprep.mubr.f32.mxu0 0.0
    %2870 = vmatmul.mubr.f32.gmra.mrb[0].mxu0 %v2752
    %v2871 = vpop.f32.mrb[0].mxu0
    %v2872 = vadd.f32 0.0, %v2871
    %v2873 = vpop.f32.mrb[0].mxu0
    %2874 = vmatprep.mubr.f32.mxu0 0.0
    %2875 = vmatmul.mubr.f32.gmra.mrb[0].mxu0 %v2755
    %v2876 = vpop.f32.mrb[0].mxu0
    %v2877 = vadd.f32 0.0, %v2876
    %v2878 = vpop.f32.mrb[0].mxu0
    %2879 = vmatprep.mubr.f32.mxu0 0.0
    %2880 = vmatmul.mubr.f32.gmra.mrb[0].mxu0 %v2758
    %v2881 = vpop.f32.mrb[0].mxu0
    %v2882 = vadd.f32 0.0, %v2881
    %v2883 = vpop.f32.mrb[0].mxu0
    %2884 = vmatprep.mubr.f32.mxu0 0.0
    %2885 = vmatmul.mubr.f32.gmra.mrb[0].mxu0 %v2761
    %v2886 = vpop.f32.mrb[0].mxu0
    %v2887 = vadd.f32 0.0, %v2886
    %v2888 = vpop.f32.mrb[0].mxu0
    %2889 = vmatprep.mubr.f32.mxu0 0.0
    %2890 = vmatmul.mubr.f32.gmra.mrb[0].mxu0 %v2764
    %v2891 = vpop.f32.mrb[0].mxu0
    %v2892 = vadd.f32 0.0, %v2891
    %v2893 = vpop.f32.mrb[0].mxu0
    %2894 = vmatprep.mubr.f32.mxu0 0.0
    %2895 = vmatmul.mubr.f32.gmra.mrb[0].mxu0 %v2767
    %v2896 = vpop.f32.mrb[0].mxu0
    %v2897 = vadd.f32 0.0, %v2896
    %v2898 = vpop.f32.mrb[0].mxu0
    %2899 = vmatprep.mubr.f32.mxu0 0.0
    %2900 = vmatmul.mubr.f32.gmra.mrb[0].mxu0 %v2770
    %v2901 = vpop.f32.mrb[0].mxu0
    %v2902 = vadd.f32 0.0, %v2901
    %v2903 = vpop.f32.mrb[0].mxu0
    %2904 = vmatprep.mubr.f32.mxu0 0.0
    %2905 = vmatmul.mubr.f32.gmra.mrb[0].mxu0 %v2773
    %v2906 = vpop.f32.mrb[0].mxu0
    %v2907 = vadd.f32 0.0, %v2906
    %v2908 = vpop.f32.mrb[0].mxu0
    %2909 = vmatprep.mubr.f32.mxu0 0.0
    %2910 = vmatmul.mubr.f32.gmra.mrb[0].mxu0 %v2776
    %v2911 = vpop.f32.mrb[0].mxu0
    %v2912 = vadd.f32 0.0, %v2911
    %v2913 = vpop.f32.mrb[0].mxu0
    %2914 = vmatprep.mubr.f32.mxu0 0.0
    %2915 = vmatmul.mubr.f32.gmra.mrb[0].mxu0 %v2779
    %v2916 = vpop.f32.mrb[0].mxu0
    %v2917 = vadd.f32 0.0, %v2916
    %v2918 = vpop.f32.mrb[0].mxu0
    %2919 = vmatprep.mubr.f32.mxu0 0.0
    %2920 = vmatmul.mubr.f32.gmra.mrb[0].mxu0 %v2782
    %v2921 = vpop.f32.mrb[0].mxu0
    %v2922 = vadd.f32 0.0, %v2921
    %v2923 = vpop.f32.mrb[0].mxu0
    %2924 = vmatprep.mubr.f32.mxu0 0.0
    %2925 = vmatmul.mubr.f32.gmra.mrb[0].mxu0 %v2785
    %v2926 = vpop.f32.mrb[0].mxu0
    %v2927 = vadd.f32 0.0, %v2926
    %v2928 = vpop.f32.mrb[0].mxu0
    %2929 = vmatprep.mubr.f32.mxu0 0.0
    %2930 = vmatmul.mubr.f32.gmra.mrb[0].mxu0 %v2788
    %v2931 = vpop.f32.mrb[0].mxu0
    %v2932 = vadd.f32 0.0, %v2931
    %v2933 = vpop.f32.mrb[0].mxu0
    %2934 = vdwg.mxu0
    %v2935 = vadd.f32 %v2692, %v2857
    %v2936 = vadd.f32 %v2693, %v2862
    %v2937 = vadd.f32 %v2694, %v2867
    %v2938 = vadd.f32 %v2695, %v2872
    %v2939 = vadd.f32 %v2696, %v2877
    %v2940 = vadd.f32 %v2697, %v2882
    %v2941 = vadd.f32 %v2698, %v2887
    %v2942 = vadd.f32 %v2699, %v2892
    %v2943 = vadd.f32 %v2700, %v2897
    %v2944 = vadd.f32 %v2701, %v2902
    %v2945 = vadd.f32 %v2702, %v2907
    %v2946 = vadd.f32 %v2703, %v2912
    %v2947 = vadd.f32 %v2704, %v2917
    %v2948 = vadd.f32 %v2705, %v2922
    %v2949 = vadd.f32 %v2706, %v2927
    %v2950 = vadd.f32 %v2707, %v2932
    %s2951 = scalar_lea.vmem %s2465, 2 [#allocation2]
    %v2952 = vld [vmem:[%s2951] ss:$2 sm:$0xff]
    %s2953 = scalar_lea.vmem %s2465, 50 [#allocation2]
    %v2954 = vld [vmem:[%s2953] ss:$2 sm:$0xff]
    %s2955 = scalar_lea.vmem %s2465, 98 [#allocation2]
    %v2956 = vld [vmem:[%s2955] ss:$2 sm:$0xff]
    %s2957 = scalar_lea.vmem %s2465, 146 [#allocation2]
    %v2958 = vld [vmem:[%s2957] ss:$2 sm:$0xff]
    %s2959 = scalar_lea.vmem %s2465, 194 [#allocation2]
    %v2960 = vld [vmem:[%s2959] ss:$2 sm:$0xff]
    %s2961 = scalar_lea.vmem %s2465, 242 [#allocation2]
    %v2962 = vld [vmem:[%s2961] ss:$2 sm:$0xff]
    %s2963 = scalar_lea.vmem %s2465, 290 [#allocation2]
    %v2964 = vld [vmem:[%s2963] ss:$2 sm:$0xff]
    %s2965 = scalar_lea.vmem %s2465, 338 [#allocation2]
    %v2966 = vld [vmem:[%s2965] ss:$2 sm:$0xff]
    %s2967 = scalar_lea.vmem %s2465, 434 [#allocation2]
    %v2968 = vld [vmem:[%s2967] ss:$2 sm:$0xff]
    %s2969 = scalar_lea.vmem %s2465, 482 [#allocation2]
    %v2970 = vld [vmem:[%s2969] ss:$2 sm:$0xff]
    %s2971 = scalar_lea.vmem %s2465, 530 [#allocation2]
    %v2972 = vld [vmem:[%s2971] ss:$2 sm:$0xff]
    %s2973 = scalar_lea.vmem %s2465, 578 [#allocation2]
    %v2974 = vld [vmem:[%s2973] ss:$2 sm:$0xff]
    %s2975 = scalar_lea.vmem %s2465, 626 [#allocation2]
    %v2976 = vld [vmem:[%s2975] ss:$2 sm:$0xff]
    %s2977 = scalar_lea.vmem %s2465, 674 [#allocation2]
    %v2978 = vld [vmem:[%s2977] ss:$2 sm:$0xff]
    %s2979 = scalar_lea.vmem %s2465, 722 [#allocation2]
    %v2980 = vld [vmem:[%s2979] ss:$2 sm:$0xff]
    %s2981 = scalar_lea.vmem %s2465, 770 [#allocation2]
    %v2982 = vld [vmem:[%s2981] ss:$2 sm:$0xff]
    %s2983 = scalar_lea.vmem %s3, 64
    %v2984 = vld [vmem:[%s2983] sm:$0xff]
    %v2986 = vsel %vm62, %v2952, 0
    %v2989 = vsel %vm62, %v2954, 0
    %v2992 = vsel %vm62, %v2956, 0
    %v2995 = vsel %vm62, %v2958, 0
    %v2998 = vsel %vm62, %v2960, 0
    %v3001 = vsel %vm62, %v2962, 0
    %v3004 = vsel %vm62, %v2964, 0
    %v3007 = vsel %vm62, %v2966, 0
    %v3010 = vsel %vm62, %v2968, 0
    %v3013 = vsel %vm62, %v2970, 0
    %v3016 = vsel %vm62, %v2972, 0
    %v3019 = vsel %vm62, %v2974, 0
    %v3022 = vsel %vm62, %v2976, 0
    %v3025 = vsel %vm62, %v2978, 0
    %v3028 = vsel %vm62, %v2980, 0
    %v3031 = vsel %vm62, %v2982, 0
    %3033 = vmatprep.subr.mxu0 0.0
    %3034 = vmatpush1.msra.mxu0 %v2984
    %3035 = vmatprep.subr.mxu0 0.0
    %3036 = vmatpush1.msra.mxu0 0.0
    %3037 = vmatprep.subr.mxu0 0.0
    %3038 = vmatpush1.msra.mxu0 0.0
    %3039 = vmatprep.subr.mxu0 0.0
    %3040 = vmatpush1.msra.mxu0 0.0
    %3041 = vmatprep.subr.mxu0 0.0
    %3042 = vmatpush1.msra.mxu0 0.0
    %3043 = vmatprep.subr.mxu0 0.0
    %3044 = vmatpush1.msra.mxu0 0.0
    %3045 = vmatprep.subr.mxu0 0.0
    %3046 = vmatpush1.msra.mxu0 0.0
    %3047 = vmatprep.subr.mxu0 0.0
    %3048 = vmatpush1.msra.mxu0 0.0
    %3049 = vmatprep.subr.mxu0 0.0
    %3050 = vmatpush1.msra.mxu0 0.0
    %3051 = vmatprep.subr.mxu0 0.0
    %3052 = vmatpush1.msra.mxu0 0.0
    %3053 = vmatprep.subr.mxu0 0.0
    %3054 = vmatpush1.msra.mxu0 0.0
    %3055 = vmatprep.subr.mxu0 0.0
    %3056 = vmatpush1.msra.mxu0 0.0
    %3057 = vmatprep.subr.mxu0 0.0
    %3058 = vmatpush1.msra.mxu0 0.0
    %3059 = vmatprep.subr.mxu0 0.0
    %3060 = vmatpush1.msra.mxu0 0.0
    %3061 = vmatprep.subr.mxu0 0.0
    %3062 = vmatpush1.msra.mxu0 0.0
    %3063 = vmatprep.subr.mxu0 0.0
    %3064 = vmatpush1.msra.mxu0 0.0
    %3065 = vmatprep.subr.mxu0 0.0
    %3066 = vmatpush1.msra.mxu0 0.0
    %3067 = vmatprep.subr.mxu0 0.0
    %3068 = vmatpush1.msra.mxu0 0.0
    %3069 = vmatprep.subr.mxu0 0.0
    %3070 = vmatpush1.msra.mxu0 0.0
    %3071 = vmatprep.subr.mxu0 0.0
    %3072 = vmatpush1.msra.mxu0 0.0
    %3073 = vmatprep.subr.mxu0 0.0
    %3074 = vmatpush1.msra.mxu0 0.0
    %3075 = vmatprep.subr.mxu0 0.0
    %3076 = vmatpush1.msra.mxu0 0.0
    %3077 = vmatprep.subr.mxu0 0.0
    %3078 = vmatpush1.msra.mxu0 0.0
    %3079 = vmatprep.subr.mxu0 0.0
    %3080 = vmatpush1.msra.mxu0 0.0
    %3081 = vmatprep.subr.mxu0 0.0
    %3082 = vmatpush1.msra.mxu0 0.0
    %3083 = vmatprep.subr.mxu0 0.0
    %3084 = vmatpush1.msra.mxu0 0.0
    %3085 = vmatprep.subr.mxu0 0.0
    %3086 = vmatpush1.msra.mxu0 0.0
    %3087 = vmatprep.subr.mxu0 0.0
    %3088 = vmatpush1.msra.mxu0 0.0
    %3089 = vmatprep.subr.mxu0 0.0
    %3090 = vmatpush1.msra.mxu0 0.0
    %3091 = vmatprep.subr.mxu0 0.0
    %3092 = vmatpush1.msra.mxu0 0.0
    %3093 = vmatprep.subr.mxu0 0.0
    %3094 = vmatpush1.msra.mxu0 0.0
    %3095 = vmatprep.subr.mxu0 0.0
    %3096 = vmatpush1.msra.mxu0 0.0
    %3097 = vmatprep.mubr.f32.mxu0 0.0
    %3098 = vmatmul.mubr.f32.gmra.mrb[0].mxu0 %v2986
    %v3099 = vpop.f32.mrb[0].mxu0
    %v3100 = vadd.f32 0.0, %v3099
    %v3101 = vpop.f32.mrb[0].mxu0
    %3102 = vmatprep.mubr.f32.mxu0 0.0
    %3103 = vmatmul.mubr.f32.gmra.mrb[0].mxu0 %v2989
    %v3104 = vpop.f32.mrb[0].mxu0
    %v3105 = vadd.f32 0.0, %v3104
    %v3106 = vpop.f32.mrb[0].mxu0
    %3107 = vmatprep.mubr.f32.mxu0 0.0
    %3108 = vmatmul.mubr.f32.gmra.mrb[0].mxu0 %v2992
    %v3109 = vpop.f32.mrb[0].mxu0
    %v3110 = vadd.f32 0.0, %v3109
    %v3111 = vpop.f32.mrb[0].mxu0
    %3112 = vmatprep.mubr.f32.mxu0 0.0
    %3113 = vmatmul.mubr.f32.gmra.mrb[0].mxu0 %v2995
    %v3114 = vpop.f32.mrb[0].mxu0
    %v3115 = vadd.f32 0.0, %v3114
    %v3116 = vpop.f32.mrb[0].mxu0
    %3117 = vmatprep.mubr.f32.mxu0 0.0
    %3118 = vmatmul.mubr.f32.gmra.mrb[0].mxu0 %v2998
    %v3119 = vpop.f32.mrb[0].mxu0
    %v3120 = vadd.f32 0.0, %v3119
    %v3121 = vpop.f32.mrb[0].mxu0
    %3122 = vmatprep.mubr.f32.mxu0 0.0
    %3123 = vmatmul.mubr.f32.gmra.mrb[0].mxu0 %v3001
    %v3124 = vpop.f32.mrb[0].mxu0
    %v3125 = vadd.f32 0.0, %v3124
    %v3126 = vpop.f32.mrb[0].mxu0
    %3127 = vmatprep.mubr.f32.mxu0 0.0
    %3128 = vmatmul.mubr.f32.gmra.mrb[0].mxu0 %v3004
    %v3129 = vpop.f32.mrb[0].mxu0
    %v3130 = vadd.f32 0.0, %v3129
    %v3131 = vpop.f32.mrb[0].mxu0
    %3132 = vmatprep.mubr.f32.mxu0 0.0
    %3133 = vmatmul.mubr.f32.gmra.mrb[0].mxu0 %v3007
    %v3134 = vpop.f32.mrb[0].mxu0
    %v3135 = vadd.f32 0.0, %v3134
    %v3136 = vpop.f32.mrb[0].mxu0
    %3137 = vmatprep.mubr.f32.mxu0 0.0
    %3138 = vmatmul.mubr.f32.gmra.mrb[0].mxu0 %v3010
    %v3139 = vpop.f32.mrb[0].mxu0
    %v3140 = vadd.f32 0.0, %v3139
    %v3141 = vpop.f32.mrb[0].mxu0
    %3142 = vmatprep.mubr.f32.mxu0 0.0
    %3143 = vmatmul.mubr.f32.gmra.mrb[0].mxu0 %v3013
    %v3144 = vpop.f32.mrb[0].mxu0
    %v3145 = vadd.f32 0.0, %v3144
    %v3146 = vpop.f32.mrb[0].mxu0
    %3147 = vmatprep.mubr.f32.mxu0 0.0
    %3148 = vmatmul.mubr.f32.gmra.mrb[0].mxu0 %v3016
    %v3149 = vpop.f32.mrb[0].mxu0
    %v3150 = vadd.f32 0.0, %v3149
    %v3151 = vpop.f32.mrb[0].mxu0
    %3152 = vmatprep.mubr.f32.mxu0 0.0
    %3153 = vmatmul.mubr.f32.gmra.mrb[0].mxu0 %v3019
    %v3154 = vpop.f32.mrb[0].mxu0
    %v3155 = vadd.f32 0.0, %v3154
    %v3156 = vpop.f32.mrb[0].mxu0
    %3157 = vmatprep.mubr.f32.mxu0 0.0
    %3158 = vmatmul.mubr.f32.gmra.mrb[0].mxu0 %v3022
    %v3159 = vpop.f32.mrb[0].mxu0
    %v3160 = vadd.f32 0.0, %v3159
    %v3161 = vpop.f32.mrb[0].mxu0
    %3162 = vmatprep.mubr.f32.mxu0 0.0
    %3163 = vmatmul.mubr.f32.gmra.mrb[0].mxu0 %v3025
    %v3164 = vpop.f32.mrb[0].mxu0
    %v3165 = vadd.f32 0.0, %v3164
    %v3166 = vpop.f32.mrb[0].mxu0
    %3167 = vmatprep.mubr.f32.mxu0 0.0
    %3168 = vmatmul.mubr.f32.gmra.mrb[0].mxu0 %v3028
    %v3169 = vpop.f32.mrb[0].mxu0
    %v3170 = vadd.f32 0.0, %v3169
    %v3171 = vpop.f32.mrb[0].mxu0
    %3172 = vmatprep.mubr.f32.mxu0 0.0
    %3173 = vmatmul.mubr.f32.gmra.mrb[0].mxu0 %v3031
    %v3174 = vpop.f32.mrb[0].mxu0
    %v3175 = vadd.f32 0.0, %v3174
    %v3176 = vpop.f32.mrb[0].mxu0
    %3177 = vdwg.mxu0
    %v3178 = vadd.f32 %v2935, %v3100
    %v3179 = vadd.f32 %v2936, %v3105
    %v3180 = vadd.f32 %v2937, %v3110
    %v3181 = vadd.f32 %v2938, %v3115
    %v3182 = vadd.f32 %v2939, %v3120
    %v3183 = vadd.f32 %v2940, %v3125
    %v3184 = vadd.f32 %v2941, %v3130
    %v3185 = vadd.f32 %v2942, %v3135
    %v3186 = vadd.f32 %v2943, %v3140
    %v3187 = vadd.f32 %v2944, %v3145
    %v3188 = vadd.f32 %v2945, %v3150
    %v3189 = vadd.f32 %v2946, %v3155
    %v3190 = vadd.f32 %v2947, %v3160
    %v3191 = vadd.f32 %v2948, %v3165
    %v3192 = vadd.f32 %v2949, %v3170
    %v3193 = vadd.f32 %v2950, %v3175
    %v3194 = vld [vmem:[%s4] sm:$0x1]
    %v3196 = vlaneseq
    %v3197 = vshrl.u32 %v3196, 7
    %v3198 = vsub.s32 0, %v3197
    %v3199 = vrot.slane %v3194, %v3198
    %v3201 = vadd.f32 %v3178, %v3199
    %v3202 = vadd.f32 %v3179, %v3199
    %v3203 = vadd.f32 %v3180, %v3199
    %v3204 = vadd.f32 %v3181, %v3199
    %v3205 = vadd.f32 %v3182, %v3199
    %v3206 = vadd.f32 %v3183, %v3199
    %v3207 = vadd.f32 %v3184, %v3199
    %v3208 = vadd.f32 %v3185, %v3199
    %v3209 = vadd.f32 %v3186, %v3199
    %v3210 = vadd.f32 %v3187, %v3199
    %v3211 = vadd.f32 %v3188, %v3199
    %v3212 = vadd.f32 %v3189, %v3199
    %v3213 = vadd.f32 %v3190, %v3199
    %v3214 = vadd.f32 %v3191, %v3199
    %v3215 = vadd.f32 %v3192, %v3199
    %v3216 = vadd.f32 %v3193, %v3199
    %v3217 = vmax.f32 %v3201, 0.0
    %v3218 = vmax.f32 %v3202, 0.0
    %v3219 = vmax.f32 %v3203, 0.0
    %v3220 = vmax.f32 %v3204, 0.0
    %v3221 = vmax.f32 %v3205, 0.0
    %v3222 = vmax.f32 %v3206, 0.0
    %v3223 = vmax.f32 %v3207, 0.0
    %v3224 = vmax.f32 %v3208, 0.0
    %v3225 = vmax.f32 %v3209, 0.0
    %v3226 = vmax.f32 %v3210, 0.0
    %v3227 = vmax.f32 %v3211, 0.0
    %v3228 = vmax.f32 %v3212, 0.0
    %v3229 = vmax.f32 %v3213, 0.0
    %v3230 = vmax.f32 %v3214, 0.0
    %v3231 = vmax.f32 %v3215, 0.0
    %v3232 = vmax.f32 %v3216, 0.0
    %s3233 = scalar_lea.vmem [#allocation3], 16
    %3234 = vst.msk [vmem:[%s3233 + $0x1] sm:$0xff] %vm150, %v3217
    %3235 = vst.msk [vmem:[%s3233 + $0x11] sm:$0xff] %vm150, %v3218
    %3236 = vst.msk [vmem:[%s3233 + $0x21] sm:$0xff] %vm150, %v3219
    %3237 = vst.msk [vmem:[%s3233 + $0x31] sm:$0xff] %vm150, %v3220
    %3238 = vst.msk [vmem:[%s3233 + $0x41] sm:$0xff] %vm150, %v3221
    %3239 = vst.msk [vmem:[%s3233 + $0x51] sm:$0xff] %vm150, %v3222
    %3240 = vst.msk [vmem:[%s3233 + $0x61] sm:$0xff] %vm150, %v3223
    %3241 = vst.msk [vmem:[%s3233 + $0x71] sm:$0xff] %vm150, %v3224
    %3242 = vst.msk [vmem:[%s3233 + $0xa1] sm:$0xff] %vm150, %v3225
    %3243 = vst.msk [vmem:[%s3233 + $0xb1] sm:$0xff] %vm150, %v3226
    %3244 = vst.msk [vmem:[%s3233 + $0xc1] sm:$0xff] %vm150, %v3227
    %3245 = vst.msk [vmem:[%s3233 + $0xd1] sm:$0xff] %vm150, %v3228
    %3246 = vst.msk [vmem:[%s3233 + $0xe1] sm:$0xff] %vm150, %v3229
    %3247 = vst.msk [vmem:[%s3233 + $0xf1] sm:$0xff] %vm150, %v3230
    %3248 = vst.msk [vmem:[%s3233 + $0x101] sm:$0xff] %vm150, %v3231
    %3249 = vst.msk [vmem:[%s3233 + $0x111] sm:$0xff] %vm150, %v3232
    %v3250 = vld [vmem:[#allocation3] sm:$0xff]
    %v3251 = vld [vmem:[#allocation3 + $0x10] sm:$0xff]
    %v3252 = vld [vmem:[#allocation3 + $0x20] sm:$0xff]
    %v3253 = vld [vmem:[#allocation3 + $0x30] sm:$0xff]
    %v3254 = vld [vmem:[#allocation3 + $0x40] sm:$0xff]
    %v3255 = vld [vmem:[#allocation3 + $0x50] sm:$0xff]
    %v3256 = vld [vmem:[#allocation3 + $0x60] sm:$0xff]
    %v3257 = vld [vmem:[#allocation3 + $0x70] sm:$0xff]
    %v3258 = vld [vmem:[#allocation3 + $0xa0] sm:$0xff]
    %v3259 = vld [vmem:[#allocation3 + $0xb0] sm:$0xff]
    %v3260 = vld [vmem:[#allocation3 + $0xc0] sm:$0xff]
    %v3261 = vld [vmem:[#allocation3 + $0xd0] sm:$0xff]
    %v3262 = vld [vmem:[#allocation3 + $0xe0] sm:$0xff]
    %v3263 = vld [vmem:[#allocation3 + $0xf0] sm:$0xff]
    %v3264 = vld [vmem:[#allocation3 + $0x100] sm:$0xff]
    %v3265 = vld [vmem:[#allocation3 + $0x110] sm:$0xff]
    %v3266 = vld [vmem:[%s5] sm:$0xff]
    %v3267 = vld [vmem:[%s5 + $0x8] sm:$0xff]
    %v3268 = vld [vmem:[#allocation3 + $0x1] sm:$0xff]
    %v3269 = vld [vmem:[#allocation3 + $0x11] sm:$0xff]
    %v3270 = vld [vmem:[#allocation3 + $0x21] sm:$0xff]
    %v3271 = vld [vmem:[#allocation3 + $0x31] sm:$0xff]
    %v3272 = vld [vmem:[#allocation3 + $0x41] sm:$0xff]
    %v3273 = vld [vmem:[#allocation3 + $0x51] sm:$0xff]
    %v3274 = vld [vmem:[#allocation3 + $0x61] sm:$0xff]
    %v3275 = vld [vmem:[#allocation3 + $0x71] sm:$0xff]
    %v3276 = vld [vmem:[#allocation3 + $0xa1] sm:$0xff]
    %v3277 = vld [vmem:[#allocation3 + $0xb1] sm:$0xff]
    %v3278 = vld [vmem:[#allocation3 + $0xc1] sm:$0xff]
    %v3279 = vld [vmem:[#allocation3 + $0xd1] sm:$0xff]
    %v3280 = vld [vmem:[#allocation3 + $0xe1] sm:$0xff]
    %v3281 = vld [vmem:[#allocation3 + $0xf1] sm:$0xff]
    %v3282 = vld [vmem:[#allocation3 + $0x101] sm:$0xff]
    %v3283 = vld [vmem:[#allocation3 + $0x111] sm:$0xff]
    %s3284 = scalar_lea.vmem %s5, 16
    %v3285 = vld [vmem:[%s3284] sm:$0xff]
    %v3286 = vld [vmem:[%s3284 + $0x8] sm:$0xff]
    %v3288 = vsel %vm150, %v3268, 0
    %v3291 = vsel %vm150, %v3269, 0
    %v3294 = vsel %vm150, %v3270, 0
    %v3297 = vsel %vm150, %v3271, 0
    %v3300 = vsel %vm150, %v3272, 0
    %v3303 = vsel %vm150, %v3273, 0
    %v3306 = vsel %vm150, %v3274, 0
    %v3309 = vsel %vm150, %v3275, 0
    %v3312 = vsel %vm150, %v3276, 0
    %v3315 = vsel %vm150, %v3277, 0
    %v3318 = vsel %vm150, %v3278, 0
    %v3321 = vsel %vm150, %v3279, 0
    %v3324 = vsel %vm150, %v3280, 0
    %v3327 = vsel %vm150, %v3281, 0
    %v3330 = vsel %vm150, %v3282, 0
    %v3333 = vsel %vm150, %v3283, 0
    %3335 = vmatprep.subr.mxu0 0.0
    %3336 = vmatpush1.msra.mxu0 %v3285
    %3337 = vmatprep.subr.mxu0 0.0
    %3338 = vmatpush1.msra.mxu0 %v3286
    %3339 = vmatprep.subr.mxu0 0.0
    %3340 = vmatpush1.msra.mxu0 0.0
    %3341 = vmatprep.subr.mxu0 0.0
    %3342 = vmatpush1.msra.mxu0 0.0
    %3343 = vmatprep.subr.mxu0 0.0
    %3344 = vmatpush1.msra.mxu0 0.0
    %3345 = vmatprep.subr.mxu0 0.0
    %3346 = vmatpush1.msra.mxu0 0.0
    %3347 = vmatprep.subr.mxu0 0.0
    %3348 = vmatpush1.msra.mxu0 0.0
    %3349 = vmatprep.subr.mxu0 0.0
    %3350 = vmatpush1.msra.mxu0 0.0
    %3351 = vmatprep.subr.mxu0 0.0
    %3352 = vmatpush1.msra.mxu0 0.0
    %3353 = vmatprep.subr.mxu0 0.0
    %3354 = vmatpush1.msra.mxu0 0.0
    %3355 = vmatprep.subr.mxu0 0.0
    %3356 = vmatpush1.msra.mxu0 0.0
    %3357 = vmatprep.subr.mxu0 0.0
    %3358 = vmatpush1.msra.mxu0 0.0
    %3359 = vmatprep.subr.mxu0 0.0
    %3360 = vmatpush1.msra.mxu0 0.0
    %3361 = vmatprep.subr.mxu0 0.0
    %3362 = vmatpush1.msra.mxu0 0.0
    %3363 = vmatprep.subr.mxu0 0.0
    %3364 = vmatpush1.msra.mxu0 0.0
    %3365 = vmatprep.subr.mxu0 0.0
    %3366 = vmatpush1.msra.mxu0 0.0
    %3367 = vmatprep.subr.mxu0 0.0
    %3368 = vmatpush1.msra.mxu0 0.0
    %3369 = vmatprep.subr.mxu0 0.0
    %3370 = vmatpush1.msra.mxu0 0.0
    %3371 = vmatprep.subr.mxu0 0.0
    %3372 = vmatpush1.msra.mxu0 0.0
    %3373 = vmatprep.subr.mxu0 0.0
    %3374 = vmatpush1.msra.mxu0 0.0
    %3375 = vmatprep.subr.mxu0 0.0
    %3376 = vmatpush1.msra.mxu0 0.0
    %3377 = vmatprep.subr.mxu0 0.0
    %3378 = vmatpush1.msra.mxu0 0.0
    %3379 = vmatprep.subr.mxu0 0.0
    %3380 = vmatpush1.msra.mxu0 0.0
    %3381 = vmatprep.subr.mxu0 0.0
    %3382 = vmatpush1.msra.mxu0 0.0
    %3383 = vmatprep.subr.mxu0 0.0
    %3384 = vmatpush1.msra.mxu0 0.0
    %3385 = vmatprep.subr.mxu0 0.0
    %3386 = vmatpush1.msra.mxu0 0.0
    %3387 = vmatprep.subr.mxu0 0.0
    %3388 = vmatpush1.msra.mxu0 0.0
    %3389 = vmatprep.subr.mxu0 0.0
    %3390 = vmatpush1.msra.mxu0 0.0
    %3391 = vmatprep.subr.mxu0 0.0
    %3392 = vmatpush1.msra.mxu0 0.0
    %3393 = vmatprep.subr.mxu0 0.0
    %3394 = vmatpush1.msra.mxu0 0.0
    %3395 = vmatprep.subr.mxu0 0.0
    %3396 = vmatpush1.msra.mxu0 0.0
    %3397 = vmatprep.subr.mxu0 0.0
    %3398 = vmatpush1.msra.mxu0 0.0
    %3399 = vmatprep.mubr.f32.mxu0 0.0
    %3400 = vmatmul.mubr.f32.gmra.mrb[0].mxu0 %v3288
    %v3401 = vpop.f32.mrb[0].mxu0
    %v3402 = vadd.f32 0.0, %v3401
    %v3403 = vpop.f32.mrb[0].mxu0
    %3404 = vmatprep.mubr.f32.mxu0 0.0
    %3405 = vmatmul.mubr.f32.gmra.mrb[0].mxu0 %v3291
    %v3406 = vpop.f32.mrb[0].mxu0
    %v3407 = vadd.f32 0.0, %v3406
    %v3408 = vpop.f32.mrb[0].mxu0
    %3409 = vmatprep.mubr.f32.mxu0 0.0
    %3410 = vmatmul.mubr.f32.gmra.mrb[0].mxu0 %v3294
    %v3411 = vpop.f32.mrb[0].mxu0
    %v3412 = vadd.f32 0.0, %v3411
    %v3413 = vpop.f32.mrb[0].mxu0
    %3414 = vmatprep.mubr.f32.mxu0 0.0
    %3415 = vmatmul.mubr.f32.gmra.mrb[0].mxu0 %v3297
    %v3416 = vpop.f32.mrb[0].mxu0
    %v3417 = vadd.f32 0.0, %v3416
    %v3418 = vpop.f32.mrb[0].mxu0
    %3419 = vmatprep.mubr.f32.mxu0 0.0
    %3420 = vmatmul.mubr.f32.gmra.mrb[0].mxu0 %v3300
    %v3421 = vpop.f32.mrb[0].mxu0
    %v3422 = vadd.f32 0.0, %v3421
    %v3423 = vpop.f32.mrb[0].mxu0
    %3424 = vmatprep.mubr.f32.mxu0 0.0
    %3425 = vmatmul.mubr.f32.gmra.mrb[0].mxu0 %v3303
    %v3426 = vpop.f32.mrb[0].mxu0
    %v3427 = vadd.f32 0.0, %v3426
    %v3428 = vpop.f32.mrb[0].mxu0
    %3429 = vmatprep.mubr.f32.mxu0 0.0
    %3430 = vmatmul.mubr.f32.gmra.mrb[0].mxu0 %v3306
    %v3431 = vpop.f32.mrb[0].mxu0
    %v3432 = vadd.f32 0.0, %v3431
    %v3433 = vpop.f32.mrb[0].mxu0
    %3434 = vmatprep.mubr.f32.mxu0 0.0
    %3435 = vmatmul.mubr.f32.gmra.mrb[0].mxu0 %v3309
    %v3436 = vpop.f32.mrb[0].mxu0
    %v3437 = vadd.f32 0.0, %v3436
    %v3438 = vpop.f32.mrb[0].mxu0
    %3439 = vmatprep.mubr.f32.mxu0 0.0
    %3440 = vmatmul.mubr.f32.gmra.mrb[0].mxu0 %v3312
    %v3441 = vpop.f32.mrb[0].mxu0
    %v3442 = vadd.f32 0.0, %v3441
    %v3443 = vpop.f32.mrb[0].mxu0
    %3444 = vmatprep.mubr.f32.mxu0 0.0
    %3445 = vmatmul.mubr.f32.gmra.mrb[0].mxu0 %v3315
    %v3446 = vpop.f32.mrb[0].mxu0
    %v3447 = vadd.f32 0.0, %v3446
    %v3448 = vpop.f32.mrb[0].mxu0
    %3449 = vmatprep.mubr.f32.mxu0 0.0
    %3450 = vmatmul.mubr.f32.gmra.mrb[0].mxu0 %v3318
    %v3451 = vpop.f32.mrb[0].mxu0
    %v3452 = vadd.f32 0.0, %v3451
    %v3453 = vpop.f32.mrb[0].mxu0
    %3454 = vmatprep.mubr.f32.mxu0 0.0
    %3455 = vmatmul.mubr.f32.gmra.mrb[0].mxu0 %v3321
    %v3456 = vpop.f32.mrb[0].mxu0
    %v3457 = vadd.f32 0.0, %v3456
    %v3458 = vpop.f32.mrb[0].mxu0
    %3459 = vmatprep.mubr.f32.mxu0 0.0
    %3460 = vmatmul.mubr.f32.gmra.mrb[0].mxu0 %v3324
    %v3461 = vpop.f32.mrb[0].mxu0
    %v3462 = vadd.f32 0.0, %v3461
    %v3463 = vpop.f32.mrb[0].mxu0
    %3464 = vmatprep.mubr.f32.mxu0 0.0
    %3465 = vmatmul.mubr.f32.gmra.mrb[0].mxu0 %v3327
    %v3466 = vpop.f32.mrb[0].mxu0
    %v3467 = vadd.f32 0.0, %v3466
    %v3468 = vpop.f32.mrb[0].mxu0
    %3469 = vmatprep.mubr.f32.mxu0 0.0
    %3470 = vmatmul.mubr.f32.gmra.mrb[0].mxu0 %v3330
    %v3471 = vpop.f32.mrb[0].mxu0
    %v3472 = vadd.f32 0.0, %v3471
    %v3473 = vpop.f32.mrb[0].mxu0
    %3474 = vmatprep.mubr.f32.mxu0 0.0
    %3475 = vmatmul.mubr.f32.gmra.mrb[0].mxu0 %v3333
    %v3476 = vpop.f32.mrb[0].mxu0
    %v3477 = vadd.f32 0.0, %v3476
    %v3478 = vpop.f32.mrb[0].mxu0
    %3479 = vdwg.mxu0
    %v3481 = vsel %vm150, %v3250, 0
    %v3484 = vsel %vm150, %v3251, 0
    %v3487 = vsel %vm150, %v3252, 0
    %v3490 = vsel %vm150, %v3253, 0
    %v3493 = vsel %vm150, %v3254, 0
    %v3496 = vsel %vm150, %v3255, 0
    %v3499 = vsel %vm150, %v3256, 0
    %v3502 = vsel %vm150, %v3257, 0
    %v3505 = vsel %vm150, %v3258, 0
    %v3508 = vsel %vm150, %v3259, 0
    %v3511 = vsel %vm150, %v3260, 0
    %v3514 = vsel %vm150, %v3261, 0
    %v3517 = vsel %vm150, %v3262, 0
    %v3520 = vsel %vm150, %v3263, 0
    %v3523 = vsel %vm150, %v3264, 0
    %v3526 = vsel %vm150, %v3265, 0
    %3528 = vmatprep.subr.mxu0 0.0
    %3529 = vmatpush1.msra.mxu0 %v3266
    %3530 = vmatprep.subr.mxu0 0.0
    %3531 = vmatpush1.msra.mxu0 %v3267
    %3532 = vmatprep.subr.mxu0 0.0
    %3533 = vmatpush1.msra.mxu0 0.0
    %3534 = vmatprep.subr.mxu0 0.0
    %3535 = vmatpush1.msra.mxu0 0.0
    %3536 = vmatprep.subr.mxu0 0.0
    %3537 = vmatpush1.msra.mxu0 0.0
    %3538 = vmatprep.subr.mxu0 0.0
    %3539 = vmatpush1.msra.mxu0 0.0
    %3540 = vmatprep.subr.mxu0 0.0
    %3541 = vmatpush1.msra.mxu0 0.0
    %3542 = vmatprep.subr.mxu0 0.0
    %3543 = vmatpush1.msra.mxu0 0.0
    %3544 = vmatprep.subr.mxu0 0.0
    %3545 = vmatpush1.msra.mxu0 0.0
    %3546 = vmatprep.subr.mxu0 0.0
    %3547 = vmatpush1.msra.mxu0 0.0
    %3548 = vmatprep.subr.mxu0 0.0
    %3549 = vmatpush1.msra.mxu0 0.0
    %3550 = vmatprep.subr.mxu0 0.0
    %3551 = vmatpush1.msra.mxu0 0.0
    %3552 = vmatprep.subr.mxu0 0.0
    %3553 = vmatpush1.msra.mxu0 0.0
    %3554 = vmatprep.subr.mxu0 0.0
    %3555 = vmatpush1.msra.mxu0 0.0
    %3556 = vmatprep.subr.mxu0 0.0
    %3557 = vmatpush1.msra.mxu0 0.0
    %3558 = vmatprep.subr.mxu0 0.0
    %3559 = vmatpush1.msra.mxu0 0.0
    %3560 = vmatprep.subr.mxu0 0.0
    %3561 = vmatpush1.msra.mxu0 0.0
    %3562 = vmatprep.subr.mxu0 0.0
    %3563 = vmatpush1.msra.mxu0 0.0
    %3564 = vmatprep.subr.mxu0 0.0
    %3565 = vmatpush1.msra.mxu0 0.0
    %3566 = vmatprep.subr.mxu0 0.0
    %3567 = vmatpush1.msra.mxu0 0.0
    %3568 = vmatprep.subr.mxu0 0.0
    %3569 = vmatpush1.msra.mxu0 0.0
    %3570 = vmatprep.subr.mxu0 0.0
    %3571 = vmatpush1.msra.mxu0 0.0
    %3572 = vmatprep.subr.mxu0 0.0
    %3573 = vmatpush1.msra.mxu0 0.0
    %3574 = vmatprep.subr.mxu0 0.0
    %3575 = vmatpush1.msra.mxu0 0.0
    %3576 = vmatprep.subr.mxu0 0.0
    %3577 = vmatpush1.msra.mxu0 0.0
    %3578 = vmatprep.subr.mxu0 0.0
    %3579 = vmatpush1.msra.mxu0 0.0
    %3580 = vmatprep.subr.mxu0 0.0
    %3581 = vmatpush1.msra.mxu0 0.0
    %3582 = vmatprep.subr.mxu0 0.0
    %3583 = vmatpush1.msra.mxu0 0.0
    %3584 = vmatprep.subr.mxu0 0.0
    %3585 = vmatpush1.msra.mxu0 0.0
    %3586 = vmatprep.subr.mxu0 0.0
    %3587 = vmatpush1.msra.mxu0 0.0
    %3588 = vmatprep.subr.mxu0 0.0
    %3589 = vmatpush1.msra.mxu0 0.0
    %3590 = vmatprep.subr.mxu0 0.0
    %3591 = vmatpush1.msra.mxu0 0.0
    %3592 = vmatprep.mubr.f32.mxu0 0.0
    %3593 = vmatmul.mubr.f32.gmra.mrb[0].mxu0 %v3481
    %v3594 = vpop.f32.mrb[0].mxu0
    %v3595 = vadd.f32 %v3402, %v3594
    %v3596 = vpop.f32.mrb[0].mxu0
    %3597 = vmatprep.mubr.f32.mxu0 0.0
    %3598 = vmatmul.mubr.f32.gmra.mrb[0].mxu0 %v3484
    %v3599 = vpop.f32.mrb[0].mxu0
    %v3600 = vadd.f32 %v3407, %v3599
    %v3601 = vpop.f32.mrb[0].mxu0
    %3602 = vmatprep.mubr.f32.mxu0 0.0
    %3603 = vmatmul.mubr.f32.gmra.mrb[0].mxu0 %v3487
    %v3604 = vpop.f32.mrb[0].mxu0
    %v3605 = vadd.f32 %v3412, %v3604
    %v3606 = vpop.f32.mrb[0].mxu0
    %3607 = vmatprep.mubr.f32.mxu0 0.0
    %3608 = vmatmul.mubr.f32.gmra.mrb[0].mxu0 %v3490
    %v3609 = vpop.f32.mrb[0].mxu0
    %v3610 = vadd.f32 %v3417, %v3609
    %v3611 = vpop.f32.mrb[0].mxu0
    %3612 = vmatprep.mubr.f32.mxu0 0.0
    %3613 = vmatmul.mubr.f32.gmra.mrb[0].mxu0 %v3493
    %v3614 = vpop.f32.mrb[0].mxu0
    %v3615 = vadd.f32 %v3422, %v3614
    %v3616 = vpop.f32.mrb[0].mxu0
    %3617 = vmatprep.mubr.f32.mxu0 0.0
    %3618 = vmatmul.mubr.f32.gmra.mrb[0].mxu0 %v3496
    %v3619 = vpop.f32.mrb[0].mxu0
    %v3620 = vadd.f32 %v3427, %v3619
    %v3621 = vpop.f32.mrb[0].mxu0
    %3622 = vmatprep.mubr.f32.mxu0 0.0
    %3623 = vmatmul.mubr.f32.gmra.mrb[0].mxu0 %v3499
    %v3624 = vpop.f32.mrb[0].mxu0
    %v3625 = vadd.f32 %v3432, %v3624
    %v3626 = vpop.f32.mrb[0].mxu0
    %3627 = vmatprep.mubr.f32.mxu0 0.0
    %3628 = vmatmul.mubr.f32.gmra.mrb[0].mxu0 %v3502
    %v3629 = vpop.f32.mrb[0].mxu0
    %v3630 = vadd.f32 %v3437, %v3629
    %v3631 = vpop.f32.mrb[0].mxu0
    %3632 = vmatprep.mubr.f32.mxu0 0.0
    %3633 = vmatmul.mubr.f32.gmra.mrb[0].mxu0 %v3505
    %v3634 = vpop.f32.mrb[0].mxu0
    %v3635 = vadd.f32 %v3442, %v3634
    %v3636 = vpop.f32.mrb[0].mxu0
    %3637 = vmatprep.mubr.f32.mxu0 0.0
    %3638 = vmatmul.mubr.f32.gmra.mrb[0].mxu0 %v3508
    %v3639 = vpop.f32.mrb[0].mxu0
    %v3640 = vadd.f32 %v3447, %v3639
    %v3641 = vpop.f32.mrb[0].mxu0
    %3642 = vmatprep.mubr.f32.mxu0 0.0
    %3643 = vmatmul.mubr.f32.gmra.mrb[0].mxu0 %v3511
    %v3644 = vpop.f32.mrb[0].mxu0
    %v3645 = vadd.f32 %v3452, %v3644
    %v3646 = vpop.f32.mrb[0].mxu0
    %3647 = vmatprep.mubr.f32.mxu0 0.0
    %3648 = vmatmul.mubr.f32.gmra.mrb[0].mxu0 %v3514
    %v3649 = vpop.f32.mrb[0].mxu0
    %v3650 = vadd.f32 %v3457, %v3649
    %v3651 = vpop.f32.mrb[0].mxu0
    %3652 = vmatprep.mubr.f32.mxu0 0.0
    %3653 = vmatmul.mubr.f32.gmra.mrb[0].mxu0 %v3517
    %v3654 = vpop.f32.mrb[0].mxu0
    %v3655 = vadd.f32 %v3462, %v3654
    %v3656 = vpop.f32.mrb[0].mxu0
    %3657 = vmatprep.mubr.f32.mxu0 0.0
    %3658 = vmatmul.mubr.f32.gmra.mrb[0].mxu0 %v3520
    %v3659 = vpop.f32.mrb[0].mxu0
    %v3660 = vadd.f32 %v3467, %v3659
    %v3661 = vpop.f32.mrb[0].mxu0
    %3662 = vmatprep.mubr.f32.mxu0 0.0
    %3663 = vmatmul.mubr.f32.gmra.mrb[0].mxu0 %v3523
    %v3664 = vpop.f32.mrb[0].mxu0
    %v3665 = vadd.f32 %v3472, %v3664
    %v3666 = vpop.f32.mrb[0].mxu0
    %3667 = vmatprep.mubr.f32.mxu0 0.0
    %3668 = vmatmul.mubr.f32.gmra.mrb[0].mxu0 %v3526
    %v3669 = vpop.f32.mrb[0].mxu0
    %v3670 = vadd.f32 %v3477, %v3669
    %v3671 = vpop.f32.mrb[0].mxu0
    %3672 = vdwg.mxu0
    %v3673 = vld [vmem:[#allocation3 + $0x2] sm:$0xff]
    %v3674 = vld [vmem:[#allocation3 + $0x12] sm:$0xff]
    %v3675 = vld [vmem:[#allocation3 + $0x22] sm:$0xff]
    %v3676 = vld [vmem:[#allocation3 + $0x32] sm:$0xff]
    %v3677 = vld [vmem:[#allocation3 + $0x42] sm:$0xff]
    %v3678 = vld [vmem:[#allocation3 + $0x52] sm:$0xff]
    %v3679 = vld [vmem:[#allocation3 + $0x62] sm:$0xff]
    %v3680 = vld [vmem:[#allocation3 + $0x72] sm:$0xff]
    %v3681 = vld [vmem:[#allocation3 + $0xa2] sm:$0xff]
    %v3682 = vld [vmem:[#allocation3 + $0xb2] sm:$0xff]
    %v3683 = vld [vmem:[#allocation3 + $0xc2] sm:$0xff]
    %v3684 = vld [vmem:[#allocation3 + $0xd2] sm:$0xff]
    %v3685 = vld [vmem:[#allocation3 + $0xe2] sm:$0xff]
    %v3686 = vld [vmem:[#allocation3 + $0xf2] sm:$0xff]
    %v3687 = vld [vmem:[#allocation3 + $0x102] sm:$0xff]
    %v3688 = vld [vmem:[#allocation3 + $0x112] sm:$0xff]
    %s3689 = scalar_lea.vmem %s5, 32
    %v3690 = vld [vmem:[%s3689] sm:$0xff]
    %v3691 = vld [vmem:[%s3689 + $0x8] sm:$0xff]
    %v3693 = vsel %vm150, %v3673, 0
    %v3696 = vsel %vm150, %v3674, 0
    %v3699 = vsel %vm150, %v3675, 0
    %v3702 = vsel %vm150, %v3676, 0
    %v3705 = vsel %vm150, %v3677, 0
    %v3708 = vsel %vm150, %v3678, 0
    %v3711 = vsel %vm150, %v3679, 0
    %v3714 = vsel %vm150, %v3680, 0
    %v3717 = vsel %vm150, %v3681, 0
    %v3720 = vsel %vm150, %v3682, 0
    %v3723 = vsel %vm150, %v3683, 0
    %v3726 = vsel %vm150, %v3684, 0
    %v3729 = vsel %vm150, %v3685, 0
    %v3732 = vsel %vm150, %v3686, 0
    %v3735 = vsel %vm150, %v3687, 0
    %v3738 = vsel %vm150, %v3688, 0
    %3740 = vmatprep.subr.mxu0 0.0
    %3741 = vmatpush1.msra.mxu0 %v3690
    %3742 = vmatprep.subr.mxu0 0.0
    %3743 = vmatpush1.msra.mxu0 %v3691
    %3744 = vmatprep.subr.mxu0 0.0
    %3745 = vmatpush1.msra.mxu0 0.0
    %3746 = vmatprep.subr.mxu0 0.0
    %3747 = vmatpush1.msra.mxu0 0.0
    %3748 = vmatprep.subr.mxu0 0.0
    %3749 = vmatpush1.msra.mxu0 0.0
    %3750 = vmatprep.subr.mxu0 0.0
    %3751 = vmatpush1.msra.mxu0 0.0
    %3752 = vmatprep.subr.mxu0 0.0
    %3753 = vmatpush1.msra.mxu0 0.0
    %3754 = vmatprep.subr.mxu0 0.0
    %3755 = vmatpush1.msra.mxu0 0.0
    %3756 = vmatprep.subr.mxu0 0.0
    %3757 = vmatpush1.msra.mxu0 0.0
    %3758 = vmatprep.subr.mxu0 0.0
    %3759 = vmatpush1.msra.mxu0 0.0
    %3760 = vmatprep.subr.mxu0 0.0
    %3761 = vmatpush1.msra.mxu0 0.0
    %3762 = vmatprep.subr.mxu0 0.0
    %3763 = vmatpush1.msra.mxu0 0.0
    %3764 = vmatprep.subr.mxu0 0.0
    %3765 = vmatpush1.msra.mxu0 0.0
    %3766 = vmatprep.subr.mxu0 0.0
    %3767 = vmatpush1.msra.mxu0 0.0
    %3768 = vmatprep.subr.mxu0 0.0
    %3769 = vmatpush1.msra.mxu0 0.0
    %3770 = vmatprep.subr.mxu0 0.0
    %3771 = vmatpush1.msra.mxu0 0.0
    %3772 = vmatprep.subr.mxu0 0.0
    %3773 = vmatpush1.msra.mxu0 0.0
    %3774 = vmatprep.subr.mxu0 0.0
    %3775 = vmatpush1.msra.mxu0 0.0
    %3776 = vmatprep.subr.mxu0 0.0
    %3777 = vmatpush1.msra.mxu0 0.0
    %3778 = vmatprep.subr.mxu0 0.0
    %3779 = vmatpush1.msra.mxu0 0.0
    %3780 = vmatprep.subr.mxu0 0.0
    %3781 = vmatpush1.msra.mxu0 0.0
    %3782 = vmatprep.subr.mxu0 0.0
    %3783 = vmatpush1.msra.mxu0 0.0
    %3784 = vmatprep.subr.mxu0 0.0
    %3785 = vmatpush1.msra.mxu0 0.0
    %3786 = vmatprep.subr.mxu0 0.0
    %3787 = vmatpush1.msra.mxu0 0.0
    %3788 = vmatprep.subr.mxu0 0.0
    %3789 = vmatpush1.msra.mxu0 0.0
    %3790 = vmatprep.subr.mxu0 0.0
    %3791 = vmatpush1.msra.mxu0 0.0
    %3792 = vmatprep.subr.mxu0 0.0
    %3793 = vmatpush1.msra.mxu0 0.0
    %3794 = vmatprep.subr.mxu0 0.0
    %3795 = vmatpush1.msra.mxu0 0.0
    %3796 = vmatprep.subr.mxu0 0.0
    %3797 = vmatpush1.msra.mxu0 0.0
    %3798 = vmatprep.subr.mxu0 0.0
    %3799 = vmatpush1.msra.mxu0 0.0
    %3800 = vmatprep.subr.mxu0 0.0
    %3801 = vmatpush1.msra.mxu0 0.0
    %3802 = vmatprep.subr.mxu0 0.0
    %3803 = vmatpush1.msra.mxu0 0.0
    %3804 = vmatprep.mubr.f32.mxu0 0.0
    %3805 = vmatmul.mubr.f32.gmra.mrb[0].mxu0 %v3693
    %v3806 = vpop.f32.mrb[0].mxu0
    %v3807 = vadd.f32 0.0, %v3806
    %v3808 = vpop.f32.mrb[0].mxu0
    %3809 = vmatprep.mubr.f32.mxu0 0.0
    %3810 = vmatmul.mubr.f32.gmra.mrb[0].mxu0 %v3696
    %v3811 = vpop.f32.mrb[0].mxu0
    %v3812 = vadd.f32 0.0, %v3811
    %v3813 = vpop.f32.mrb[0].mxu0
    %3814 = vmatprep.mubr.f32.mxu0 0.0
    %3815 = vmatmul.mubr.f32.gmra.mrb[0].mxu0 %v3699
    %v3816 = vpop.f32.mrb[0].mxu0
    %v3817 = vadd.f32 0.0, %v3816
    %v3818 = vpop.f32.mrb[0].mxu0
    %3819 = vmatprep.mubr.f32.mxu0 0.0
    %3820 = vmatmul.mubr.f32.gmra.mrb[0].mxu0 %v3702
    %v3821 = vpop.f32.mrb[0].mxu0
    %v3822 = vadd.f32 0.0, %v3821
    %v3823 = vpop.f32.mrb[0].mxu0
    %3824 = vmatprep.mubr.f32.mxu0 0.0
    %3825 = vmatmul.mubr.f32.gmra.mrb[0].mxu0 %v3705
    %v3826 = vpop.f32.mrb[0].mxu0
    %v3827 = vadd.f32 0.0, %v3826
    %v3828 = vpop.f32.mrb[0].mxu0
    %3829 = vmatprep.mubr.f32.mxu0 0.0
    %3830 = vmatmul.mubr.f32.gmra.mrb[0].mxu0 %v3708
    %v3831 = vpop.f32.mrb[0].mxu0
    %v3832 = vadd.f32 0.0, %v3831
    %v3833 = vpop.f32.mrb[0].mxu0
    %3834 = vmatprep.mubr.f32.mxu0 0.0
    %3835 = vmatmul.mubr.f32.gmra.mrb[0].mxu0 %v3711
    %v3836 = vpop.f32.mrb[0].mxu0
    %v3837 = vadd.f32 0.0, %v3836
    %v3838 = vpop.f32.mrb[0].mxu0
    %3839 = vmatprep.mubr.f32.mxu0 0.0
    %3840 = vmatmul.mubr.f32.gmra.mrb[0].mxu0 %v3714
    %v3841 = vpop.f32.mrb[0].mxu0
    %v3842 = vadd.f32 0.0, %v3841
    %v3843 = vpop.f32.mrb[0].mxu0
    %3844 = vmatprep.mubr.f32.mxu0 0.0
    %3845 = vmatmul.mubr.f32.gmra.mrb[0].mxu0 %v3717
    %v3846 = vpop.f32.mrb[0].mxu0
    %v3847 = vadd.f32 0.0, %v3846
    %v3848 = vpop.f32.mrb[0].mxu0
    %3849 = vmatprep.mubr.f32.mxu0 0.0
    %3850 = vmatmul.mubr.f32.gmra.mrb[0].mxu0 %v3720
    %v3851 = vpop.f32.mrb[0].mxu0
    %v3852 = vadd.f32 0.0, %v3851
    %v3853 = vpop.f32.mrb[0].mxu0
    %3854 = vmatprep.mubr.f32.mxu0 0.0
    %3855 = vmatmul.mubr.f32.gmra.mrb[0].mxu0 %v3723
    %v3856 = vpop.f32.mrb[0].mxu0
    %v3857 = vadd.f32 0.0, %v3856
    %v3858 = vpop.f32.mrb[0].mxu0
    %3859 = vmatprep.mubr.f32.mxu0 0.0
    %3860 = vmatmul.mubr.f32.gmra.mrb[0].mxu0 %v3726
    %v3861 = vpop.f32.mrb[0].mxu0
    %v3862 = vadd.f32 0.0, %v3861
    %v3863 = vpop.f32.mrb[0].mxu0
    %3864 = vmatprep.mubr.f32.mxu0 0.0
    %3865 = vmatmul.mubr.f32.gmra.mrb[0].mxu0 %v3729
    %v3866 = vpop.f32.mrb[0].mxu0
    %v3867 = vadd.f32 0.0, %v3866
    %v3868 = vpop.f32.mrb[0].mxu0
    %3869 = vmatprep.mubr.f32.mxu0 0.0
    %3870 = vmatmul.mubr.f32.gmra.mrb[0].mxu0 %v3732
    %v3871 = vpop.f32.mrb[0].mxu0
    %v3872 = vadd.f32 0.0, %v3871
    %v3873 = vpop.f32.mrb[0].mxu0
    %3874 = vmatprep.mubr.f32.mxu0 0.0
    %3875 = vmatmul.mubr.f32.gmra.mrb[0].mxu0 %v3735
    %v3876 = vpop.f32.mrb[0].mxu0
    %v3877 = vadd.f32 0.0, %v3876
    %v3878 = vpop.f32.mrb[0].mxu0
    %3879 = vmatprep.mubr.f32.mxu0 0.0
    %3880 = vmatmul.mubr.f32.gmra.mrb[0].mxu0 %v3738
    %v3881 = vpop.f32.mrb[0].mxu0
    %v3882 = vadd.f32 0.0, %v3881
    %v3883 = vpop.f32.mrb[0].mxu0
    %3884 = vdwg.mxu0
    %v3885 = vadd.f32 %v3595, %v3807
    %v3886 = vadd.f32 %v3600, %v3812
    %v3887 = vadd.f32 %v3605, %v3817
    %v3888 = vadd.f32 %v3610, %v3822
    %v3889 = vadd.f32 %v3615, %v3827
    %v3890 = vadd.f32 %v3620, %v3832
    %v3891 = vadd.f32 %v3625, %v3837
    %v3892 = vadd.f32 %v3630, %v3842
    %v3893 = vadd.f32 %v3635, %v3847
    %v3894 = vadd.f32 %v3640, %v3852
    %v3895 = vadd.f32 %v3645, %v3857
    %v3896 = vadd.f32 %v3650, %v3862
    %v3897 = vadd.f32 %v3655, %v3867
    %v3898 = vadd.f32 %v3660, %v3872
    %v3899 = vadd.f32 %v3665, %v3877
    %v3900 = vadd.f32 %v3670, %v3882
    %v3901 = vld [vmem:[%s3233] sm:$0xff]
    %v3902 = vld [vmem:[%s3233 + $0x10] sm:$0xff]
    %v3903 = vld [vmem:[%s3233 + $0x20] sm:$0xff]
    %v3904 = vld [vmem:[%s3233 + $0x30] sm:$0xff]
    %v3905 = vld [vmem:[%s3233 + $0x40] sm:$0xff]
    %v3906 = vld [vmem:[%s3233 + $0x50] sm:$0xff]
    %v3907 = vld [vmem:[%s3233 + $0x60] sm:$0xff]
    %v3908 = vld [vmem:[%s3233 + $0x70] sm:$0xff]
    %v3909 = vld [vmem:[%s3233 + $0xa0] sm:$0xff]
    %v3910 = vld [vmem:[%s3233 + $0xb0] sm:$0xff]
    %v3911 = vld [vmem:[%s3233 + $0xc0] sm:$0xff]
    %v3912 = vld [vmem:[%s3233 + $0xd0] sm:$0xff]
    %v3913 = vld [vmem:[%s3233 + $0xe0] sm:$0xff]
    %v3914 = vld [vmem:[%s3233 + $0xf0] sm:$0xff]
    %v3915 = vld [vmem:[%s3233 + $0x100] sm:$0xff]
    %v3916 = vld [vmem:[%s3233 + $0x110] sm:$0xff]
    %s3917 = scalar_lea.vmem %s5, 48
    %v3918 = vld [vmem:[%s3917] sm:$0xff]
    %v3919 = vld [vmem:[%s3917 + $0x8] sm:$0xff]
    %v3921 = vsel %vm150, %v3901, 0
    %v3924 = vsel %vm150, %v3902, 0
    %v3927 = vsel %vm150, %v3903, 0
    %v3930 = vsel %vm150, %v3904, 0
    %v3933 = vsel %vm150, %v3905, 0
    %v3936 = vsel %vm150, %v3906, 0
    %v3939 = vsel %vm150, %v3907, 0
    %v3942 = vsel %vm150, %v3908, 0
    %v3945 = vsel %vm150, %v3909, 0
    %v3948 = vsel %vm150, %v3910, 0
    %v3951 = vsel %vm150, %v3911, 0
    %v3954 = vsel %vm150, %v3912, 0
    %v3957 = vsel %vm150, %v3913, 0
    %v3960 = vsel %vm150, %v3914, 0
    %v3963 = vsel %vm150, %v3915, 0
    %v3966 = vsel %vm150, %v3916, 0
    %3968 = vmatprep.subr.mxu0 0.0
    %3969 = vmatpush1.msra.mxu0 %v3918
    %3970 = vmatprep.subr.mxu0 0.0
    %3971 = vmatpush1.msra.mxu0 %v3919
    %3972 = vmatprep.subr.mxu0 0.0
    %3973 = vmatpush1.msra.mxu0 0.0
    %3974 = vmatprep.subr.mxu0 0.0
    %3975 = vmatpush1.msra.mxu0 0.0
    %3976 = vmatprep.subr.mxu0 0.0
    %3977 = vmatpush1.msra.mxu0 0.0
    %3978 = vmatprep.subr.mxu0 0.0
    %3979 = vmatpush1.msra.mxu0 0.0
    %3980 = vmatprep.subr.mxu0 0.0
    %3981 = vmatpush1.msra.mxu0 0.0
    %3982 = vmatprep.subr.mxu0 0.0
    %3983 = vmatpush1.msra.mxu0 0.0
    %3984 = vmatprep.subr.mxu0 0.0
    %3985 = vmatpush1.msra.mxu0 0.0
    %3986 = vmatprep.subr.mxu0 0.0
    %3987 = vmatpush1.msra.mxu0 0.0
    %3988 = vmatprep.subr.mxu0 0.0
    %3989 = vmatpush1.msra.mxu0 0.0
    %3990 = vmatprep.subr.mxu0 0.0
    %3991 = vmatpush1.msra.mxu0 0.0
    %3992 = vmatprep.subr.mxu0 0.0
    %3993 = vmatpush1.msra.mxu0 0.0
    %3994 = vmatprep.subr.mxu0 0.0
    %3995 = vmatpush1.msra.mxu0 0.0
    %3996 = vmatprep.subr.mxu0 0.0
    %3997 = vmatpush1.msra.mxu0 0.0
    %3998 = vmatprep.subr.mxu0 0.0
    %3999 = vmatpush1.msra.mxu0 0.0
    %4000 = vmatprep.subr.mxu0 0.0
    %4001 = vmatpush1.msra.mxu0 0.0
    %4002 = vmatprep.subr.mxu0 0.0
    %4003 = vmatpush1.msra.mxu0 0.0
    %4004 = vmatprep.subr.mxu0 0.0
    %4005 = vmatpush1.msra.mxu0 0.0
    %4006 = vmatprep.subr.mxu0 0.0
    %4007 = vmatpush1.msra.mxu0 0.0
    %4008 = vmatprep.subr.mxu0 0.0
    %4009 = vmatpush1.msra.mxu0 0.0
    %4010 = vmatprep.subr.mxu0 0.0
    %4011 = vmatpush1.msra.mxu0 0.0
    %4012 = vmatprep.subr.mxu0 0.0
    %4013 = vmatpush1.msra.mxu0 0.0
    %4014 = vmatprep.subr.mxu0 0.0
    %4015 = vmatpush1.msra.mxu0 0.0
    %4016 = vmatprep.subr.mxu0 0.0
    %4017 = vmatpush1.msra.mxu0 0.0
    %4018 = vmatprep.subr.mxu0 0.0
    %4019 = vmatpush1.msra.mxu0 0.0
    %4020 = vmatprep.subr.mxu0 0.0
    %4021 = vmatpush1.msra.mxu0 0.0
    %4022 = vmatprep.subr.mxu0 0.0
    %4023 = vmatpush1.msra.mxu0 0.0
    %4024 = vmatprep.subr.mxu0 0.0
    %4025 = vmatpush1.msra.mxu0 0.0
    %4026 = vmatprep.subr.mxu0 0.0
    %4027 = vmatpush1.msra.mxu0 0.0
    %4028 = vmatprep.subr.mxu0 0.0
    %4029 = vmatpush1.msra.mxu0 0.0
    %4030 = vmatprep.subr.mxu0 0.0
    %4031 = vmatpush1.msra.mxu0 0.0
    %4032 = vmatprep.mubr.f32.mxu0 0.0
    %4033 = vmatmul.mubr.f32.gmra.mrb[0].mxu0 %v3921
    %v4034 = vpop.f32.mrb[0].mxu0
    %v4035 = vadd.f32 0.0, %v4034
    %v4036 = vpop.f32.mrb[0].mxu0
    %4037 = vmatprep.mubr.f32.mxu0 0.0
    %4038 = vmatmul.mubr.f32.gmra.mrb[0].mxu0 %v3924
    %v4039 = vpop.f32.mrb[0].mxu0
    %v4040 = vadd.f32 0.0, %v4039
    %v4041 = vpop.f32.mrb[0].mxu0
    %4042 = vmatprep.mubr.f32.mxu0 0.0
    %4043 = vmatmul.mubr.f32.gmra.mrb[0].mxu0 %v3927
    %v4044 = vpop.f32.mrb[0].mxu0
    %v4045 = vadd.f32 0.0, %v4044
    %v4046 = vpop.f32.mrb[0].mxu0
    %4047 = vmatprep.mubr.f32.mxu0 0.0
    %4048 = vmatmul.mubr.f32.gmra.mrb[0].mxu0 %v3930
    %v4049 = vpop.f32.mrb[0].mxu0
    %v4050 = vadd.f32 0.0, %v4049
    %v4051 = vpop.f32.mrb[0].mxu0
    %4052 = vmatprep.mubr.f32.mxu0 0.0
    %4053 = vmatmul.mubr.f32.gmra.mrb[0].mxu0 %v3933
    %v4054 = vpop.f32.mrb[0].mxu0
    %v4055 = vadd.f32 0.0, %v4054
    %v4056 = vpop.f32.mrb[0].mxu0
    %4057 = vmatprep.mubr.f32.mxu0 0.0
    %4058 = vmatmul.mubr.f32.gmra.mrb[0].mxu0 %v3936
    %v4059 = vpop.f32.mrb[0].mxu0
    %v4060 = vadd.f32 0.0, %v4059
    %v4061 = vpop.f32.mrb[0].mxu0
    %4062 = vmatprep.mubr.f32.mxu0 0.0
    %4063 = vmatmul.mubr.f32.gmra.mrb[0].mxu0 %v3939
    %v4064 = vpop.f32.mrb[0].mxu0
    %v4065 = vadd.f32 0.0, %v4064
    %v4066 = vpop.f32.mrb[0].mxu0
    %4067 = vmatprep.mubr.f32.mxu0 0.0
    %4068 = vmatmul.mubr.f32.gmra.mrb[0].mxu0 %v3942
    %v4069 = vpop.f32.mrb[0].mxu0
    %v4070 = vadd.f32 0.0, %v4069
    %v4071 = vpop.f32.mrb[0].mxu0
    %4072 = vmatprep.mubr.f32.mxu0 0.0
    %4073 = vmatmul.mubr.f32.gmra.mrb[0].mxu0 %v3945
    %v4074 = vpop.f32.mrb[0].mxu0
    %v4075 = vadd.f32 0.0, %v4074
    %v4076 = vpop.f32.mrb[0].mxu0
    %4077 = vmatprep.mubr.f32.mxu0 0.0
    %4078 = vmatmul.mubr.f32.gmra.mrb[0].mxu0 %v3948
    %v4079 = vpop.f32.mrb[0].mxu0
    %v4080 = vadd.f32 0.0, %v4079
    %v4081 = vpop.f32.mrb[0].mxu0
    %4082 = vmatprep.mubr.f32.mxu0 0.0
    %4083 = vmatmul.mubr.f32.gmra.mrb[0].mxu0 %v3951
    %v4084 = vpop.f32.mrb[0].mxu0
    %v4085 = vadd.f32 0.0, %v4084
    %v4086 = vpop.f32.mrb[0].mxu0
    %4087 = vmatprep.mubr.f32.mxu0 0.0
    %4088 = vmatmul.mubr.f32.gmra.mrb[0].mxu0 %v3954
    %v4089 = vpop.f32.mrb[0].mxu0
    %v4090 = vadd.f32 0.0, %v4089
    %v4091 = vpop.f32.mrb[0].mxu0
    %4092 = vmatprep.mubr.f32.mxu0 0.0
    %4093 = vmatmul.mubr.f32.gmra.mrb[0].mxu0 %v3957
    %v4094 = vpop.f32.mrb[0].mxu0
    %v4095 = vadd.f32 0.0, %v4094
    %v4096 = vpop.f32.mrb[0].mxu0
    %4097 = vmatprep.mubr.f32.mxu0 0.0
    %4098 = vmatmul.mubr.f32.gmra.mrb[0].mxu0 %v3960
    %v4099 = vpop.f32.mrb[0].mxu0
    %v4100 = vadd.f32 0.0, %v4099
    %v4101 = vpop.f32.mrb[0].mxu0
    %4102 = vmatprep.mubr.f32.mxu0 0.0
    %4103 = vmatmul.mubr.f32.gmra.mrb[0].mxu0 %v3963
    %v4104 = vpop.f32.mrb[0].mxu0
    %v4105 = vadd.f32 0.0, %v4104
    %v4106 = vpop.f32.mrb[0].mxu0
    %4107 = vmatprep.mubr.f32.mxu0 0.0
    %4108 = vmatmul.mubr.f32.gmra.mrb[0].mxu0 %v3966
    %v4109 = vpop.f32.mrb[0].mxu0
    %v4110 = vadd.f32 0.0, %v4109
    %v4111 = vpop.f32.mrb[0].mxu0
    %4112 = vdwg.mxu0
    %v4113 = vadd.f32 %v3885, %v4035
    %v4114 = vadd.f32 %v3886, %v4040
    %v4115 = vadd.f32 %v3887, %v4045
    %v4116 = vadd.f32 %v3888, %v4050
    %v4117 = vadd.f32 %v3889, %v4055
    %v4118 = vadd.f32 %v3890, %v4060
    %v4119 = vadd.f32 %v3891, %v4065
    %v4120 = vadd.f32 %v3892, %v4070
    %v4121 = vadd.f32 %v3893, %v4075
    %v4122 = vadd.f32 %v3894, %v4080
    %v4123 = vadd.f32 %v3895, %v4085
    %v4124 = vadd.f32 %v3896, %v4090
    %v4125 = vadd.f32 %v3897, %v4095
    %v4126 = vadd.f32 %v3898, %v4100
    %v4127 = vadd.f32 %v3899, %v4105
    %v4128 = vadd.f32 %v3900, %v4110
    %v4129 = vld [vmem:[%s3233 + $0x1] sm:$0xff]
    %v4130 = vld [vmem:[%s3233 + $0x11] sm:$0xff]
    %v4131 = vld [vmem:[%s3233 + $0x21] sm:$0xff]
    %v4132 = vld [vmem:[%s3233 + $0x31] sm:$0xff]
    %v4133 = vld [vmem:[%s3233 + $0x41] sm:$0xff]
    %v4134 = vld [vmem:[%s3233 + $0x51] sm:$0xff]
    %v4135 = vld [vmem:[%s3233 + $0x61] sm:$0xff]
    %v4136 = vld [vmem:[%s3233 + $0x71] sm:$0xff]
    %v4137 = vld [vmem:[%s3233 + $0xa1] sm:$0xff]
    %v4138 = vld [vmem:[%s3233 + $0xb1] sm:$0xff]
    %v4139 = vld [vmem:[%s3233 + $0xc1] sm:$0xff]
    %v4140 = vld [vmem:[%s3233 + $0xd1] sm:$0xff]
    %v4141 = vld [vmem:[%s3233 + $0xe1] sm:$0xff]
    %v4142 = vld [vmem:[%s3233 + $0xf1] sm:$0xff]
    %v4143 = vld [vmem:[%s3233 + $0x101] sm:$0xff]
    %v4144 = vld [vmem:[%s3233 + $0x111] sm:$0xff]
    %s4145 = scalar_lea.vmem %s5, 64
    %v4146 = vld [vmem:[%s4145] sm:$0xff]
    %v4147 = vld [vmem:[%s4145 + $0x8] sm:$0xff]
    %v4149 = vsel %vm150, %v4129, 0
    %v4152 = vsel %vm150, %v4130, 0
    %v4155 = vsel %vm150, %v4131, 0
    %v4158 = vsel %vm150, %v4132, 0
    %v4161 = vsel %vm150, %v4133, 0
    %v4164 = vsel %vm150, %v4134, 0
    %v4167 = vsel %vm150, %v4135, 0
    %v4170 = vsel %vm150, %v4136, 0
    %v4173 = vsel %vm150, %v4137, 0
    %v4176 = vsel %vm150, %v4138, 0
    %v4179 = vsel %vm150, %v4139, 0
    %v4182 = vsel %vm150, %v4140, 0
    %v4185 = vsel %vm150, %v4141, 0
    %v4188 = vsel %vm150, %v4142, 0
    %v4191 = vsel %vm150, %v4143, 0
    %v4194 = vsel %vm150, %v4144, 0
    %4196 = vmatprep.subr.mxu0 0.0
    %4197 = vmatpush1.msra.mxu0 %v4146
    %4198 = vmatprep.subr.mxu0 0.0
    %4199 = vmatpush1.msra.mxu0 %v4147
    %4200 = vmatprep.subr.mxu0 0.0
    %4201 = vmatpush1.msra.mxu0 0.0
    %4202 = vmatprep.subr.mxu0 0.0
    %4203 = vmatpush1.msra.mxu0 0.0
    %4204 = vmatprep.subr.mxu0 0.0
    %4205 = vmatpush1.msra.mxu0 0.0
    %4206 = vmatprep.subr.mxu0 0.0
    %4207 = vmatpush1.msra.mxu0 0.0
    %4208 = vmatprep.subr.mxu0 0.0
    %4209 = vmatpush1.msra.mxu0 0.0
    %4210 = vmatprep.subr.mxu0 0.0
    %4211 = vmatpush1.msra.mxu0 0.0
    %4212 = vmatprep.subr.mxu0 0.0
    %4213 = vmatpush1.msra.mxu0 0.0
    %4214 = vmatprep.subr.mxu0 0.0
    %4215 = vmatpush1.msra.mxu0 0.0
    %4216 = vmatprep.subr.mxu0 0.0
    %4217 = vmatpush1.msra.mxu0 0.0
    %4218 = vmatprep.subr.mxu0 0.0
    %4219 = vmatpush1.msra.mxu0 0.0
    %4220 = vmatprep.subr.mxu0 0.0
    %4221 = vmatpush1.msra.mxu0 0.0
    %4222 = vmatprep.subr.mxu0 0.0
    %4223 = vmatpush1.msra.mxu0 0.0
    %4224 = vmatprep.subr.mxu0 0.0
    %4225 = vmatpush1.msra.mxu0 0.0
    %4226 = vmatprep.subr.mxu0 0.0
    %4227 = vmatpush1.msra.mxu0 0.0
    %4228 = vmatprep.subr.mxu0 0.0
    %4229 = vmatpush1.msra.mxu0 0.0
    %4230 = vmatprep.subr.mxu0 0.0
    %4231 = vmatpush1.msra.mxu0 0.0
    %4232 = vmatprep.subr.mxu0 0.0
    %4233 = vmatpush1.msra.mxu0 0.0
    %4234 = vmatprep.subr.mxu0 0.0
    %4235 = vmatpush1.msra.mxu0 0.0
    %4236 = vmatprep.subr.mxu0 0.0
    %4237 = vmatpush1.msra.mxu0 0.0
    %4238 = vmatprep.subr.mxu0 0.0
    %4239 = vmatpush1.msra.mxu0 0.0
    %4240 = vmatprep.subr.mxu0 0.0
    %4241 = vmatpush1.msra.mxu0 0.0
    %4242 = vmatprep.subr.mxu0 0.0
    %4243 = vmatpush1.msra.mxu0 0.0
    %4244 = vmatprep.subr.mxu0 0.0
    %4245 = vmatpush1.msra.mxu0 0.0
    %4246 = vmatprep.subr.mxu0 0.0
    %4247 = vmatpush1.msra.mxu0 0.0
    %4248 = vmatprep.subr.mxu0 0.0
    %4249 = vmatpush1.msra.mxu0 0.0
    %4250 = vmatprep.subr.mxu0 0.0
    %4251 = vmatpush1.msra.mxu0 0.0
    %4252 = vmatprep.subr.mxu0 0.0
    %4253 = vmatpush1.msra.mxu0 0.0
    %4254 = vmatprep.subr.mxu0 0.0
    %4255 = vmatpush1.msra.mxu0 0.0
    %4256 = vmatprep.subr.mxu0 0.0
    %4257 = vmatpush1.msra.mxu0 0.0
    %4258 = vmatprep.subr.mxu0 0.0
    %4259 = vmatpush1.msra.mxu0 0.0
    %4260 = vmatprep.mubr.f32.mxu0 0.0
    %4261 = vmatmul.mubr.f32.gmra.mrb[0].mxu0 %v4149
    %v4262 = vpop.f32.mrb[0].mxu0
    %v4263 = vadd.f32 0.0, %v4262
    %v4264 = vpop.f32.mrb[0].mxu0
    %4265 = vmatprep.mubr.f32.mxu0 0.0
    %4266 = vmatmul.mubr.f32.gmra.mrb[0].mxu0 %v4152
    %v4267 = vpop.f32.mrb[0].mxu0
    %v4268 = vadd.f32 0.0, %v4267
    %v4269 = vpop.f32.mrb[0].mxu0
    %4270 = vmatprep.mubr.f32.mxu0 0.0
    %4271 = vmatmul.mubr.f32.gmra.mrb[0].mxu0 %v4155
    %v4272 = vpop.f32.mrb[0].mxu0
    %v4273 = vadd.f32 0.0, %v4272
    %v4274 = vpop.f32.mrb[0].mxu0
    %4275 = vmatprep.mubr.f32.mxu0 0.0
    %4276 = vmatmul.mubr.f32.gmra.mrb[0].mxu0 %v4158
    %v4277 = vpop.f32.mrb[0].mxu0
    %v4278 = vadd.f32 0.0, %v4277
    %v4279 = vpop.f32.mrb[0].mxu0
    %4280 = vmatprep.mubr.f32.mxu0 0.0
    %4281 = vmatmul.mubr.f32.gmra.mrb[0].mxu0 %v4161
    %v4282 = vpop.f32.mrb[0].mxu0
    %v4283 = vadd.f32 0.0, %v4282
    %v4284 = vpop.f32.mrb[0].mxu0
    %4285 = vmatprep.mubr.f32.mxu0 0.0
    %4286 = vmatmul.mubr.f32.gmra.mrb[0].mxu0 %v4164
    %v4287 = vpop.f32.mrb[0].mxu0
    %v4288 = vadd.f32 0.0, %v4287
    %v4289 = vpop.f32.mrb[0].mxu0
    %4290 = vmatprep.mubr.f32.mxu0 0.0
    %4291 = vmatmul.mubr.f32.gmra.mrb[0].mxu0 %v4167
    %v4292 = vpop.f32.mrb[0].mxu0
    %v4293 = vadd.f32 0.0, %v4292
    %v4294 = vpop.f32.mrb[0].mxu0
    %4295 = vmatprep.mubr.f32.mxu0 0.0
    %4296 = vmatmul.mubr.f32.gmra.mrb[0].mxu0 %v4170
    %v4297 = vpop.f32.mrb[0].mxu0
    %v4298 = vadd.f32 0.0, %v4297
    %v4299 = vpop.f32.mrb[0].mxu0
    %4300 = vmatprep.mubr.f32.mxu0 0.0
    %4301 = vmatmul.mubr.f32.gmra.mrb[0].mxu0 %v4173
    %v4302 = vpop.f32.mrb[0].mxu0
    %v4303 = vadd.f32 0.0, %v4302
    %v4304 = vpop.f32.mrb[0].mxu0
    %4305 = vmatprep.mubr.f32.mxu0 0.0
    %4306 = vmatmul.mubr.f32.gmra.mrb[0].mxu0 %v4176
    %v4307 = vpop.f32.mrb[0].mxu0
    %v4308 = vadd.f32 0.0, %v4307
    %v4309 = vpop.f32.mrb[0].mxu0
    %4310 = vmatprep.mubr.f32.mxu0 0.0
    %4311 = vmatmul.mubr.f32.gmra.mrb[0].mxu0 %v4179
    %v4312 = vpop.f32.mrb[0].mxu0
    %v4313 = vadd.f32 0.0, %v4312
    %v4314 = vpop.f32.mrb[0].mxu0
    %4315 = vmatprep.mubr.f32.mxu0 0.0
    %4316 = vmatmul.mubr.f32.gmra.mrb[0].mxu0 %v4182
    %v4317 = vpop.f32.mrb[0].mxu0
    %v4318 = vadd.f32 0.0, %v4317
    %v4319 = vpop.f32.mrb[0].mxu0
    %4320 = vmatprep.mubr.f32.mxu0 0.0
    %4321 = vmatmul.mubr.f32.gmra.mrb[0].mxu0 %v4185
    %v4322 = vpop.f32.mrb[0].mxu0
    %v4323 = vadd.f32 0.0, %v4322
    %v4324 = vpop.f32.mrb[0].mxu0
    %4325 = vmatprep.mubr.f32.mxu0 0.0
    %4326 = vmatmul.mubr.f32.gmra.mrb[0].mxu0 %v4188
    %v4327 = vpop.f32.mrb[0].mxu0
    %v4328 = vadd.f32 0.0, %v4327
    %v4329 = vpop.f32.mrb[0].mxu0
    %4330 = vmatprep.mubr.f32.mxu0 0.0
    %4331 = vmatmul.mubr.f32.gmra.mrb[0].mxu0 %v4191
    %v4332 = vpop.f32.mrb[0].mxu0
    %v4333 = vadd.f32 0.0, %v4332
    %v4334 = vpop.f32.mrb[0].mxu0
    %4335 = vmatprep.mubr.f32.mxu0 0.0
    %4336 = vmatmul.mubr.f32.gmra.mrb[0].mxu0 %v4194
    %v4337 = vpop.f32.mrb[0].mxu0
    %v4338 = vadd.f32 0.0, %v4337
    %v4339 = vpop.f32.mrb[0].mxu0
    %4340 = vdwg.mxu0
    %v4341 = vadd.f32 %v4113, %v4263
    %v4342 = vadd.f32 %v4114, %v4268
    %v4343 = vadd.f32 %v4115, %v4273
    %v4344 = vadd.f32 %v4116, %v4278
    %v4345 = vadd.f32 %v4117, %v4283
    %v4346 = vadd.f32 %v4118, %v4288
    %v4347 = vadd.f32 %v4119, %v4293
    %v4348 = vadd.f32 %v4120, %v4298
    %v4349 = vadd.f32 %v4121, %v4303
    %v4350 = vadd.f32 %v4122, %v4308
    %v4351 = vadd.f32 %v4123, %v4313
    %v4352 = vadd.f32 %v4124, %v4318
    %v4353 = vadd.f32 %v4125, %v4323
    %v4354 = vadd.f32 %v4126, %v4328
    %v4355 = vadd.f32 %v4127, %v4333
    %v4356 = vadd.f32 %v4128, %v4338
    %v4357 = vld [vmem:[%s3233 + $0x2] sm:$0xff]
    %v4358 = vld [vmem:[%s3233 + $0x12] sm:$0xff]
    %v4359 = vld [vmem:[%s3233 + $0x22] sm:$0xff]
    %v4360 = vld [vmem:[%s3233 + $0x32] sm:$0xff]
    %v4361 = vld [vmem:[%s3233 + $0x42] sm:$0xff]
    %v4362 = vld [vmem:[%s3233 + $0x52] sm:$0xff]
    %v4363 = vld [vmem:[%s3233 + $0x62] sm:$0xff]
    %v4364 = vld [vmem:[%s3233 + $0x72] sm:$0xff]
    %v4365 = vld [vmem:[%s3233 + $0xa2] sm:$0xff]
    %v4366 = vld [vmem:[%s3233 + $0xb2] sm:$0xff]
    %v4367 = vld [vmem:[%s3233 + $0xc2] sm:$0xff]
    %v4368 = vld [vmem:[%s3233 + $0xd2] sm:$0xff]
    %v4369 = vld [vmem:[%s3233 + $0xe2] sm:$0xff]
    %v4370 = vld [vmem:[%s3233 + $0xf2] sm:$0xff]
    %v4371 = vld [vmem:[%s3233 + $0x102] sm:$0xff]
    %v4372 = vld [vmem:[%s3233 + $0x112] sm:$0xff]
    %s4373 = scalar_lea.vmem %s5, 80
    %v4374 = vld [vmem:[%s4373] sm:$0xff]
    %v4375 = vld [vmem:[%s4373 + $0x8] sm:$0xff]
    %v4377 = vsel %vm150, %v4357, 0
    %v4380 = vsel %vm150, %v4358, 0
    %v4383 = vsel %vm150, %v4359, 0
    %v4386 = vsel %vm150, %v4360, 0
    %v4389 = vsel %vm150, %v4361, 0
    %v4392 = vsel %vm150, %v4362, 0
    %v4395 = vsel %vm150, %v4363, 0
    %v4398 = vsel %vm150, %v4364, 0
    %v4401 = vsel %vm150, %v4365, 0
    %v4404 = vsel %vm150, %v4366, 0
    %v4407 = vsel %vm150, %v4367, 0
    %v4410 = vsel %vm150, %v4368, 0
    %v4413 = vsel %vm150, %v4369, 0
    %v4416 = vsel %vm150, %v4370, 0
    %v4419 = vsel %vm150, %v4371, 0
    %v4422 = vsel %vm150, %v4372, 0
    %4424 = vmatprep.subr.mxu0 0.0
    %4425 = vmatpush1.msra.mxu0 %v4374
    %4426 = vmatprep.subr.mxu0 0.0
    %4427 = vmatpush1.msra.mxu0 %v4375
    %4428 = vmatprep.subr.mxu0 0.0
    %4429 = vmatpush1.msra.mxu0 0.0
    %4430 = vmatprep.subr.mxu0 0.0
    %4431 = vmatpush1.msra.mxu0 0.0
    %4432 = vmatprep.subr.mxu0 0.0
    %4433 = vmatpush1.msra.mxu0 0.0
    %4434 = vmatprep.subr.mxu0 0.0
    %4435 = vmatpush1.msra.mxu0 0.0
    %4436 = vmatprep.subr.mxu0 0.0
    %4437 = vmatpush1.msra.mxu0 0.0
    %4438 = vmatprep.subr.mxu0 0.0
    %4439 = vmatpush1.msra.mxu0 0.0
    %4440 = vmatprep.subr.mxu0 0.0
    %4441 = vmatpush1.msra.mxu0 0.0
    %4442 = vmatprep.subr.mxu0 0.0
    %4443 = vmatpush1.msra.mxu0 0.0
    %4444 = vmatprep.subr.mxu0 0.0
    %4445 = vmatpush1.msra.mxu0 0.0
    %4446 = vmatprep.subr.mxu0 0.0
    %4447 = vmatpush1.msra.mxu0 0.0
    %4448 = vmatprep.subr.mxu0 0.0
    %4449 = vmatpush1.msra.mxu0 0.0
    %4450 = vmatprep.subr.mxu0 0.0
    %4451 = vmatpush1.msra.mxu0 0.0
    %4452 = vmatprep.subr.mxu0 0.0
    %4453 = vmatpush1.msra.mxu0 0.0
    %4454 = vmatprep.subr.mxu0 0.0
    %4455 = vmatpush1.msra.mxu0 0.0
    %4456 = vmatprep.subr.mxu0 0.0
    %4457 = vmatpush1.msra.mxu0 0.0
    %4458 = vmatprep.subr.mxu0 0.0
    %4459 = vmatpush1.msra.mxu0 0.0
    %4460 = vmatprep.subr.mxu0 0.0
    %4461 = vmatpush1.msra.mxu0 0.0
    %4462 = vmatprep.subr.mxu0 0.0
    %4463 = vmatpush1.msra.mxu0 0.0
    %4464 = vmatprep.subr.mxu0 0.0
    %4465 = vmatpush1.msra.mxu0 0.0
    %4466 = vmatprep.subr.mxu0 0.0
    %4467 = vmatpush1.msra.mxu0 0.0
    %4468 = vmatprep.subr.mxu0 0.0
    %4469 = vmatpush1.msra.mxu0 0.0
    %4470 = vmatprep.subr.mxu0 0.0
    %4471 = vmatpush1.msra.mxu0 0.0
    %4472 = vmatprep.subr.mxu0 0.0
    %4473 = vmatpush1.msra.mxu0 0.0
    %4474 = vmatprep.subr.mxu0 0.0
    %4475 = vmatpush1.msra.mxu0 0.0
    %4476 = vmatprep.subr.mxu0 0.0
    %4477 = vmatpush1.msra.mxu0 0.0
    %4478 = vmatprep.subr.mxu0 0.0
    %4479 = vmatpush1.msra.mxu0 0.0
    %4480 = vmatprep.subr.mxu0 0.0
    %4481 = vmatpush1.msra.mxu0 0.0
    %4482 = vmatprep.subr.mxu0 0.0
    %4483 = vmatpush1.msra.mxu0 0.0
    %4484 = vmatprep.subr.mxu0 0.0
    %4485 = vmatpush1.msra.mxu0 0.0
    %4486 = vmatprep.subr.mxu0 0.0
    %4487 = vmatpush1.msra.mxu0 0.0
    %4488 = vmatprep.mubr.f32.mxu0 0.0
    %4489 = vmatmul.mubr.f32.gmra.mrb[0].mxu0 %v4377
    %v4490 = vpop.f32.mrb[0].mxu0
    %v4491 = vadd.f32 0.0, %v4490
    %v4492 = vpop.f32.mrb[0].mxu0
    %4493 = vmatprep.mubr.f32.mxu0 0.0
    %4494 = vmatmul.mubr.f32.gmra.mrb[0].mxu0 %v4380
    %v4495 = vpop.f32.mrb[0].mxu0
    %v4496 = vadd.f32 0.0, %v4495
    %v4497 = vpop.f32.mrb[0].mxu0
    %4498 = vmatprep.mubr.f32.mxu0 0.0
    %4499 = vmatmul.mubr.f32.gmra.mrb[0].mxu0 %v4383
    %v4500 = vpop.f32.mrb[0].mxu0
    %v4501 = vadd.f32 0.0, %v4500
    %v4502 = vpop.f32.mrb[0].mxu0
    %4503 = vmatprep.mubr.f32.mxu0 0.0
    %4504 = vmatmul.mubr.f32.gmra.mrb[0].mxu0 %v4386
    %v4505 = vpop.f32.mrb[0].mxu0
    %v4506 = vadd.f32 0.0, %v4505
    %v4507 = vpop.f32.mrb[0].mxu0
    %4508 = vmatprep.mubr.f32.mxu0 0.0
    %4509 = vmatmul.mubr.f32.gmra.mrb[0].mxu0 %v4389
    %v4510 = vpop.f32.mrb[0].mxu0
    %v4511 = vadd.f32 0.0, %v4510
    %v4512 = vpop.f32.mrb[0].mxu0
    %4513 = vmatprep.mubr.f32.mxu0 0.0
    %4514 = vmatmul.mubr.f32.gmra.mrb[0].mxu0 %v4392
    %v4515 = vpop.f32.mrb[0].mxu0
    %v4516 = vadd.f32 0.0, %v4515
    %v4517 = vpop.f32.mrb[0].mxu0
    %4518 = vmatprep.mubr.f32.mxu0 0.0
    %4519 = vmatmul.mubr.f32.gmra.mrb[0].mxu0 %v4395
    %v4520 = vpop.f32.mrb[0].mxu0
    %v4521 = vadd.f32 0.0, %v4520
    %v4522 = vpop.f32.mrb[0].mxu0
    %4523 = vmatprep.mubr.f32.mxu0 0.0
    %4524 = vmatmul.mubr.f32.gmra.mrb[0].mxu0 %v4398
    %v4525 = vpop.f32.mrb[0].mxu0
    %v4526 = vadd.f32 0.0, %v4525
    %v4527 = vpop.f32.mrb[0].mxu0
    %4528 = vmatprep.mubr.f32.mxu0 0.0
    %4529 = vmatmul.mubr.f32.gmra.mrb[0].mxu0 %v4401
    %v4530 = vpop.f32.mrb[0].mxu0
    %v4531 = vadd.f32 0.0, %v4530
    %v4532 = vpop.f32.mrb[0].mxu0
    %4533 = vmatprep.mubr.f32.mxu0 0.0
    %4534 = vmatmul.mubr.f32.gmra.mrb[0].mxu0 %v4404
    %v4535 = vpop.f32.mrb[0].mxu0
    %v4536 = vadd.f32 0.0, %v4535
    %v4537 = vpop.f32.mrb[0].mxu0
    %4538 = vmatprep.mubr.f32.mxu0 0.0
    %4539 = vmatmul.mubr.f32.gmra.mrb[0].mxu0 %v4407
    %v4540 = vpop.f32.mrb[0].mxu0
    %v4541 = vadd.f32 0.0, %v4540
    %v4542 = vpop.f32.mrb[0].mxu0
    %4543 = vmatprep.mubr.f32.mxu0 0.0
    %4544 = vmatmul.mubr.f32.gmra.mrb[0].mxu0 %v4410
    %v4545 = vpop.f32.mrb[0].mxu0
    %v4546 = vadd.f32 0.0, %v4545
    %v4547 = vpop.f32.mrb[0].mxu0
    %4548 = vmatprep.mubr.f32.mxu0 0.0
    %4549 = vmatmul.mubr.f32.gmra.mrb[0].mxu0 %v4413
    %v4550 = vpop.f32.mrb[0].mxu0
    %v4551 = vadd.f32 0.0, %v4550
    %v4552 = vpop.f32.mrb[0].mxu0
    %4553 = vmatprep.mubr.f32.mxu0 0.0
    %4554 = vmatmul.mubr.f32.gmra.mrb[0].mxu0 %v4416
    %v4555 = vpop.f32.mrb[0].mxu0
    %v4556 = vadd.f32 0.0, %v4555
    %v4557 = vpop.f32.mrb[0].mxu0
    %4558 = vmatprep.mubr.f32.mxu0 0.0
    %4559 = vmatmul.mubr.f32.gmra.mrb[0].mxu0 %v4419
    %v4560 = vpop.f32.mrb[0].mxu0
    %v4561 = vadd.f32 0.0, %v4560
    %v4562 = vpop.f32.mrb[0].mxu0
    %4563 = vmatprep.mubr.f32.mxu0 0.0
    %4564 = vmatmul.mubr.f32.gmra.mrb[0].mxu0 %v4422
    %v4565 = vpop.f32.mrb[0].mxu0
    %v4566 = vadd.f32 0.0, %v4565
    %v4567 = vpop.f32.mrb[0].mxu0
    %4568 = vdwg.mxu0
    %v4569 = vadd.f32 %v4341, %v4491
    %v4570 = vadd.f32 %v4342, %v4496
    %v4571 = vadd.f32 %v4343, %v4501
    %v4572 = vadd.f32 %v4344, %v4506
    %v4573 = vadd.f32 %v4345, %v4511
    %v4574 = vadd.f32 %v4346, %v4516
    %v4575 = vadd.f32 %v4347, %v4521
    %v4576 = vadd.f32 %v4348, %v4526
    %v4577 = vadd.f32 %v4349, %v4531
    %v4578 = vadd.f32 %v4350, %v4536
    %v4579 = vadd.f32 %v4351, %v4541
    %v4580 = vadd.f32 %v4352, %v4546
    %v4581 = vadd.f32 %v4353, %v4551
    %v4582 = vadd.f32 %v4354, %v4556
    %v4583 = vadd.f32 %v4355, %v4561
    %v4584 = vadd.f32 %v4356, %v4566
    %s4585 = scalar_lea.vmem [#allocation3], 32
    %v4586 = vld [vmem:[%s4585] sm:$0xff]
    %v4587 = vld [vmem:[%s4585 + $0x10] sm:$0xff]
    %v4588 = vld [vmem:[%s4585 + $0x20] sm:$0xff]
    %v4589 = vld [vmem:[%s4585 + $0x30] sm:$0xff]
    %v4590 = vld [vmem:[%s4585 + $0x40] sm:$0xff]
    %v4591 = vld [vmem:[%s4585 + $0x50] sm:$0xff]
    %v4592 = vld [vmem:[%s4585 + $0x60] sm:$0xff]
    %v4593 = vld [vmem:[%s4585 + $0x70] sm:$0xff]
    %v4594 = vld [vmem:[%s4585 + $0xa0] sm:$0xff]
    %v4595 = vld [vmem:[%s4585 + $0xb0] sm:$0xff]
    %v4596 = vld [vmem:[%s4585 + $0xc0] sm:$0xff]
    %v4597 = vld [vmem:[%s4585 + $0xd0] sm:$0xff]
    %v4598 = vld [vmem:[%s4585 + $0xe0] sm:$0xff]
    %v4599 = vld [vmem:[%s4585 + $0xf0] sm:$0xff]
    %v4600 = vld [vmem:[%s4585 + $0x100] sm:$0xff]
    %v4601 = vld [vmem:[%s4585 + $0x110] sm:$0xff]
    %s4602 = scalar_lea.vmem %s5, 96
    %v4603 = vld [vmem:[%s4602] sm:$0xff]
    %v4604 = vld [vmem:[%s4602 + $0x8] sm:$0xff]
    %v4606 = vsel %vm150, %v4586, 0
    %v4609 = vsel %vm150, %v4587, 0
    %v4612 = vsel %vm150, %v4588, 0
    %v4615 = vsel %vm150, %v4589, 0
    %v4618 = vsel %vm150, %v4590, 0
    %v4621 = vsel %vm150, %v4591, 0
    %v4624 = vsel %vm150, %v4592, 0
    %v4627 = vsel %vm150, %v4593, 0
    %v4630 = vsel %vm150, %v4594, 0
    %v4633 = vsel %vm150, %v4595, 0
    %v4636 = vsel %vm150, %v4596, 0
    %v4639 = vsel %vm150, %v4597, 0
    %v4642 = vsel %vm150, %v4598, 0
    %v4645 = vsel %vm150, %v4599, 0
    %v4648 = vsel %vm150, %v4600, 0
    %v4651 = vsel %vm150, %v4601, 0
    %4653 = vmatprep.subr.mxu0 0.0
    %4654 = vmatpush1.msra.mxu0 %v4603
    %4655 = vmatprep.subr.mxu0 0.0
    %4656 = vmatpush1.msra.mxu0 %v4604
    %4657 = vmatprep.subr.mxu0 0.0
    %4658 = vmatpush1.msra.mxu0 0.0
    %4659 = vmatprep.subr.mxu0 0.0
    %4660 = vmatpush1.msra.mxu0 0.0
    %4661 = vmatprep.subr.mxu0 0.0
    %4662 = vmatpush1.msra.mxu0 0.0
    %4663 = vmatprep.subr.mxu0 0.0
    %4664 = vmatpush1.msra.mxu0 0.0
    %4665 = vmatprep.subr.mxu0 0.0
    %4666 = vmatpush1.msra.mxu0 0.0
    %4667 = vmatprep.subr.mxu0 0.0
    %4668 = vmatpush1.msra.mxu0 0.0
    %4669 = vmatprep.subr.mxu0 0.0
    %4670 = vmatpush1.msra.mxu0 0.0
    %4671 = vmatprep.subr.mxu0 0.0
    %4672 = vmatpush1.msra.mxu0 0.0
    %4673 = vmatprep.subr.mxu0 0.0
    %4674 = vmatpush1.msra.mxu0 0.0
    %4675 = vmatprep.subr.mxu0 0.0
    %4676 = vmatpush1.msra.mxu0 0.0
    %4677 = vmatprep.subr.mxu0 0.0
    %4678 = vmatpush1.msra.mxu0 0.0
    %4679 = vmatprep.subr.mxu0 0.0
    %4680 = vmatpush1.msra.mxu0 0.0
    %4681 = vmatprep.subr.mxu0 0.0
    %4682 = vmatpush1.msra.mxu0 0.0
    %4683 = vmatprep.subr.mxu0 0.0
    %4684 = vmatpush1.msra.mxu0 0.0
    %4685 = vmatprep.subr.mxu0 0.0
    %4686 = vmatpush1.msra.mxu0 0.0
    %4687 = vmatprep.subr.mxu0 0.0
    %4688 = vmatpush1.msra.mxu0 0.0
    %4689 = vmatprep.subr.mxu0 0.0
    %4690 = vmatpush1.msra.mxu0 0.0
    %4691 = vmatprep.subr.mxu0 0.0
    %4692 = vmatpush1.msra.mxu0 0.0
    %4693 = vmatprep.subr.mxu0 0.0
    %4694 = vmatpush1.msra.mxu0 0.0
    %4695 = vmatprep.subr.mxu0 0.0
    %4696 = vmatpush1.msra.mxu0 0.0
    %4697 = vmatprep.subr.mxu0 0.0
    %4698 = vmatpush1.msra.mxu0 0.0
    %4699 = vmatprep.subr.mxu0 0.0
    %4700 = vmatpush1.msra.mxu0 0.0
    %4701 = vmatprep.subr.mxu0 0.0
    %4702 = vmatpush1.msra.mxu0 0.0
    %4703 = vmatprep.subr.mxu0 0.0
    %4704 = vmatpush1.msra.mxu0 0.0
    %4705 = vmatprep.subr.mxu0 0.0
    %4706 = vmatpush1.msra.mxu0 0.0
    %4707 = vmatprep.subr.mxu0 0.0
    %4708 = vmatpush1.msra.mxu0 0.0
    %4709 = vmatprep.subr.mxu0 0.0
    %4710 = vmatpush1.msra.mxu0 0.0
    %4711 = vmatprep.subr.mxu0 0.0
    %4712 = vmatpush1.msra.mxu0 0.0
    %4713 = vmatprep.subr.mxu0 0.0
    %4714 = vmatpush1.msra.mxu0 0.0
    %4715 = vmatprep.subr.mxu0 0.0
    %4716 = vmatpush1.msra.mxu0 0.0
    %4717 = vmatprep.mubr.f32.mxu0 0.0
    %4718 = vmatmul.mubr.f32.gmra.mrb[0].mxu0 %v4606
    %v4719 = vpop.f32.mrb[0].mxu0
    %v4720 = vadd.f32 0.0, %v4719
    %v4721 = vpop.f32.mrb[0].mxu0
    %4722 = vmatprep.mubr.f32.mxu0 0.0
    %4723 = vmatmul.mubr.f32.gmra.mrb[0].mxu0 %v4609
    %v4724 = vpop.f32.mrb[0].mxu0
    %v4725 = vadd.f32 0.0, %v4724
    %v4726 = vpop.f32.mrb[0].mxu0
    %4727 = vmatprep.mubr.f32.mxu0 0.0
    %4728 = vmatmul.mubr.f32.gmra.mrb[0].mxu0 %v4612
    %v4729 = vpop.f32.mrb[0].mxu0
    %v4730 = vadd.f32 0.0, %v4729
    %v4731 = vpop.f32.mrb[0].mxu0
    %4732 = vmatprep.mubr.f32.mxu0 0.0
    %4733 = vmatmul.mubr.f32.gmra.mrb[0].mxu0 %v4615
    %v4734 = vpop.f32.mrb[0].mxu0
    %v4735 = vadd.f32 0.0, %v4734
    %v4736 = vpop.f32.mrb[0].mxu0
    %4737 = vmatprep.mubr.f32.mxu0 0.0
    %4738 = vmatmul.mubr.f32.gmra.mrb[0].mxu0 %v4618
    %v4739 = vpop.f32.mrb[0].mxu0
    %v4740 = vadd.f32 0.0, %v4739
    %v4741 = vpop.f32.mrb[0].mxu0
    %4742 = vmatprep.mubr.f32.mxu0 0.0
    %4743 = vmatmul.mubr.f32.gmra.mrb[0].mxu0 %v4621
    %v4744 = vpop.f32.mrb[0].mxu0
    %v4745 = vadd.f32 0.0, %v4744
    %v4746 = vpop.f32.mrb[0].mxu0
    %4747 = vmatprep.mubr.f32.mxu0 0.0
    %4748 = vmatmul.mubr.f32.gmra.mrb[0].mxu0 %v4624
    %v4749 = vpop.f32.mrb[0].mxu0
    %v4750 = vadd.f32 0.0, %v4749
    %v4751 = vpop.f32.mrb[0].mxu0
    %4752 = vmatprep.mubr.f32.mxu0 0.0
    %4753 = vmatmul.mubr.f32.gmra.mrb[0].mxu0 %v4627
    %v4754 = vpop.f32.mrb[0].mxu0
    %v4755 = vadd.f32 0.0, %v4754
    %v4756 = vpop.f32.mrb[0].mxu0
    %4757 = vmatprep.mubr.f32.mxu0 0.0
    %4758 = vmatmul.mubr.f32.gmra.mrb[0].mxu0 %v4630
    %v4759 = vpop.f32.mrb[0].mxu0
    %v4760 = vadd.f32 0.0, %v4759
    %v4761 = vpop.f32.mrb[0].mxu0
    %4762 = vmatprep.mubr.f32.mxu0 0.0
    %4763 = vmatmul.mubr.f32.gmra.mrb[0].mxu0 %v4633
    %v4764 = vpop.f32.mrb[0].mxu0
    %v4765 = vadd.f32 0.0, %v4764
    %v4766 = vpop.f32.mrb[0].mxu0
    %4767 = vmatprep.mubr.f32.mxu0 0.0
    %4768 = vmatmul.mubr.f32.gmra.mrb[0].mxu0 %v4636
    %v4769 = vpop.f32.mrb[0].mxu0
    %v4770 = vadd.f32 0.0, %v4769
    %v4771 = vpop.f32.mrb[0].mxu0
    %4772 = vmatprep.mubr.f32.mxu0 0.0
    %4773 = vmatmul.mubr.f32.gmra.mrb[0].mxu0 %v4639
    %v4774 = vpop.f32.mrb[0].mxu0
    %v4775 = vadd.f32 0.0, %v4774
    %v4776 = vpop.f32.mrb[0].mxu0
    %4777 = vmatprep.mubr.f32.mxu0 0.0
    %4778 = vmatmul.mubr.f32.gmra.mrb[0].mxu0 %v4642
    %v4779 = vpop.f32.mrb[0].mxu0
    %v4780 = vadd.f32 0.0, %v4779
    %v4781 = vpop.f32.mrb[0].mxu0
    %4782 = vmatprep.mubr.f32.mxu0 0.0
    %4783 = vmatmul.mubr.f32.gmra.mrb[0].mxu0 %v4645
    %v4784 = vpop.f32.mrb[0].mxu0
    %v4785 = vadd.f32 0.0, %v4784
    %v4786 = vpop.f32.mrb[0].mxu0
    %4787 = vmatprep.mubr.f32.mxu0 0.0
    %4788 = vmatmul.mubr.f32.gmra.mrb[0].mxu0 %v4648
    %v4789 = vpop.f32.mrb[0].mxu0
    %v4790 = vadd.f32 0.0, %v4789
    %v4791 = vpop.f32.mrb[0].mxu0
    %4792 = vmatprep.mubr.f32.mxu0 0.0
    %4793 = vmatmul.mubr.f32.gmra.mrb[0].mxu0 %v4651
    %v4794 = vpop.f32.mrb[0].mxu0
    %v4795 = vadd.f32 0.0, %v4794
    %v4796 = vpop.f32.mrb[0].mxu0
    %4797 = vdwg.mxu0
    %v4798 = vadd.f32 %v4569, %v4720
    %v4799 = vadd.f32 %v4570, %v4725
    %v4800 = vadd.f32 %v4571, %v4730
    %v4801 = vadd.f32 %v4572, %v4735
    %v4802 = vadd.f32 %v4573, %v4740
    %v4803 = vadd.f32 %v4574, %v4745
    %v4804 = vadd.f32 %v4575, %v4750
    %v4805 = vadd.f32 %v4576, %v4755
    %v4806 = vadd.f32 %v4577, %v4760
    %v4807 = vadd.f32 %v4578, %v4765
    %v4808 = vadd.f32 %v4579, %v4770
    %v4809 = vadd.f32 %v4580, %v4775
    %v4810 = vadd.f32 %v4581, %v4780
    %v4811 = vadd.f32 %v4582, %v4785
    %v4812 = vadd.f32 %v4583, %v4790
    %v4813 = vadd.f32 %v4584, %v4795
    %v4814 = vld [vmem:[%s4585 + $0x1] sm:$0xff]
    %v4815 = vld [vmem:[%s4585 + $0x11] sm:$0xff]
    %v4816 = vld [vmem:[%s4585 + $0x21] sm:$0xff]
    %v4817 = vld [vmem:[%s4585 + $0x31] sm:$0xff]
    %v4818 = vld [vmem:[%s4585 + $0x41] sm:$0xff]
    %v4819 = vld [vmem:[%s4585 + $0x51] sm:$0xff]
    %v4820 = vld [vmem:[%s4585 + $0x61] sm:$0xff]
    %v4821 = vld [vmem:[%s4585 + $0x71] sm:$0xff]
    %v4822 = vld [vmem:[%s4585 + $0xa1] sm:$0xff]
    %v4823 = vld [vmem:[%s4585 + $0xb1] sm:$0xff]
    %v4824 = vld [vmem:[%s4585 + $0xc1] sm:$0xff]
    %v4825 = vld [vmem:[%s4585 + $0xd1] sm:$0xff]
    %v4826 = vld [vmem:[%s4585 + $0xe1] sm:$0xff]
    %v4827 = vld [vmem:[%s4585 + $0xf1] sm:$0xff]
    %v4828 = vld [vmem:[%s4585 + $0x101] sm:$0xff]
    %v4829 = vld [vmem:[%s4585 + $0x111] sm:$0xff]
    %s4830 = scalar_lea.vmem %s5, 112
    %v4831 = vld [vmem:[%s4830] sm:$0xff]
    %v4832 = vld [vmem:[%s4830 + $0x8] sm:$0xff]
    %v4834 = vsel %vm150, %v4814, 0
    %v4837 = vsel %vm150, %v4815, 0
    %v4840 = vsel %vm150, %v4816, 0
    %v4843 = vsel %vm150, %v4817, 0
    %v4846 = vsel %vm150, %v4818, 0
    %v4849 = vsel %vm150, %v4819, 0
    %v4852 = vsel %vm150, %v4820, 0
    %v4855 = vsel %vm150, %v4821, 0
    %v4858 = vsel %vm150, %v4822, 0
    %v4861 = vsel %vm150, %v4823, 0
    %v4864 = vsel %vm150, %v4824, 0
    %v4867 = vsel %vm150, %v4825, 0
    %v4870 = vsel %vm150, %v4826, 0
    %v4873 = vsel %vm150, %v4827, 0
    %v4876 = vsel %vm150, %v4828, 0
    %v4879 = vsel %vm150, %v4829, 0
    %4881 = vmatprep.subr.mxu0 0.0
    %4882 = vmatpush1.msra.mxu0 %v4831
    %4883 = vmatprep.subr.mxu0 0.0
    %4884 = vmatpush1.msra.mxu0 %v4832
    %4885 = vmatprep.subr.mxu0 0.0
    %4886 = vmatpush1.msra.mxu0 0.0
    %4887 = vmatprep.subr.mxu0 0.0
    %4888 = vmatpush1.msra.mxu0 0.0
    %4889 = vmatprep.subr.mxu0 0.0
    %4890 = vmatpush1.msra.mxu0 0.0
    %4891 = vmatprep.subr.mxu0 0.0
    %4892 = vmatpush1.msra.mxu0 0.0
    %4893 = vmatprep.subr.mxu0 0.0
    %4894 = vmatpush1.msra.mxu0 0.0
    %4895 = vmatprep.subr.mxu0 0.0
    %4896 = vmatpush1.msra.mxu0 0.0
    %4897 = vmatprep.subr.mxu0 0.0
    %4898 = vmatpush1.msra.mxu0 0.0
    %4899 = vmatprep.subr.mxu0 0.0
    %4900 = vmatpush1.msra.mxu0 0.0
    %4901 = vmatprep.subr.mxu0 0.0
    %4902 = vmatpush1.msra.mxu0 0.0
    %4903 = vmatprep.subr.mxu0 0.0
    %4904 = vmatpush1.msra.mxu0 0.0
    %4905 = vmatprep.subr.mxu0 0.0
    %4906 = vmatpush1.msra.mxu0 0.0
    %4907 = vmatprep.subr.mxu0 0.0
    %4908 = vmatpush1.msra.mxu0 0.0
    %4909 = vmatprep.subr.mxu0 0.0
    %4910 = vmatpush1.msra.mxu0 0.0
    %4911 = vmatprep.subr.mxu0 0.0
    %4912 = vmatpush1.msra.mxu0 0.0
    %4913 = vmatprep.subr.mxu0 0.0
    %4914 = vmatpush1.msra.mxu0 0.0
    %4915 = vmatprep.subr.mxu0 0.0
    %4916 = vmatpush1.msra.mxu0 0.0
    %4917 = vmatprep.subr.mxu0 0.0
    %4918 = vmatpush1.msra.mxu0 0.0
    %4919 = vmatprep.subr.mxu0 0.0
    %4920 = vmatpush1.msra.mxu0 0.0
    %4921 = vmatprep.subr.mxu0 0.0
    %4922 = vmatpush1.msra.mxu0 0.0
    %4923 = vmatprep.subr.mxu0 0.0
    %4924 = vmatpush1.msra.mxu0 0.0
    %4925 = vmatprep.subr.mxu0 0.0
    %4926 = vmatpush1.msra.mxu0 0.0
    %4927 = vmatprep.subr.mxu0 0.0
    %4928 = vmatpush1.msra.mxu0 0.0
    %4929 = vmatprep.subr.mxu0 0.0
    %4930 = vmatpush1.msra.mxu0 0.0
    %4931 = vmatprep.subr.mxu0 0.0
    %4932 = vmatpush1.msra.mxu0 0.0
    %4933 = vmatprep.subr.mxu0 0.0
    %4934 = vmatpush1.msra.mxu0 0.0
    %4935 = vmatprep.subr.mxu0 0.0
    %4936 = vmatpush1.msra.mxu0 0.0
    %4937 = vmatprep.subr.mxu0 0.0
    %4938 = vmatpush1.msra.mxu0 0.0
    %4939 = vmatprep.subr.mxu0 0.0
    %4940 = vmatpush1.msra.mxu0 0.0
    %4941 = vmatprep.subr.mxu0 0.0
    %4942 = vmatpush1.msra.mxu0 0.0
    %4943 = vmatprep.subr.mxu0 0.0
    %4944 = vmatpush1.msra.mxu0 0.0
    %4945 = vmatprep.mubr.f32.mxu0 0.0
    %4946 = vmatmul.mubr.f32.gmra.mrb[0].mxu0 %v4834
    %v4947 = vpop.f32.mrb[0].mxu0
    %v4948 = vadd.f32 0.0, %v4947
    %v4949 = vpop.f32.mrb[0].mxu0
    %4950 = vmatprep.mubr.f32.mxu0 0.0
    %4951 = vmatmul.mubr.f32.gmra.mrb[0].mxu0 %v4837
    %v4952 = vpop.f32.mrb[0].mxu0
    %v4953 = vadd.f32 0.0, %v4952
    %v4954 = vpop.f32.mrb[0].mxu0
    %4955 = vmatprep.mubr.f32.mxu0 0.0
    %4956 = vmatmul.mubr.f32.gmra.mrb[0].mxu0 %v4840
    %v4957 = vpop.f32.mrb[0].mxu0
    %v4958 = vadd.f32 0.0, %v4957
    %v4959 = vpop.f32.mrb[0].mxu0
    %4960 = vmatprep.mubr.f32.mxu0 0.0
    %4961 = vmatmul.mubr.f32.gmra.mrb[0].mxu0 %v4843
    %v4962 = vpop.f32.mrb[0].mxu0
    %v4963 = vadd.f32 0.0, %v4962
    %v4964 = vpop.f32.mrb[0].mxu0
    %4965 = vmatprep.mubr.f32.mxu0 0.0
    %4966 = vmatmul.mubr.f32.gmra.mrb[0].mxu0 %v4846
    %v4967 = vpop.f32.mrb[0].mxu0
    %v4968 = vadd.f32 0.0, %v4967
    %v4969 = vpop.f32.mrb[0].mxu0
    %4970 = vmatprep.mubr.f32.mxu0 0.0
    %4971 = vmatmul.mubr.f32.gmra.mrb[0].mxu0 %v4849
    %v4972 = vpop.f32.mrb[0].mxu0
    %v4973 = vadd.f32 0.0, %v4972
    %v4974 = vpop.f32.mrb[0].mxu0
    %4975 = vmatprep.mubr.f32.mxu0 0.0
    %4976 = vmatmul.mubr.f32.gmra.mrb[0].mxu0 %v4852
    %v4977 = vpop.f32.mrb[0].mxu0
    %v4978 = vadd.f32 0.0, %v4977
    %v4979 = vpop.f32.mrb[0].mxu0
    %4980 = vmatprep.mubr.f32.mxu0 0.0
    %4981 = vmatmul.mubr.f32.gmra.mrb[0].mxu0 %v4855
    %v4982 = vpop.f32.mrb[0].mxu0
    %v4983 = vadd.f32 0.0, %v4982
    %v4984 = vpop.f32.mrb[0].mxu0
    %4985 = vmatprep.mubr.f32.mxu0 0.0
    %4986 = vmatmul.mubr.f32.gmra.mrb[0].mxu0 %v4858
    %v4987 = vpop.f32.mrb[0].mxu0
    %v4988 = vadd.f32 0.0, %v4987
    %v4989 = vpop.f32.mrb[0].mxu0
    %4990 = vmatprep.mubr.f32.mxu0 0.0
    %4991 = vmatmul.mubr.f32.gmra.mrb[0].mxu0 %v4861
    %v4992 = vpop.f32.mrb[0].mxu0
    %v4993 = vadd.f32 0.0, %v4992
    %v4994 = vpop.f32.mrb[0].mxu0
    %4995 = vmatprep.mubr.f32.mxu0 0.0
    %4996 = vmatmul.mubr.f32.gmra.mrb[0].mxu0 %v4864
    %v4997 = vpop.f32.mrb[0].mxu0
    %v4998 = vadd.f32 0.0, %v4997
    %v4999 = vpop.f32.mrb[0].mxu0
    %5000 = vmatprep.mubr.f32.mxu0 0.0
    %5001 = vmatmul.mubr.f32.gmra.mrb[0].mxu0 %v4867
    %v5002 = vpop.f32.mrb[0].mxu0
    %v5003 = vadd.f32 0.0, %v5002
    %v5004 = vpop.f32.mrb[0].mxu0
    %5005 = vmatprep.mubr.f32.mxu0 0.0
    %5006 = vmatmul.mubr.f32.gmra.mrb[0].mxu0 %v4870
    %v5007 = vpop.f32.mrb[0].mxu0
    %v5008 = vadd.f32 0.0, %v5007
    %v5009 = vpop.f32.mrb[0].mxu0
    %5010 = vmatprep.mubr.f32.mxu0 0.0
    %5011 = vmatmul.mubr.f32.gmra.mrb[0].mxu0 %v4873
    %v5012 = vpop.f32.mrb[0].mxu0
    %v5013 = vadd.f32 0.0, %v5012
    %v5014 = vpop.f32.mrb[0].mxu0
    %5015 = vmatprep.mubr.f32.mxu0 0.0
    %5016 = vmatmul.mubr.f32.gmra.mrb[0].mxu0 %v4876
    %v5017 = vpop.f32.mrb[0].mxu0
    %v5018 = vadd.f32 0.0, %v5017
    %v5019 = vpop.f32.mrb[0].mxu0
    %5020 = vmatprep.mubr.f32.mxu0 0.0
    %5021 = vmatmul.mubr.f32.gmra.mrb[0].mxu0 %v4879
    %v5022 = vpop.f32.mrb[0].mxu0
    %v5023 = vadd.f32 0.0, %v5022
    %v5024 = vpop.f32.mrb[0].mxu0
    %5025 = vdwg.mxu0
    %v5026 = vadd.f32 %v4798, %v4948
    %v5027 = vadd.f32 %v4799, %v4953
    %v5028 = vadd.f32 %v4800, %v4958
    %v5029 = vadd.f32 %v4801, %v4963
    %v5030 = vadd.f32 %v4802, %v4968
    %v5031 = vadd.f32 %v4803, %v4973
    %v5032 = vadd.f32 %v4804, %v4978
    %v5033 = vadd.f32 %v4805, %v4983
    %v5034 = vadd.f32 %v4806, %v4988
    %v5035 = vadd.f32 %v4807, %v4993
    %v5036 = vadd.f32 %v4808, %v4998
    %v5037 = vadd.f32 %v4809, %v5003
    %v5038 = vadd.f32 %v4810, %v5008
    %v5039 = vadd.f32 %v4811, %v5013
    %v5040 = vadd.f32 %v4812, %v5018
    %v5041 = vadd.f32 %v4813, %v5023
    %v5042 = vld [vmem:[%s4585 + $0x2] sm:$0xff]
    %v5043 = vld [vmem:[%s4585 + $0x12] sm:$0xff]
    %v5044 = vld [vmem:[%s4585 + $0x22] sm:$0xff]
    %v5045 = vld [vmem:[%s4585 + $0x32] sm:$0xff]
    %v5046 = vld [vmem:[%s4585 + $0x42] sm:$0xff]
    %v5047 = vld [vmem:[%s4585 + $0x52] sm:$0xff]
    %v5048 = vld [vmem:[%s4585 + $0x62] sm:$0xff]
    %v5049 = vld [vmem:[%s4585 + $0x72] sm:$0xff]
    %v5050 = vld [vmem:[%s4585 + $0xa2] sm:$0xff]
    %v5051 = vld [vmem:[%s4585 + $0xb2] sm:$0xff]
    %v5052 = vld [vmem:[%s4585 + $0xc2] sm:$0xff]
    %v5053 = vld [vmem:[%s4585 + $0xd2] sm:$0xff]
    %v5054 = vld [vmem:[%s4585 + $0xe2] sm:$0xff]
    %v5055 = vld [vmem:[%s4585 + $0xf2] sm:$0xff]
    %v5056 = vld [vmem:[%s4585 + $0x102] sm:$0xff]
    %v5057 = vld [vmem:[%s4585 + $0x112] sm:$0xff]
    %s5058 = scalar_lea.vmem %s5, 128
    %v5059 = vld [vmem:[%s5058] sm:$0xff]
    %v5060 = vld [vmem:[%s5058 + $0x8] sm:$0xff]
    %v5062 = vsel %vm150, %v5042, 0
    %v5065 = vsel %vm150, %v5043, 0
    %v5068 = vsel %vm150, %v5044, 0
    %v5071 = vsel %vm150, %v5045, 0
    %v5074 = vsel %vm150, %v5046, 0
    %v5077 = vsel %vm150, %v5047, 0
    %v5080 = vsel %vm150, %v5048, 0
    %v5083 = vsel %vm150, %v5049, 0
    %v5086 = vsel %vm150, %v5050, 0
    %v5089 = vsel %vm150, %v5051, 0
    %v5092 = vsel %vm150, %v5052, 0
    %v5095 = vsel %vm150, %v5053, 0
    %v5098 = vsel %vm150, %v5054, 0
    %v5101 = vsel %vm150, %v5055, 0
    %v5104 = vsel %vm150, %v5056, 0
    %v5107 = vsel %vm150, %v5057, 0
    %5109 = vmatprep.subr.mxu0 0.0
    %5110 = vmatpush1.msra.mxu0 %v5059
    %5111 = vmatprep.subr.mxu0 0.0
    %5112 = vmatpush1.msra.mxu0 %v5060
    %5113 = vmatprep.subr.mxu0 0.0
    %5114 = vmatpush1.msra.mxu0 0.0
    %5115 = vmatprep.subr.mxu0 0.0
    %5116 = vmatpush1.msra.mxu0 0.0
    %5117 = vmatprep.subr.mxu0 0.0
    %5118 = vmatpush1.msra.mxu0 0.0
    %5119 = vmatprep.subr.mxu0 0.0
    %5120 = vmatpush1.msra.mxu0 0.0
    %5121 = vmatprep.subr.mxu0 0.0
    %5122 = vmatpush1.msra.mxu0 0.0
    %5123 = vmatprep.subr.mxu0 0.0
    %5124 = vmatpush1.msra.mxu0 0.0
    %5125 = vmatprep.subr.mxu0 0.0
    %5126 = vmatpush1.msra.mxu0 0.0
    %5127 = vmatprep.subr.mxu0 0.0
    %5128 = vmatpush1.msra.mxu0 0.0
    %5129 = vmatprep.subr.mxu0 0.0
    %5130 = vmatpush1.msra.mxu0 0.0
    %5131 = vmatprep.subr.mxu0 0.0
    %5132 = vmatpush1.msra.mxu0 0.0
    %5133 = vmatprep.subr.mxu0 0.0
    %5134 = vmatpush1.msra.mxu0 0.0
    %5135 = vmatprep.subr.mxu0 0.0
    %5136 = vmatpush1.msra.mxu0 0.0
    %5137 = vmatprep.subr.mxu0 0.0
    %5138 = vmatpush1.msra.mxu0 0.0
    %5139 = vmatprep.subr.mxu0 0.0
    %5140 = vmatpush1.msra.mxu0 0.0
    %5141 = vmatprep.subr.mxu0 0.0
    %5142 = vmatpush1.msra.mxu0 0.0
    %5143 = vmatprep.subr.mxu0 0.0
    %5144 = vmatpush1.msra.mxu0 0.0
    %5145 = vmatprep.subr.mxu0 0.0
    %5146 = vmatpush1.msra.mxu0 0.0
    %5147 = vmatprep.subr.mxu0 0.0
    %5148 = vmatpush1.msra.mxu0 0.0
    %5149 = vmatprep.subr.mxu0 0.0
    %5150 = vmatpush1.msra.mxu0 0.0
    %5151 = vmatprep.subr.mxu0 0.0
    %5152 = vmatpush1.msra.mxu0 0.0
    %5153 = vmatprep.subr.mxu0 0.0
    %5154 = vmatpush1.msra.mxu0 0.0
    %5155 = vmatprep.subr.mxu0 0.0
    %5156 = vmatpush1.msra.mxu0 0.0
    %5157 = vmatprep.subr.mxu0 0.0
    %5158 = vmatpush1.msra.mxu0 0.0
    %5159 = vmatprep.subr.mxu0 0.0
    %5160 = vmatpush1.msra.mxu0 0.0
    %5161 = vmatprep.subr.mxu0 0.0
    %5162 = vmatpush1.msra.mxu0 0.0
    %5163 = vmatprep.subr.mxu0 0.0
    %5164 = vmatpush1.msra.mxu0 0.0
    %5165 = vmatprep.subr.mxu0 0.0
    %5166 = vmatpush1.msra.mxu0 0.0
    %5167 = vmatprep.subr.mxu0 0.0
    %5168 = vmatpush1.msra.mxu0 0.0
    %5169 = vmatprep.subr.mxu0 0.0
    %5170 = vmatpush1.msra.mxu0 0.0
    %5171 = vmatprep.subr.mxu0 0.0
    %5172 = vmatpush1.msra.mxu0 0.0
    %5173 = vmatprep.mubr.f32.mxu0 0.0
    %5174 = vmatmul.mubr.f32.gmra.mrb[0].mxu0 %v5062
    %v5175 = vpop.f32.mrb[0].mxu0
    %v5176 = vadd.f32 0.0, %v5175
    %v5177 = vpop.f32.mrb[0].mxu0
    %5178 = vmatprep.mubr.f32.mxu0 0.0
    %5179 = vmatmul.mubr.f32.gmra.mrb[0].mxu0 %v5065
    %v5180 = vpop.f32.mrb[0].mxu0
    %v5181 = vadd.f32 0.0, %v5180
    %v5182 = vpop.f32.mrb[0].mxu0
    %5183 = vmatprep.mubr.f32.mxu0 0.0
    %5184 = vmatmul.mubr.f32.gmra.mrb[0].mxu0 %v5068
    %v5185 = vpop.f32.mrb[0].mxu0
    %v5186 = vadd.f32 0.0, %v5185
    %v5187 = vpop.f32.mrb[0].mxu0
    %5188 = vmatprep.mubr.f32.mxu0 0.0
    %5189 = vmatmul.mubr.f32.gmra.mrb[0].mxu0 %v5071
    %v5190 = vpop.f32.mrb[0].mxu0
    %v5191 = vadd.f32 0.0, %v5190
    %v5192 = vpop.f32.mrb[0].mxu0
    %5193 = vmatprep.mubr.f32.mxu0 0.0
    %5194 = vmatmul.mubr.f32.gmra.mrb[0].mxu0 %v5074
    %v5195 = vpop.f32.mrb[0].mxu0
    %v5196 = vadd.f32 0.0, %v5195
    %v5197 = vpop.f32.mrb[0].mxu0
    %5198 = vmatprep.mubr.f32.mxu0 0.0
    %5199 = vmatmul.mubr.f32.gmra.mrb[0].mxu0 %v5077
    %v5200 = vpop.f32.mrb[0].mxu0
    %v5201 = vadd.f32 0.0, %v5200
    %v5202 = vpop.f32.mrb[0].mxu0
    %5203 = vmatprep.mubr.f32.mxu0 0.0
    %5204 = vmatmul.mubr.f32.gmra.mrb[0].mxu0 %v5080
    %v5205 = vpop.f32.mrb[0].mxu0
    %v5206 = vadd.f32 0.0, %v5205
    %v5207 = vpop.f32.mrb[0].mxu0
    %5208 = vmatprep.mubr.f32.mxu0 0.0
    %5209 = vmatmul.mubr.f32.gmra.mrb[0].mxu0 %v5083
    %v5210 = vpop.f32.mrb[0].mxu0
    %v5211 = vadd.f32 0.0, %v5210
    %v5212 = vpop.f32.mrb[0].mxu0
    %5213 = vmatprep.mubr.f32.mxu0 0.0
    %5214 = vmatmul.mubr.f32.gmra.mrb[0].mxu0 %v5086
    %v5215 = vpop.f32.mrb[0].mxu0
    %v5216 = vadd.f32 0.0, %v5215
    %v5217 = vpop.f32.mrb[0].mxu0
    %5218 = vmatprep.mubr.f32.mxu0 0.0
    %5219 = vmatmul.mubr.f32.gmra.mrb[0].mxu0 %v5089
    %v5220 = vpop.f32.mrb[0].mxu0
    %v5221 = vadd.f32 0.0, %v5220
    %v5222 = vpop.f32.mrb[0].mxu0
    %5223 = vmatprep.mubr.f32.mxu0 0.0
    %5224 = vmatmul.mubr.f32.gmra.mrb[0].mxu0 %v5092
    %v5225 = vpop.f32.mrb[0].mxu0
    %v5226 = vadd.f32 0.0, %v5225
    %v5227 = vpop.f32.mrb[0].mxu0
    %5228 = vmatprep.mubr.f32.mxu0 0.0
    %5229 = vmatmul.mubr.f32.gmra.mrb[0].mxu0 %v5095
    %v5230 = vpop.f32.mrb[0].mxu0
    %v5231 = vadd.f32 0.0, %v5230
    %v5232 = vpop.f32.mrb[0].mxu0
    %5233 = vmatprep.mubr.f32.mxu0 0.0
    %5234 = vmatmul.mubr.f32.gmra.mrb[0].mxu0 %v5098
    %v5235 = vpop.f32.mrb[0].mxu0
    %v5236 = vadd.f32 0.0, %v5235
    %v5237 = vpop.f32.mrb[0].mxu0
    %5238 = vmatprep.mubr.f32.mxu0 0.0
    %5239 = vmatmul.mubr.f32.gmra.mrb[0].mxu0 %v5101
    %v5240 = vpop.f32.mrb[0].mxu0
    %v5241 = vadd.f32 0.0, %v5240
    %v5242 = vpop.f32.mrb[0].mxu0
    %5243 = vmatprep.mubr.f32.mxu0 0.0
    %5244 = vmatmul.mubr.f32.gmra.mrb[0].mxu0 %v5104
    %v5245 = vpop.f32.mrb[0].mxu0
    %v5246 = vadd.f32 0.0, %v5245
    %v5247 = vpop.f32.mrb[0].mxu0
    %5248 = vmatprep.mubr.f32.mxu0 0.0
    %5249 = vmatmul.mubr.f32.gmra.mrb[0].mxu0 %v5107
    %v5250 = vpop.f32.mrb[0].mxu0
    %v5251 = vadd.f32 0.0, %v5250
    %v5252 = vpop.f32.mrb[0].mxu0
    %5253 = vdwg.mxu0
    %v5254 = vadd.f32 %v5026, %v5176
    %v5255 = vadd.f32 %v5027, %v5181
    %v5256 = vadd.f32 %v5028, %v5186
    %v5257 = vadd.f32 %v5029, %v5191
    %v5258 = vadd.f32 %v5030, %v5196
    %v5259 = vadd.f32 %v5031, %v5201
    %v5260 = vadd.f32 %v5032, %v5206
    %v5261 = vadd.f32 %v5033, %v5211
    %v5262 = vadd.f32 %v5034, %v5216
    %v5263 = vadd.f32 %v5035, %v5221
    %v5264 = vadd.f32 %v5036, %v5226
    %v5265 = vadd.f32 %v5037, %v5231
    %v5266 = vadd.f32 %v5038, %v5236
    %v5267 = vadd.f32 %v5039, %v5241
    %v5268 = vadd.f32 %v5040, %v5246
    %v5269 = vadd.f32 %v5041, %v5251
    %v5270 = vld [vmem:[%s6] sm:$0x1]
    %v5272 = vlaneseq
    %v5273 = vshrl.u32 %v5272, 7
    %v5274 = vsub.s32 0, %v5273
    %v5275 = vrot.slane %v5270, %v5274
    %v5277 = vadd.f32 %v5254, %v5275
    %v5278 = vadd.f32 %v5255, %v5275
    %v5279 = vadd.f32 %v5256, %v5275
    %v5280 = vadd.f32 %v5257, %v5275
    %v5281 = vadd.f32 %v5258, %v5275
    %v5282 = vadd.f32 %v5259, %v5275
    %v5283 = vadd.f32 %v5260, %v5275
    %v5284 = vadd.f32 %v5261, %v5275
    %v5285 = vadd.f32 %v5262, %v5275
    %v5286 = vadd.f32 %v5263, %v5275
    %v5287 = vadd.f32 %v5264, %v5275
    %v5288 = vadd.f32 %v5265, %v5275
    %v5289 = vadd.f32 %v5266, %v5275
    %v5290 = vadd.f32 %v5267, %v5275
    %v5291 = vadd.f32 %v5268, %v5275
    %v5292 = vadd.f32 %v5269, %v5275
    %v5293 = vmax.f32 %v5277, 0.0
    %v5294 = vmax.f32 %v5278, 0.0
    %v5295 = vmax.f32 %v5279, 0.0
    %v5296 = vmax.f32 %v5280, 0.0
    %v5297 = vmax.f32 %v5281, 0.0
    %v5298 = vmax.f32 %v5282, 0.0
    %v5299 = vmax.f32 %v5283, 0.0
    %v5300 = vmax.f32 %v5284, 0.0
    %v5301 = vmax.f32 %v5285, 0.0
    %v5302 = vmax.f32 %v5286, 0.0
    %v5303 = vmax.f32 %v5287, 0.0
    %v5304 = vmax.f32 %v5288, 0.0
    %v5305 = vmax.f32 %v5289, 0.0
    %v5306 = vmax.f32 %v5290, 0.0
    %v5307 = vmax.f32 %v5291, 0.0
    %v5308 = vmax.f32 %v5292, 0.0
    %5309 = vst.msk [vmem:[%s3233 + $0x1] sm:$0xff] %vm150, %v5293
    %5310 = vst.msk [vmem:[%s3233 + $0x11] sm:$0xff] %vm150, %v5294
    %5311 = vst.msk [vmem:[%s3233 + $0x21] sm:$0xff] %vm150, %v5295
    %5312 = vst.msk [vmem:[%s3233 + $0x31] sm:$0xff] %vm150, %v5296
    %5313 = vst.msk [vmem:[%s3233 + $0x41] sm:$0xff] %vm150, %v5297
    %5314 = vst.msk [vmem:[%s3233 + $0x51] sm:$0xff] %vm150, %v5298
    %5315 = vst.msk [vmem:[%s3233 + $0x61] sm:$0xff] %vm150, %v5299
    %5316 = vst.msk [vmem:[%s3233 + $0x71] sm:$0xff] %vm150, %v5300
    %5317 = vst.msk [vmem:[%s3233 + $0xa1] sm:$0xff] %vm150, %v5301
    %5318 = vst.msk [vmem:[%s3233 + $0xb1] sm:$0xff] %vm150, %v5302
    %5319 = vst.msk [vmem:[%s3233 + $0xc1] sm:$0xff] %vm150, %v5303
    %5320 = vst.msk [vmem:[%s3233 + $0xd1] sm:$0xff] %vm150, %v5304
    %5321 = vst.msk [vmem:[%s3233 + $0xe1] sm:$0xff] %vm150, %v5305
    %5322 = vst.msk [vmem:[%s3233 + $0xf1] sm:$0xff] %vm150, %v5306
    %5323 = vst.msk [vmem:[%s3233 + $0x101] sm:$0xff] %vm150, %v5307
    %5324 = vst.msk [vmem:[%s3233 + $0x111] sm:$0xff] %vm150, %v5308
    %v5325 = vld [vmem:[#allocation3] ss:$2 sm:$0xf]
    %s5326 = scalar_lea.vmem [#allocation3], 32
    %v5327 = vld [vmem:[%s5326] ss:$2 sm:$0xf]
    %s5328 = scalar_lea.vmem [#allocation3], 64
    %v5329 = vld [vmem:[%s5328] ss:$2 sm:$0xf]
    %s5330 = scalar_lea.vmem [#allocation3], 96
    %v5331 = vld [vmem:[%s5330] ss:$2 sm:$0xf]
    %s5332 = scalar_lea.vmem [#allocation3], 160
    %v5333 = vld [vmem:[%s5332] ss:$2 sm:$0xf]
    %s5334 = scalar_lea.vmem [#allocation3], 192
    %v5335 = vld [vmem:[%s5334] ss:$2 sm:$0xf]
    %s5336 = scalar_lea.vmem [#allocation3], 224
    %v5337 = vld [vmem:[%s5336] ss:$2 sm:$0xf]
    %s5338 = scalar_lea.vmem [#allocation3], 256
    %v5339 = vld [vmem:[%s5338] ss:$2 sm:$0xf]
    %v5340 = vld [vmem:[%s7] sm:$0xff]
    %v5341 = vld [vmem:[%s7 + $0x8] sm:$0xff]
    %s5342 = scalar_lea.vmem [#allocation3], 1
    %v5343 = vld [vmem:[%s5342] ss:$2 sm:$0xf]
    %s5344 = scalar_lea.vmem [#allocation3], 33
    %v5345 = vld [vmem:[%s5344] ss:$2 sm:$0xf]
    %s5346 = scalar_lea.vmem [#allocation3], 65
    %v5347 = vld [vmem:[%s5346] ss:$2 sm:$0xf]
    %s5348 = scalar_lea.vmem [#allocation3], 97
    %v5349 = vld [vmem:[%s5348] ss:$2 sm:$0xf]
    %s5350 = scalar_lea.vmem [#allocation3], 161
    %v5351 = vld [vmem:[%s5350] ss:$2 sm:$0xf]
    %s5352 = scalar_lea.vmem [#allocation3], 193
    %v5353 = vld [vmem:[%s5352] ss:$2 sm:$0xf]
    %s5354 = scalar_lea.vmem [#allocation3], 225
    %v5355 = vld [vmem:[%s5354] ss:$2 sm:$0xf]
    %s5356 = scalar_lea.vmem [#allocation3], 257
    %v5357 = vld [vmem:[%s5356] ss:$2 sm:$0xf]
    %s5358 = scalar_lea.vmem %s7, 16
    %v5359 = vld [vmem:[%s5358] sm:$0xff]
    %v5360 = vld [vmem:[%s5358 + $0x8] sm:$0xff]
    %v5369 = vcombine.low %v5343, %v5345
    %v5370 = vcombine.low %v5347, %v5349
    %v5371 = vcombine.low %v5351, %v5353
    %v5372 = vcombine.low %v5355, %v5357
    %v5373 = vsel %vm150, %v5369, 0
    %v5375 = vsel %vm150, %v5370, 0
    %v5377 = vsel %vm150, %v5371, 0
    %v5379 = vsel %vm150, %v5372, 0
    %5381 = vmatprep.subr.mxu0 0.0
    %5382 = vmatpush1.msra.mxu0 %v5359
    %5383 = vmatprep.subr.mxu0 0.0
    %5384 = vmatpush1.msra.mxu0 %v5360
    %5385 = vmatprep.subr.mxu0 0.0
    %5386 = vmatpush1.msra.mxu0 0.0
    %5387 = vmatprep.subr.mxu0 0.0
    %5388 = vmatpush1.msra.mxu0 0.0
    %5389 = vmatprep.subr.mxu0 0.0
    %5390 = vmatpush1.msra.mxu0 0.0
    %5391 = vmatprep.subr.mxu0 0.0
    %5392 = vmatpush1.msra.mxu0 0.0
    %5393 = vmatprep.subr.mxu0 0.0
    %5394 = vmatpush1.msra.mxu0 0.0
    %5395 = vmatprep.subr.mxu0 0.0
    %5396 = vmatpush1.msra.mxu0 0.0
    %5397 = vmatprep.subr.mxu0 0.0
    %5398 = vmatpush1.msra.mxu0 0.0
    %5399 = vmatprep.subr.mxu0 0.0
    %5400 = vmatpush1.msra.mxu0 0.0
    %5401 = vmatprep.subr.mxu0 0.0
    %5402 = vmatpush1.msra.mxu0 0.0
    %5403 = vmatprep.subr.mxu0 0.0
    %5404 = vmatpush1.msra.mxu0 0.0
    %5405 = vmatprep.subr.mxu0 0.0
    %5406 = vmatpush1.msra.mxu0 0.0
    %5407 = vmatprep.subr.mxu0 0.0
    %5408 = vmatpush1.msra.mxu0 0.0
    %5409 = vmatprep.subr.mxu0 0.0
    %5410 = vmatpush1.msra.mxu0 0.0
    %5411 = vmatprep.subr.mxu0 0.0
    %5412 = vmatpush1.msra.mxu0 0.0
    %5413 = vmatprep.subr.mxu0 0.0
    %5414 = vmatpush1.msra.mxu0 0.0
    %5415 = vmatprep.subr.mxu0 0.0
    %5416 = vmatpush1.msra.mxu0 0.0
    %5417 = vmatprep.subr.mxu0 0.0
    %5418 = vmatpush1.msra.mxu0 0.0
    %5419 = vmatprep.subr.mxu0 0.0
    %5420 = vmatpush1.msra.mxu0 0.0
    %5421 = vmatprep.subr.mxu0 0.0
    %5422 = vmatpush1.msra.mxu0 0.0
    %5423 = vmatprep.subr.mxu0 0.0
    %5424 = vmatpush1.msra.mxu0 0.0
    %5425 = vmatprep.subr.mxu0 0.0
    %5426 = vmatpush1.msra.mxu0 0.0
    %5427 = vmatprep.subr.mxu0 0.0
    %5428 = vmatpush1.msra.mxu0 0.0
    %5429 = vmatprep.subr.mxu0 0.0
    %5430 = vmatpush1.msra.mxu0 0.0
    %5431 = vmatprep.subr.mxu0 0.0
    %5432 = vmatpush1.msra.mxu0 0.0
    %5433 = vmatprep.subr.mxu0 0.0
    %5434 = vmatpush1.msra.mxu0 0.0
    %5435 = vmatprep.subr.mxu0 0.0
    %5436 = vmatpush1.msra.mxu0 0.0
    %5437 = vmatprep.subr.mxu0 0.0
    %5438 = vmatpush1.msra.mxu0 0.0
    %5439 = vmatprep.subr.mxu0 0.0
    %5440 = vmatpush1.msra.mxu0 0.0
    %5441 = vmatprep.subr.mxu0 0.0
    %5442 = vmatpush1.msra.mxu0 0.0
    %5443 = vmatprep.subr.mxu0 0.0
    %5444 = vmatpush1.msra.mxu0 0.0
    %5445 = vmatprep.mubr.f32.mxu0 0.0
    %5446 = vmatmul.mubr.f32.gmra.mrb[0].mxu0 %v5373
    %v5447 = vpop.f32.mrb[0].mxu0
    %v5448 = vadd.f32 0.0, %v5447
    %v5449 = vpop.f32.mrb[0].mxu0
    %5450 = vmatprep.mubr.f32.mxu0 0.0
    %5451 = vmatmul.mubr.f32.gmra.mrb[0].mxu0 %v5375
    %v5452 = vpop.f32.mrb[0].mxu0
    %v5453 = vadd.f32 0.0, %v5452
    %v5454 = vpop.f32.mrb[0].mxu0
    %5455 = vmatprep.mubr.f32.mxu0 0.0
    %5456 = vmatmul.mubr.f32.gmra.mrb[0].mxu0 %v5377
    %v5457 = vpop.f32.mrb[0].mxu0
    %v5458 = vadd.f32 0.0, %v5457
    %v5459 = vpop.f32.mrb[0].mxu0
    %5460 = vmatprep.mubr.f32.mxu0 0.0
    %5461 = vmatmul.mubr.f32.gmra.mrb[0].mxu0 %v5379
    %v5462 = vpop.f32.mrb[0].mxu0
    %v5463 = vadd.f32 0.0, %v5462
    %v5464 = vpop.f32.mrb[0].mxu0
    %5465 = vdwg.mxu0
    %v5474 = vcombine.low %v5325, %v5327
    %v5475 = vcombine.low %v5329, %v5331
    %v5476 = vcombine.low %v5333, %v5335
    %v5477 = vcombine.low %v5337, %v5339
    %v5478 = vsel %vm150, %v5474, 0
    %v5480 = vsel %vm150, %v5475, 0
    %v5482 = vsel %vm150, %v5476, 0
    %v5484 = vsel %vm150, %v5477, 0
    %5486 = vmatprep.subr.mxu0 0.0
    %5487 = vmatpush1.msra.mxu0 %v5340
    %5488 = vmatprep.subr.mxu0 0.0
    %5489 = vmatpush1.msra.mxu0 %v5341
    %5490 = vmatprep.subr.mxu0 0.0
    %5491 = vmatpush1.msra.mxu0 0.0
    %5492 = vmatprep.subr.mxu0 0.0
    %5493 = vmatpush1.msra.mxu0 0.0
    %5494 = vmatprep.subr.mxu0 0.0
    %5495 = vmatpush1.msra.mxu0 0.0
    %5496 = vmatprep.subr.mxu0 0.0
    %5497 = vmatpush1.msra.mxu0 0.0
    %5498 = vmatprep.subr.mxu0 0.0
    %5499 = vmatpush1.msra.mxu0 0.0
    %5500 = vmatprep.subr.mxu0 0.0
    %5501 = vmatpush1.msra.mxu0 0.0
    %5502 = vmatprep.subr.mxu0 0.0
    %5503 = vmatpush1.msra.mxu0 0.0
    %5504 = vmatprep.subr.mxu0 0.0
    %5505 = vmatpush1.msra.mxu0 0.0
    %5506 = vmatprep.subr.mxu0 0.0
    %5507 = vmatpush1.msra.mxu0 0.0
    %5508 = vmatprep.subr.mxu0 0.0
    %5509 = vmatpush1.msra.mxu0 0.0
    %5510 = vmatprep.subr.mxu0 0.0
    %5511 = vmatpush1.msra.mxu0 0.0
    %5512 = vmatprep.subr.mxu0 0.0
    %5513 = vmatpush1.msra.mxu0 0.0
    %5514 = vmatprep.subr.mxu0 0.0
    %5515 = vmatpush1.msra.mxu0 0.0
    %5516 = vmatprep.subr.mxu0 0.0
    %5517 = vmatpush1.msra.mxu0 0.0
    %5518 = vmatprep.subr.mxu0 0.0
    %5519 = vmatpush1.msra.mxu0 0.0
    %5520 = vmatprep.subr.mxu0 0.0
    %5521 = vmatpush1.msra.mxu0 0.0
    %5522 = vmatprep.subr.mxu0 0.0
    %5523 = vmatpush1.msra.mxu0 0.0
    %5524 = vmatprep.subr.mxu0 0.0
    %5525 = vmatpush1.msra.mxu0 0.0
    %5526 = vmatprep.subr.mxu0 0.0
    %5527 = vmatpush1.msra.mxu0 0.0
    %5528 = vmatprep.subr.mxu0 0.0
    %5529 = vmatpush1.msra.mxu0 0.0
    %5530 = vmatprep.subr.mxu0 0.0
    %5531 = vmatpush1.msra.mxu0 0.0
    %5532 = vmatprep.subr.mxu0 0.0
    %5533 = vmatpush1.msra.mxu0 0.0
    %5534 = vmatprep.subr.mxu0 0.0
    %5535 = vmatpush1.msra.mxu0 0.0
    %5536 = vmatprep.subr.mxu0 0.0
    %5537 = vmatpush1.msra.mxu0 0.0
    %5538 = vmatprep.subr.mxu0 0.0
    %5539 = vmatpush1.msra.mxu0 0.0
    %5540 = vmatprep.subr.mxu0 0.0
    %5541 = vmatpush1.msra.mxu0 0.0
    %5542 = vmatprep.subr.mxu0 0.0
    %5543 = vmatpush1.msra.mxu0 0.0
    %5544 = vmatprep.subr.mxu0 0.0
    %5545 = vmatpush1.msra.mxu0 0.0
    %5546 = vmatprep.subr.mxu0 0.0
    %5547 = vmatpush1.msra.mxu0 0.0
    %5548 = vmatprep.subr.mxu0 0.0
    %5549 = vmatpush1.msra.mxu0 0.0
    %5550 = vmatprep.mubr.f32.mxu0 0.0
    %5551 = vmatmul.mubr.f32.gmra.mrb[0].mxu0 %v5478
    %v5552 = vpop.f32.mrb[0].mxu0
    %v5553 = vadd.f32 %v5448, %v5552
    %v5554 = vpop.f32.mrb[0].mxu0
    %5555 = vmatprep.mubr.f32.mxu0 0.0
    %5556 = vmatmul.mubr.f32.gmra.mrb[0].mxu0 %v5480
    %v5557 = vpop.f32.mrb[0].mxu0
    %v5558 = vadd.f32 %v5453, %v5557
    %v5559 = vpop.f32.mrb[0].mxu0
    %5560 = vmatprep.mubr.f32.mxu0 0.0
    %5561 = vmatmul.mubr.f32.gmra.mrb[0].mxu0 %v5482
    %v5562 = vpop.f32.mrb[0].mxu0
    %v5563 = vadd.f32 %v5458, %v5562
    %v5564 = vpop.f32.mrb[0].mxu0
    %5565 = vmatprep.mubr.f32.mxu0 0.0
    %5566 = vmatmul.mubr.f32.gmra.mrb[0].mxu0 %v5484
    %v5567 = vpop.f32.mrb[0].mxu0
    %v5568 = vadd.f32 %v5463, %v5567
    %v5569 = vpop.f32.mrb[0].mxu0
    %5570 = vdwg.mxu0
    %s5571 = scalar_lea.vmem [#allocation3], 2
    %v5572 = vld [vmem:[%s5571] ss:$2 sm:$0xf]
    %s5573 = scalar_lea.vmem [#allocation3], 34
    %v5574 = vld [vmem:[%s5573] ss:$2 sm:$0xf]
    %s5575 = scalar_lea.vmem [#allocation3], 66
    %v5576 = vld [vmem:[%s5575] ss:$2 sm:$0xf]
    %s5577 = scalar_lea.vmem [#allocation3], 98
    %v5578 = vld [vmem:[%s5577] ss:$2 sm:$0xf]
    %s5579 = scalar_lea.vmem [#allocation3], 162
    %v5580 = vld [vmem:[%s5579] ss:$2 sm:$0xf]
    %s5581 = scalar_lea.vmem [#allocation3], 194
    %v5582 = vld [vmem:[%s5581] ss:$2 sm:$0xf]
    %s5583 = scalar_lea.vmem [#allocation3], 226
    %v5584 = vld [vmem:[%s5583] ss:$2 sm:$0xf]
    %s5585 = scalar_lea.vmem [#allocation3], 258
    %v5586 = vld [vmem:[%s5585] ss:$2 sm:$0xf]
    %s5587 = scalar_lea.vmem %s7, 32
    %v5588 = vld [vmem:[%s5587] sm:$0xff]
    %v5589 = vld [vmem:[%s5587 + $0x8] sm:$0xff]
    %v5598 = vcombine.low %v5572, %v5574
    %v5599 = vcombine.low %v5576, %v5578
    %v5600 = vcombine.low %v5580, %v5582
    %v5601 = vcombine.low %v5584, %v5586
    %v5602 = vsel %vm150, %v5598, 0
    %v5604 = vsel %vm150, %v5599, 0
    %v5606 = vsel %vm150, %v5600, 0
    %v5608 = vsel %vm150, %v5601, 0
    %5610 = vmatprep.subr.mxu0 0.0
    %5611 = vmatpush1.msra.mxu0 %v5588
    %5612 = vmatprep.subr.mxu0 0.0
    %5613 = vmatpush1.msra.mxu0 %v5589
    %5614 = vmatprep.subr.mxu0 0.0
    %5615 = vmatpush1.msra.mxu0 0.0
    %5616 = vmatprep.subr.mxu0 0.0
    %5617 = vmatpush1.msra.mxu0 0.0
    %5618 = vmatprep.subr.mxu0 0.0
    %5619 = vmatpush1.msra.mxu0 0.0
    %5620 = vmatprep.subr.mxu0 0.0
    %5621 = vmatpush1.msra.mxu0 0.0
    %5622 = vmatprep.subr.mxu0 0.0
    %5623 = vmatpush1.msra.mxu0 0.0
    %5624 = vmatprep.subr.mxu0 0.0
    %5625 = vmatpush1.msra.mxu0 0.0
    %5626 = vmatprep.subr.mxu0 0.0
    %5627 = vmatpush1.msra.mxu0 0.0
    %5628 = vmatprep.subr.mxu0 0.0
    %5629 = vmatpush1.msra.mxu0 0.0
    %5630 = vmatprep.subr.mxu0 0.0
    %5631 = vmatpush1.msra.mxu0 0.0
    %5632 = vmatprep.subr.mxu0 0.0
    %5633 = vmatpush1.msra.mxu0 0.0
    %5634 = vmatprep.subr.mxu0 0.0
    %5635 = vmatpush1.msra.mxu0 0.0
    %5636 = vmatprep.subr.mxu0 0.0
    %5637 = vmatpush1.msra.mxu0 0.0
    %5638 = vmatprep.subr.mxu0 0.0
    %5639 = vmatpush1.msra.mxu0 0.0
    %5640 = vmatprep.subr.mxu0 0.0
    %5641 = vmatpush1.msra.mxu0 0.0
    %5642 = vmatprep.subr.mxu0 0.0
    %5643 = vmatpush1.msra.mxu0 0.0
    %5644 = vmatprep.subr.mxu0 0.0
    %5645 = vmatpush1.msra.mxu0 0.0
    %5646 = vmatprep.subr.mxu0 0.0
    %5647 = vmatpush1.msra.mxu0 0.0
    %5648 = vmatprep.subr.mxu0 0.0
    %5649 = vmatpush1.msra.mxu0 0.0
    %5650 = vmatprep.subr.mxu0 0.0
    %5651 = vmatpush1.msra.mxu0 0.0
    %5652 = vmatprep.subr.mxu0 0.0
    %5653 = vmatpush1.msra.mxu0 0.0
    %5654 = vmatprep.subr.mxu0 0.0
    %5655 = vmatpush1.msra.mxu0 0.0
    %5656 = vmatprep.subr.mxu0 0.0
    %5657 = vmatpush1.msra.mxu0 0.0
    %5658 = vmatprep.subr.mxu0 0.0
    %5659 = vmatpush1.msra.mxu0 0.0
    %5660 = vmatprep.subr.mxu0 0.0
    %5661 = vmatpush1.msra.mxu0 0.0
    %5662 = vmatprep.subr.mxu0 0.0
    %5663 = vmatpush1.msra.mxu0 0.0
    %5664 = vmatprep.subr.mxu0 0.0
    %5665 = vmatpush1.msra.mxu0 0.0
    %5666 = vmatprep.subr.mxu0 0.0
    %5667 = vmatpush1.msra.mxu0 0.0
    %5668 = vmatprep.subr.mxu0 0.0
    %5669 = vmatpush1.msra.mxu0 0.0
    %5670 = vmatprep.subr.mxu0 0.0
    %5671 = vmatpush1.msra.mxu0 0.0
    %5672 = vmatprep.subr.mxu0 0.0
    %5673 = vmatpush1.msra.mxu0 0.0
    %5674 = vmatprep.mubr.f32.mxu0 0.0
    %5675 = vmatmul.mubr.f32.gmra.mrb[0].mxu0 %v5602
    %v5676 = vpop.f32.mrb[0].mxu0
    %v5677 = vadd.f32 0.0, %v5676
    %v5678 = vpop.f32.mrb[0].mxu0
    %5679 = vmatprep.mubr.f32.mxu0 0.0
    %5680 = vmatmul.mubr.f32.gmra.mrb[0].mxu0 %v5604
    %v5681 = vpop.f32.mrb[0].mxu0
    %v5682 = vadd.f32 0.0, %v5681
    %v5683 = vpop.f32.mrb[0].mxu0
    %5684 = vmatprep.mubr.f32.mxu0 0.0
    %5685 = vmatmul.mubr.f32.gmra.mrb[0].mxu0 %v5606
    %v5686 = vpop.f32.mrb[0].mxu0
    %v5687 = vadd.f32 0.0, %v5686
    %v5688 = vpop.f32.mrb[0].mxu0
    %5689 = vmatprep.mubr.f32.mxu0 0.0
    %5690 = vmatmul.mubr.f32.gmra.mrb[0].mxu0 %v5608
    %v5691 = vpop.f32.mrb[0].mxu0
    %v5692 = vadd.f32 0.0, %v5691
    %v5693 = vpop.f32.mrb[0].mxu0
    %5694 = vdwg.mxu0
    %v5695 = vadd.f32 %v5553, %v5677
    %v5696 = vadd.f32 %v5558, %v5682
    %v5697 = vadd.f32 %v5563, %v5687
    %v5698 = vadd.f32 %v5568, %v5692
    %v5699 = vld [vmem:[%s3233] ss:$2 sm:$0xf]
    %s5700 = scalar_lea.vmem %s3233, 32 [#allocation3]
    %v5701 = vld [vmem:[%s5700] ss:$2 sm:$0xf]
    %s5702 = scalar_lea.vmem %s3233, 64 [#allocation3]
    %v5703 = vld [vmem:[%s5702] ss:$2 sm:$0xf]
    %s5704 = scalar_lea.vmem %s3233, 96 [#allocation3]
    %v5705 = vld [vmem:[%s5704] ss:$2 sm:$0xf]
    %s5706 = scalar_lea.vmem %s3233, 160 [#allocation3]
    %v5707 = vld [vmem:[%s5706] ss:$2 sm:$0xf]
    %s5708 = scalar_lea.vmem %s3233, 192 [#allocation3]
    %v5709 = vld [vmem:[%s5708] ss:$2 sm:$0xf]
    %s5710 = scalar_lea.vmem %s3233, 224 [#allocation3]
    %v5711 = vld [vmem:[%s5710] ss:$2 sm:$0xf]
    %s5712 = scalar_lea.vmem %s3233, 256 [#allocation3]
    %v5713 = vld [vmem:[%s5712] ss:$2 sm:$0xf]
    %s5714 = scalar_lea.vmem %s7, 48
    %v5715 = vld [vmem:[%s5714] sm:$0xff]
    %v5716 = vld [vmem:[%s5714 + $0x8] sm:$0xff]
    %v5725 = vcombine.low %v5699, %v5701
    %v5726 = vcombine.low %v5703, %v5705
    %v5727 = vcombine.low %v5707, %v5709
    %v5728 = vcombine.low %v5711, %v5713
    %v5729 = vsel %vm150, %v5725, 0
    %v5731 = vsel %vm150, %v5726, 0
    %v5733 = vsel %vm150, %v5727, 0
    %v5735 = vsel %vm150, %v5728, 0
    %5737 = vmatprep.subr.mxu0 0.0
    %5738 = vmatpush1.msra.mxu0 %v5715
    %5739 = vmatprep.subr.mxu0 0.0
    %5740 = vmatpush1.msra.mxu0 %v5716
    %5741 = vmatprep.subr.mxu0 0.0
    %5742 = vmatpush1.msra.mxu0 0.0
    %5743 = vmatprep.subr.mxu0 0.0
    %5744 = vmatpush1.msra.mxu0 0.0
    %5745 = vmatprep.subr.mxu0 0.0
    %5746 = vmatpush1.msra.mxu0 0.0
    %5747 = vmatprep.subr.mxu0 0.0
    %5748 = vmatpush1.msra.mxu0 0.0
    %5749 = vmatprep.subr.mxu0 0.0
    %5750 = vmatpush1.msra.mxu0 0.0
    %5751 = vmatprep.subr.mxu0 0.0
    %5752 = vmatpush1.msra.mxu0 0.0
    %5753 = vmatprep.subr.mxu0 0.0
    %5754 = vmatpush1.msra.mxu0 0.0
    %5755 = vmatprep.subr.mxu0 0.0
    %5756 = vmatpush1.msra.mxu0 0.0
    %5757 = vmatprep.subr.mxu0 0.0
    %5758 = vmatpush1.msra.mxu0 0.0
    %5759 = vmatprep.subr.mxu0 0.0
    %5760 = vmatpush1.msra.mxu0 0.0
    %5761 = vmatprep.subr.mxu0 0.0
    %5762 = vmatpush1.msra.mxu0 0.0
    %5763 = vmatprep.subr.mxu0 0.0
    %5764 = vmatpush1.msra.mxu0 0.0
    %5765 = vmatprep.subr.mxu0 0.0
    %5766 = vmatpush1.msra.mxu0 0.0
    %5767 = vmatprep.subr.mxu0 0.0
    %5768 = vmatpush1.msra.mxu0 0.0
    %5769 = vmatprep.subr.mxu0 0.0
    %5770 = vmatpush1.msra.mxu0 0.0
    %5771 = vmatprep.subr.mxu0 0.0
    %5772 = vmatpush1.msra.mxu0 0.0
    %5773 = vmatprep.subr.mxu0 0.0
    %5774 = vmatpush1.msra.mxu0 0.0
    %5775 = vmatprep.subr.mxu0 0.0
    %5776 = vmatpush1.msra.mxu0 0.0
    %5777 = vmatprep.subr.mxu0 0.0
    %5778 = vmatpush1.msra.mxu0 0.0
    %5779 = vmatprep.subr.mxu0 0.0
    %5780 = vmatpush1.msra.mxu0 0.0
    %5781 = vmatprep.subr.mxu0 0.0
    %5782 = vmatpush1.msra.mxu0 0.0
    %5783 = vmatprep.subr.mxu0 0.0
    %5784 = vmatpush1.msra.mxu0 0.0
    %5785 = vmatprep.subr.mxu0 0.0
    %5786 = vmatpush1.msra.mxu0 0.0
    %5787 = vmatprep.subr.mxu0 0.0
    %5788 = vmatpush1.msra.mxu0 0.0
    %5789 = vmatprep.subr.mxu0 0.0
    %5790 = vmatpush1.msra.mxu0 0.0
    %5791 = vmatprep.subr.mxu0 0.0
    %5792 = vmatpush1.msra.mxu0 0.0
    %5793 = vmatprep.subr.mxu0 0.0
    %5794 = vmatpush1.msra.mxu0 0.0
    %5795 = vmatprep.subr.mxu0 0.0
    %5796 = vmatpush1.msra.mxu0 0.0
    %5797 = vmatprep.subr.mxu0 0.0
    %5798 = vmatpush1.msra.mxu0 0.0
    %5799 = vmatprep.subr.mxu0 0.0
    %5800 = vmatpush1.msra.mxu0 0.0
    %5801 = vmatprep.mubr.f32.mxu0 0.0
    %5802 = vmatmul.mubr.f32.gmra.mrb[0].mxu0 %v5729
    %v5803 = vpop.f32.mrb[0].mxu0
    %v5804 = vadd.f32 0.0, %v5803
    %v5805 = vpop.f32.mrb[0].mxu0
    %5806 = vmatprep.mubr.f32.mxu0 0.0
    %5807 = vmatmul.mubr.f32.gmra.mrb[0].mxu0 %v5731
    %v5808 = vpop.f32.mrb[0].mxu0
    %v5809 = vadd.f32 0.0, %v5808
    %v5810 = vpop.f32.mrb[0].mxu0
    %5811 = vmatprep.mubr.f32.mxu0 0.0
    %5812 = vmatmul.mubr.f32.gmra.mrb[0].mxu0 %v5733
    %v5813 = vpop.f32.mrb[0].mxu0
    %v5814 = vadd.f32 0.0, %v5813
    %v5815 = vpop.f32.mrb[0].mxu0
    %5816 = vmatprep.mubr.f32.mxu0 0.0
    %5817 = vmatmul.mubr.f32.gmra.mrb[0].mxu0 %v5735
    %v5818 = vpop.f32.mrb[0].mxu0
    %v5819 = vadd.f32 0.0, %v5818
    %v5820 = vpop.f32.mrb[0].mxu0
    %5821 = vdwg.mxu0
    %v5822 = vadd.f32 %v5695, %v5804
    %v5823 = vadd.f32 %v5696, %v5809
    %v5824 = vadd.f32 %v5697, %v5814
    %v5825 = vadd.f32 %v5698, %v5819
    %s5826 = scalar_lea.vmem %s3233, 1 [#allocation3]
    %v5827 = vld [vmem:[%s5826] ss:$2 sm:$0xf]
    %s5828 = scalar_lea.vmem %s3233, 33 [#allocation3]
    %v5829 = vld [vmem:[%s5828] ss:$2 sm:$0xf]
    %s5830 = scalar_lea.vmem %s3233, 65 [#allocation3]
    %v5831 = vld [vmem:[%s5830] ss:$2 sm:$0xf]
    %s5832 = scalar_lea.vmem %s3233, 97 [#allocation3]
    %v5833 = vld [vmem:[%s5832] ss:$2 sm:$0xf]
    %s5834 = scalar_lea.vmem %s3233, 161 [#allocation3]
    %v5835 = vld [vmem:[%s5834] ss:$2 sm:$0xf]
    %s5836 = scalar_lea.vmem %s3233, 193 [#allocation3]
    %v5837 = vld [vmem:[%s5836] ss:$2 sm:$0xf]
    %s5838 = scalar_lea.vmem %s3233, 225 [#allocation3]
    %v5839 = vld [vmem:[%s5838] ss:$2 sm:$0xf]
    %s5840 = scalar_lea.vmem %s3233, 257 [#allocation3]
    %v5841 = vld [vmem:[%s5840] ss:$2 sm:$0xf]
    %s5842 = scalar_lea.vmem %s7, 64
    %v5843 = vld [vmem:[%s5842] sm:$0xff]
    %v5844 = vld [vmem:[%s5842 + $0x8] sm:$0xff]
    %v5853 = vcombine.low %v5827, %v5829
    %v5854 = vcombine.low %v5831, %v5833
    %v5855 = vcombine.low %v5835, %v5837
    %v5856 = vcombine.low %v5839, %v5841
    %v5857 = vsel %vm150, %v5853, 0
    %v5859 = vsel %vm150, %v5854, 0
    %v5861 = vsel %vm150, %v5855, 0
    %v5863 = vsel %vm150, %v5856, 0
    %5865 = vmatprep.subr.mxu0 0.0
    %5866 = vmatpush1.msra.mxu0 %v5843
    %5867 = vmatprep.subr.mxu0 0.0
    %5868 = vmatpush1.msra.mxu0 %v5844
    %5869 = vmatprep.subr.mxu0 0.0
    %5870 = vmatpush1.msra.mxu0 0.0
    %5871 = vmatprep.subr.mxu0 0.0
    %5872 = vmatpush1.msra.mxu0 0.0
    %5873 = vmatprep.subr.mxu0 0.0
    %5874 = vmatpush1.msra.mxu0 0.0
    %5875 = vmatprep.subr.mxu0 0.0
    %5876 = vmatpush1.msra.mxu0 0.0
    %5877 = vmatprep.subr.mxu0 0.0
    %5878 = vmatpush1.msra.mxu0 0.0
    %5879 = vmatprep.subr.mxu0 0.0
    %5880 = vmatpush1.msra.mxu0 0.0
    %5881 = vmatprep.subr.mxu0 0.0
    %5882 = vmatpush1.msra.mxu0 0.0
    %5883 = vmatprep.subr.mxu0 0.0
    %5884 = vmatpush1.msra.mxu0 0.0
    %5885 = vmatprep.subr.mxu0 0.0
    %5886 = vmatpush1.msra.mxu0 0.0
    %5887 = vmatprep.subr.mxu0 0.0
    %5888 = vmatpush1.msra.mxu0 0.0
    %5889 = vmatprep.subr.mxu0 0.0
    %5890 = vmatpush1.msra.mxu0 0.0
    %5891 = vmatprep.subr.mxu0 0.0
    %5892 = vmatpush1.msra.mxu0 0.0
    %5893 = vmatprep.subr.mxu0 0.0
    %5894 = vmatpush1.msra.mxu0 0.0
    %5895 = vmatprep.subr.mxu0 0.0
    %5896 = vmatpush1.msra.mxu0 0.0
    %5897 = vmatprep.subr.mxu0 0.0
    %5898 = vmatpush1.msra.mxu0 0.0
    %5899 = vmatprep.subr.mxu0 0.0
    %5900 = vmatpush1.msra.mxu0 0.0
    %5901 = vmatprep.subr.mxu0 0.0
    %5902 = vmatpush1.msra.mxu0 0.0
    %5903 = vmatprep.subr.mxu0 0.0
    %5904 = vmatpush1.msra.mxu0 0.0
    %5905 = vmatprep.subr.mxu0 0.0
    %5906 = vmatpush1.msra.mxu0 0.0
    %5907 = vmatprep.subr.mxu0 0.0
    %5908 = vmatpush1.msra.mxu0 0.0
    %5909 = vmatprep.subr.mxu0 0.0
    %5910 = vmatpush1.msra.mxu0 0.0
    %5911 = vmatprep.subr.mxu0 0.0
    %5912 = vmatpush1.msra.mxu0 0.0
    %5913 = vmatprep.subr.mxu0 0.0
    %5914 = vmatpush1.msra.mxu0 0.0
    %5915 = vmatprep.subr.mxu0 0.0
    %5916 = vmatpush1.msra.mxu0 0.0
    %5917 = vmatprep.subr.mxu0 0.0
    %5918 = vmatpush1.msra.mxu0 0.0
    %5919 = vmatprep.subr.mxu0 0.0
    %5920 = vmatpush1.msra.mxu0 0.0
    %5921 = vmatprep.subr.mxu0 0.0
    %5922 = vmatpush1.msra.mxu0 0.0
    %5923 = vmatprep.subr.mxu0 0.0
    %5924 = vmatpush1.msra.mxu0 0.0
    %5925 = vmatprep.subr.mxu0 0.0
    %5926 = vmatpush1.msra.mxu0 0.0
    %5927 = vmatprep.subr.mxu0 0.0
    %5928 = vmatpush1.msra.mxu0 0.0
    %5929 = vmatprep.mubr.f32.mxu0 0.0
    %5930 = vmatmul.mubr.f32.gmra.mrb[0].mxu0 %v5857
    %v5931 = vpop.f32.mrb[0].mxu0
    %v5932 = vadd.f32 0.0, %v5931
    %v5933 = vpop.f32.mrb[0].mxu0
    %5934 = vmatprep.mubr.f32.mxu0 0.0
    %5935 = vmatmul.mubr.f32.gmra.mrb[0].mxu0 %v5859
    %v5936 = vpop.f32.mrb[0].mxu0
    %v5937 = vadd.f32 0.0, %v5936
    %v5938 = vpop.f32.mrb[0].mxu0
    %5939 = vmatprep.mubr.f32.mxu0 0.0
    %5940 = vmatmul.mubr.f32.gmra.mrb[0].mxu0 %v5861
    %v5941 = vpop.f32.mrb[0].mxu0
    %v5942 = vadd.f32 0.0, %v5941
    %v5943 = vpop.f32.mrb[0].mxu0
    %5944 = vmatprep.mubr.f32.mxu0 0.0
    %5945 = vmatmul.mubr.f32.gmra.mrb[0].mxu0 %v5863
    %v5946 = vpop.f32.mrb[0].mxu0
    %v5947 = vadd.f32 0.0, %v5946
    %v5948 = vpop.f32.mrb[0].mxu0
    %5949 = vdwg.mxu0
    %v5950 = vadd.f32 %v5822, %v5932
    %v5951 = vadd.f32 %v5823, %v5937
    %v5952 = vadd.f32 %v5824, %v5942
    %v5953 = vadd.f32 %v5825, %v5947
    %s5954 = scalar_lea.vmem %s3233, 2 [#allocation3]
    %v5955 = vld [vmem:[%s5954] ss:$2 sm:$0xf]
    %s5956 = scalar_lea.vmem %s3233, 34 [#allocation3]
    %v5957 = vld [vmem:[%s5956] ss:$2 sm:$0xf]
    %s5958 = scalar_lea.vmem %s3233, 66 [#allocation3]
    %v5959 = vld [vmem:[%s5958] ss:$2 sm:$0xf]
    %s5960 = scalar_lea.vmem %s3233, 98 [#allocation3]
    %v5961 = vld [vmem:[%s5960] ss:$2 sm:$0xf]
    %s5962 = scalar_lea.vmem %s3233, 162 [#allocation3]
    %v5963 = vld [vmem:[%s5962] ss:$2 sm:$0xf]
    %s5964 = scalar_lea.vmem %s3233, 194 [#allocation3]
    %v5965 = vld [vmem:[%s5964] ss:$2 sm:$0xf]
    %s5966 = scalar_lea.vmem %s3233, 226 [#allocation3]
    %v5967 = vld [vmem:[%s5966] ss:$2 sm:$0xf]
    %s5968 = scalar_lea.vmem %s3233, 258 [#allocation3]
    %v5969 = vld [vmem:[%s5968] ss:$2 sm:$0xf]
    %s5970 = scalar_lea.vmem %s7, 80
    %v5971 = vld [vmem:[%s5970] sm:$0xff]
    %v5972 = vld [vmem:[%s5970 + $0x8] sm:$0xff]
    %v5981 = vcombine.low %v5955, %v5957
    %v5982 = vcombine.low %v5959, %v5961
    %v5983 = vcombine.low %v5963, %v5965
    %v5984 = vcombine.low %v5967, %v5969
    %v5985 = vsel %vm150, %v5981, 0
    %v5987 = vsel %vm150, %v5982, 0
    %v5989 = vsel %vm150, %v5983, 0
    %v5991 = vsel %vm150, %v5984, 0
    %5993 = vmatprep.subr.mxu0 0.0
    %5994 = vmatpush1.msra.mxu0 %v5971
    %5995 = vmatprep.subr.mxu0 0.0
    %5996 = vmatpush1.msra.mxu0 %v5972
    %5997 = vmatprep.subr.mxu0 0.0
    %5998 = vmatpush1.msra.mxu0 0.0
    %5999 = vmatprep.subr.mxu0 0.0
    %6000 = vmatpush1.msra.mxu0 0.0
    %6001 = vmatprep.subr.mxu0 0.0
    %6002 = vmatpush1.msra.mxu0 0.0
    %6003 = vmatprep.subr.mxu0 0.0
    %6004 = vmatpush1.msra.mxu0 0.0
    %6005 = vmatprep.subr.mxu0 0.0
    %6006 = vmatpush1.msra.mxu0 0.0
    %6007 = vmatprep.subr.mxu0 0.0
    %6008 = vmatpush1.msra.mxu0 0.0
    %6009 = vmatprep.subr.mxu0 0.0
    %6010 = vmatpush1.msra.mxu0 0.0
    %6011 = vmatprep.subr.mxu0 0.0
    %6012 = vmatpush1.msra.mxu0 0.0
    %6013 = vmatprep.subr.mxu0 0.0
    %6014 = vmatpush1.msra.mxu0 0.0
    %6015 = vmatprep.subr.mxu0 0.0
    %6016 = vmatpush1.msra.mxu0 0.0
    %6017 = vmatprep.subr.mxu0 0.0
    %6018 = vmatpush1.msra.mxu0 0.0
    %6019 = vmatprep.subr.mxu0 0.0
    %6020 = vmatpush1.msra.mxu0 0.0
    %6021 = vmatprep.subr.mxu0 0.0
    %6022 = vmatpush1.msra.mxu0 0.0
    %6023 = vmatprep.subr.mxu0 0.0
    %6024 = vmatpush1.msra.mxu0 0.0
    %6025 = vmatprep.subr.mxu0 0.0
    %6026 = vmatpush1.msra.mxu0 0.0
    %6027 = vmatprep.subr.mxu0 0.0
    %6028 = vmatpush1.msra.mxu0 0.0
    %6029 = vmatprep.subr.mxu0 0.0
    %6030 = vmatpush1.msra.mxu0 0.0
    %6031 = vmatprep.subr.mxu0 0.0
    %6032 = vmatpush1.msra.mxu0 0.0
    %6033 = vmatprep.subr.mxu0 0.0
    %6034 = vmatpush1.msra.mxu0 0.0
    %6035 = vmatprep.subr.mxu0 0.0
    %6036 = vmatpush1.msra.mxu0 0.0
    %6037 = vmatprep.subr.mxu0 0.0
    %6038 = vmatpush1.msra.mxu0 0.0
    %6039 = vmatprep.subr.mxu0 0.0
    %6040 = vmatpush1.msra.mxu0 0.0
    %6041 = vmatprep.subr.mxu0 0.0
    %6042 = vmatpush1.msra.mxu0 0.0
    %6043 = vmatprep.subr.mxu0 0.0
    %6044 = vmatpush1.msra.mxu0 0.0
    %6045 = vmatprep.subr.mxu0 0.0
    %6046 = vmatpush1.msra.mxu0 0.0
    %6047 = vmatprep.subr.mxu0 0.0
    %6048 = vmatpush1.msra.mxu0 0.0
    %6049 = vmatprep.subr.mxu0 0.0
    %6050 = vmatpush1.msra.mxu0 0.0
    %6051 = vmatprep.subr.mxu0 0.0
    %6052 = vmatpush1.msra.mxu0 0.0
    %6053 = vmatprep.subr.mxu0 0.0
    %6054 = vmatpush1.msra.mxu0 0.0
    %6055 = vmatprep.subr.mxu0 0.0
    %6056 = vmatpush1.msra.mxu0 0.0
    %6057 = vmatprep.mubr.f32.mxu0 0.0
    %6058 = vmatmul.mubr.f32.gmra.mrb[0].mxu0 %v5985
    %v6059 = vpop.f32.mrb[0].mxu0
    %v6060 = vadd.f32 0.0, %v6059
    %v6061 = vpop.f32.mrb[0].mxu0
    %6062 = vmatprep.mubr.f32.mxu0 0.0
    %6063 = vmatmul.mubr.f32.gmra.mrb[0].mxu0 %v5987
    %v6064 = vpop.f32.mrb[0].mxu0
    %v6065 = vadd.f32 0.0, %v6064
    %v6066 = vpop.f32.mrb[0].mxu0
    %6067 = vmatprep.mubr.f32.mxu0 0.0
    %6068 = vmatmul.mubr.f32.gmra.mrb[0].mxu0 %v5989
    %v6069 = vpop.f32.mrb[0].mxu0
    %v6070 = vadd.f32 0.0, %v6069
    %v6071 = vpop.f32.mrb[0].mxu0
    %6072 = vmatprep.mubr.f32.mxu0 0.0
    %6073 = vmatmul.mubr.f32.gmra.mrb[0].mxu0 %v5991
    %v6074 = vpop.f32.mrb[0].mxu0
    %v6075 = vadd.f32 0.0, %v6074
    %v6076 = vpop.f32.mrb[0].mxu0
    %6077 = vdwg.mxu0
    %v6078 = vadd.f32 %v5950, %v6060
    %v6079 = vadd.f32 %v5951, %v6065
    %v6080 = vadd.f32 %v5952, %v6070
    %v6081 = vadd.f32 %v5953, %v6075
    %v6082 = vld [vmem:[%s4585] ss:$2 sm:$0xf]
    %s6083 = scalar_lea.vmem %s4585, 32 [#allocation3]
    %v6084 = vld [vmem:[%s6083] ss:$2 sm:$0xf]
    %s6085 = scalar_lea.vmem %s4585, 64 [#allocation3]
    %v6086 = vld [vmem:[%s6085] ss:$2 sm:$0xf]
    %s6087 = scalar_lea.vmem %s4585, 96 [#allocation3]
    %v6088 = vld [vmem:[%s6087] ss:$2 sm:$0xf]
    %s6089 = scalar_lea.vmem %s4585, 160 [#allocation3]
    %v6090 = vld [vmem:[%s6089] ss:$2 sm:$0xf]
    %s6091 = scalar_lea.vmem %s4585, 192 [#allocation3]
    %v6092 = vld [vmem:[%s6091] ss:$2 sm:$0xf]
    %s6093 = scalar_lea.vmem %s4585, 224 [#allocation3]
    %v6094 = vld [vmem:[%s6093] ss:$2 sm:$0xf]
    %s6095 = scalar_lea.vmem %s4585, 256 [#allocation3]
    %v6096 = vld [vmem:[%s6095] ss:$2 sm:$0xf]
    %s6097 = scalar_lea.vmem %s7, 96
    %v6098 = vld [vmem:[%s6097] sm:$0xff]
    %v6099 = vld [vmem:[%s6097 + $0x8] sm:$0xff]
    %v6108 = vcombine.low %v6082, %v6084
    %v6109 = vcombine.low %v6086, %v6088
    %v6110 = vcombine.low %v6090, %v6092
    %v6111 = vcombine.low %v6094, %v6096
    %v6112 = vsel %vm150, %v6108, 0
    %v6114 = vsel %vm150, %v6109, 0
    %v6116 = vsel %vm150, %v6110, 0
    %v6118 = vsel %vm150, %v6111, 0
    %6120 = vmatprep.subr.mxu0 0.0
    %6121 = vmatpush1.msra.mxu0 %v6098
    %6122 = vmatprep.subr.mxu0 0.0
    %6123 = vmatpush1.msra.mxu0 %v6099
    %6124 = vmatprep.subr.mxu0 0.0
    %6125 = vmatpush1.msra.mxu0 0.0
    %6126 = vmatprep.subr.mxu0 0.0
    %6127 = vmatpush1.msra.mxu0 0.0
    %6128 = vmatprep.subr.mxu0 0.0
    %6129 = vmatpush1.msra.mxu0 0.0
    %6130 = vmatprep.subr.mxu0 0.0
    %6131 = vmatpush1.msra.mxu0 0.0
    %6132 = vmatprep.subr.mxu0 0.0
    %6133 = vmatpush1.msra.mxu0 0.0
    %6134 = vmatprep.subr.mxu0 0.0
    %6135 = vmatpush1.msra.mxu0 0.0
    %6136 = vmatprep.subr.mxu0 0.0
    %6137 = vmatpush1.msra.mxu0 0.0
    %6138 = vmatprep.subr.mxu0 0.0
    %6139 = vmatpush1.msra.mxu0 0.0
    %6140 = vmatprep.subr.mxu0 0.0
    %6141 = vmatpush1.msra.mxu0 0.0
    %6142 = vmatprep.subr.mxu0 0.0
    %6143 = vmatpush1.msra.mxu0 0.0
    %6144 = vmatprep.subr.mxu0 0.0
    %6145 = vmatpush1.msra.mxu0 0.0
    %6146 = vmatprep.subr.mxu0 0.0
    %6147 = vmatpush1.msra.mxu0 0.0
    %6148 = vmatprep.subr.mxu0 0.0
    %6149 = vmatpush1.msra.mxu0 0.0
    %6150 = vmatprep.subr.mxu0 0.0
    %6151 = vmatpush1.msra.mxu0 0.0
    %6152 = vmatprep.subr.mxu0 0.0
    %6153 = vmatpush1.msra.mxu0 0.0
    %6154 = vmatprep.subr.mxu0 0.0
    %6155 = vmatpush1.msra.mxu0 0.0
    %6156 = vmatprep.subr.mxu0 0.0
    %6157 = vmatpush1.msra.mxu0 0.0
    %6158 = vmatprep.subr.mxu0 0.0
    %6159 = vmatpush1.msra.mxu0 0.0
    %6160 = vmatprep.subr.mxu0 0.0
    %6161 = vmatpush1.msra.mxu0 0.0
    %6162 = vmatprep.subr.mxu0 0.0
    %6163 = vmatpush1.msra.mxu0 0.0
    %6164 = vmatprep.subr.mxu0 0.0
    %6165 = vmatpush1.msra.mxu0 0.0
    %6166 = vmatprep.subr.mxu0 0.0
    %6167 = vmatpush1.msra.mxu0 0.0
    %6168 = vmatprep.subr.mxu0 0.0
    %6169 = vmatpush1.msra.mxu0 0.0
    %6170 = vmatprep.subr.mxu0 0.0
    %6171 = vmatpush1.msra.mxu0 0.0
    %6172 = vmatprep.subr.mxu0 0.0
    %6173 = vmatpush1.msra.mxu0 0.0
    %6174 = vmatprep.subr.mxu0 0.0
    %6175 = vmatpush1.msra.mxu0 0.0
    %6176 = vmatprep.subr.mxu0 0.0
    %6177 = vmatpush1.msra.mxu0 0.0
    %6178 = vmatprep.subr.mxu0 0.0
    %6179 = vmatpush1.msra.mxu0 0.0
    %6180 = vmatprep.subr.mxu0 0.0
    %6181 = vmatpush1.msra.mxu0 0.0
    %6182 = vmatprep.subr.mxu0 0.0
    %6183 = vmatpush1.msra.mxu0 0.0
    %6184 = vmatprep.mubr.f32.mxu0 0.0
    %6185 = vmatmul.mubr.f32.gmra.mrb[0].mxu0 %v6112
    %v6186 = vpop.f32.mrb[0].mxu0
    %v6187 = vadd.f32 0.0, %v6186
    %v6188 = vpop.f32.mrb[0].mxu0
    %6189 = vmatprep.mubr.f32.mxu0 0.0
    %6190 = vmatmul.mubr.f32.gmra.mrb[0].mxu0 %v6114
    %v6191 = vpop.f32.mrb[0].mxu0
    %v6192 = vadd.f32 0.0, %v6191
    %v6193 = vpop.f32.mrb[0].mxu0
    %6194 = vmatprep.mubr.f32.mxu0 0.0
    %6195 = vmatmul.mubr.f32.gmra.mrb[0].mxu0 %v6116
    %v6196 = vpop.f32.mrb[0].mxu0
    %v6197 = vadd.f32 0.0, %v6196
    %v6198 = vpop.f32.mrb[0].mxu0
    %6199 = vmatprep.mubr.f32.mxu0 0.0
    %6200 = vmatmul.mubr.f32.gmra.mrb[0].mxu0 %v6118
    %v6201 = vpop.f32.mrb[0].mxu0
    %v6202 = vadd.f32 0.0, %v6201
    %v6203 = vpop.f32.mrb[0].mxu0
    %6204 = vdwg.mxu0
    %v6205 = vadd.f32 %v6078, %v6187
    %v6206 = vadd.f32 %v6079, %v6192
    %v6207 = vadd.f32 %v6080, %v6197
    %v6208 = vadd.f32 %v6081, %v6202
    %s6209 = scalar_lea.vmem %s4585, 1 [#allocation3]
    %v6210 = vld [vmem:[%s6209] ss:$2 sm:$0xf]
    %s6211 = scalar_lea.vmem %s4585, 33 [#allocation3]
    %v6212 = vld [vmem:[%s6211] ss:$2 sm:$0xf]
    %s6213 = scalar_lea.vmem %s4585, 65 [#allocation3]
    %v6214 = vld [vmem:[%s6213] ss:$2 sm:$0xf]
    %s6215 = scalar_lea.vmem %s4585, 97 [#allocation3]
    %v6216 = vld [vmem:[%s6215] ss:$2 sm:$0xf]
    %s6217 = scalar_lea.vmem %s4585, 161 [#allocation3]
    %v6218 = vld [vmem:[%s6217] ss:$2 sm:$0xf]
    %s6219 = scalar_lea.vmem %s4585, 193 [#allocation3]
    %v6220 = vld [vmem:[%s6219] ss:$2 sm:$0xf]
    %s6221 = scalar_lea.vmem %s4585, 225 [#allocation3]
    %v6222 = vld [vmem:[%s6221] ss:$2 sm:$0xf]
    %s6223 = scalar_lea.vmem %s4585, 257 [#allocation3]
    %v6224 = vld [vmem:[%s6223] ss:$2 sm:$0xf]
    %s6225 = scalar_lea.vmem %s7, 112
    %v6226 = vld [vmem:[%s6225] sm:$0xff]
    %v6227 = vld [vmem:[%s6225 + $0x8] sm:$0xff]
    %v6236 = vcombine.low %v6210, %v6212
    %v6237 = vcombine.low %v6214, %v6216
    %v6238 = vcombine.low %v6218, %v6220
    %v6239 = vcombine.low %v6222, %v6224
    %v6240 = vsel %vm150, %v6236, 0
    %v6242 = vsel %vm150, %v6237, 0
    %v6244 = vsel %vm150, %v6238, 0
    %v6246 = vsel %vm150, %v6239, 0
    %6248 = vmatprep.subr.mxu0 0.0
    %6249 = vmatpush1.msra.mxu0 %v6226
    %6250 = vmatprep.subr.mxu0 0.0
    %6251 = vmatpush1.msra.mxu0 %v6227
    %6252 = vmatprep.subr.mxu0 0.0
    %6253 = vmatpush1.msra.mxu0 0.0
    %6254 = vmatprep.subr.mxu0 0.0
    %6255 = vmatpush1.msra.mxu0 0.0
    %6256 = vmatprep.subr.mxu0 0.0
    %6257 = vmatpush1.msra.mxu0 0.0
    %6258 = vmatprep.subr.mxu0 0.0
    %6259 = vmatpush1.msra.mxu0 0.0
    %6260 = vmatprep.subr.mxu0 0.0
    %6261 = vmatpush1.msra.mxu0 0.0
    %6262 = vmatprep.subr.mxu0 0.0
    %6263 = vmatpush1.msra.mxu0 0.0
    %6264 = vmatprep.subr.mxu0 0.0
    %6265 = vmatpush1.msra.mxu0 0.0
    %6266 = vmatprep.subr.mxu0 0.0
    %6267 = vmatpush1.msra.mxu0 0.0
    %6268 = vmatprep.subr.mxu0 0.0
    %6269 = vmatpush1.msra.mxu0 0.0
    %6270 = vmatprep.subr.mxu0 0.0
    %6271 = vmatpush1.msra.mxu0 0.0
    %6272 = vmatprep.subr.mxu0 0.0
    %6273 = vmatpush1.msra.mxu0 0.0
    %6274 = vmatprep.subr.mxu0 0.0
    %6275 = vmatpush1.msra.mxu0 0.0
    %6276 = vmatprep.subr.mxu0 0.0
    %6277 = vmatpush1.msra.mxu0 0.0
    %6278 = vmatprep.subr.mxu0 0.0
    %6279 = vmatpush1.msra.mxu0 0.0
    %6280 = vmatprep.subr.mxu0 0.0
    %6281 = vmatpush1.msra.mxu0 0.0
    %6282 = vmatprep.subr.mxu0 0.0
    %6283 = vmatpush1.msra.mxu0 0.0
    %6284 = vmatprep.subr.mxu0 0.0
    %6285 = vmatpush1.msra.mxu0 0.0
    %6286 = vmatprep.subr.mxu0 0.0
    %6287 = vmatpush1.msra.mxu0 0.0
    %6288 = vmatprep.subr.mxu0 0.0
    %6289 = vmatpush1.msra.mxu0 0.0
    %6290 = vmatprep.subr.mxu0 0.0
    %6291 = vmatpush1.msra.mxu0 0.0
    %6292 = vmatprep.subr.mxu0 0.0
    %6293 = vmatpush1.msra.mxu0 0.0
    %6294 = vmatprep.subr.mxu0 0.0
    %6295 = vmatpush1.msra.mxu0 0.0
    %6296 = vmatprep.subr.mxu0 0.0
    %6297 = vmatpush1.msra.mxu0 0.0
    %6298 = vmatprep.subr.mxu0 0.0
    %6299 = vmatpush1.msra.mxu0 0.0
    %6300 = vmatprep.subr.mxu0 0.0
    %6301 = vmatpush1.msra.mxu0 0.0
    %6302 = vmatprep.subr.mxu0 0.0
    %6303 = vmatpush1.msra.mxu0 0.0
    %6304 = vmatprep.subr.mxu0 0.0
    %6305 = vmatpush1.msra.mxu0 0.0
    %6306 = vmatprep.subr.mxu0 0.0
    %6307 = vmatpush1.msra.mxu0 0.0
    %6308 = vmatprep.subr.mxu0 0.0
    %6309 = vmatpush1.msra.mxu0 0.0
    %6310 = vmatprep.subr.mxu0 0.0
    %6311 = vmatpush1.msra.mxu0 0.0
    %6312 = vmatprep.mubr.f32.mxu0 0.0
    %6313 = vmatmul.mubr.f32.gmra.mrb[0].mxu0 %v6240
    %v6314 = vpop.f32.mrb[0].mxu0
    %v6315 = vadd.f32 0.0, %v6314
    %v6316 = vpop.f32.mrb[0].mxu0
    %6317 = vmatprep.mubr.f32.mxu0 0.0
    %6318 = vmatmul.mubr.f32.gmra.mrb[0].mxu0 %v6242
    %v6319 = vpop.f32.mrb[0].mxu0
    %v6320 = vadd.f32 0.0, %v6319
    %v6321 = vpop.f32.mrb[0].mxu0
    %6322 = vmatprep.mubr.f32.mxu0 0.0
    %6323 = vmatmul.mubr.f32.gmra.mrb[0].mxu0 %v6244
    %v6324 = vpop.f32.mrb[0].mxu0
    %v6325 = vadd.f32 0.0, %v6324
    %v6326 = vpop.f32.mrb[0].mxu0
    %6327 = vmatprep.mubr.f32.mxu0 0.0
    %6328 = vmatmul.mubr.f32.gmra.mrb[0].mxu0 %v6246
    %v6329 = vpop.f32.mrb[0].mxu0
    %v6330 = vadd.f32 0.0, %v6329
    %v6331 = vpop.f32.mrb[0].mxu0
    %6332 = vdwg.mxu0
    %v6333 = vadd.f32 %v6205, %v6315
    %v6334 = vadd.f32 %v6206, %v6320
    %v6335 = vadd.f32 %v6207, %v6325
    %v6336 = vadd.f32 %v6208, %v6330
    %s6337 = scalar_lea.vmem %s4585, 2 [#allocation3]
    %v6338 = vld [vmem:[%s6337] ss:$2 sm:$0xf]
    %s6339 = scalar_lea.vmem %s4585, 34 [#allocation3]
    %v6340 = vld [vmem:[%s6339] ss:$2 sm:$0xf]
    %s6341 = scalar_lea.vmem %s4585, 66 [#allocation3]
    %v6342 = vld [vmem:[%s6341] ss:$2 sm:$0xf]
    %s6343 = scalar_lea.vmem %s4585, 98 [#allocation3]
    %v6344 = vld [vmem:[%s6343] ss:$2 sm:$0xf]
    %s6345 = scalar_lea.vmem %s4585, 162 [#allocation3]
    %v6346 = vld [vmem:[%s6345] ss:$2 sm:$0xf]
    %s6347 = scalar_lea.vmem %s4585, 194 [#allocation3]
    %v6348 = vld [vmem:[%s6347] ss:$2 sm:$0xf]
    %s6349 = scalar_lea.vmem %s4585, 226 [#allocation3]
    %v6350 = vld [vmem:[%s6349] ss:$2 sm:$0xf]
    %s6351 = scalar_lea.vmem %s4585, 258 [#allocation3]
    %v6352 = vld [vmem:[%s6351] ss:$2 sm:$0xf]
    %s6353 = scalar_lea.vmem %s7, 128
    %v6354 = vld [vmem:[%s6353] sm:$0xff]
    %v6355 = vld [vmem:[%s6353 + $0x8] sm:$0xff]
    %v6364 = vcombine.low %v6338, %v6340
    %v6365 = vcombine.low %v6342, %v6344
    %v6366 = vcombine.low %v6346, %v6348
    %v6367 = vcombine.low %v6350, %v6352
    %v6368 = vsel %vm150, %v6364, 0
    %v6370 = vsel %vm150, %v6365, 0
    %v6372 = vsel %vm150, %v6366, 0
    %v6374 = vsel %vm150, %v6367, 0
    %6376 = vmatprep.subr.mxu0 0.0
    %6377 = vmatpush1.msra.mxu0 %v6354
    %6378 = vmatprep.subr.mxu0 0.0
    %6379 = vmatpush1.msra.mxu0 %v6355
    %6380 = vmatprep.subr.mxu0 0.0
    %6381 = vmatpush1.msra.mxu0 0.0
    %6382 = vmatprep.subr.mxu0 0.0
    %6383 = vmatpush1.msra.mxu0 0.0
    %6384 = vmatprep.subr.mxu0 0.0
    %6385 = vmatpush1.msra.mxu0 0.0
    %6386 = vmatprep.subr.mxu0 0.0
    %6387 = vmatpush1.msra.mxu0 0.0
    %6388 = vmatprep.subr.mxu0 0.0
    %6389 = vmatpush1.msra.mxu0 0.0
    %6390 = vmatprep.subr.mxu0 0.0
    %6391 = vmatpush1.msra.mxu0 0.0
    %6392 = vmatprep.subr.mxu0 0.0
    %6393 = vmatpush1.msra.mxu0 0.0
    %6394 = vmatprep.subr.mxu0 0.0
    %6395 = vmatpush1.msra.mxu0 0.0
    %6396 = vmatprep.subr.mxu0 0.0
    %6397 = vmatpush1.msra.mxu0 0.0
    %6398 = vmatprep.subr.mxu0 0.0
    %6399 = vmatpush1.msra.mxu0 0.0
    %6400 = vmatprep.subr.mxu0 0.0
    %6401 = vmatpush1.msra.mxu0 0.0
    %6402 = vmatprep.subr.mxu0 0.0
    %6403 = vmatpush1.msra.mxu0 0.0
    %6404 = vmatprep.subr.mxu0 0.0
    %6405 = vmatpush1.msra.mxu0 0.0
    %6406 = vmatprep.subr.mxu0 0.0
    %6407 = vmatpush1.msra.mxu0 0.0
    %6408 = vmatprep.subr.mxu0 0.0
    %6409 = vmatpush1.msra.mxu0 0.0
    %6410 = vmatprep.subr.mxu0 0.0
    %6411 = vmatpush1.msra.mxu0 0.0
    %6412 = vmatprep.subr.mxu0 0.0
    %6413 = vmatpush1.msra.mxu0 0.0
    %6414 = vmatprep.subr.mxu0 0.0
    %6415 = vmatpush1.msra.mxu0 0.0
    %6416 = vmatprep.subr.mxu0 0.0
    %6417 = vmatpush1.msra.mxu0 0.0
    %6418 = vmatprep.subr.mxu0 0.0
    %6419 = vmatpush1.msra.mxu0 0.0
    %6420 = vmatprep.subr.mxu0 0.0
    %6421 = vmatpush1.msra.mxu0 0.0
    %6422 = vmatprep.subr.mxu0 0.0
    %6423 = vmatpush1.msra.mxu0 0.0
    %6424 = vmatprep.subr.mxu0 0.0
    %6425 = vmatpush1.msra.mxu0 0.0
    %6426 = vmatprep.subr.mxu0 0.0
    %6427 = vmatpush1.msra.mxu0 0.0
    %6428 = vmatprep.subr.mxu0 0.0
    %6429 = vmatpush1.msra.mxu0 0.0
    %6430 = vmatprep.subr.mxu0 0.0
    %6431 = vmatpush1.msra.mxu0 0.0
    %6432 = vmatprep.subr.mxu0 0.0
    %6433 = vmatpush1.msra.mxu0 0.0
    %6434 = vmatprep.subr.mxu0 0.0
    %6435 = vmatpush1.msra.mxu0 0.0
    %6436 = vmatprep.subr.mxu0 0.0
    %6437 = vmatpush1.msra.mxu0 0.0
    %6438 = vmatprep.subr.mxu0 0.0
    %6439 = vmatpush1.msra.mxu0 0.0
    %6440 = vmatprep.mubr.f32.mxu0 0.0
    %6441 = vmatmul.mubr.f32.gmra.mrb[0].mxu0 %v6368
    %v6442 = vpop.f32.mrb[0].mxu0
    %v6443 = vadd.f32 0.0, %v6442
    %v6444 = vpop.f32.mrb[0].mxu0
    %6445 = vmatprep.mubr.f32.mxu0 0.0
    %6446 = vmatmul.mubr.f32.gmra.mrb[0].mxu0 %v6370
    %v6447 = vpop.f32.mrb[0].mxu0
    %v6448 = vadd.f32 0.0, %v6447
    %v6449 = vpop.f32.mrb[0].mxu0
    %6450 = vmatprep.mubr.f32.mxu0 0.0
    %6451 = vmatmul.mubr.f32.gmra.mrb[0].mxu0 %v6372
    %v6452 = vpop.f32.mrb[0].mxu0
    %v6453 = vadd.f32 0.0, %v6452
    %v6454 = vpop.f32.mrb[0].mxu0
    %6455 = vmatprep.mubr.f32.mxu0 0.0
    %6456 = vmatmul.mubr.f32.gmra.mrb[0].mxu0 %v6374
    %v6457 = vpop.f32.mrb[0].mxu0
    %v6458 = vadd.f32 0.0, %v6457
    %v6459 = vpop.f32.mrb[0].mxu0
    %6460 = vdwg.mxu0
    %v6461 = vadd.f32 %v6333, %v6443
    %v6462 = vadd.f32 %v6334, %v6448
    %v6463 = vadd.f32 %v6335, %v6453
    %v6464 = vadd.f32 %v6336, %v6458
    %v6465 = vld [vmem:[%s8] sm:$0x1]
    %v6467 = vlaneseq
    %v6468 = vshrl.u32 %v6467, 7
    %v6469 = vsub.s32 0, %v6468
    %v6470 = vrot.slane %v6465, %v6469
    %v6472 = vadd.f32 %v6461, %v6470
    %v6473 = vadd.f32 %v6462, %v6470
    %v6474 = vadd.f32 %v6463, %v6470
    %v6475 = vadd.f32 %v6464, %v6470
    %v6476 = vmax.f32 %v6472, 0.0
    %v6477 = vmax.f32 %v6473, 0.0
    %v6478 = vmax.f32 %v6474, 0.0
    %v6479 = vmax.f32 %v6475, 0.0
    %v6484 = vcombine.high %v6476, %v6476
    %v6485 = vcombine.high %v6477, %v6477
    %v6486 = vcombine.high %v6478, %v6478
    %v6487 = vcombine.high %v6479, %v6479
    %s6492 = scalar_lea.vmem [#allocation4], 8
    %vm6493 = vcmask 257024
    %6494 = vst.msk [vmem:[%s6492 + $0x1] sm:$0xf] %vm6493, %v6476
    %6495 = vst.msk [vmem:[%s6492 + $0x9] sm:$0xf] %vm6493, %v6484
    %6496 = vst.msk [vmem:[%s6492 + $0x11] sm:$0xf] %vm6493, %v6477
    %6497 = vst.msk [vmem:[%s6492 + $0x19] sm:$0xf] %vm6493, %v6485
    %6498 = vst.msk [vmem:[%s6492 + $0x31] sm:$0xf] %vm6493, %v6478
    %6499 = vst.msk [vmem:[%s6492 + $0x39] sm:$0xf] %vm6493, %v6486
    %6500 = vst.msk [vmem:[%s6492 + $0x41] sm:$0xf] %vm6493, %v6479
    %6501 = vst.msk [vmem:[%s6492 + $0x49] sm:$0xf] %vm6493, %v6487
    %v6502 = vld [vmem:[#allocation4] sm:$0xf]
    %v6503 = vld [vmem:[#allocation4 + $0x8] sm:$0xf]
    %v6504 = vld [vmem:[#allocation4 + $0x10] sm:$0xf]
    %v6505 = vld [vmem:[#allocation4 + $0x18] sm:$0xf]
    %v6506 = vld [vmem:[#allocation4 + $0x30] sm:$0xf]
    %v6507 = vld [vmem:[#allocation4 + $0x38] sm:$0xf]
    %v6508 = vld [vmem:[#allocation4 + $0x40] sm:$0xf]
    %v6509 = vld [vmem:[#allocation4 + $0x48] sm:$0xf]
    %v6510 = vld [vmem:[%s9] sm:$0xff]
    %v6511 = vld [vmem:[%s9 + $0x8] sm:$0xff]
    %v6512 = vld [vmem:[%s9 + $0x10] sm:$0xff]
    %v6513 = vld [vmem:[%s9 + $0x18] sm:$0xff]
    %v6514 = vld [vmem:[#allocation4 + $0x1] sm:$0xf]
    %v6515 = vld [vmem:[#allocation4 + $0x9] sm:$0xf]
    %v6516 = vld [vmem:[#allocation4 + $0x11] sm:$0xf]
    %v6517 = vld [vmem:[#allocation4 + $0x19] sm:$0xf]
    %v6518 = vld [vmem:[#allocation4 + $0x31] sm:$0xf]
    %v6519 = vld [vmem:[#allocation4 + $0x39] sm:$0xf]
    %v6520 = vld [vmem:[#allocation4 + $0x41] sm:$0xf]
    %v6521 = vld [vmem:[#allocation4 + $0x49] sm:$0xf]
    %s6522 = scalar_lea.vmem %s9, 32
    %v6523 = vld [vmem:[%s6522] sm:$0xff]
    %v6524 = vld [vmem:[%s6522 + $0x8] sm:$0xff]
    %v6525 = vld [vmem:[%s6522 + $0x10] sm:$0xff]
    %v6526 = vld [vmem:[%s6522 + $0x18] sm:$0xff]
    %v6535 = vcombine.low %v6514, %v6515
    %v6536 = vcombine.low %v6516, %v6517
    %v6537 = vcombine.low %v6518, %v6519
    %v6538 = vcombine.low %v6520, %v6521
    %vm6539 = vcmask 261120
    %v6540 = vsel %vm6539, %v6535, 0
    %v6542 = vsel %vm6539, %v6536, 0
    %v6544 = vsel %vm6539, %v6537, 0
    %v6546 = vsel %vm6539, %v6538, 0
    %6548 = vmatprep.subr.mxu0 0.0
    %6549 = vmatpush1.msra.mxu0 %v6523
    %6550 = vmatprep.subr.mxu0 0.0
    %6551 = vmatpush1.msra.mxu0 %v6524
    %6552 = vmatprep.subr.mxu0 0.0
    %6553 = vmatpush1.msra.mxu0 %v6525
    %6554 = vmatprep.subr.mxu0 0.0
    %6555 = vmatpush1.msra.mxu0 %v6526
    %6556 = vmatprep.subr.mxu0 0.0
    %6557 = vmatpush1.msra.mxu0 0.0
    %6558 = vmatprep.subr.mxu0 0.0
    %6559 = vmatpush1.msra.mxu0 0.0
    %6560 = vmatprep.subr.mxu0 0.0
    %6561 = vmatpush1.msra.mxu0 0.0
    %6562 = vmatprep.subr.mxu0 0.0
    %6563 = vmatpush1.msra.mxu0 0.0
    %6564 = vmatprep.subr.mxu0 0.0
    %6565 = vmatpush1.msra.mxu0 0.0
    %6566 = vmatprep.subr.mxu0 0.0
    %6567 = vmatpush1.msra.mxu0 0.0
    %6568 = vmatprep.subr.mxu0 0.0
    %6569 = vmatpush1.msra.mxu0 0.0
    %6570 = vmatprep.subr.mxu0 0.0
    %6571 = vmatpush1.msra.mxu0 0.0
    %6572 = vmatprep.subr.mxu0 0.0
    %6573 = vmatpush1.msra.mxu0 0.0
    %6574 = vmatprep.subr.mxu0 0.0
    %6575 = vmatpush1.msra.mxu0 0.0
    %6576 = vmatprep.subr.mxu0 0.0
    %6577 = vmatpush1.msra.mxu0 0.0
    %6578 = vmatprep.subr.mxu0 0.0
    %6579 = vmatpush1.msra.mxu0 0.0
    %6580 = vmatprep.subr.mxu0 0.0
    %6581 = vmatpush1.msra.mxu0 0.0
    %6582 = vmatprep.subr.mxu0 0.0
    %6583 = vmatpush1.msra.mxu0 0.0
    %6584 = vmatprep.subr.mxu0 0.0
    %6585 = vmatpush1.msra.mxu0 0.0
    %6586 = vmatprep.subr.mxu0 0.0
    %6587 = vmatpush1.msra.mxu0 0.0
    %6588 = vmatprep.subr.mxu0 0.0
    %6589 = vmatpush1.msra.mxu0 0.0
    %6590 = vmatprep.subr.mxu0 0.0
    %6591 = vmatpush1.msra.mxu0 0.0
    %6592 = vmatprep.subr.mxu0 0.0
    %6593 = vmatpush1.msra.mxu0 0.0
    %6594 = vmatprep.subr.mxu0 0.0
    %6595 = vmatpush1.msra.mxu0 0.0
    %6596 = vmatprep.subr.mxu0 0.0
    %6597 = vmatpush1.msra.mxu0 0.0
    %6598 = vmatprep.subr.mxu0 0.0
    %6599 = vmatpush1.msra.mxu0 0.0
    %6600 = vmatprep.subr.mxu0 0.0
    %6601 = vmatpush1.msra.mxu0 0.0
    %6602 = vmatprep.subr.mxu0 0.0
    %6603 = vmatpush1.msra.mxu0 0.0
    %6604 = vmatprep.subr.mxu0 0.0
    %6605 = vmatpush1.msra.mxu0 0.0
    %6606 = vmatprep.subr.mxu0 0.0
    %6607 = vmatpush1.msra.mxu0 0.0
    %6608 = vmatprep.subr.mxu0 0.0
    %6609 = vmatpush1.msra.mxu0 0.0
    %6610 = vmatprep.subr.mxu0 0.0
    %6611 = vmatpush1.msra.mxu0 0.0
    %6612 = vmatprep.mubr.f32.mxu0 0.0
    %6613 = vmatmul.mubr.f32.gmra.mrb[0].mxu0 %v6540
    %v6614 = vpop.f32.mrb[0].mxu0
    %v6615 = vadd.f32 0.0, %v6614
    %v6616 = vpop.f32.mrb[0].mxu0
    %6617 = vmatprep.mubr.f32.mxu0 0.0
    %6618 = vmatmul.mubr.f32.gmra.mrb[0].mxu0 %v6542
    %v6619 = vpop.f32.mrb[0].mxu0
    %v6620 = vadd.f32 0.0, %v6619
    %v6621 = vpop.f32.mrb[0].mxu0
    %6622 = vmatprep.mubr.f32.mxu0 0.0
    %6623 = vmatmul.mubr.f32.gmra.mrb[0].mxu0 %v6544
    %v6624 = vpop.f32.mrb[0].mxu0
    %v6625 = vadd.f32 0.0, %v6624
    %v6626 = vpop.f32.mrb[0].mxu0
    %6627 = vmatprep.mubr.f32.mxu0 0.0
    %6628 = vmatmul.mubr.f32.gmra.mrb[0].mxu0 %v6546
    %v6629 = vpop.f32.mrb[0].mxu0
    %v6630 = vadd.f32 0.0, %v6629
    %v6631 = vpop.f32.mrb[0].mxu0
    %6632 = vdwg.mxu0
    %v6641 = vcombine.low %v6502, %v6503
    %v6642 = vcombine.low %v6504, %v6505
    %v6643 = vcombine.low %v6506, %v6507
    %v6644 = vcombine.low %v6508, %v6509
    %v6645 = vsel %vm6539, %v6641, 0
    %v6647 = vsel %vm6539, %v6642, 0
    %v6649 = vsel %vm6539, %v6643, 0
    %v6651 = vsel %vm6539, %v6644, 0
    %6653 = vmatprep.subr.mxu0 0.0
    %6654 = vmatpush1.msra.mxu0 %v6510
    %6655 = vmatprep.subr.mxu0 0.0
    %6656 = vmatpush1.msra.mxu0 %v6511
    %6657 = vmatprep.subr.mxu0 0.0
    %6658 = vmatpush1.msra.mxu0 %v6512
    %6659 = vmatprep.subr.mxu0 0.0
    %6660 = vmatpush1.msra.mxu0 %v6513
    %6661 = vmatprep.subr.mxu0 0.0
    %6662 = vmatpush1.msra.mxu0 0.0
    %6663 = vmatprep.subr.mxu0 0.0
    %6664 = vmatpush1.msra.mxu0 0.0
    %6665 = vmatprep.subr.mxu0 0.0
    %6666 = vmatpush1.msra.mxu0 0.0
    %6667 = vmatprep.subr.mxu0 0.0
    %6668 = vmatpush1.msra.mxu0 0.0
    %6669 = vmatprep.subr.mxu0 0.0
    %6670 = vmatpush1.msra.mxu0 0.0
    %6671 = vmatprep.subr.mxu0 0.0
    %6672 = vmatpush1.msra.mxu0 0.0
    %6673 = vmatprep.subr.mxu0 0.0
    %6674 = vmatpush1.msra.mxu0 0.0
    %6675 = vmatprep.subr.mxu0 0.0
    %6676 = vmatpush1.msra.mxu0 0.0
    %6677 = vmatprep.subr.mxu0 0.0
    %6678 = vmatpush1.msra.mxu0 0.0
    %6679 = vmatprep.subr.mxu0 0.0
    %6680 = vmatpush1.msra.mxu0 0.0
    %6681 = vmatprep.subr.mxu0 0.0
    %6682 = vmatpush1.msra.mxu0 0.0
    %6683 = vmatprep.subr.mxu0 0.0
    %6684 = vmatpush1.msra.mxu0 0.0
    %6685 = vmatprep.subr.mxu0 0.0
    %6686 = vmatpush1.msra.mxu0 0.0
    %6687 = vmatprep.subr.mxu0 0.0
    %6688 = vmatpush1.msra.mxu0 0.0
    %6689 = vmatprep.subr.mxu0 0.0
    %6690 = vmatpush1.msra.mxu0 0.0
    %6691 = vmatprep.subr.mxu0 0.0
    %6692 = vmatpush1.msra.mxu0 0.0
    %6693 = vmatprep.subr.mxu0 0.0
    %6694 = vmatpush1.msra.mxu0 0.0
    %6695 = vmatprep.subr.mxu0 0.0
    %6696 = vmatpush1.msra.mxu0 0.0
    %6697 = vmatprep.subr.mxu0 0.0
    %6698 = vmatpush1.msra.mxu0 0.0
    %6699 = vmatprep.subr.mxu0 0.0
    %6700 = vmatpush1.msra.mxu0 0.0
    %6701 = vmatprep.subr.mxu0 0.0
    %6702 = vmatpush1.msra.mxu0 0.0
    %6703 = vmatprep.subr.mxu0 0.0
    %6704 = vmatpush1.msra.mxu0 0.0
    %6705 = vmatprep.subr.mxu0 0.0
    %6706 = vmatpush1.msra.mxu0 0.0
    %6707 = vmatprep.subr.mxu0 0.0
    %6708 = vmatpush1.msra.mxu0 0.0
    %6709 = vmatprep.subr.mxu0 0.0
    %6710 = vmatpush1.msra.mxu0 0.0
    %6711 = vmatprep.subr.mxu0 0.0
    %6712 = vmatpush1.msra.mxu0 0.0
    %6713 = vmatprep.subr.mxu0 0.0
    %6714 = vmatpush1.msra.mxu0 0.0
    %6715 = vmatprep.subr.mxu0 0.0
    %6716 = vmatpush1.msra.mxu0 0.0
    %6717 = vmatprep.mubr.f32.mxu0 0.0
    %6718 = vmatmul.mubr.f32.gmra.mrb[0].mxu0 %v6645
    %v6719 = vpop.f32.mrb[0].mxu0
    %v6720 = vadd.f32 %v6615, %v6719
    %v6721 = vpop.f32.mrb[0].mxu0
    %6722 = vmatprep.mubr.f32.mxu0 0.0
    %6723 = vmatmul.mubr.f32.gmra.mrb[0].mxu0 %v6647
    %v6724 = vpop.f32.mrb[0].mxu0
    %v6725 = vadd.f32 %v6620, %v6724
    %v6726 = vpop.f32.mrb[0].mxu0
    %6727 = vmatprep.mubr.f32.mxu0 0.0
    %6728 = vmatmul.mubr.f32.gmra.mrb[0].mxu0 %v6649
    %v6729 = vpop.f32.mrb[0].mxu0
    %v6730 = vadd.f32 %v6625, %v6729
    %v6731 = vpop.f32.mrb[0].mxu0
    %6732 = vmatprep.mubr.f32.mxu0 0.0
    %6733 = vmatmul.mubr.f32.gmra.mrb[0].mxu0 %v6651
    %v6734 = vpop.f32.mrb[0].mxu0
    %v6735 = vadd.f32 %v6630, %v6734
    %v6736 = vpop.f32.mrb[0].mxu0
    %6737 = vdwg.mxu0
    %v6738 = vld [vmem:[#allocation4 + $0x2] sm:$0xf]
    %v6739 = vld [vmem:[#allocation4 + $0xa] sm:$0xf]
    %v6740 = vld [vmem:[#allocation4 + $0x12] sm:$0xf]
    %v6741 = vld [vmem:[#allocation4 + $0x1a] sm:$0xf]
    %v6742 = vld [vmem:[#allocation4 + $0x32] sm:$0xf]
    %v6743 = vld [vmem:[#allocation4 + $0x3a] sm:$0xf]
    %v6744 = vld [vmem:[#allocation4 + $0x42] sm:$0xf]
    %v6745 = vld [vmem:[#allocation4 + $0x4a] sm:$0xf]
    %s6746 = scalar_lea.vmem %s9, 64
    %v6747 = vld [vmem:[%s6746] sm:$0xff]
    %v6748 = vld [vmem:[%s6746 + $0x8] sm:$0xff]
    %v6749 = vld [vmem:[%s6746 + $0x10] sm:$0xff]
    %v6750 = vld [vmem:[%s6746 + $0x18] sm:$0xff]
    %v6759 = vcombine.low %v6738, %v6739
    %v6760 = vcombine.low %v6740, %v6741
    %v6761 = vcombine.low %v6742, %v6743
    %v6762 = vcombine.low %v6744, %v6745
    %v6763 = vsel %vm6539, %v6759, 0
    %v6765 = vsel %vm6539, %v6760, 0
    %v6767 = vsel %vm6539, %v6761, 0
    %v6769 = vsel %vm6539, %v6762, 0
    %6771 = vmatprep.subr.mxu0 0.0
    %6772 = vmatpush1.msra.mxu0 %v6747
    %6773 = vmatprep.subr.mxu0 0.0
    %6774 = vmatpush1.msra.mxu0 %v6748
    %6775 = vmatprep.subr.mxu0 0.0
    %6776 = vmatpush1.msra.mxu0 %v6749
    %6777 = vmatprep.subr.mxu0 0.0
    %6778 = vmatpush1.msra.mxu0 %v6750
    %6779 = vmatprep.subr.mxu0 0.0
    %6780 = vmatpush1.msra.mxu0 0.0
    %6781 = vmatprep.subr.mxu0 0.0
    %6782 = vmatpush1.msra.mxu0 0.0
    %6783 = vmatprep.subr.mxu0 0.0
    %6784 = vmatpush1.msra.mxu0 0.0
    %6785 = vmatprep.subr.mxu0 0.0
    %6786 = vmatpush1.msra.mxu0 0.0
    %6787 = vmatprep.subr.mxu0 0.0
    %6788 = vmatpush1.msra.mxu0 0.0
    %6789 = vmatprep.subr.mxu0 0.0
    %6790 = vmatpush1.msra.mxu0 0.0
    %6791 = vmatprep.subr.mxu0 0.0
    %6792 = vmatpush1.msra.mxu0 0.0
    %6793 = vmatprep.subr.mxu0 0.0
    %6794 = vmatpush1.msra.mxu0 0.0
    %6795 = vmatprep.subr.mxu0 0.0
    %6796 = vmatpush1.msra.mxu0 0.0
    %6797 = vmatprep.subr.mxu0 0.0
    %6798 = vmatpush1.msra.mxu0 0.0
    %6799 = vmatprep.subr.mxu0 0.0
    %6800 = vmatpush1.msra.mxu0 0.0
    %6801 = vmatprep.subr.mxu0 0.0
    %6802 = vmatpush1.msra.mxu0 0.0
    %6803 = vmatprep.subr.mxu0 0.0
    %6804 = vmatpush1.msra.mxu0 0.0
    %6805 = vmatprep.subr.mxu0 0.0
    %6806 = vmatpush1.msra.mxu0 0.0
    %6807 = vmatprep.subr.mxu0 0.0
    %6808 = vmatpush1.msra.mxu0 0.0
    %6809 = vmatprep.subr.mxu0 0.0
    %6810 = vmatpush1.msra.mxu0 0.0
    %6811 = vmatprep.subr.mxu0 0.0
    %6812 = vmatpush1.msra.mxu0 0.0
    %6813 = vmatprep.subr.mxu0 0.0
    %6814 = vmatpush1.msra.mxu0 0.0
    %6815 = vmatprep.subr.mxu0 0.0
    %6816 = vmatpush1.msra.mxu0 0.0
    %6817 = vmatprep.subr.mxu0 0.0
    %6818 = vmatpush1.msra.mxu0 0.0
    %6819 = vmatprep.subr.mxu0 0.0
    %6820 = vmatpush1.msra.mxu0 0.0
    %6821 = vmatprep.subr.mxu0 0.0
    %6822 = vmatpush1.msra.mxu0 0.0
    %6823 = vmatprep.subr.mxu0 0.0
    %6824 = vmatpush1.msra.mxu0 0.0
    %6825 = vmatprep.subr.mxu0 0.0
    %6826 = vmatpush1.msra.mxu0 0.0
    %6827 = vmatprep.subr.mxu0 0.0
    %6828 = vmatpush1.msra.mxu0 0.0
    %6829 = vmatprep.subr.mxu0 0.0
    %6830 = vmatpush1.msra.mxu0 0.0
    %6831 = vmatprep.subr.mxu0 0.0
    %6832 = vmatpush1.msra.mxu0 0.0
    %6833 = vmatprep.subr.mxu0 0.0
    %6834 = vmatpush1.msra.mxu0 0.0
    %6835 = vmatprep.mubr.f32.mxu0 0.0
    %6836 = vmatmul.mubr.f32.gmra.mrb[0].mxu0 %v6763
    %v6837 = vpop.f32.mrb[0].mxu0
    %v6838 = vadd.f32 0.0, %v6837
    %v6839 = vpop.f32.mrb[0].mxu0
    %6840 = vmatprep.mubr.f32.mxu0 0.0
    %6841 = vmatmul.mubr.f32.gmra.mrb[0].mxu0 %v6765
    %v6842 = vpop.f32.mrb[0].mxu0
    %v6843 = vadd.f32 0.0, %v6842
    %v6844 = vpop.f32.mrb[0].mxu0
    %6845 = vmatprep.mubr.f32.mxu0 0.0
    %6846 = vmatmul.mubr.f32.gmra.mrb[0].mxu0 %v6767
    %v6847 = vpop.f32.mrb[0].mxu0
    %v6848 = vadd.f32 0.0, %v6847
    %v6849 = vpop.f32.mrb[0].mxu0
    %6850 = vmatprep.mubr.f32.mxu0 0.0
    %6851 = vmatmul.mubr.f32.gmra.mrb[0].mxu0 %v6769
    %v6852 = vpop.f32.mrb[0].mxu0
    %v6853 = vadd.f32 0.0, %v6852
    %v6854 = vpop.f32.mrb[0].mxu0
    %6855 = vdwg.mxu0
    %v6856 = vadd.f32 %v6720, %v6838
    %v6857 = vadd.f32 %v6725, %v6843
    %v6858 = vadd.f32 %v6730, %v6848
    %v6859 = vadd.f32 %v6735, %v6853
    %v6860 = vld [vmem:[%s6492] sm:$0xf]
    %v6861 = vld [vmem:[%s6492 + $0x8] sm:$0xf]
    %v6862 = vld [vmem:[%s6492 + $0x10] sm:$0xf]
    %v6863 = vld [vmem:[%s6492 + $0x18] sm:$0xf]
    %v6864 = vld [vmem:[%s6492 + $0x30] sm:$0xf]
    %v6865 = vld [vmem:[%s6492 + $0x38] sm:$0xf]
    %v6866 = vld [vmem:[%s6492 + $0x40] sm:$0xf]
    %v6867 = vld [vmem:[%s6492 + $0x48] sm:$0xf]
    %s6868 = scalar_lea.vmem %s9, 96
    %v6869 = vld [vmem:[%s6868] sm:$0xff]
    %v6870 = vld [vmem:[%s6868 + $0x8] sm:$0xff]
    %v6871 = vld [vmem:[%s6868 + $0x10] sm:$0xff]
    %v6872 = vld [vmem:[%s6868 + $0x18] sm:$0xff]
    %v6881 = vcombine.low %v6860, %v6861
    %v6882 = vcombine.low %v6862, %v6863
    %v6883 = vcombine.low %v6864, %v6865
    %v6884 = vcombine.low %v6866, %v6867
    %v6885 = vsel %vm6539, %v6881, 0
    %v6887 = vsel %vm6539, %v6882, 0
    %v6889 = vsel %vm6539, %v6883, 0
    %v6891 = vsel %vm6539, %v6884, 0
    %6893 = vmatprep.subr.mxu0 0.0
    %6894 = vmatpush1.msra.mxu0 %v6869
    %6895 = vmatprep.subr.mxu0 0.0
    %6896 = vmatpush1.msra.mxu0 %v6870
    %6897 = vmatprep.subr.mxu0 0.0
    %6898 = vmatpush1.msra.mxu0 %v6871
    %6899 = vmatprep.subr.mxu0 0.0
    %6900 = vmatpush1.msra.mxu0 %v6872
    %6901 = vmatprep.subr.mxu0 0.0
    %6902 = vmatpush1.msra.mxu0 0.0
    %6903 = vmatprep.subr.mxu0 0.0
    %6904 = vmatpush1.msra.mxu0 0.0
    %6905 = vmatprep.subr.mxu0 0.0
    %6906 = vmatpush1.msra.mxu0 0.0
    %6907 = vmatprep.subr.mxu0 0.0
    %6908 = vmatpush1.msra.mxu0 0.0
    %6909 = vmatprep.subr.mxu0 0.0
    %6910 = vmatpush1.msra.mxu0 0.0
    %6911 = vmatprep.subr.mxu0 0.0
    %6912 = vmatpush1.msra.mxu0 0.0
    %6913 = vmatprep.subr.mxu0 0.0
    %6914 = vmatpush1.msra.mxu0 0.0
    %6915 = vmatprep.subr.mxu0 0.0
    %6916 = vmatpush1.msra.mxu0 0.0
    %6917 = vmatprep.subr.mxu0 0.0
    %6918 = vmatpush1.msra.mxu0 0.0
    %6919 = vmatprep.subr.mxu0 0.0
    %6920 = vmatpush1.msra.mxu0 0.0
    %6921 = vmatprep.subr.mxu0 0.0
    %6922 = vmatpush1.msra.mxu0 0.0
    %6923 = vmatprep.subr.mxu0 0.0
    %6924 = vmatpush1.msra.mxu0 0.0
    %6925 = vmatprep.subr.mxu0 0.0
    %6926 = vmatpush1.msra.mxu0 0.0
    %6927 = vmatprep.subr.mxu0 0.0
    %6928 = vmatpush1.msra.mxu0 0.0
    %6929 = vmatprep.subr.mxu0 0.0
    %6930 = vmatpush1.msra.mxu0 0.0
    %6931 = vmatprep.subr.mxu0 0.0
    %6932 = vmatpush1.msra.mxu0 0.0
    %6933 = vmatprep.subr.mxu0 0.0
    %6934 = vmatpush1.msra.mxu0 0.0
    %6935 = vmatprep.subr.mxu0 0.0
    %6936 = vmatpush1.msra.mxu0 0.0
    %6937 = vmatprep.subr.mxu0 0.0
    %6938 = vmatpush1.msra.mxu0 0.0
    %6939 = vmatprep.subr.mxu0 0.0
    %6940 = vmatpush1.msra.mxu0 0.0
    %6941 = vmatprep.subr.mxu0 0.0
    %6942 = vmatpush1.msra.mxu0 0.0
    %6943 = vmatprep.subr.mxu0 0.0
    %6944 = vmatpush1.msra.mxu0 0.0
    %6945 = vmatprep.subr.mxu0 0.0
    %6946 = vmatpush1.msra.mxu0 0.0
    %6947 = vmatprep.subr.mxu0 0.0
    %6948 = vmatpush1.msra.mxu0 0.0
    %6949 = vmatprep.subr.mxu0 0.0
    %6950 = vmatpush1.msra.mxu0 0.0
    %6951 = vmatprep.subr.mxu0 0.0
    %6952 = vmatpush1.msra.mxu0 0.0
    %6953 = vmatprep.subr.mxu0 0.0
    %6954 = vmatpush1.msra.mxu0 0.0
    %6955 = vmatprep.subr.mxu0 0.0
    %6956 = vmatpush1.msra.mxu0 0.0
    %6957 = vmatprep.mubr.f32.mxu0 0.0
    %6958 = vmatmul.mubr.f32.gmra.mrb[0].mxu0 %v6885
    %v6959 = vpop.f32.mrb[0].mxu0
    %v6960 = vadd.f32 0.0, %v6959
    %v6961 = vpop.f32.mrb[0].mxu0
    %6962 = vmatprep.mubr.f32.mxu0 0.0
    %6963 = vmatmul.mubr.f32.gmra.mrb[0].mxu0 %v6887
    %v6964 = vpop.f32.mrb[0].mxu0
    %v6965 = vadd.f32 0.0, %v6964
    %v6966 = vpop.f32.mrb[0].mxu0
    %6967 = vmatprep.mubr.f32.mxu0 0.0
    %6968 = vmatmul.mubr.f32.gmra.mrb[0].mxu0 %v6889
    %v6969 = vpop.f32.mrb[0].mxu0
    %v6970 = vadd.f32 0.0, %v6969
    %v6971 = vpop.f32.mrb[0].mxu0
    %6972 = vmatprep.mubr.f32.mxu0 0.0
    %6973 = vmatmul.mubr.f32.gmra.mrb[0].mxu0 %v6891
    %v6974 = vpop.f32.mrb[0].mxu0
    %v6975 = vadd.f32 0.0, %v6974
    %v6976 = vpop.f32.mrb[0].mxu0
    %6977 = vdwg.mxu0
    %v6978 = vadd.f32 %v6856, %v6960
    %v6979 = vadd.f32 %v6857, %v6965
    %v6980 = vadd.f32 %v6858, %v6970
    %v6981 = vadd.f32 %v6859, %v6975
    %v6982 = vld [vmem:[%s6492 + $0x1] sm:$0xf]
    %v6983 = vld [vmem:[%s6492 + $0x9] sm:$0xf]
    %v6984 = vld [vmem:[%s6492 + $0x11] sm:$0xf]
    %v6985 = vld [vmem:[%s6492 + $0x19] sm:$0xf]
    %v6986 = vld [vmem:[%s6492 + $0x31] sm:$0xf]
    %v6987 = vld [vmem:[%s6492 + $0x39] sm:$0xf]
    %v6988 = vld [vmem:[%s6492 + $0x41] sm:$0xf]
    %v6989 = vld [vmem:[%s6492 + $0x49] sm:$0xf]
    %s6990 = scalar_lea.vmem %s9, 128
    %v6991 = vld [vmem:[%s6990] sm:$0xff]
    %v6992 = vld [vmem:[%s6990 + $0x8] sm:$0xff]
    %v6993 = vld [vmem:[%s6990 + $0x10] sm:$0xff]
    %v6994 = vld [vmem:[%s6990 + $0x18] sm:$0xff]
    %v7003 = vcombine.low %v6982, %v6983
    %v7004 = vcombine.low %v6984, %v6985
    %v7005 = vcombine.low %v6986, %v6987
    %v7006 = vcombine.low %v6988, %v6989
    %v7007 = vsel %vm6539, %v7003, 0
    %v7009 = vsel %vm6539, %v7004, 0
    %v7011 = vsel %vm6539, %v7005, 0
    %v7013 = vsel %vm6539, %v7006, 0
    %7015 = vmatprep.subr.mxu0 0.0
    %7016 = vmatpush1.msra.mxu0 %v6991
    %7017 = vmatprep.subr.mxu0 0.0
    %7018 = vmatpush1.msra.mxu0 %v6992
    %7019 = vmatprep.subr.mxu0 0.0
    %7020 = vmatpush1.msra.mxu0 %v6993
    %7021 = vmatprep.subr.mxu0 0.0
    %7022 = vmatpush1.msra.mxu0 %v6994
    %7023 = vmatprep.subr.mxu0 0.0
    %7024 = vmatpush1.msra.mxu0 0.0
    %7025 = vmatprep.subr.mxu0 0.0
    %7026 = vmatpush1.msra.mxu0 0.0
    %7027 = vmatprep.subr.mxu0 0.0
    %7028 = vmatpush1.msra.mxu0 0.0
    %7029 = vmatprep.subr.mxu0 0.0
    %7030 = vmatpush1.msra.mxu0 0.0
    %7031 = vmatprep.subr.mxu0 0.0
    %7032 = vmatpush1.msra.mxu0 0.0
    %7033 = vmatprep.subr.mxu0 0.0
    %7034 = vmatpush1.msra.mxu0 0.0
    %7035 = vmatprep.subr.mxu0 0.0
    %7036 = vmatpush1.msra.mxu0 0.0
    %7037 = vmatprep.subr.mxu0 0.0
    %7038 = vmatpush1.msra.mxu0 0.0
    %7039 = vmatprep.subr.mxu0 0.0
    %7040 = vmatpush1.msra.mxu0 0.0
    %7041 = vmatprep.subr.mxu0 0.0
    %7042 = vmatpush1.msra.mxu0 0.0
    %7043 = vmatprep.subr.mxu0 0.0
    %7044 = vmatpush1.msra.mxu0 0.0
    %7045 = vmatprep.subr.mxu0 0.0
    %7046 = vmatpush1.msra.mxu0 0.0
    %7047 = vmatprep.subr.mxu0 0.0
    %7048 = vmatpush1.msra.mxu0 0.0
    %7049 = vmatprep.subr.mxu0 0.0
    %7050 = vmatpush1.msra.mxu0 0.0
    %7051 = vmatprep.subr.mxu0 0.0
    %7052 = vmatpush1.msra.mxu0 0.0
    %7053 = vmatprep.subr.mxu0 0.0
    %7054 = vmatpush1.msra.mxu0 0.0
    %7055 = vmatprep.subr.mxu0 0.0
    %7056 = vmatpush1.msra.mxu0 0.0
    %7057 = vmatprep.subr.mxu0 0.0
    %7058 = vmatpush1.msra.mxu0 0.0
    %7059 = vmatprep.subr.mxu0 0.0
    %7060 = vmatpush1.msra.mxu0 0.0
    %7061 = vmatprep.subr.mxu0 0.0
    %7062 = vmatpush1.msra.mxu0 0.0
    %7063 = vmatprep.subr.mxu0 0.0
    %7064 = vmatpush1.msra.mxu0 0.0
    %7065 = vmatprep.subr.mxu0 0.0
    %7066 = vmatpush1.msra.mxu0 0.0
    %7067 = vmatprep.subr.mxu0 0.0
    %7068 = vmatpush1.msra.mxu0 0.0
    %7069 = vmatprep.subr.mxu0 0.0
    %7070 = vmatpush1.msra.mxu0 0.0
    %7071 = vmatprep.subr.mxu0 0.0
    %7072 = vmatpush1.msra.mxu0 0.0
    %7073 = vmatprep.subr.mxu0 0.0
    %7074 = vmatpush1.msra.mxu0 0.0
    %7075 = vmatprep.subr.mxu0 0.0
    %7076 = vmatpush1.msra.mxu0 0.0
    %7077 = vmatprep.subr.mxu0 0.0
    %7078 = vmatpush1.msra.mxu0 0.0
    %7079 = vmatprep.mubr.f32.mxu0 0.0
    %7080 = vmatmul.mubr.f32.gmra.mrb[0].mxu0 %v7007
    %v7081 = vpop.f32.mrb[0].mxu0
    %v7082 = vadd.f32 0.0, %v7081
    %v7083 = vpop.f32.mrb[0].mxu0
    %7084 = vmatprep.mubr.f32.mxu0 0.0
    %7085 = vmatmul.mubr.f32.gmra.mrb[0].mxu0 %v7009
    %v7086 = vpop.f32.mrb[0].mxu0
    %v7087 = vadd.f32 0.0, %v7086
    %v7088 = vpop.f32.mrb[0].mxu0
    %7089 = vmatprep.mubr.f32.mxu0 0.0
    %7090 = vmatmul.mubr.f32.gmra.mrb[0].mxu0 %v7011
    %v7091 = vpop.f32.mrb[0].mxu0
    %v7092 = vadd.f32 0.0, %v7091
    %v7093 = vpop.f32.mrb[0].mxu0
    %7094 = vmatprep.mubr.f32.mxu0 0.0
    %7095 = vmatmul.mubr.f32.gmra.mrb[0].mxu0 %v7013
    %v7096 = vpop.f32.mrb[0].mxu0
    %v7097 = vadd.f32 0.0, %v7096
    %v7098 = vpop.f32.mrb[0].mxu0
    %7099 = vdwg.mxu0
    %v7100 = vadd.f32 %v6978, %v7082
    %v7101 = vadd.f32 %v6979, %v7087
    %v7102 = vadd.f32 %v6980, %v7092
    %v7103 = vadd.f32 %v6981, %v7097
    %v7104 = vld [vmem:[%s6492 + $0x2] sm:$0xf]
    %v7105 = vld [vmem:[%s6492 + $0xa] sm:$0xf]
    %v7106 = vld [vmem:[%s6492 + $0x12] sm:$0xf]
    %v7107 = vld [vmem:[%s6492 + $0x1a] sm:$0xf]
    %v7108 = vld [vmem:[%s6492 + $0x32] sm:$0xf]
    %v7109 = vld [vmem:[%s6492 + $0x3a] sm:$0xf]
    %v7110 = vld [vmem:[%s6492 + $0x42] sm:$0xf]
    %v7111 = vld [vmem:[%s6492 + $0x4a] sm:$0xf]
    %s7112 = scalar_lea.vmem %s9, 160
    %v7113 = vld [vmem:[%s7112] sm:$0xff]
    %v7114 = vld [vmem:[%s7112 + $0x8] sm:$0xff]
    %v7115 = vld [vmem:[%s7112 + $0x10] sm:$0xff]
    %v7116 = vld [vmem:[%s7112 + $0x18] sm:$0xff]
    %v7125 = vcombine.low %v7104, %v7105
    %v7126 = vcombine.low %v7106, %v7107
    %v7127 = vcombine.low %v7108, %v7109
    %v7128 = vcombine.low %v7110, %v7111
    %v7129 = vsel %vm6539, %v7125, 0
    %v7131 = vsel %vm6539, %v7126, 0
    %v7133 = vsel %vm6539, %v7127, 0
    %v7135 = vsel %vm6539, %v7128, 0
    %7137 = vmatprep.subr.mxu0 0.0
    %7138 = vmatpush1.msra.mxu0 %v7113
    %7139 = vmatprep.subr.mxu0 0.0
    %7140 = vmatpush1.msra.mxu0 %v7114
    %7141 = vmatprep.subr.mxu0 0.0
    %7142 = vmatpush1.msra.mxu0 %v7115
    %7143 = vmatprep.subr.mxu0 0.0
    %7144 = vmatpush1.msra.mxu0 %v7116
    %7145 = vmatprep.subr.mxu0 0.0
    %7146 = vmatpush1.msra.mxu0 0.0
    %7147 = vmatprep.subr.mxu0 0.0
    %7148 = vmatpush1.msra.mxu0 0.0
    %7149 = vmatprep.subr.mxu0 0.0
    %7150 = vmatpush1.msra.mxu0 0.0
    %7151 = vmatprep.subr.mxu0 0.0
    %7152 = vmatpush1.msra.mxu0 0.0
    %7153 = vmatprep.subr.mxu0 0.0
    %7154 = vmatpush1.msra.mxu0 0.0
    %7155 = vmatprep.subr.mxu0 0.0
    %7156 = vmatpush1.msra.mxu0 0.0
    %7157 = vmatprep.subr.mxu0 0.0
    %7158 = vmatpush1.msra.mxu0 0.0
    %7159 = vmatprep.subr.mxu0 0.0
    %7160 = vmatpush1.msra.mxu0 0.0
    %7161 = vmatprep.subr.mxu0 0.0
    %7162 = vmatpush1.msra.mxu0 0.0
    %7163 = vmatprep.subr.mxu0 0.0
    %7164 = vmatpush1.msra.mxu0 0.0
    %7165 = vmatprep.subr.mxu0 0.0
    %7166 = vmatpush1.msra.mxu0 0.0
    %7167 = vmatprep.subr.mxu0 0.0
    %7168 = vmatpush1.msra.mxu0 0.0
    %7169 = vmatprep.subr.mxu0 0.0
    %7170 = vmatpush1.msra.mxu0 0.0
    %7171 = vmatprep.subr.mxu0 0.0
    %7172 = vmatpush1.msra.mxu0 0.0
    %7173 = vmatprep.subr.mxu0 0.0
    %7174 = vmatpush1.msra.mxu0 0.0
    %7175 = vmatprep.subr.mxu0 0.0
    %7176 = vmatpush1.msra.mxu0 0.0
    %7177 = vmatprep.subr.mxu0 0.0
    %7178 = vmatpush1.msra.mxu0 0.0
    %7179 = vmatprep.subr.mxu0 0.0
    %7180 = vmatpush1.msra.mxu0 0.0
    %7181 = vmatprep.subr.mxu0 0.0
    %7182 = vmatpush1.msra.mxu0 0.0
    %7183 = vmatprep.subr.mxu0 0.0
    %7184 = vmatpush1.msra.mxu0 0.0
    %7185 = vmatprep.subr.mxu0 0.0
    %7186 = vmatpush1.msra.mxu0 0.0
    %7187 = vmatprep.subr.mxu0 0.0
    %7188 = vmatpush1.msra.mxu0 0.0
    %7189 = vmatprep.subr.mxu0 0.0
    %7190 = vmatpush1.msra.mxu0 0.0
    %7191 = vmatprep.subr.mxu0 0.0
    %7192 = vmatpush1.msra.mxu0 0.0
    %7193 = vmatprep.subr.mxu0 0.0
    %7194 = vmatpush1.msra.mxu0 0.0
    %7195 = vmatprep.subr.mxu0 0.0
    %7196 = vmatpush1.msra.mxu0 0.0
    %7197 = vmatprep.subr.mxu0 0.0
    %7198 = vmatpush1.msra.mxu0 0.0
    %7199 = vmatprep.subr.mxu0 0.0
    %7200 = vmatpush1.msra.mxu0 0.0
    %7201 = vmatprep.mubr.f32.mxu0 0.0
    %7202 = vmatmul.mubr.f32.gmra.mrb[0].mxu0 %v7129
    %v7203 = vpop.f32.mrb[0].mxu0
    %v7204 = vadd.f32 0.0, %v7203
    %v7205 = vpop.f32.mrb[0].mxu0
    %7206 = vmatprep.mubr.f32.mxu0 0.0
    %7207 = vmatmul.mubr.f32.gmra.mrb[0].mxu0 %v7131
    %v7208 = vpop.f32.mrb[0].mxu0
    %v7209 = vadd.f32 0.0, %v7208
    %v7210 = vpop.f32.mrb[0].mxu0
    %7211 = vmatprep.mubr.f32.mxu0 0.0
    %7212 = vmatmul.mubr.f32.gmra.mrb[0].mxu0 %v7133
    %v7213 = vpop.f32.mrb[0].mxu0
    %v7214 = vadd.f32 0.0, %v7213
    %v7215 = vpop.f32.mrb[0].mxu0
    %7216 = vmatprep.mubr.f32.mxu0 0.0
    %7217 = vmatmul.mubr.f32.gmra.mrb[0].mxu0 %v7135
    %v7218 = vpop.f32.mrb[0].mxu0
    %v7219 = vadd.f32 0.0, %v7218
    %v7220 = vpop.f32.mrb[0].mxu0
    %7221 = vdwg.mxu0
    %v7222 = vadd.f32 %v7100, %v7204
    %v7223 = vadd.f32 %v7101, %v7209
    %v7224 = vadd.f32 %v7102, %v7214
    %v7225 = vadd.f32 %v7103, %v7219
    %s7226 = scalar_lea.vmem [#allocation4], 16
    %v7227 = vld [vmem:[%s7226] sm:$0xf]
    %v7228 = vld [vmem:[%s7226 + $0x8] sm:$0xf]
    %v7229 = vld [vmem:[%s7226 + $0x10] sm:$0xf]
    %v7230 = vld [vmem:[%s7226 + $0x18] sm:$0xf]
    %v7231 = vld [vmem:[%s7226 + $0x30] sm:$0xf]
    %v7232 = vld [vmem:[%s7226 + $0x38] sm:$0xf]
    %v7233 = vld [vmem:[%s7226 + $0x40] sm:$0xf]
    %v7234 = vld [vmem:[%s7226 + $0x48] sm:$0xf]
    %s7235 = scalar_lea.vmem %s9, 192
    %v7236 = vld [vmem:[%s7235] sm:$0xff]
    %v7237 = vld [vmem:[%s7235 + $0x8] sm:$0xff]
    %v7238 = vld [vmem:[%s7235 + $0x10] sm:$0xff]
    %v7239 = vld [vmem:[%s7235 + $0x18] sm:$0xff]
    %v7248 = vcombine.low %v7227, %v7228
    %v7249 = vcombine.low %v7229, %v7230
    %v7250 = vcombine.low %v7231, %v7232
    %v7251 = vcombine.low %v7233, %v7234
    %v7252 = vsel %vm6539, %v7248, 0
    %v7254 = vsel %vm6539, %v7249, 0
    %v7256 = vsel %vm6539, %v7250, 0
    %v7258 = vsel %vm6539, %v7251, 0
    %7260 = vmatprep.subr.mxu0 0.0
    %7261 = vmatpush1.msra.mxu0 %v7236
    %7262 = vmatprep.subr.mxu0 0.0
    %7263 = vmatpush1.msra.mxu0 %v7237
    %7264 = vmatprep.subr.mxu0 0.0
    %7265 = vmatpush1.msra.mxu0 %v7238
    %7266 = vmatprep.subr.mxu0 0.0
    %7267 = vmatpush1.msra.mxu0 %v7239
    %7268 = vmatprep.subr.mxu0 0.0
    %7269 = vmatpush1.msra.mxu0 0.0
    %7270 = vmatprep.subr.mxu0 0.0
    %7271 = vmatpush1.msra.mxu0 0.0
    %7272 = vmatprep.subr.mxu0 0.0
    %7273 = vmatpush1.msra.mxu0 0.0
    %7274 = vmatprep.subr.mxu0 0.0
    %7275 = vmatpush1.msra.mxu0 0.0
    %7276 = vmatprep.subr.mxu0 0.0
    %7277 = vmatpush1.msra.mxu0 0.0
    %7278 = vmatprep.subr.mxu0 0.0
    %7279 = vmatpush1.msra.mxu0 0.0
    %7280 = vmatprep.subr.mxu0 0.0
    %7281 = vmatpush1.msra.mxu0 0.0
    %7282 = vmatprep.subr.mxu0 0.0
    %7283 = vmatpush1.msra.mxu0 0.0
    %7284 = vmatprep.subr.mxu0 0.0
    %7285 = vmatpush1.msra.mxu0 0.0
    %7286 = vmatprep.subr.mxu0 0.0
    %7287 = vmatpush1.msra.mxu0 0.0
    %7288 = vmatprep.subr.mxu0 0.0
    %7289 = vmatpush1.msra.mxu0 0.0
    %7290 = vmatprep.subr.mxu0 0.0
    %7291 = vmatpush1.msra.mxu0 0.0
    %7292 = vmatprep.subr.mxu0 0.0
    %7293 = vmatpush1.msra.mxu0 0.0
    %7294 = vmatprep.subr.mxu0 0.0
    %7295 = vmatpush1.msra.mxu0 0.0
    %7296 = vmatprep.subr.mxu0 0.0
    %7297 = vmatpush1.msra.mxu0 0.0
    %7298 = vmatprep.subr.mxu0 0.0
    %7299 = vmatpush1.msra.mxu0 0.0
    %7300 = vmatprep.subr.mxu0 0.0
    %7301 = vmatpush1.msra.mxu0 0.0
    %7302 = vmatprep.subr.mxu0 0.0
    %7303 = vmatpush1.msra.mxu0 0.0
    %7304 = vmatprep.subr.mxu0 0.0
    %7305 = vmatpush1.msra.mxu0 0.0
    %7306 = vmatprep.subr.mxu0 0.0
    %7307 = vmatpush1.msra.mxu0 0.0
    %7308 = vmatprep.subr.mxu0 0.0
    %7309 = vmatpush1.msra.mxu0 0.0
    %7310 = vmatprep.subr.mxu0 0.0
    %7311 = vmatpush1.msra.mxu0 0.0
    %7312 = vmatprep.subr.mxu0 0.0
    %7313 = vmatpush1.msra.mxu0 0.0
    %7314 = vmatprep.subr.mxu0 0.0
    %7315 = vmatpush1.msra.mxu0 0.0
    %7316 = vmatprep.subr.mxu0 0.0
    %7317 = vmatpush1.msra.mxu0 0.0
    %7318 = vmatprep.subr.mxu0 0.0
    %7319 = vmatpush1.msra.mxu0 0.0
    %7320 = vmatprep.subr.mxu0 0.0
    %7321 = vmatpush1.msra.mxu0 0.0
    %7322 = vmatprep.subr.mxu0 0.0
    %7323 = vmatpush1.msra.mxu0 0.0
    %7324 = vmatprep.mubr.f32.mxu0 0.0
    %7325 = vmatmul.mubr.f32.gmra.mrb[0].mxu0 %v7252
    %v7326 = vpop.f32.mrb[0].mxu0
    %v7327 = vadd.f32 0.0, %v7326
    %v7328 = vpop.f32.mrb[0].mxu0
    %7329 = vmatprep.mubr.f32.mxu0 0.0
    %7330 = vmatmul.mubr.f32.gmra.mrb[0].mxu0 %v7254
    %v7331 = vpop.f32.mrb[0].mxu0
    %v7332 = vadd.f32 0.0, %v7331
    %v7333 = vpop.f32.mrb[0].mxu0
    %7334 = vmatprep.mubr.f32.mxu0 0.0
    %7335 = vmatmul.mubr.f32.gmra.mrb[0].mxu0 %v7256
    %v7336 = vpop.f32.mrb[0].mxu0
    %v7337 = vadd.f32 0.0, %v7336
    %v7338 = vpop.f32.mrb[0].mxu0
    %7339 = vmatprep.mubr.f32.mxu0 0.0
    %7340 = vmatmul.mubr.f32.gmra.mrb[0].mxu0 %v7258
    %v7341 = vpop.f32.mrb[0].mxu0
    %v7342 = vadd.f32 0.0, %v7341
    %v7343 = vpop.f32.mrb[0].mxu0
    %7344 = vdwg.mxu0
    %v7345 = vadd.f32 %v7222, %v7327
    %v7346 = vadd.f32 %v7223, %v7332
    %v7347 = vadd.f32 %v7224, %v7337
    %v7348 = vadd.f32 %v7225, %v7342
    %v7349 = vld [vmem:[%s7226 + $0x1] sm:$0xf]
    %v7350 = vld [vmem:[%s7226 + $0x9] sm:$0xf]
    %v7351 = vld [vmem:[%s7226 + $0x11] sm:$0xf]
    %v7352 = vld [vmem:[%s7226 + $0x19] sm:$0xf]
    %v7353 = vld [vmem:[%s7226 + $0x31] sm:$0xf]
    %v7354 = vld [vmem:[%s7226 + $0x39] sm:$0xf]
    %v7355 = vld [vmem:[%s7226 + $0x41] sm:$0xf]
    %v7356 = vld [vmem:[%s7226 + $0x49] sm:$0xf]
    %s7357 = scalar_lea.vmem %s9, 224
    %v7358 = vld [vmem:[%s7357] sm:$0xff]
    %v7359 = vld [vmem:[%s7357 + $0x8] sm:$0xff]
    %v7360 = vld [vmem:[%s7357 + $0x10] sm:$0xff]
    %v7361 = vld [vmem:[%s7357 + $0x18] sm:$0xff]
    %v7370 = vcombine.low %v7349, %v7350
    %v7371 = vcombine.low %v7351, %v7352
    %v7372 = vcombine.low %v7353, %v7354
    %v7373 = vcombine.low %v7355, %v7356
    %v7374 = vsel %vm6539, %v7370, 0
    %v7376 = vsel %vm6539, %v7371, 0
    %v7378 = vsel %vm6539, %v7372, 0
    %v7380 = vsel %vm6539, %v7373, 0
    %7382 = vmatprep.subr.mxu0 0.0
    %7383 = vmatpush1.msra.mxu0 %v7358
    %7384 = vmatprep.subr.mxu0 0.0
    %7385 = vmatpush1.msra.mxu0 %v7359
    %7386 = vmatprep.subr.mxu0 0.0
    %7387 = vmatpush1.msra.mxu0 %v7360
    %7388 = vmatprep.subr.mxu0 0.0
    %7389 = vmatpush1.msra.mxu0 %v7361
    %7390 = vmatprep.subr.mxu0 0.0
    %7391 = vmatpush1.msra.mxu0 0.0
    %7392 = vmatprep.subr.mxu0 0.0
    %7393 = vmatpush1.msra.mxu0 0.0
    %7394 = vmatprep.subr.mxu0 0.0
    %7395 = vmatpush1.msra.mxu0 0.0
    %7396 = vmatprep.subr.mxu0 0.0
    %7397 = vmatpush1.msra.mxu0 0.0
    %7398 = vmatprep.subr.mxu0 0.0
    %7399 = vmatpush1.msra.mxu0 0.0
    %7400 = vmatprep.subr.mxu0 0.0
    %7401 = vmatpush1.msra.mxu0 0.0
    %7402 = vmatprep.subr.mxu0 0.0
    %7403 = vmatpush1.msra.mxu0 0.0
    %7404 = vmatprep.subr.mxu0 0.0
    %7405 = vmatpush1.msra.mxu0 0.0
    %7406 = vmatprep.subr.mxu0 0.0
    %7407 = vmatpush1.msra.mxu0 0.0
    %7408 = vmatprep.subr.mxu0 0.0
    %7409 = vmatpush1.msra.mxu0 0.0
    %7410 = vmatprep.subr.mxu0 0.0
    %7411 = vmatpush1.msra.mxu0 0.0
    %7412 = vmatprep.subr.mxu0 0.0
    %7413 = vmatpush1.msra.mxu0 0.0
    %7414 = vmatprep.subr.mxu0 0.0
    %7415 = vmatpush1.msra.mxu0 0.0
    %7416 = vmatprep.subr.mxu0 0.0
    %7417 = vmatpush1.msra.mxu0 0.0
    %7418 = vmatprep.subr.mxu0 0.0
    %7419 = vmatpush1.msra.mxu0 0.0
    %7420 = vmatprep.subr.mxu0 0.0
    %7421 = vmatpush1.msra.mxu0 0.0
    %7422 = vmatprep.subr.mxu0 0.0
    %7423 = vmatpush1.msra.mxu0 0.0
    %7424 = vmatprep.subr.mxu0 0.0
    %7425 = vmatpush1.msra.mxu0 0.0
    %7426 = vmatprep.subr.mxu0 0.0
    %7427 = vmatpush1.msra.mxu0 0.0
    %7428 = vmatprep.subr.mxu0 0.0
    %7429 = vmatpush1.msra.mxu0 0.0
    %7430 = vmatprep.subr.mxu0 0.0
    %7431 = vmatpush1.msra.mxu0 0.0
    %7432 = vmatprep.subr.mxu0 0.0
    %7433 = vmatpush1.msra.mxu0 0.0
    %7434 = vmatprep.subr.mxu0 0.0
    %7435 = vmatpush1.msra.mxu0 0.0
    %7436 = vmatprep.subr.mxu0 0.0
    %7437 = vmatpush1.msra.mxu0 0.0
    %7438 = vmatprep.subr.mxu0 0.0
    %7439 = vmatpush1.msra.mxu0 0.0
    %7440 = vmatprep.subr.mxu0 0.0
    %7441 = vmatpush1.msra.mxu0 0.0
    %7442 = vmatprep.subr.mxu0 0.0
    %7443 = vmatpush1.msra.mxu0 0.0
    %7444 = vmatprep.subr.mxu0 0.0
    %7445 = vmatpush1.msra.mxu0 0.0
    %7446 = vmatprep.mubr.f32.mxu0 0.0
    %7447 = vmatmul.mubr.f32.gmra.mrb[0].mxu0 %v7374
    %v7448 = vpop.f32.mrb[0].mxu0
    %v7449 = vadd.f32 0.0, %v7448
    %v7450 = vpop.f32.mrb[0].mxu0
    %7451 = vmatprep.mubr.f32.mxu0 0.0
    %7452 = vmatmul.mubr.f32.gmra.mrb[0].mxu0 %v7376
    %v7453 = vpop.f32.mrb[0].mxu0
    %v7454 = vadd.f32 0.0, %v7453
    %v7455 = vpop.f32.mrb[0].mxu0
    %7456 = vmatprep.mubr.f32.mxu0 0.0
    %7457 = vmatmul.mubr.f32.gmra.mrb[0].mxu0 %v7378
    %v7458 = vpop.f32.mrb[0].mxu0
    %v7459 = vadd.f32 0.0, %v7458
    %v7460 = vpop.f32.mrb[0].mxu0
    %7461 = vmatprep.mubr.f32.mxu0 0.0
    %7462 = vmatmul.mubr.f32.gmra.mrb[0].mxu0 %v7380
    %v7463 = vpop.f32.mrb[0].mxu0
    %v7464 = vadd.f32 0.0, %v7463
    %v7465 = vpop.f32.mrb[0].mxu0
    %7466 = vdwg.mxu0
    %v7467 = vadd.f32 %v7345, %v7449
    %v7468 = vadd.f32 %v7346, %v7454
    %v7469 = vadd.f32 %v7347, %v7459
    %v7470 = vadd.f32 %v7348, %v7464
    %v7471 = vld [vmem:[%s7226 + $0x2] sm:$0xf]
    %v7472 = vld [vmem:[%s7226 + $0xa] sm:$0xf]
    %v7473 = vld [vmem:[%s7226 + $0x12] sm:$0xf]
    %v7474 = vld [vmem:[%s7226 + $0x1a] sm:$0xf]
    %v7475 = vld [vmem:[%s7226 + $0x32] sm:$0xf]
    %v7476 = vld [vmem:[%s7226 + $0x3a] sm:$0xf]
    %v7477 = vld [vmem:[%s7226 + $0x42] sm:$0xf]
    %v7478 = vld [vmem:[%s7226 + $0x4a] sm:$0xf]
    %s7479 = scalar_lea.vmem %s9, 256
    %v7480 = vld [vmem:[%s7479] sm:$0xff]
    %v7481 = vld [vmem:[%s7479 + $0x8] sm:$0xff]
    %v7482 = vld [vmem:[%s7479 + $0x10] sm:$0xff]
    %v7483 = vld [vmem:[%s7479 + $0x18] sm:$0xff]
    %v7492 = vcombine.low %v7471, %v7472
    %v7493 = vcombine.low %v7473, %v7474
    %v7494 = vcombine.low %v7475, %v7476
    %v7495 = vcombine.low %v7477, %v7478
    %v7496 = vsel %vm6539, %v7492, 0
    %v7498 = vsel %vm6539, %v7493, 0
    %v7500 = vsel %vm6539, %v7494, 0
    %v7502 = vsel %vm6539, %v7495, 0
    %7504 = vmatprep.subr.mxu0 0.0
    %7505 = vmatpush1.msra.mxu0 %v7480
    %7506 = vmatprep.subr.mxu0 0.0
    %7507 = vmatpush1.msra.mxu0 %v7481
    %7508 = vmatprep.subr.mxu0 0.0
    %7509 = vmatpush1.msra.mxu0 %v7482
    %7510 = vmatprep.subr.mxu0 0.0
    %7511 = vmatpush1.msra.mxu0 %v7483
    %7512 = vmatprep.subr.mxu0 0.0
    %7513 = vmatpush1.msra.mxu0 0.0
    %7514 = vmatprep.subr.mxu0 0.0
    %7515 = vmatpush1.msra.mxu0 0.0
    %7516 = vmatprep.subr.mxu0 0.0
    %7517 = vmatpush1.msra.mxu0 0.0
    %7518 = vmatprep.subr.mxu0 0.0
    %7519 = vmatpush1.msra.mxu0 0.0
    %7520 = vmatprep.subr.mxu0 0.0
    %7521 = vmatpush1.msra.mxu0 0.0
    %7522 = vmatprep.subr.mxu0 0.0
    %7523 = vmatpush1.msra.mxu0 0.0
    %7524 = vmatprep.subr.mxu0 0.0
    %7525 = vmatpush1.msra.mxu0 0.0
    %7526 = vmatprep.subr.mxu0 0.0
    %7527 = vmatpush1.msra.mxu0 0.0
    %7528 = vmatprep.subr.mxu0 0.0
    %7529 = vmatpush1.msra.mxu0 0.0
    %7530 = vmatprep.subr.mxu0 0.0
    %7531 = vmatpush1.msra.mxu0 0.0
    %7532 = vmatprep.subr.mxu0 0.0
    %7533 = vmatpush1.msra.mxu0 0.0
    %7534 = vmatprep.subr.mxu0 0.0
    %7535 = vmatpush1.msra.mxu0 0.0
    %7536 = vmatprep.subr.mxu0 0.0
    %7537 = vmatpush1.msra.mxu0 0.0
    %7538 = vmatprep.subr.mxu0 0.0
    %7539 = vmatpush1.msra.mxu0 0.0
    %7540 = vmatprep.subr.mxu0 0.0
    %7541 = vmatpush1.msra.mxu0 0.0
    %7542 = vmatprep.subr.mxu0 0.0
    %7543 = vmatpush1.msra.mxu0 0.0
    %7544 = vmatprep.subr.mxu0 0.0
    %7545 = vmatpush1.msra.mxu0 0.0
    %7546 = vmatprep.subr.mxu0 0.0
    %7547 = vmatpush1.msra.mxu0 0.0
    %7548 = vmatprep.subr.mxu0 0.0
    %7549 = vmatpush1.msra.mxu0 0.0
    %7550 = vmatprep.subr.mxu0 0.0
    %7551 = vmatpush1.msra.mxu0 0.0
    %7552 = vmatprep.subr.mxu0 0.0
    %7553 = vmatpush1.msra.mxu0 0.0
    %7554 = vmatprep.subr.mxu0 0.0
    %7555 = vmatpush1.msra.mxu0 0.0
    %7556 = vmatprep.subr.mxu0 0.0
    %7557 = vmatpush1.msra.mxu0 0.0
    %7558 = vmatprep.subr.mxu0 0.0
    %7559 = vmatpush1.msra.mxu0 0.0
    %7560 = vmatprep.subr.mxu0 0.0
    %7561 = vmatpush1.msra.mxu0 0.0
    %7562 = vmatprep.subr.mxu0 0.0
    %7563 = vmatpush1.msra.mxu0 0.0
    %7564 = vmatprep.subr.mxu0 0.0
    %7565 = vmatpush1.msra.mxu0 0.0
    %7566 = vmatprep.subr.mxu0 0.0
    %7567 = vmatpush1.msra.mxu0 0.0
    %7568 = vmatprep.mubr.f32.mxu0 0.0
    %7569 = vmatmul.mubr.f32.gmra.mrb[0].mxu0 %v7496
    %v7570 = vpop.f32.mrb[0].mxu0
    %v7571 = vadd.f32 0.0, %v7570
    %v7572 = vpop.f32.mrb[0].mxu0
    %7573 = vmatprep.mubr.f32.mxu0 0.0
    %7574 = vmatmul.mubr.f32.gmra.mrb[0].mxu0 %v7498
    %v7575 = vpop.f32.mrb[0].mxu0
    %v7576 = vadd.f32 0.0, %v7575
    %v7577 = vpop.f32.mrb[0].mxu0
    %7578 = vmatprep.mubr.f32.mxu0 0.0
    %7579 = vmatmul.mubr.f32.gmra.mrb[0].mxu0 %v7500
    %v7580 = vpop.f32.mrb[0].mxu0
    %v7581 = vadd.f32 0.0, %v7580
    %v7582 = vpop.f32.mrb[0].mxu0
    %7583 = vmatprep.mubr.f32.mxu0 0.0
    %7584 = vmatmul.mubr.f32.gmra.mrb[0].mxu0 %v7502
    %v7585 = vpop.f32.mrb[0].mxu0
    %v7586 = vadd.f32 0.0, %v7585
    %v7587 = vpop.f32.mrb[0].mxu0
    %7588 = vdwg.mxu0
    %v7589 = vadd.f32 %v7467, %v7571
    %v7590 = vadd.f32 %v7468, %v7576
    %v7591 = vadd.f32 %v7469, %v7581
    %v7592 = vadd.f32 %v7470, %v7586
    %v7593 = vld [vmem:[%s10] sm:$0x1]
    %v7595 = vlaneseq
    %v7596 = vshrl.u32 %v7595, 7
    %v7597 = vsub.s32 0, %v7596
    %v7598 = vrot.slane %v7593, %v7597
    %v7600 = vadd.f32 %v7589, %v7598
    %v7601 = vadd.f32 %v7590, %v7598
    %v7602 = vadd.f32 %v7591, %v7598
    %v7603 = vadd.f32 %v7592, %v7598
    %v7604 = vmax.f32 %v7600, 0.0
    %v7605 = vmax.f32 %v7601, 0.0
    %v7606 = vmax.f32 %v7602, 0.0
    %v7607 = vmax.f32 %v7603, 0.0
    %v7612 = vcombine.high %v7604, %v7604
    %v7613 = vcombine.high %v7605, %v7605
    %v7614 = vcombine.high %v7606, %v7606
    %v7615 = vcombine.high %v7607, %v7607
    %7620 = vst.msk [vmem:[%s6492 + $0x1] sm:$0xf] %vm6493, %v7604
    %7621 = vst.msk [vmem:[%s6492 + $0x9] sm:$0xf] %vm6493, %v7612
    %7622 = vst.msk [vmem:[%s6492 + $0x11] sm:$0xf] %vm6493, %v7605
    %7623 = vst.msk [vmem:[%s6492 + $0x19] sm:$0xf] %vm6493, %v7613
    %7624 = vst.msk [vmem:[%s6492 + $0x31] sm:$0xf] %vm6493, %v7606
    %7625 = vst.msk [vmem:[%s6492 + $0x39] sm:$0xf] %vm6493, %v7614
    %7626 = vst.msk [vmem:[%s6492 + $0x41] sm:$0xf] %vm6493, %v7607
    %7627 = vst.msk [vmem:[%s6492 + $0x49] sm:$0xf] %vm6493, %v7615
    %v7628 = vld [vmem:[#allocation4] ss:$2 sm:$0x3]
    %s7629 = scalar_lea.vmem [#allocation4], 16
    %v7630 = vld [vmem:[%s7629] ss:$2 sm:$0x3]
    %s7631 = scalar_lea.vmem [#allocation4], 48
    %v7632 = vld [vmem:[%s7631] ss:$2 sm:$0x3]
    %s7633 = scalar_lea.vmem [#allocation4], 64
    %v7634 = vld [vmem:[%s7633] ss:$2 sm:$0x3]
    %v7635 = vld [vmem:[%s11] sm:$0xff]
    %v7636 = vld [vmem:[%s11 + $0x8] sm:$0xff]
    %v7637 = vld [vmem:[%s11 + $0x10] sm:$0xff]
    %v7638 = vld [vmem:[%s11 + $0x18] sm:$0xff]
    %s7639 = scalar_lea.vmem [#allocation4], 1
    %v7640 = vld [vmem:[%s7639] ss:$2 sm:$0x3]
    %s7641 = scalar_lea.vmem [#allocation4], 17
    %v7642 = vld [vmem:[%s7641] ss:$2 sm:$0x3]
    %s7643 = scalar_lea.vmem [#allocation4], 49
    %v7644 = vld [vmem:[%s7643] ss:$2 sm:$0x3]
    %s7645 = scalar_lea.vmem [#allocation4], 65
    %v7646 = vld [vmem:[%s7645] ss:$2 sm:$0x3]
    %s7647 = scalar_lea.vmem %s11, 32
    %v7648 = vld [vmem:[%s7647] sm:$0xff]
    %v7649 = vld [vmem:[%s7647 + $0x8] sm:$0xff]
    %v7650 = vld [vmem:[%s7647 + $0x10] sm:$0xff]
    %v7651 = vld [vmem:[%s7647 + $0x18] sm:$0xff]
    %v7656 = vcombine.low %v7640, %v7642
    %v7657 = vcombine.low %v7644, %v7646
    %v7659 = vunpack.c.l.s4 1983009808
    %v7660 = vunpack.c.0.s8 %v7659
    %v7661 = vlaneseq
    %v7662 = vshrl.u32 %v7661, 7
    %v7663 = vsub.s32 %v7660, %v7662
    %v7664 = vrot.slane %v7656, %v7663
    %v7666 = vunpack.c.l.s4 1983009808
    %v7667 = vunpack.c.0.s8 %v7666
    %v7668 = vlaneseq
    %v7669 = vshrl.u32 %v7668, 7
    %v7670 = vsub.s32 %v7667, %v7669
    %v7671 = vrot.slane %v7657, %v7670
    %v7672 = vcombine.low %v7664, %v7671
    %v7673 = vsel %vm6539, %v7672, 0
    %7675 = vmatprep.subr.mxu0 0.0
    %7676 = vmatpush1.msra.mxu0 %v7648
    %7677 = vmatprep.subr.mxu0 0.0
    %7678 = vmatpush1.msra.mxu0 %v7649
    %7679 = vmatprep.subr.mxu0 0.0
    %7680 = vmatpush1.msra.mxu0 %v7650
    %7681 = vmatprep.subr.mxu0 0.0
    %7682 = vmatpush1.msra.mxu0 %v7651
    %7683 = vmatprep.subr.mxu0 0.0
    %7684 = vmatpush1.msra.mxu0 0.0
    %7685 = vmatprep.subr.mxu0 0.0
    %7686 = vmatpush1.msra.mxu0 0.0
    %7687 = vmatprep.subr.mxu0 0.0
    %7688 = vmatpush1.msra.mxu0 0.0
    %7689 = vmatprep.subr.mxu0 0.0
    %7690 = vmatpush1.msra.mxu0 0.0
    %7691 = vmatprep.subr.mxu0 0.0
    %7692 = vmatpush1.msra.mxu0 0.0
    %7693 = vmatprep.subr.mxu0 0.0
    %7694 = vmatpush1.msra.mxu0 0.0
    %7695 = vmatprep.subr.mxu0 0.0
    %7696 = vmatpush1.msra.mxu0 0.0
    %7697 = vmatprep.subr.mxu0 0.0
    %7698 = vmatpush1.msra.mxu0 0.0
    %7699 = vmatprep.subr.mxu0 0.0
    %7700 = vmatpush1.msra.mxu0 0.0
    %7701 = vmatprep.subr.mxu0 0.0
    %7702 = vmatpush1.msra.mxu0 0.0
    %7703 = vmatprep.subr.mxu0 0.0
    %7704 = vmatpush1.msra.mxu0 0.0
    %7705 = vmatprep.subr.mxu0 0.0
    %7706 = vmatpush1.msra.mxu0 0.0
    %7707 = vmatprep.subr.mxu0 0.0
    %7708 = vmatpush1.msra.mxu0 0.0
    %7709 = vmatprep.subr.mxu0 0.0
    %7710 = vmatpush1.msra.mxu0 0.0
    %7711 = vmatprep.subr.mxu0 0.0
    %7712 = vmatpush1.msra.mxu0 0.0
    %7713 = vmatprep.subr.mxu0 0.0
    %7714 = vmatpush1.msra.mxu0 0.0
    %7715 = vmatprep.subr.mxu0 0.0
    %7716 = vmatpush1.msra.mxu0 0.0
    %7717 = vmatprep.subr.mxu0 0.0
    %7718 = vmatpush1.msra.mxu0 0.0
    %7719 = vmatprep.subr.mxu0 0.0
    %7720 = vmatpush1.msra.mxu0 0.0
    %7721 = vmatprep.subr.mxu0 0.0
    %7722 = vmatpush1.msra.mxu0 0.0
    %7723 = vmatprep.subr.mxu0 0.0
    %7724 = vmatpush1.msra.mxu0 0.0
    %7725 = vmatprep.subr.mxu0 0.0
    %7726 = vmatpush1.msra.mxu0 0.0
    %7727 = vmatprep.subr.mxu0 0.0
    %7728 = vmatpush1.msra.mxu0 0.0
    %7729 = vmatprep.subr.mxu0 0.0
    %7730 = vmatpush1.msra.mxu0 0.0
    %7731 = vmatprep.subr.mxu0 0.0
    %7732 = vmatpush1.msra.mxu0 0.0
    %7733 = vmatprep.subr.mxu0 0.0
    %7734 = vmatpush1.msra.mxu0 0.0
    %7735 = vmatprep.subr.mxu0 0.0
    %7736 = vmatpush1.msra.mxu0 0.0
    %7737 = vmatprep.subr.mxu0 0.0
    %7738 = vmatpush1.msra.mxu0 0.0
    %7739 = vmatprep.mubr.f32.mxu0 0.0
    %7740 = vmatmul.mubr.f32.gmra.mrb[0].mxu0 %v7673
    %v7741 = vpop.f32.mrb[0].mxu0
    %v7742 = vadd.f32 0.0, %v7741
    %v7743 = vpop.f32.mrb[0].mxu0
    %7744 = vdwg.mxu0
    %v7749 = vcombine.low %v7628, %v7630
    %v7750 = vcombine.low %v7632, %v7634
    %v7752 = vunpack.c.l.s4 1983009808
    %v7753 = vunpack.c.0.s8 %v7752
    %v7754 = vlaneseq
    %v7755 = vshrl.u32 %v7754, 7
    %v7756 = vsub.s32 %v7753, %v7755
    %v7757 = vrot.slane %v7749, %v7756
    %v7759 = vunpack.c.l.s4 1983009808
    %v7760 = vunpack.c.0.s8 %v7759
    %v7761 = vlaneseq
    %v7762 = vshrl.u32 %v7761, 7
    %v7763 = vsub.s32 %v7760, %v7762
    %v7764 = vrot.slane %v7750, %v7763
    %v7765 = vcombine.low %v7757, %v7764
    %v7766 = vsel %vm6539, %v7765, 0
    %7768 = vmatprep.subr.mxu0 0.0
    %7769 = vmatpush1.msra.mxu0 %v7635
    %7770 = vmatprep.subr.mxu0 0.0
    %7771 = vmatpush1.msra.mxu0 %v7636
    %7772 = vmatprep.subr.mxu0 0.0
    %7773 = vmatpush1.msra.mxu0 %v7637
    %7774 = vmatprep.subr.mxu0 0.0
    %7775 = vmatpush1.msra.mxu0 %v7638
    %7776 = vmatprep.subr.mxu0 0.0
    %7777 = vmatpush1.msra.mxu0 0.0
    %7778 = vmatprep.subr.mxu0 0.0
    %7779 = vmatpush1.msra.mxu0 0.0
    %7780 = vmatprep.subr.mxu0 0.0
    %7781 = vmatpush1.msra.mxu0 0.0
    %7782 = vmatprep.subr.mxu0 0.0
    %7783 = vmatpush1.msra.mxu0 0.0
    %7784 = vmatprep.subr.mxu0 0.0
    %7785 = vmatpush1.msra.mxu0 0.0
    %7786 = vmatprep.subr.mxu0 0.0
    %7787 = vmatpush1.msra.mxu0 0.0
    %7788 = vmatprep.subr.mxu0 0.0
    %7789 = vmatpush1.msra.mxu0 0.0
    %7790 = vmatprep.subr.mxu0 0.0
    %7791 = vmatpush1.msra.mxu0 0.0
    %7792 = vmatprep.subr.mxu0 0.0
    %7793 = vmatpush1.msra.mxu0 0.0
    %7794 = vmatprep.subr.mxu0 0.0
    %7795 = vmatpush1.msra.mxu0 0.0
    %7796 = vmatprep.subr.mxu0 0.0
    %7797 = vmatpush1.msra.mxu0 0.0
    %7798 = vmatprep.subr.mxu0 0.0
    %7799 = vmatpush1.msra.mxu0 0.0
    %7800 = vmatprep.subr.mxu0 0.0
    %7801 = vmatpush1.msra.mxu0 0.0
    %7802 = vmatprep.subr.mxu0 0.0
    %7803 = vmatpush1.msra.mxu0 0.0
    %7804 = vmatprep.subr.mxu0 0.0
    %7805 = vmatpush1.msra.mxu0 0.0
    %7806 = vmatprep.subr.mxu0 0.0
    %7807 = vmatpush1.msra.mxu0 0.0
    %7808 = vmatprep.subr.mxu0 0.0
    %7809 = vmatpush1.msra.mxu0 0.0
    %7810 = vmatprep.subr.mxu0 0.0
    %7811 = vmatpush1.msra.mxu0 0.0
    %7812 = vmatprep.subr.mxu0 0.0
    %7813 = vmatpush1.msra.mxu0 0.0
    %7814 = vmatprep.subr.mxu0 0.0
    %7815 = vmatpush1.msra.mxu0 0.0
    %7816 = vmatprep.subr.mxu0 0.0
    %7817 = vmatpush1.msra.mxu0 0.0
    %7818 = vmatprep.subr.mxu0 0.0
    %7819 = vmatpush1.msra.mxu0 0.0
    %7820 = vmatprep.subr.mxu0 0.0
    %7821 = vmatpush1.msra.mxu0 0.0
    %7822 = vmatprep.subr.mxu0 0.0
    %7823 = vmatpush1.msra.mxu0 0.0
    %7824 = vmatprep.subr.mxu0 0.0
    %7825 = vmatpush1.msra.mxu0 0.0
    %7826 = vmatprep.subr.mxu0 0.0
    %7827 = vmatpush1.msra.mxu0 0.0
    %7828 = vmatprep.subr.mxu0 0.0
    %7829 = vmatpush1.msra.mxu0 0.0
    %7830 = vmatprep.subr.mxu0 0.0
    %7831 = vmatpush1.msra.mxu0 0.0
    %7832 = vmatprep.mubr.f32.mxu0 0.0
    %7833 = vmatmul.mubr.f32.gmra.mrb[0].mxu0 %v7766
    %v7834 = vpop.f32.mrb[0].mxu0
    %v7835 = vadd.f32 %v7742, %v7834
    %v7836 = vpop.f32.mrb[0].mxu0
    %7837 = vdwg.mxu0
    %s7838 = scalar_lea.vmem [#allocation4], 2
    %v7839 = vld [vmem:[%s7838] ss:$2 sm:$0x3]
    %s7840 = scalar_lea.vmem [#allocation4], 18
    %v7841 = vld [vmem:[%s7840] ss:$2 sm:$0x3]
    %s7842 = scalar_lea.vmem [#allocation4], 50
    %v7843 = vld [vmem:[%s7842] ss:$2 sm:$0x3]
    %s7844 = scalar_lea.vmem [#allocation4], 66
    %v7845 = vld [vmem:[%s7844] ss:$2 sm:$0x3]
    %s7846 = scalar_lea.vmem %s11, 64
    %v7847 = vld [vmem:[%s7846] sm:$0xff]
    %v7848 = vld [vmem:[%s7846 + $0x8] sm:$0xff]
    %v7849 = vld [vmem:[%s7846 + $0x10] sm:$0xff]
    %v7850 = vld [vmem:[%s7846 + $0x18] sm:$0xff]
    %v7855 = vcombine.low %v7839, %v7841
    %v7856 = vcombine.low %v7843, %v7845
    %v7858 = vunpack.c.l.s4 1983009808
    %v7859 = vunpack.c.0.s8 %v7858
    %v7860 = vlaneseq
    %v7861 = vshrl.u32 %v7860, 7
    %v7862 = vsub.s32 %v7859, %v7861
    %v7863 = vrot.slane %v7855, %v7862
    %v7865 = vunpack.c.l.s4 1983009808
    %v7866 = vunpack.c.0.s8 %v7865
    %v7867 = vlaneseq
    %v7868 = vshrl.u32 %v7867, 7
    %v7869 = vsub.s32 %v7866, %v7868
    %v7870 = vrot.slane %v7856, %v7869
    %v7871 = vcombine.low %v7863, %v7870
    %v7872 = vsel %vm6539, %v7871, 0
    %7874 = vmatprep.subr.mxu0 0.0
    %7875 = vmatpush1.msra.mxu0 %v7847
    %7876 = vmatprep.subr.mxu0 0.0
    %7877 = vmatpush1.msra.mxu0 %v7848
    %7878 = vmatprep.subr.mxu0 0.0
    %7879 = vmatpush1.msra.mxu0 %v7849
    %7880 = vmatprep.subr.mxu0 0.0
    %7881 = vmatpush1.msra.mxu0 %v7850
    %7882 = vmatprep.subr.mxu0 0.0
    %7883 = vmatpush1.msra.mxu0 0.0
    %7884 = vmatprep.subr.mxu0 0.0
    %7885 = vmatpush1.msra.mxu0 0.0
    %7886 = vmatprep.subr.mxu0 0.0
    %7887 = vmatpush1.msra.mxu0 0.0
    %7888 = vmatprep.subr.mxu0 0.0
    %7889 = vmatpush1.msra.mxu0 0.0
    %7890 = vmatprep.subr.mxu0 0.0
    %7891 = vmatpush1.msra.mxu0 0.0
    %7892 = vmatprep.subr.mxu0 0.0
    %7893 = vmatpush1.msra.mxu0 0.0
    %7894 = vmatprep.subr.mxu0 0.0
    %7895 = vmatpush1.msra.mxu0 0.0
    %7896 = vmatprep.subr.mxu0 0.0
    %7897 = vmatpush1.msra.mxu0 0.0
    %7898 = vmatprep.subr.mxu0 0.0
    %7899 = vmatpush1.msra.mxu0 0.0
    %7900 = vmatprep.subr.mxu0 0.0
    %7901 = vmatpush1.msra.mxu0 0.0
    %7902 = vmatprep.subr.mxu0 0.0
    %7903 = vmatpush1.msra.mxu0 0.0
    %7904 = vmatprep.subr.mxu0 0.0
    %7905 = vmatpush1.msra.mxu0 0.0
    %7906 = vmatprep.subr.mxu0 0.0
    %7907 = vmatpush1.msra.mxu0 0.0
    %7908 = vmatprep.subr.mxu0 0.0
    %7909 = vmatpush1.msra.mxu0 0.0
    %7910 = vmatprep.subr.mxu0 0.0
    %7911 = vmatpush1.msra.mxu0 0.0
    %7912 = vmatprep.subr.mxu0 0.0
    %7913 = vmatpush1.msra.mxu0 0.0
    %7914 = vmatprep.subr.mxu0 0.0
    %7915 = vmatpush1.msra.mxu0 0.0
    %7916 = vmatprep.subr.mxu0 0.0
    %7917 = vmatpush1.msra.mxu0 0.0
    %7918 = vmatprep.subr.mxu0 0.0
    %7919 = vmatpush1.msra.mxu0 0.0
    %7920 = vmatprep.subr.mxu0 0.0
    %7921 = vmatpush1.msra.mxu0 0.0
    %7922 = vmatprep.subr.mxu0 0.0
    %7923 = vmatpush1.msra.mxu0 0.0
    %7924 = vmatprep.subr.mxu0 0.0
    %7925 = vmatpush1.msra.mxu0 0.0
    %7926 = vmatprep.subr.mxu0 0.0
    %7927 = vmatpush1.msra.mxu0 0.0
    %7928 = vmatprep.subr.mxu0 0.0
    %7929 = vmatpush1.msra.mxu0 0.0
    %7930 = vmatprep.subr.mxu0 0.0
    %7931 = vmatpush1.msra.mxu0 0.0
    %7932 = vmatprep.subr.mxu0 0.0
    %7933 = vmatpush1.msra.mxu0 0.0
    %7934 = vmatprep.subr.mxu0 0.0
    %7935 = vmatpush1.msra.mxu0 0.0
    %7936 = vmatprep.subr.mxu0 0.0
    %7937 = vmatpush1.msra.mxu0 0.0
    %7938 = vmatprep.mubr.f32.mxu0 0.0
    %7939 = vmatmul.mubr.f32.gmra.mrb[0].mxu0 %v7872
    %v7940 = vpop.f32.mrb[0].mxu0
    %v7941 = vadd.f32 0.0, %v7940
    %v7942 = vpop.f32.mrb[0].mxu0
    %7943 = vdwg.mxu0
    %v7944 = vadd.f32 %v7835, %v7941
    %v7945 = vld [vmem:[%s6492] ss:$2 sm:$0x3]
    %s7946 = scalar_lea.vmem %s6492, 16 [#allocation4]
    %v7947 = vld [vmem:[%s7946] ss:$2 sm:$0x3]
    %s7948 = scalar_lea.vmem %s6492, 48 [#allocation4]
    %v7949 = vld [vmem:[%s7948] ss:$2 sm:$0x3]
    %s7950 = scalar_lea.vmem %s6492, 64 [#allocation4]
    %v7951 = vld [vmem:[%s7950] ss:$2 sm:$0x3]
    %s7952 = scalar_lea.vmem %s11, 96
    %v7953 = vld [vmem:[%s7952] sm:$0xff]
    %v7954 = vld [vmem:[%s7952 + $0x8] sm:$0xff]
    %v7955 = vld [vmem:[%s7952 + $0x10] sm:$0xff]
    %v7956 = vld [vmem:[%s7952 + $0x18] sm:$0xff]
    %v7961 = vcombine.low %v7945, %v7947
    %v7962 = vcombine.low %v7949, %v7951
    %v7964 = vunpack.c.l.s4 1983009808
    %v7965 = vunpack.c.0.s8 %v7964
    %v7966 = vlaneseq
    %v7967 = vshrl.u32 %v7966, 7
    %v7968 = vsub.s32 %v7965, %v7967
    %v7969 = vrot.slane %v7961, %v7968
    %v7971 = vunpack.c.l.s4 1983009808
    %v7972 = vunpack.c.0.s8 %v7971
    %v7973 = vlaneseq
    %v7974 = vshrl.u32 %v7973, 7
    %v7975 = vsub.s32 %v7972, %v7974
    %v7976 = vrot.slane %v7962, %v7975
    %v7977 = vcombine.low %v7969, %v7976
    %v7978 = vsel %vm6539, %v7977, 0
    %7980 = vmatprep.subr.mxu0 0.0
    %7981 = vmatpush1.msra.mxu0 %v7953
    %7982 = vmatprep.subr.mxu0 0.0
    %7983 = vmatpush1.msra.mxu0 %v7954
    %7984 = vmatprep.subr.mxu0 0.0
    %7985 = vmatpush1.msra.mxu0 %v7955
    %7986 = vmatprep.subr.mxu0 0.0
    %7987 = vmatpush1.msra.mxu0 %v7956
    %7988 = vmatprep.subr.mxu0 0.0
    %7989 = vmatpush1.msra.mxu0 0.0
    %7990 = vmatprep.subr.mxu0 0.0
    %7991 = vmatpush1.msra.mxu0 0.0
    %7992 = vmatprep.subr.mxu0 0.0
    %7993 = vmatpush1.msra.mxu0 0.0
    %7994 = vmatprep.subr.mxu0 0.0
    %7995 = vmatpush1.msra.mxu0 0.0
    %7996 = vmatprep.subr.mxu0 0.0
    %7997 = vmatpush1.msra.mxu0 0.0
    %7998 = vmatprep.subr.mxu0 0.0
    %7999 = vmatpush1.msra.mxu0 0.0
    %8000 = vmatprep.subr.mxu0 0.0
    %8001 = vmatpush1.msra.mxu0 0.0
    %8002 = vmatprep.subr.mxu0 0.0
    %8003 = vmatpush1.msra.mxu0 0.0
    %8004 = vmatprep.subr.mxu0 0.0
    %8005 = vmatpush1.msra.mxu0 0.0
    %8006 = vmatprep.subr.mxu0 0.0
    %8007 = vmatpush1.msra.mxu0 0.0
    %8008 = vmatprep.subr.mxu0 0.0
    %8009 = vmatpush1.msra.mxu0 0.0
    %8010 = vmatprep.subr.mxu0 0.0
    %8011 = vmatpush1.msra.mxu0 0.0
    %8012 = vmatprep.subr.mxu0 0.0
    %8013 = vmatpush1.msra.mxu0 0.0
    %8014 = vmatprep.subr.mxu0 0.0
    %8015 = vmatpush1.msra.mxu0 0.0
    %8016 = vmatprep.subr.mxu0 0.0
    %8017 = vmatpush1.msra.mxu0 0.0
    %8018 = vmatprep.subr.mxu0 0.0
    %8019 = vmatpush1.msra.mxu0 0.0
    %8020 = vmatprep.subr.mxu0 0.0
    %8021 = vmatpush1.msra.mxu0 0.0
    %8022 = vmatprep.subr.mxu0 0.0
    %8023 = vmatpush1.msra.mxu0 0.0
    %8024 = vmatprep.subr.mxu0 0.0
    %8025 = vmatpush1.msra.mxu0 0.0
    %8026 = vmatprep.subr.mxu0 0.0
    %8027 = vmatpush1.msra.mxu0 0.0
    %8028 = vmatprep.subr.mxu0 0.0
    %8029 = vmatpush1.msra.mxu0 0.0
    %8030 = vmatprep.subr.mxu0 0.0
    %8031 = vmatpush1.msra.mxu0 0.0
    %8032 = vmatprep.subr.mxu0 0.0
    %8033 = vmatpush1.msra.mxu0 0.0
    %8034 = vmatprep.subr.mxu0 0.0
    %8035 = vmatpush1.msra.mxu0 0.0
    %8036 = vmatprep.subr.mxu0 0.0
    %8037 = vmatpush1.msra.mxu0 0.0
    %8038 = vmatprep.subr.mxu0 0.0
    %8039 = vmatpush1.msra.mxu0 0.0
    %8040 = vmatprep.subr.mxu0 0.0
    %8041 = vmatpush1.msra.mxu0 0.0
    %8042 = vmatprep.subr.mxu0 0.0
    %8043 = vmatpush1.msra.mxu0 0.0
    %8044 = vmatprep.mubr.f32.mxu0 0.0
    %8045 = vmatmul.mubr.f32.gmra.mrb[0].mxu0 %v7978
    %v8046 = vpop.f32.mrb[0].mxu0
    %v8047 = vadd.f32 0.0, %v8046
    %v8048 = vpop.f32.mrb[0].mxu0
    %8049 = vdwg.mxu0
    %v8050 = vadd.f32 %v7944, %v8047
    %s8051 = scalar_lea.vmem %s6492, 1 [#allocation4]
    %v8052 = vld [vmem:[%s8051] ss:$2 sm:$0x3]
    %s8053 = scalar_lea.vmem %s6492, 17 [#allocation4]
    %v8054 = vld [vmem:[%s8053] ss:$2 sm:$0x3]
    %s8055 = scalar_lea.vmem %s6492, 49 [#allocation4]
    %v8056 = vld [vmem:[%s8055] ss:$2 sm:$0x3]
    %s8057 = scalar_lea.vmem %s6492, 65 [#allocation4]
    %v8058 = vld [vmem:[%s8057] ss:$2 sm:$0x3]
    %s8059 = scalar_lea.vmem %s11, 128
    %v8060 = vld [vmem:[%s8059] sm:$0xff]
    %v8061 = vld [vmem:[%s8059 + $0x8] sm:$0xff]
    %v8062 = vld [vmem:[%s8059 + $0x10] sm:$0xff]
    %v8063 = vld [vmem:[%s8059 + $0x18] sm:$0xff]
    %v8068 = vcombine.low %v8052, %v8054
    %v8069 = vcombine.low %v8056, %v8058
    %v8071 = vunpack.c.l.s4 1983009808
    %v8072 = vunpack.c.0.s8 %v8071
    %v8073 = vlaneseq
    %v8074 = vshrl.u32 %v8073, 7
    %v8075 = vsub.s32 %v8072, %v8074
    %v8076 = vrot.slane %v8068, %v8075
    %v8078 = vunpack.c.l.s4 1983009808
    %v8079 = vunpack.c.0.s8 %v8078
    %v8080 = vlaneseq
    %v8081 = vshrl.u32 %v8080, 7
    %v8082 = vsub.s32 %v8079, %v8081
    %v8083 = vrot.slane %v8069, %v8082
    %v8084 = vcombine.low %v8076, %v8083
    %v8085 = vsel %vm6539, %v8084, 0
    %8087 = vmatprep.subr.mxu0 0.0
    %8088 = vmatpush1.msra.mxu0 %v8060
    %8089 = vmatprep.subr.mxu0 0.0
    %8090 = vmatpush1.msra.mxu0 %v8061
    %8091 = vmatprep.subr.mxu0 0.0
    %8092 = vmatpush1.msra.mxu0 %v8062
    %8093 = vmatprep.subr.mxu0 0.0
    %8094 = vmatpush1.msra.mxu0 %v8063
    %8095 = vmatprep.subr.mxu0 0.0
    %8096 = vmatpush1.msra.mxu0 0.0
    %8097 = vmatprep.subr.mxu0 0.0
    %8098 = vmatpush1.msra.mxu0 0.0
    %8099 = vmatprep.subr.mxu0 0.0
    %8100 = vmatpush1.msra.mxu0 0.0
    %8101 = vmatprep.subr.mxu0 0.0
    %8102 = vmatpush1.msra.mxu0 0.0
    %8103 = vmatprep.subr.mxu0 0.0
    %8104 = vmatpush1.msra.mxu0 0.0
    %8105 = vmatprep.subr.mxu0 0.0
    %8106 = vmatpush1.msra.mxu0 0.0
    %8107 = vmatprep.subr.mxu0 0.0
    %8108 = vmatpush1.msra.mxu0 0.0
    %8109 = vmatprep.subr.mxu0 0.0
    %8110 = vmatpush1.msra.mxu0 0.0
    %8111 = vmatprep.subr.mxu0 0.0
    %8112 = vmatpush1.msra.mxu0 0.0
    %8113 = vmatprep.subr.mxu0 0.0
    %8114 = vmatpush1.msra.mxu0 0.0
    %8115 = vmatprep.subr.mxu0 0.0
    %8116 = vmatpush1.msra.mxu0 0.0
    %8117 = vmatprep.subr.mxu0 0.0
    %8118 = vmatpush1.msra.mxu0 0.0
    %8119 = vmatprep.subr.mxu0 0.0
    %8120 = vmatpush1.msra.mxu0 0.0
    %8121 = vmatprep.subr.mxu0 0.0
    %8122 = vmatpush1.msra.mxu0 0.0
    %8123 = vmatprep.subr.mxu0 0.0
    %8124 = vmatpush1.msra.mxu0 0.0
    %8125 = vmatprep.subr.mxu0 0.0
    %8126 = vmatpush1.msra.mxu0 0.0
    %8127 = vmatprep.subr.mxu0 0.0
    %8128 = vmatpush1.msra.mxu0 0.0
    %8129 = vmatprep.subr.mxu0 0.0
    %8130 = vmatpush1.msra.mxu0 0.0
    %8131 = vmatprep.subr.mxu0 0.0
    %8132 = vmatpush1.msra.mxu0 0.0
    %8133 = vmatprep.subr.mxu0 0.0
    %8134 = vmatpush1.msra.mxu0 0.0
    %8135 = vmatprep.subr.mxu0 0.0
    %8136 = vmatpush1.msra.mxu0 0.0
    %8137 = vmatprep.subr.mxu0 0.0
    %8138 = vmatpush1.msra.mxu0 0.0
    %8139 = vmatprep.subr.mxu0 0.0
    %8140 = vmatpush1.msra.mxu0 0.0
    %8141 = vmatprep.subr.mxu0 0.0
    %8142 = vmatpush1.msra.mxu0 0.0
    %8143 = vmatprep.subr.mxu0 0.0
    %8144 = vmatpush1.msra.mxu0 0.0
    %8145 = vmatprep.subr.mxu0 0.0
    %8146 = vmatpush1.msra.mxu0 0.0
    %8147 = vmatprep.subr.mxu0 0.0
    %8148 = vmatpush1.msra.mxu0 0.0
    %8149 = vmatprep.subr.mxu0 0.0
    %8150 = vmatpush1.msra.mxu0 0.0
    %8151 = vmatprep.mubr.f32.mxu0 0.0
    %8152 = vmatmul.mubr.f32.gmra.mrb[0].mxu0 %v8085
    %v8153 = vpop.f32.mrb[0].mxu0
    %v8154 = vadd.f32 0.0, %v8153
    %v8155 = vpop.f32.mrb[0].mxu0
    %8156 = vdwg.mxu0
    %v8157 = vadd.f32 %v8050, %v8154
    %s8158 = scalar_lea.vmem %s6492, 2 [#allocation4]
    %v8159 = vld [vmem:[%s8158] ss:$2 sm:$0x3]
    %s8160 = scalar_lea.vmem %s6492, 18 [#allocation4]
    %v8161 = vld [vmem:[%s8160] ss:$2 sm:$0x3]
    %s8162 = scalar_lea.vmem %s6492, 50 [#allocation4]
    %v8163 = vld [vmem:[%s8162] ss:$2 sm:$0x3]
    %s8164 = scalar_lea.vmem %s6492, 66 [#allocation4]
    %v8165 = vld [vmem:[%s8164] ss:$2 sm:$0x3]
    %s8166 = scalar_lea.vmem %s11, 160
    %v8167 = vld [vmem:[%s8166] sm:$0xff]
    %v8168 = vld [vmem:[%s8166 + $0x8] sm:$0xff]
    %v8169 = vld [vmem:[%s8166 + $0x10] sm:$0xff]
    %v8170 = vld [vmem:[%s8166 + $0x18] sm:$0xff]
    %v8175 = vcombine.low %v8159, %v8161
    %v8176 = vcombine.low %v8163, %v8165
    %v8178 = vunpack.c.l.s4 1983009808
    %v8179 = vunpack.c.0.s8 %v8178
    %v8180 = vlaneseq
    %v8181 = vshrl.u32 %v8180, 7
    %v8182 = vsub.s32 %v8179, %v8181
    %v8183 = vrot.slane %v8175, %v8182
    %v8185 = vunpack.c.l.s4 1983009808
    %v8186 = vunpack.c.0.s8 %v8185
    %v8187 = vlaneseq
    %v8188 = vshrl.u32 %v8187, 7
    %v8189 = vsub.s32 %v8186, %v8188
    %v8190 = vrot.slane %v8176, %v8189
    %v8191 = vcombine.low %v8183, %v8190
    %v8192 = vsel %vm6539, %v8191, 0
    %8194 = vmatprep.subr.mxu0 0.0
    %8195 = vmatpush1.msra.mxu0 %v8167
    %8196 = vmatprep.subr.mxu0 0.0
    %8197 = vmatpush1.msra.mxu0 %v8168
    %8198 = vmatprep.subr.mxu0 0.0
    %8199 = vmatpush1.msra.mxu0 %v8169
    %8200 = vmatprep.subr.mxu0 0.0
    %8201 = vmatpush1.msra.mxu0 %v8170
    %8202 = vmatprep.subr.mxu0 0.0
    %8203 = vmatpush1.msra.mxu0 0.0
    %8204 = vmatprep.subr.mxu0 0.0
    %8205 = vmatpush1.msra.mxu0 0.0
    %8206 = vmatprep.subr.mxu0 0.0
    %8207 = vmatpush1.msra.mxu0 0.0
    %8208 = vmatprep.subr.mxu0 0.0
    %8209 = vmatpush1.msra.mxu0 0.0
    %8210 = vmatprep.subr.mxu0 0.0
    %8211 = vmatpush1.msra.mxu0 0.0
    %8212 = vmatprep.subr.mxu0 0.0
    %8213 = vmatpush1.msra.mxu0 0.0
    %8214 = vmatprep.subr.mxu0 0.0
    %8215 = vmatpush1.msra.mxu0 0.0
    %8216 = vmatprep.subr.mxu0 0.0
    %8217 = vmatpush1.msra.mxu0 0.0
    %8218 = vmatprep.subr.mxu0 0.0
    %8219 = vmatpush1.msra.mxu0 0.0
    %8220 = vmatprep.subr.mxu0 0.0
    %8221 = vmatpush1.msra.mxu0 0.0
    %8222 = vmatprep.subr.mxu0 0.0
    %8223 = vmatpush1.msra.mxu0 0.0
    %8224 = vmatprep.subr.mxu0 0.0
    %8225 = vmatpush1.msra.mxu0 0.0
    %8226 = vmatprep.subr.mxu0 0.0
    %8227 = vmatpush1.msra.mxu0 0.0
    %8228 = vmatprep.subr.mxu0 0.0
    %8229 = vmatpush1.msra.mxu0 0.0
    %8230 = vmatprep.subr.mxu0 0.0
    %8231 = vmatpush1.msra.mxu0 0.0
    %8232 = vmatprep.subr.mxu0 0.0
    %8233 = vmatpush1.msra.mxu0 0.0
    %8234 = vmatprep.subr.mxu0 0.0
    %8235 = vmatpush1.msra.mxu0 0.0
    %8236 = vmatprep.subr.mxu0 0.0
    %8237 = vmatpush1.msra.mxu0 0.0
    %8238 = vmatprep.subr.mxu0 0.0
    %8239 = vmatpush1.msra.mxu0 0.0
    %8240 = vmatprep.subr.mxu0 0.0
    %8241 = vmatpush1.msra.mxu0 0.0
    %8242 = vmatprep.subr.mxu0 0.0
    %8243 = vmatpush1.msra.mxu0 0.0
    %8244 = vmatprep.subr.mxu0 0.0
    %8245 = vmatpush1.msra.mxu0 0.0
    %8246 = vmatprep.subr.mxu0 0.0
    %8247 = vmatpush1.msra.mxu0 0.0
    %8248 = vmatprep.subr.mxu0 0.0
    %8249 = vmatpush1.msra.mxu0 0.0
    %8250 = vmatprep.subr.mxu0 0.0
    %8251 = vmatpush1.msra.mxu0 0.0
    %8252 = vmatprep.subr.mxu0 0.0
    %8253 = vmatpush1.msra.mxu0 0.0
    %8254 = vmatprep.subr.mxu0 0.0
    %8255 = vmatpush1.msra.mxu0 0.0
    %8256 = vmatprep.subr.mxu0 0.0
    %8257 = vmatpush1.msra.mxu0 0.0
    %8258 = vmatprep.mubr.f32.mxu0 0.0
    %8259 = vmatmul.mubr.f32.gmra.mrb[0].mxu0 %v8192
    %v8260 = vpop.f32.mrb[0].mxu0
    %v8261 = vadd.f32 0.0, %v8260
    %v8262 = vpop.f32.mrb[0].mxu0
    %8263 = vdwg.mxu0
    %v8264 = vadd.f32 %v8157, %v8261
    %v8265 = vld [vmem:[%s7226] ss:$2 sm:$0x3]
    %s8266 = scalar_lea.vmem %s7226, 16 [#allocation4]
    %v8267 = vld [vmem:[%s8266] ss:$2 sm:$0x3]
    %s8268 = scalar_lea.vmem %s7226, 48 [#allocation4]
    %v8269 = vld [vmem:[%s8268] ss:$2 sm:$0x3]
    %s8270 = scalar_lea.vmem %s7226, 64 [#allocation4]
    %v8271 = vld [vmem:[%s8270] ss:$2 sm:$0x3]
    %s8272 = scalar_lea.vmem %s11, 192
    %v8273 = vld [vmem:[%s8272] sm:$0xff]
    %v8274 = vld [vmem:[%s8272 + $0x8] sm:$0xff]
    %v8275 = vld [vmem:[%s8272 + $0x10] sm:$0xff]
    %v8276 = vld [vmem:[%s8272 + $0x18] sm:$0xff]
    %v8281 = vcombine.low %v8265, %v8267
    %v8282 = vcombine.low %v8269, %v8271
    %v8284 = vunpack.c.l.s4 1983009808
    %v8285 = vunpack.c.0.s8 %v8284
    %v8286 = vlaneseq
    %v8287 = vshrl.u32 %v8286, 7
    %v8288 = vsub.s32 %v8285, %v8287
    %v8289 = vrot.slane %v8281, %v8288
    %v8291 = vunpack.c.l.s4 1983009808
    %v8292 = vunpack.c.0.s8 %v8291
    %v8293 = vlaneseq
    %v8294 = vshrl.u32 %v8293, 7
    %v8295 = vsub.s32 %v8292, %v8294
    %v8296 = vrot.slane %v8282, %v8295
    %v8297 = vcombine.low %v8289, %v8296
    %v8298 = vsel %vm6539, %v8297, 0
    %8300 = vmatprep.subr.mxu0 0.0
    %8301 = vmatpush1.msra.mxu0 %v8273
    %8302 = vmatprep.subr.mxu0 0.0
    %8303 = vmatpush1.msra.mxu0 %v8274
    %8304 = vmatprep.subr.mxu0 0.0
    %8305 = vmatpush1.msra.mxu0 %v8275
    %8306 = vmatprep.subr.mxu0 0.0
    %8307 = vmatpush1.msra.mxu0 %v8276
    %8308 = vmatprep.subr.mxu0 0.0
    %8309 = vmatpush1.msra.mxu0 0.0
    %8310 = vmatprep.subr.mxu0 0.0
    %8311 = vmatpush1.msra.mxu0 0.0
    %8312 = vmatprep.subr.mxu0 0.0
    %8313 = vmatpush1.msra.mxu0 0.0
    %8314 = vmatprep.subr.mxu0 0.0
    %8315 = vmatpush1.msra.mxu0 0.0
    %8316 = vmatprep.subr.mxu0 0.0
    %8317 = vmatpush1.msra.mxu0 0.0
    %8318 = vmatprep.subr.mxu0 0.0
    %8319 = vmatpush1.msra.mxu0 0.0
    %8320 = vmatprep.subr.mxu0 0.0
    %8321 = vmatpush1.msra.mxu0 0.0
    %8322 = vmatprep.subr.mxu0 0.0
    %8323 = vmatpush1.msra.mxu0 0.0
    %8324 = vmatprep.subr.mxu0 0.0
    %8325 = vmatpush1.msra.mxu0 0.0
    %8326 = vmatprep.subr.mxu0 0.0
    %8327 = vmatpush1.msra.mxu0 0.0
    %8328 = vmatprep.subr.mxu0 0.0
    %8329 = vmatpush1.msra.mxu0 0.0
    %8330 = vmatprep.subr.mxu0 0.0
    %8331 = vmatpush1.msra.mxu0 0.0
    %8332 = vmatprep.subr.mxu0 0.0
    %8333 = vmatpush1.msra.mxu0 0.0
    %8334 = vmatprep.subr.mxu0 0.0
    %8335 = vmatpush1.msra.mxu0 0.0
    %8336 = vmatprep.subr.mxu0 0.0
    %8337 = vmatpush1.msra.mxu0 0.0
    %8338 = vmatprep.subr.mxu0 0.0
    %8339 = vmatpush1.msra.mxu0 0.0
    %8340 = vmatprep.subr.mxu0 0.0
    %8341 = vmatpush1.msra.mxu0 0.0
    %8342 = vmatprep.subr.mxu0 0.0
    %8343 = vmatpush1.msra.mxu0 0.0
    %8344 = vmatprep.subr.mxu0 0.0
    %8345 = vmatpush1.msra.mxu0 0.0
    %8346 = vmatprep.subr.mxu0 0.0
    %8347 = vmatpush1.msra.mxu0 0.0
    %8348 = vmatprep.subr.mxu0 0.0
    %8349 = vmatpush1.msra.mxu0 0.0
    %8350 = vmatprep.subr.mxu0 0.0
    %8351 = vmatpush1.msra.mxu0 0.0
    %8352 = vmatprep.subr.mxu0 0.0
    %8353 = vmatpush1.msra.mxu0 0.0
    %8354 = vmatprep.subr.mxu0 0.0
    %8355 = vmatpush1.msra.mxu0 0.0
    %8356 = vmatprep.subr.mxu0 0.0
    %8357 = vmatpush1.msra.mxu0 0.0
    %8358 = vmatprep.subr.mxu0 0.0
    %8359 = vmatpush1.msra.mxu0 0.0
    %8360 = vmatprep.subr.mxu0 0.0
    %8361 = vmatpush1.msra.mxu0 0.0
    %8362 = vmatprep.subr.mxu0 0.0
    %8363 = vmatpush1.msra.mxu0 0.0
    %8364 = vmatprep.mubr.f32.mxu0 0.0
    %8365 = vmatmul.mubr.f32.gmra.mrb[0].mxu0 %v8298
    %v8366 = vpop.f32.mrb[0].mxu0
    %v8367 = vadd.f32 0.0, %v8366
    %v8368 = vpop.f32.mrb[0].mxu0
    %8369 = vdwg.mxu0
    %v8370 = vadd.f32 %v8264, %v8367
    %s8371 = scalar_lea.vmem %s7226, 1 [#allocation4]
    %v8372 = vld [vmem:[%s8371] ss:$2 sm:$0x3]
    %s8373 = scalar_lea.vmem %s7226, 17 [#allocation4]
    %v8374 = vld [vmem:[%s8373] ss:$2 sm:$0x3]
    %s8375 = scalar_lea.vmem %s7226, 49 [#allocation4]
    %v8376 = vld [vmem:[%s8375] ss:$2 sm:$0x3]
    %s8377 = scalar_lea.vmem %s7226, 65 [#allocation4]
    %v8378 = vld [vmem:[%s8377] ss:$2 sm:$0x3]
    %s8379 = scalar_lea.vmem %s11, 224
    %v8380 = vld [vmem:[%s8379] sm:$0xff]
    %v8381 = vld [vmem:[%s8379 + $0x8] sm:$0xff]
    %v8382 = vld [vmem:[%s8379 + $0x10] sm:$0xff]
    %v8383 = vld [vmem:[%s8379 + $0x18] sm:$0xff]
    %v8388 = vcombine.low %v8372, %v8374
    %v8389 = vcombine.low %v8376, %v8378
    %v8391 = vunpack.c.l.s4 1983009808
    %v8392 = vunpack.c.0.s8 %v8391
    %v8393 = vlaneseq
    %v8394 = vshrl.u32 %v8393, 7
    %v8395 = vsub.s32 %v8392, %v8394
    %v8396 = vrot.slane %v8388, %v8395
    %v8398 = vunpack.c.l.s4 1983009808
    %v8399 = vunpack.c.0.s8 %v8398
    %v8400 = vlaneseq
    %v8401 = vshrl.u32 %v8400, 7
    %v8402 = vsub.s32 %v8399, %v8401
    %v8403 = vrot.slane %v8389, %v8402
    %v8404 = vcombine.low %v8396, %v8403
    %v8405 = vsel %vm6539, %v8404, 0
    %8407 = vmatprep.subr.mxu0 0.0
    %8408 = vmatpush1.msra.mxu0 %v8380
    %8409 = vmatprep.subr.mxu0 0.0
    %8410 = vmatpush1.msra.mxu0 %v8381
    %8411 = vmatprep.subr.mxu0 0.0
    %8412 = vmatpush1.msra.mxu0 %v8382
    %8413 = vmatprep.subr.mxu0 0.0
    %8414 = vmatpush1.msra.mxu0 %v8383
    %8415 = vmatprep.subr.mxu0 0.0
    %8416 = vmatpush1.msra.mxu0 0.0
    %8417 = vmatprep.subr.mxu0 0.0
    %8418 = vmatpush1.msra.mxu0 0.0
    %8419 = vmatprep.subr.mxu0 0.0
    %8420 = vmatpush1.msra.mxu0 0.0
    %8421 = vmatprep.subr.mxu0 0.0
    %8422 = vmatpush1.msra.mxu0 0.0
    %8423 = vmatprep.subr.mxu0 0.0
    %8424 = vmatpush1.msra.mxu0 0.0
    %8425 = vmatprep.subr.mxu0 0.0
    %8426 = vmatpush1.msra.mxu0 0.0
    %8427 = vmatprep.subr.mxu0 0.0
    %8428 = vmatpush1.msra.mxu0 0.0
    %8429 = vmatprep.subr.mxu0 0.0
    %8430 = vmatpush1.msra.mxu0 0.0
    %8431 = vmatprep.subr.mxu0 0.0
    %8432 = vmatpush1.msra.mxu0 0.0
    %8433 = vmatprep.subr.mxu0 0.0
    %8434 = vmatpush1.msra.mxu0 0.0
    %8435 = vmatprep.subr.mxu0 0.0
    %8436 = vmatpush1.msra.mxu0 0.0
    %8437 = vmatprep.subr.mxu0 0.0
    %8438 = vmatpush1.msra.mxu0 0.0
    %8439 = vmatprep.subr.mxu0 0.0
    %8440 = vmatpush1.msra.mxu0 0.0
    %8441 = vmatprep.subr.mxu0 0.0
    %8442 = vmatpush1.msra.mxu0 0.0
    %8443 = vmatprep.subr.mxu0 0.0
    %8444 = vmatpush1.msra.mxu0 0.0
    %8445 = vmatprep.subr.mxu0 0.0
    %8446 = vmatpush1.msra.mxu0 0.0
    %8447 = vmatprep.subr.mxu0 0.0
    %8448 = vmatpush1.msra.mxu0 0.0
    %8449 = vmatprep.subr.mxu0 0.0
    %8450 = vmatpush1.msra.mxu0 0.0
    %8451 = vmatprep.subr.mxu0 0.0
    %8452 = vmatpush1.msra.mxu0 0.0
    %8453 = vmatprep.subr.mxu0 0.0
    %8454 = vmatpush1.msra.mxu0 0.0
    %8455 = vmatprep.subr.mxu0 0.0
    %8456 = vmatpush1.msra.mxu0 0.0
    %8457 = vmatprep.subr.mxu0 0.0
    %8458 = vmatpush1.msra.mxu0 0.0
    %8459 = vmatprep.subr.mxu0 0.0
    %8460 = vmatpush1.msra.mxu0 0.0
    %8461 = vmatprep.subr.mxu0 0.0
    %8462 = vmatpush1.msra.mxu0 0.0
    %8463 = vmatprep.subr.mxu0 0.0
    %8464 = vmatpush1.msra.mxu0 0.0
    %8465 = vmatprep.subr.mxu0 0.0
    %8466 = vmatpush1.msra.mxu0 0.0
    %8467 = vmatprep.subr.mxu0 0.0
    %8468 = vmatpush1.msra.mxu0 0.0
    %8469 = vmatprep.subr.mxu0 0.0
    %8470 = vmatpush1.msra.mxu0 0.0
    %8471 = vmatprep.mubr.f32.mxu0 0.0
    %8472 = vmatmul.mubr.f32.gmra.mrb[0].mxu0 %v8405
    %v8473 = vpop.f32.mrb[0].mxu0
    %v8474 = vadd.f32 0.0, %v8473
    %v8475 = vpop.f32.mrb[0].mxu0
    %8476 = vdwg.mxu0
    %v8477 = vadd.f32 %v8370, %v8474
    %s8478 = scalar_lea.vmem %s7226, 2 [#allocation4]
    %v8479 = vld [vmem:[%s8478] ss:$2 sm:$0x3]
    %s8480 = scalar_lea.vmem %s7226, 18 [#allocation4]
    %v8481 = vld [vmem:[%s8480] ss:$2 sm:$0x3]
    %s8482 = scalar_lea.vmem %s7226, 50 [#allocation4]
    %v8483 = vld [vmem:[%s8482] ss:$2 sm:$0x3]
    %s8484 = scalar_lea.vmem %s7226, 66 [#allocation4]
    %v8485 = vld [vmem:[%s8484] ss:$2 sm:$0x3]
    %s8486 = scalar_lea.vmem %s11, 256
    %v8487 = vld [vmem:[%s8486] sm:$0xff]
    %v8488 = vld [vmem:[%s8486 + $0x8] sm:$0xff]
    %v8489 = vld [vmem:[%s8486 + $0x10] sm:$0xff]
    %v8490 = vld [vmem:[%s8486 + $0x18] sm:$0xff]
    %v8495 = vcombine.low %v8479, %v8481
    %v8496 = vcombine.low %v8483, %v8485
    %v8498 = vunpack.c.l.s4 1983009808
    %v8499 = vunpack.c.0.s8 %v8498
    %v8500 = vlaneseq
    %v8501 = vshrl.u32 %v8500, 7
    %v8502 = vsub.s32 %v8499, %v8501
    %v8503 = vrot.slane %v8495, %v8502
    %v8505 = vunpack.c.l.s4 1983009808
    %v8506 = vunpack.c.0.s8 %v8505
    %v8507 = vlaneseq
    %v8508 = vshrl.u32 %v8507, 7
    %v8509 = vsub.s32 %v8506, %v8508
    %v8510 = vrot.slane %v8496, %v8509
    %v8511 = vcombine.low %v8503, %v8510
    %v8512 = vsel %vm6539, %v8511, 0
    %8514 = vmatprep.subr.mxu0 0.0
    %8515 = vmatpush1.msra.mxu0 %v8487
    %8516 = vmatprep.subr.mxu0 0.0
    %8517 = vmatpush1.msra.mxu0 %v8488
    %8518 = vmatprep.subr.mxu0 0.0
    %8519 = vmatpush1.msra.mxu0 %v8489
    %8520 = vmatprep.subr.mxu0 0.0
    %8521 = vmatpush1.msra.mxu0 %v8490
    %8522 = vmatprep.subr.mxu0 0.0
    %8523 = vmatpush1.msra.mxu0 0.0
    %8524 = vmatprep.subr.mxu0 0.0
    %8525 = vmatpush1.msra.mxu0 0.0
    %8526 = vmatprep.subr.mxu0 0.0
    %8527 = vmatpush1.msra.mxu0 0.0
    %8528 = vmatprep.subr.mxu0 0.0
    %8529 = vmatpush1.msra.mxu0 0.0
    %8530 = vmatprep.subr.mxu0 0.0
    %8531 = vmatpush1.msra.mxu0 0.0
    %8532 = vmatprep.subr.mxu0 0.0
    %8533 = vmatpush1.msra.mxu0 0.0
    %8534 = vmatprep.subr.mxu0 0.0
    %8535 = vmatpush1.msra.mxu0 0.0
    %8536 = vmatprep.subr.mxu0 0.0
    %8537 = vmatpush1.msra.mxu0 0.0
    %8538 = vmatprep.subr.mxu0 0.0
    %8539 = vmatpush1.msra.mxu0 0.0
    %8540 = vmatprep.subr.mxu0 0.0
    %8541 = vmatpush1.msra.mxu0 0.0
    %8542 = vmatprep.subr.mxu0 0.0
    %8543 = vmatpush1.msra.mxu0 0.0
    %8544 = vmatprep.subr.mxu0 0.0
    %8545 = vmatpush1.msra.mxu0 0.0
    %8546 = vmatprep.subr.mxu0 0.0
    %8547 = vmatpush1.msra.mxu0 0.0
    %8548 = vmatprep.subr.mxu0 0.0
    %8549 = vmatpush1.msra.mxu0 0.0
    %8550 = vmatprep.subr.mxu0 0.0
    %8551 = vmatpush1.msra.mxu0 0.0
    %8552 = vmatprep.subr.mxu0 0.0
    %8553 = vmatpush1.msra.mxu0 0.0
    %8554 = vmatprep.subr.mxu0 0.0
    %8555 = vmatpush1.msra.mxu0 0.0
    %8556 = vmatprep.subr.mxu0 0.0
    %8557 = vmatpush1.msra.mxu0 0.0
    %8558 = vmatprep.subr.mxu0 0.0
    %8559 = vmatpush1.msra.mxu0 0.0
    %8560 = vmatprep.subr.mxu0 0.0
    %8561 = vmatpush1.msra.mxu0 0.0
    %8562 = vmatprep.subr.mxu0 0.0
    %8563 = vmatpush1.msra.mxu0 0.0
    %8564 = vmatprep.subr.mxu0 0.0
    %8565 = vmatpush1.msra.mxu0 0.0
    %8566 = vmatprep.subr.mxu0 0.0
    %8567 = vmatpush1.msra.mxu0 0.0
    %8568 = vmatprep.subr.mxu0 0.0
    %8569 = vmatpush1.msra.mxu0 0.0
    %8570 = vmatprep.subr.mxu0 0.0
    %8571 = vmatpush1.msra.mxu0 0.0
    %8572 = vmatprep.subr.mxu0 0.0
    %8573 = vmatpush1.msra.mxu0 0.0
    %8574 = vmatprep.subr.mxu0 0.0
    %8575 = vmatpush1.msra.mxu0 0.0
    %8576 = vmatprep.subr.mxu0 0.0
    %8577 = vmatpush1.msra.mxu0 0.0
    %8578 = vmatprep.mubr.f32.mxu0 0.0
    %8579 = vmatmul.mubr.f32.gmra.mrb[0].mxu0 %v8512
    %v8580 = vpop.f32.mrb[0].mxu0
    %v8581 = vadd.f32 0.0, %v8580
    %v8582 = vpop.f32.mrb[0].mxu0
    %8583 = vdwg.mxu0
    %v8584 = vadd.f32 %v8477, %v8581
    %v8585 = vld [vmem:[%s12] sm:$0x1]
    %v8587 = vlaneseq
    %v8588 = vshrl.u32 %v8587, 7
    %v8589 = vsub.s32 0, %v8588
    %v8590 = vrot.slane %v8585, %v8589
    %v8592 = vadd.f32 %v8584, %v8590
    %v8593 = vmax.f32 %v8592, 0.0
    %v8595 = vcombine.high %v8593, %v8593
    %v8597 = vunpack.c.l.s4 1983009808
    %v8598 = vunpack.c.0.s8 %v8597
    %v8599 = vlaneseq
    %v8600 = vshrl.u32 %v8599, 7
    %v8601 = vsub.s32 %v8598, %v8600
    %v8602 = vrot.slane %v8593, %v8601
    %v8604 = vunpack.c.l.s4 1983009808
    %v8605 = vunpack.c.0.s8 %v8604
    %v8606 = vlaneseq
    %v8607 = vshrl.u32 %v8606, 7
    %v8608 = vsub.s32 %v8605, %v8607
    %v8609 = vrot.slane %v8595, %v8608
    %v8610 = vcombine.high %v8602, %v8602
    %v8611 = vcombine.high %v8609, %v8609
    %s8616 = scalar_lea.vmem [#allocation5], 4
    %vm8617 = vcmask 517120
    %8618 = vst.msk [vmem:[%s8616 + $0x1] sm:$0x3] %vm8617, %v8602
    %8619 = vst.msk [vmem:[%s8616 + $0x5] sm:$0x3] %vm8617, %v8610
    %8620 = vst.msk [vmem:[%s8616 + $0x11] sm:$0x3] %vm8617, %v8609
    %8621 = vst.msk [vmem:[%s8616 + $0x15] sm:$0x3] %vm8617, %v8611
    %v8622 = vld [vmem:[#allocation5] sm:$0x3]
    %v8623 = vld [vmem:[#allocation5 + $0x4] sm:$0x3]
    %v8624 = vld [vmem:[#allocation5 + $0x10] sm:$0x3]
    %v8625 = vld [vmem:[#allocation5 + $0x14] sm:$0x3]
    %v8626 = vld [vmem:[%s13] sm:$0xff]
    %v8627 = vld [vmem:[%s13 + $0x8] sm:$0xff]
    %v8628 = vld [vmem:[%s13 + $0x10] sm:$0xff]
    %v8629 = vld [vmem:[%s13 + $0x18] sm:$0xff]
    %v8630 = vld [vmem:[%s13 + $0x20] sm:$0xff]
    %v8631 = vld [vmem:[%s13 + $0x28] sm:$0xff]
    %v8632 = vld [vmem:[%s13 + $0x30] sm:$0xff]
    %v8633 = vld [vmem:[%s13 + $0x38] sm:$0xff]
    %v8634 = vld [vmem:[#allocation5 + $0x1] sm:$0x3]
    %v8635 = vld [vmem:[#allocation5 + $0x5] sm:$0x3]
    %v8636 = vld [vmem:[#allocation5 + $0x11] sm:$0x3]
    %v8637 = vld [vmem:[#allocation5 + $0x15] sm:$0x3]
    %s8638 = scalar_lea.vmem %s13, 64
    %v8639 = vld [vmem:[%s8638] sm:$0xff]
    %v8640 = vld [vmem:[%s8638 + $0x8] sm:$0xff]
    %v8641 = vld [vmem:[%s8638 + $0x10] sm:$0xff]
    %v8642 = vld [vmem:[%s8638 + $0x18] sm:$0xff]
    %v8643 = vld [vmem:[%s8638 + $0x20] sm:$0xff]
    %v8644 = vld [vmem:[%s8638 + $0x28] sm:$0xff]
    %v8645 = vld [vmem:[%s8638 + $0x30] sm:$0xff]
    %v8646 = vld [vmem:[%s8638 + $0x38] sm:$0xff]
    %v8651 = vcombine.low %v8634, %v8635
    %v8652 = vcombine.low %v8636, %v8637
    %v8654 = vunpack.c.l.s4 1983009808
    %v8655 = vunpack.c.0.s8 %v8654
    %v8656 = vlaneseq
    %v8657 = vshrl.u32 %v8656, 7
    %v8658 = vsub.s32 %v8655, %v8657
    %v8659 = vrot.slane %v8651, %v8658
    %v8661 = vunpack.c.l.s4 1983009808
    %v8662 = vunpack.c.0.s8 %v8661
    %v8663 = vlaneseq
    %v8664 = vshrl.u32 %v8663, 7
    %v8665 = vsub.s32 %v8662, %v8664
    %v8666 = vrot.slane %v8652, %v8665
    %v8667 = vcombine.low %v8659, %v8666
    %vm8668 = vcmask 523264
    %v8669 = vsel %vm8668, %v8667, 0
    %8671 = vmatprep.subr.mxu0 0.0
    %8672 = vmatpush1.msra.mxu0 %v8639
    %8673 = vmatprep.subr.mxu0 0.0
    %8674 = vmatpush1.msra.mxu0 %v8640
    %8675 = vmatprep.subr.mxu0 0.0
    %8676 = vmatpush1.msra.mxu0 %v8641
    %8677 = vmatprep.subr.mxu0 0.0
    %8678 = vmatpush1.msra.mxu0 %v8642
    %8679 = vmatprep.subr.mxu0 0.0
    %8680 = vmatpush1.msra.mxu0 %v8643
    %8681 = vmatprep.subr.mxu0 0.0
    %8682 = vmatpush1.msra.mxu0 %v8644
    %8683 = vmatprep.subr.mxu0 0.0
    %8684 = vmatpush1.msra.mxu0 %v8645
    %8685 = vmatprep.subr.mxu0 0.0
    %8686 = vmatpush1.msra.mxu0 %v8646
    %8687 = vmatprep.subr.mxu0 0.0
    %8688 = vmatpush1.msra.mxu0 0.0
    %8689 = vmatprep.subr.mxu0 0.0
    %8690 = vmatpush1.msra.mxu0 0.0
    %8691 = vmatprep.subr.mxu0 0.0
    %8692 = vmatpush1.msra.mxu0 0.0
    %8693 = vmatprep.subr.mxu0 0.0
    %8694 = vmatpush1.msra.mxu0 0.0
    %8695 = vmatprep.subr.mxu0 0.0
    %8696 = vmatpush1.msra.mxu0 0.0
    %8697 = vmatprep.subr.mxu0 0.0
    %8698 = vmatpush1.msra.mxu0 0.0
    %8699 = vmatprep.subr.mxu0 0.0
    %8700 = vmatpush1.msra.mxu0 0.0
    %8701 = vmatprep.subr.mxu0 0.0
    %8702 = vmatpush1.msra.mxu0 0.0
    %8703 = vmatprep.subr.mxu0 0.0
    %8704 = vmatpush1.msra.mxu0 0.0
    %8705 = vmatprep.subr.mxu0 0.0
    %8706 = vmatpush1.msra.mxu0 0.0
    %8707 = vmatprep.subr.mxu0 0.0
    %8708 = vmatpush1.msra.mxu0 0.0
    %8709 = vmatprep.subr.mxu0 0.0
    %8710 = vmatpush1.msra.mxu0 0.0
    %8711 = vmatprep.subr.mxu0 0.0
    %8712 = vmatpush1.msra.mxu0 0.0
    %8713 = vmatprep.subr.mxu0 0.0
    %8714 = vmatpush1.msra.mxu0 0.0
    %8715 = vmatprep.subr.mxu0 0.0
    %8716 = vmatpush1.msra.mxu0 0.0
    %8717 = vmatprep.subr.mxu0 0.0
    %8718 = vmatpush1.msra.mxu0 0.0
    %8719 = vmatprep.subr.mxu0 0.0
    %8720 = vmatpush1.msra.mxu0 0.0
    %8721 = vmatprep.subr.mxu0 0.0
    %8722 = vmatpush1.msra.mxu0 0.0
    %8723 = vmatprep.subr.mxu0 0.0
    %8724 = vmatpush1.msra.mxu0 0.0
    %8725 = vmatprep.subr.mxu0 0.0
    %8726 = vmatpush1.msra.mxu0 0.0
    %8727 = vmatprep.subr.mxu0 0.0
    %8728 = vmatpush1.msra.mxu0 0.0
    %8729 = vmatprep.subr.mxu0 0.0
    %8730 = vmatpush1.msra.mxu0 0.0
    %8731 = vmatprep.subr.mxu0 0.0
    %8732 = vmatpush1.msra.mxu0 0.0
    %8733 = vmatprep.subr.mxu0 0.0
    %8734 = vmatpush1.msra.mxu0 0.0
    %8735 = vmatprep.mubr.f32.mxu0 0.0
    %8736 = vmatmul.mubr.f32.gmra.mrb[0].mxu0 %v8669
    %v8737 = vpop.f32.mrb[0].mxu0
    %v8738 = vadd.f32 0.0, %v8737
    %v8739 = vpop.f32.mrb[0].mxu0
    %8740 = vdwg.mxu0
    %v8745 = vcombine.low %v8622, %v8623
    %v8746 = vcombine.low %v8624, %v8625
    %v8748 = vunpack.c.l.s4 1983009808
    %v8749 = vunpack.c.0.s8 %v8748
    %v8750 = vlaneseq
    %v8751 = vshrl.u32 %v8750, 7
    %v8752 = vsub.s32 %v8749, %v8751
    %v8753 = vrot.slane %v8745, %v8752
    %v8755 = vunpack.c.l.s4 1983009808
    %v8756 = vunpack.c.0.s8 %v8755
    %v8757 = vlaneseq
    %v8758 = vshrl.u32 %v8757, 7
    %v8759 = vsub.s32 %v8756, %v8758
    %v8760 = vrot.slane %v8746, %v8759
    %v8761 = vcombine.low %v8753, %v8760
    %v8762 = vsel %vm8668, %v8761, 0
    %8764 = vmatprep.subr.mxu0 0.0
    %8765 = vmatpush1.msra.mxu0 %v8626
    %8766 = vmatprep.subr.mxu0 0.0
    %8767 = vmatpush1.msra.mxu0 %v8627
    %8768 = vmatprep.subr.mxu0 0.0
    %8769 = vmatpush1.msra.mxu0 %v8628
    %8770 = vmatprep.subr.mxu0 0.0
    %8771 = vmatpush1.msra.mxu0 %v8629
    %8772 = vmatprep.subr.mxu0 0.0
    %8773 = vmatpush1.msra.mxu0 %v8630
    %8774 = vmatprep.subr.mxu0 0.0
    %8775 = vmatpush1.msra.mxu0 %v8631
    %8776 = vmatprep.subr.mxu0 0.0
    %8777 = vmatpush1.msra.mxu0 %v8632
    %8778 = vmatprep.subr.mxu0 0.0
    %8779 = vmatpush1.msra.mxu0 %v8633
    %8780 = vmatprep.subr.mxu0 0.0
    %8781 = vmatpush1.msra.mxu0 0.0
    %8782 = vmatprep.subr.mxu0 0.0
    %8783 = vmatpush1.msra.mxu0 0.0
    %8784 = vmatprep.subr.mxu0 0.0
    %8785 = vmatpush1.msra.mxu0 0.0
    %8786 = vmatprep.subr.mxu0 0.0
    %8787 = vmatpush1.msra.mxu0 0.0
    %8788 = vmatprep.subr.mxu0 0.0
    %8789 = vmatpush1.msra.mxu0 0.0
    %8790 = vmatprep.subr.mxu0 0.0
    %8791 = vmatpush1.msra.mxu0 0.0
    %8792 = vmatprep.subr.mxu0 0.0
    %8793 = vmatpush1.msra.mxu0 0.0
    %8794 = vmatprep.subr.mxu0 0.0
    %8795 = vmatpush1.msra.mxu0 0.0
    %8796 = vmatprep.subr.mxu0 0.0
    %8797 = vmatpush1.msra.mxu0 0.0
    %8798 = vmatprep.subr.mxu0 0.0
    %8799 = vmatpush1.msra.mxu0 0.0
    %8800 = vmatprep.subr.mxu0 0.0
    %8801 = vmatpush1.msra.mxu0 0.0
    %8802 = vmatprep.subr.mxu0 0.0
    %8803 = vmatpush1.msra.mxu0 0.0
    %8804 = vmatprep.subr.mxu0 0.0
    %8805 = vmatpush1.msra.mxu0 0.0
    %8806 = vmatprep.subr.mxu0 0.0
    %8807 = vmatpush1.msra.mxu0 0.0
    %8808 = vmatprep.subr.mxu0 0.0
    %8809 = vmatpush1.msra.mxu0 0.0
    %8810 = vmatprep.subr.mxu0 0.0
    %8811 = vmatpush1.msra.mxu0 0.0
    %8812 = vmatprep.subr.mxu0 0.0
    %8813 = vmatpush1.msra.mxu0 0.0
    %8814 = vmatprep.subr.mxu0 0.0
    %8815 = vmatpush1.msra.mxu0 0.0
    %8816 = vmatprep.subr.mxu0 0.0
    %8817 = vmatpush1.msra.mxu0 0.0
    %8818 = vmatprep.subr.mxu0 0.0
    %8819 = vmatpush1.msra.mxu0 0.0
    %8820 = vmatprep.subr.mxu0 0.0
    %8821 = vmatpush1.msra.mxu0 0.0
    %8822 = vmatprep.subr.mxu0 0.0
    %8823 = vmatpush1.msra.mxu0 0.0
    %8824 = vmatprep.subr.mxu0 0.0
    %8825 = vmatpush1.msra.mxu0 0.0
    %8826 = vmatprep.subr.mxu0 0.0
    %8827 = vmatpush1.msra.mxu0 0.0
    %8828 = vmatprep.mubr.f32.mxu0 0.0
    %8829 = vmatmul.mubr.f32.gmra.mrb[0].mxu0 %v8762
    %v8830 = vpop.f32.mrb[0].mxu0
    %v8831 = vadd.f32 %v8738, %v8830
    %v8832 = vpop.f32.mrb[0].mxu0
    %8833 = vdwg.mxu0
    %v8834 = vld [vmem:[#allocation5 + $0x2] sm:$0x3]
    %v8835 = vld [vmem:[#allocation5 + $0x6] sm:$0x3]
    %v8836 = vld [vmem:[#allocation5 + $0x12] sm:$0x3]
    %v8837 = vld [vmem:[#allocation5 + $0x16] sm:$0x3]
    %s8838 = scalar_lea.vmem %s13, 128
    %v8839 = vld [vmem:[%s8838] sm:$0xff]
    %v8840 = vld [vmem:[%s8838 + $0x8] sm:$0xff]
    %v8841 = vld [vmem:[%s8838 + $0x10] sm:$0xff]
    %v8842 = vld [vmem:[%s8838 + $0x18] sm:$0xff]
    %v8843 = vld [vmem:[%s8838 + $0x20] sm:$0xff]
    %v8844 = vld [vmem:[%s8838 + $0x28] sm:$0xff]
    %v8845 = vld [vmem:[%s8838 + $0x30] sm:$0xff]
    %v8846 = vld [vmem:[%s8838 + $0x38] sm:$0xff]
    %v8851 = vcombine.low %v8834, %v8835
    %v8852 = vcombine.low %v8836, %v8837
    %v8854 = vunpack.c.l.s4 1983009808
    %v8855 = vunpack.c.0.s8 %v8854
    %v8856 = vlaneseq
    %v8857 = vshrl.u32 %v8856, 7
    %v8858 = vsub.s32 %v8855, %v8857
    %v8859 = vrot.slane %v8851, %v8858
    %v8861 = vunpack.c.l.s4 1983009808
    %v8862 = vunpack.c.0.s8 %v8861
    %v8863 = vlaneseq
    %v8864 = vshrl.u32 %v8863, 7
    %v8865 = vsub.s32 %v8862, %v8864
    %v8866 = vrot.slane %v8852, %v8865
    %v8867 = vcombine.low %v8859, %v8866
    %v8868 = vsel %vm8668, %v8867, 0
    %8870 = vmatprep.subr.mxu0 0.0
    %8871 = vmatpush1.msra.mxu0 %v8839
    %8872 = vmatprep.subr.mxu0 0.0
    %8873 = vmatpush1.msra.mxu0 %v8840
    %8874 = vmatprep.subr.mxu0 0.0
    %8875 = vmatpush1.msra.mxu0 %v8841
    %8876 = vmatprep.subr.mxu0 0.0
    %8877 = vmatpush1.msra.mxu0 %v8842
    %8878 = vmatprep.subr.mxu0 0.0
    %8879 = vmatpush1.msra.mxu0 %v8843
    %8880 = vmatprep.subr.mxu0 0.0
    %8881 = vmatpush1.msra.mxu0 %v8844
    %8882 = vmatprep.subr.mxu0 0.0
    %8883 = vmatpush1.msra.mxu0 %v8845
    %8884 = vmatprep.subr.mxu0 0.0
    %8885 = vmatpush1.msra.mxu0 %v8846
    %8886 = vmatprep.subr.mxu0 0.0
    %8887 = vmatpush1.msra.mxu0 0.0
    %8888 = vmatprep.subr.mxu0 0.0
    %8889 = vmatpush1.msra.mxu0 0.0
    %8890 = vmatprep.subr.mxu0 0.0
    %8891 = vmatpush1.msra.mxu0 0.0
    %8892 = vmatprep.subr.mxu0 0.0
    %8893 = vmatpush1.msra.mxu0 0.0
    %8894 = vmatprep.subr.mxu0 0.0
    %8895 = vmatpush1.msra.mxu0 0.0
    %8896 = vmatprep.subr.mxu0 0.0
    %8897 = vmatpush1.msra.mxu0 0.0
    %8898 = vmatprep.subr.mxu0 0.0
    %8899 = vmatpush1.msra.mxu0 0.0
    %8900 = vmatprep.subr.mxu0 0.0
    %8901 = vmatpush1.msra.mxu0 0.0
    %8902 = vmatprep.subr.mxu0 0.0
    %8903 = vmatpush1.msra.mxu0 0.0
    %8904 = vmatprep.subr.mxu0 0.0
    %8905 = vmatpush1.msra.mxu0 0.0
    %8906 = vmatprep.subr.mxu0 0.0
    %8907 = vmatpush1.msra.mxu0 0.0
    %8908 = vmatprep.subr.mxu0 0.0
    %8909 = vmatpush1.msra.mxu0 0.0
    %8910 = vmatprep.subr.mxu0 0.0
    %8911 = vmatpush1.msra.mxu0 0.0
    %8912 = vmatprep.subr.mxu0 0.0
    %8913 = vmatpush1.msra.mxu0 0.0
    %8914 = vmatprep.subr.mxu0 0.0
    %8915 = vmatpush1.msra.mxu0 0.0
    %8916 = vmatprep.subr.mxu0 0.0
    %8917 = vmatpush1.msra.mxu0 0.0
    %8918 = vmatprep.subr.mxu0 0.0
    %8919 = vmatpush1.msra.mxu0 0.0
    %8920 = vmatprep.subr.mxu0 0.0
    %8921 = vmatpush1.msra.mxu0 0.0
    %8922 = vmatprep.subr.mxu0 0.0
    %8923 = vmatpush1.msra.mxu0 0.0
    %8924 = vmatprep.subr.mxu0 0.0
    %8925 = vmatpush1.msra.mxu0 0.0
    %8926 = vmatprep.subr.mxu0 0.0
    %8927 = vmatpush1.msra.mxu0 0.0
    %8928 = vmatprep.subr.mxu0 0.0
    %8929 = vmatpush1.msra.mxu0 0.0
    %8930 = vmatprep.subr.mxu0 0.0
    %8931 = vmatpush1.msra.mxu0 0.0
    %8932 = vmatprep.subr.mxu0 0.0
    %8933 = vmatpush1.msra.mxu0 0.0
    %8934 = vmatprep.mubr.f32.mxu0 0.0
    %8935 = vmatmul.mubr.f32.gmra.mrb[0].mxu0 %v8868
    %v8936 = vpop.f32.mrb[0].mxu0
    %v8937 = vadd.f32 0.0, %v8936
    %v8938 = vpop.f32.mrb[0].mxu0
    %8939 = vdwg.mxu0
    %v8940 = vadd.f32 %v8831, %v8937
    %v8941 = vld [vmem:[%s8616] sm:$0x3]
    %v8942 = vld [vmem:[%s8616 + $0x4] sm:$0x3]
    %v8943 = vld [vmem:[%s8616 + $0x10] sm:$0x3]
    %v8944 = vld [vmem:[%s8616 + $0x14] sm:$0x3]
    %s8945 = scalar_lea.vmem %s13, 192
    %v8946 = vld [vmem:[%s8945] sm:$0xff]
    %v8947 = vld [vmem:[%s8945 + $0x8] sm:$0xff]
    %v8948 = vld [vmem:[%s8945 + $0x10] sm:$0xff]
    %v8949 = vld [vmem:[%s8945 + $0x18] sm:$0xff]
    %v8950 = vld [vmem:[%s8945 + $0x20] sm:$0xff]
    %v8951 = vld [vmem:[%s8945 + $0x28] sm:$0xff]
    %v8952 = vld [vmem:[%s8945 + $0x30] sm:$0xff]
    %v8953 = vld [vmem:[%s8945 + $0x38] sm:$0xff]
    %v8958 = vcombine.low %v8941, %v8942
    %v8959 = vcombine.low %v8943, %v8944
    %v8961 = vunpack.c.l.s4 1983009808
    %v8962 = vunpack.c.0.s8 %v8961
    %v8963 = vlaneseq
    %v8964 = vshrl.u32 %v8963, 7
    %v8965 = vsub.s32 %v8962, %v8964
    %v8966 = vrot.slane %v8958, %v8965
    %v8968 = vunpack.c.l.s4 1983009808
    %v8969 = vunpack.c.0.s8 %v8968
    %v8970 = vlaneseq
    %v8971 = vshrl.u32 %v8970, 7
    %v8972 = vsub.s32 %v8969, %v8971
    %v8973 = vrot.slane %v8959, %v8972
    %v8974 = vcombine.low %v8966, %v8973
    %v8975 = vsel %vm8668, %v8974, 0
    %8977 = vmatprep.subr.mxu0 0.0
    %8978 = vmatpush1.msra.mxu0 %v8946
    %8979 = vmatprep.subr.mxu0 0.0
    %8980 = vmatpush1.msra.mxu0 %v8947
    %8981 = vmatprep.subr.mxu0 0.0
    %8982 = vmatpush1.msra.mxu0 %v8948
    %8983 = vmatprep.subr.mxu0 0.0
    %8984 = vmatpush1.msra.mxu0 %v8949
    %8985 = vmatprep.subr.mxu0 0.0
    %8986 = vmatpush1.msra.mxu0 %v8950
    %8987 = vmatprep.subr.mxu0 0.0
    %8988 = vmatpush1.msra.mxu0 %v8951
    %8989 = vmatprep.subr.mxu0 0.0
    %8990 = vmatpush1.msra.mxu0 %v8952
    %8991 = vmatprep.subr.mxu0 0.0
    %8992 = vmatpush1.msra.mxu0 %v8953
    %8993 = vmatprep.subr.mxu0 0.0
    %8994 = vmatpush1.msra.mxu0 0.0
    %8995 = vmatprep.subr.mxu0 0.0
    %8996 = vmatpush1.msra.mxu0 0.0
    %8997 = vmatprep.subr.mxu0 0.0
    %8998 = vmatpush1.msra.mxu0 0.0
    %8999 = vmatprep.subr.mxu0 0.0
    %9000 = vmatpush1.msra.mxu0 0.0
    %9001 = vmatprep.subr.mxu0 0.0
    %9002 = vmatpush1.msra.mxu0 0.0
    %9003 = vmatprep.subr.mxu0 0.0
    %9004 = vmatpush1.msra.mxu0 0.0
    %9005 = vmatprep.subr.mxu0 0.0
    %9006 = vmatpush1.msra.mxu0 0.0
    %9007 = vmatprep.subr.mxu0 0.0
    %9008 = vmatpush1.msra.mxu0 0.0
    %9009 = vmatprep.subr.mxu0 0.0
    %9010 = vmatpush1.msra.mxu0 0.0
    %9011 = vmatprep.subr.mxu0 0.0
    %9012 = vmatpush1.msra.mxu0 0.0
    %9013 = vmatprep.subr.mxu0 0.0
    %9014 = vmatpush1.msra.mxu0 0.0
    %9015 = vmatprep.subr.mxu0 0.0
    %9016 = vmatpush1.msra.mxu0 0.0
    %9017 = vmatprep.subr.mxu0 0.0
    %9018 = vmatpush1.msra.mxu0 0.0
    %9019 = vmatprep.subr.mxu0 0.0
    %9020 = vmatpush1.msra.mxu0 0.0
    %9021 = vmatprep.subr.mxu0 0.0
    %9022 = vmatpush1.msra.mxu0 0.0
    %9023 = vmatprep.subr.mxu0 0.0
    %9024 = vmatpush1.msra.mxu0 0.0
    %9025 = vmatprep.subr.mxu0 0.0
    %9026 = vmatpush1.msra.mxu0 0.0
    %9027 = vmatprep.subr.mxu0 0.0
    %9028 = vmatpush1.msra.mxu0 0.0
    %9029 = vmatprep.subr.mxu0 0.0
    %9030 = vmatpush1.msra.mxu0 0.0
    %9031 = vmatprep.subr.mxu0 0.0
    %9032 = vmatpush1.msra.mxu0 0.0
    %9033 = vmatprep.subr.mxu0 0.0
    %9034 = vmatpush1.msra.mxu0 0.0
    %9035 = vmatprep.subr.mxu0 0.0
    %9036 = vmatpush1.msra.mxu0 0.0
    %9037 = vmatprep.subr.mxu0 0.0
    %9038 = vmatpush1.msra.mxu0 0.0
    %9039 = vmatprep.subr.mxu0 0.0
    %9040 = vmatpush1.msra.mxu0 0.0
    %9041 = vmatprep.mubr.f32.mxu0 0.0
    %9042 = vmatmul.mubr.f32.gmra.mrb[0].mxu0 %v8975
    %v9043 = vpop.f32.mrb[0].mxu0
    %v9044 = vadd.f32 0.0, %v9043
    %v9045 = vpop.f32.mrb[0].mxu0
    %9046 = vdwg.mxu0
    %v9047 = vadd.f32 %v8940, %v9044
    %v9048 = vld [vmem:[%s8616 + $0x1] sm:$0x3]
    %v9049 = vld [vmem:[%s8616 + $0x5] sm:$0x3]
    %v9050 = vld [vmem:[%s8616 + $0x11] sm:$0x3]
    %v9051 = vld [vmem:[%s8616 + $0x15] sm:$0x3]
    %s9052 = scalar_lea.vmem %s13, 256
    %v9053 = vld [vmem:[%s9052] sm:$0xff]
    %v9054 = vld [vmem:[%s9052 + $0x8] sm:$0xff]
    %v9055 = vld [vmem:[%s9052 + $0x10] sm:$0xff]
    %v9056 = vld [vmem:[%s9052 + $0x18] sm:$0xff]
    %v9057 = vld [vmem:[%s9052 + $0x20] sm:$0xff]
    %v9058 = vld [vmem:[%s9052 + $0x28] sm:$0xff]
    %v9059 = vld [vmem:[%s9052 + $0x30] sm:$0xff]
    %v9060 = vld [vmem:[%s9052 + $0x38] sm:$0xff]
    %v9065 = vcombine.low %v9048, %v9049
    %v9066 = vcombine.low %v9050, %v9051
    %v9068 = vunpack.c.l.s4 1983009808
    %v9069 = vunpack.c.0.s8 %v9068
    %v9070 = vlaneseq
    %v9071 = vshrl.u32 %v9070, 7
    %v9072 = vsub.s32 %v9069, %v9071
    %v9073 = vrot.slane %v9065, %v9072
    %v9075 = vunpack.c.l.s4 1983009808
    %v9076 = vunpack.c.0.s8 %v9075
    %v9077 = vlaneseq
    %v9078 = vshrl.u32 %v9077, 7
    %v9079 = vsub.s32 %v9076, %v9078
    %v9080 = vrot.slane %v9066, %v9079
    %v9081 = vcombine.low %v9073, %v9080
    %v9082 = vsel %vm8668, %v9081, 0
    %9084 = vmatprep.subr.mxu0 0.0
    %9085 = vmatpush1.msra.mxu0 %v9053
    %9086 = vmatprep.subr.mxu0 0.0
    %9087 = vmatpush1.msra.mxu0 %v9054
    %9088 = vmatprep.subr.mxu0 0.0
    %9089 = vmatpush1.msra.mxu0 %v9055
    %9090 = vmatprep.subr.mxu0 0.0
    %9091 = vmatpush1.msra.mxu0 %v9056
    %9092 = vmatprep.subr.mxu0 0.0
    %9093 = vmatpush1.msra.mxu0 %v9057
    %9094 = vmatprep.subr.mxu0 0.0
    %9095 = vmatpush1.msra.mxu0 %v9058
    %9096 = vmatprep.subr.mxu0 0.0
    %9097 = vmatpush1.msra.mxu0 %v9059
    %9098 = vmatprep.subr.mxu0 0.0
    %9099 = vmatpush1.msra.mxu0 %v9060
    %9100 = vmatprep.subr.mxu0 0.0
    %9101 = vmatpush1.msra.mxu0 0.0
    %9102 = vmatprep.subr.mxu0 0.0
    %9103 = vmatpush1.msra.mxu0 0.0
    %9104 = vmatprep.subr.mxu0 0.0
    %9105 = vmatpush1.msra.mxu0 0.0
    %9106 = vmatprep.subr.mxu0 0.0
    %9107 = vmatpush1.msra.mxu0 0.0
    %9108 = vmatprep.subr.mxu0 0.0
    %9109 = vmatpush1.msra.mxu0 0.0
    %9110 = vmatprep.subr.mxu0 0.0
    %9111 = vmatpush1.msra.mxu0 0.0
    %9112 = vmatprep.subr.mxu0 0.0
    %9113 = vmatpush1.msra.mxu0 0.0
    %9114 = vmatprep.subr.mxu0 0.0
    %9115 = vmatpush1.msra.mxu0 0.0
    %9116 = vmatprep.subr.mxu0 0.0
    %9117 = vmatpush1.msra.mxu0 0.0
    %9118 = vmatprep.subr.mxu0 0.0
    %9119 = vmatpush1.msra.mxu0 0.0
    %9120 = vmatprep.subr.mxu0 0.0
    %9121 = vmatpush1.msra.mxu0 0.0
    %9122 = vmatprep.subr.mxu0 0.0
    %9123 = vmatpush1.msra.mxu0 0.0
    %9124 = vmatprep.subr.mxu0 0.0
    %9125 = vmatpush1.msra.mxu0 0.0
    %9126 = vmatprep.subr.mxu0 0.0
    %9127 = vmatpush1.msra.mxu0 0.0
    %9128 = vmatprep.subr.mxu0 0.0
    %9129 = vmatpush1.msra.mxu0 0.0
    %9130 = vmatprep.subr.mxu0 0.0
    %9131 = vmatpush1.msra.mxu0 0.0
    %9132 = vmatprep.subr.mxu0 0.0
    %9133 = vmatpush1.msra.mxu0 0.0
    %9134 = vmatprep.subr.mxu0 0.0
    %9135 = vmatpush1.msra.mxu0 0.0
    %9136 = vmatprep.subr.mxu0 0.0
    %9137 = vmatpush1.msra.mxu0 0.0
    %9138 = vmatprep.subr.mxu0 0.0
    %9139 = vmatpush1.msra.mxu0 0.0
    %9140 = vmatprep.subr.mxu0 0.0
    %9141 = vmatpush1.msra.mxu0 0.0
    %9142 = vmatprep.subr.mxu0 0.0
    %9143 = vmatpush1.msra.mxu0 0.0
    %9144 = vmatprep.subr.mxu0 0.0
    %9145 = vmatpush1.msra.mxu0 0.0
    %9146 = vmatprep.subr.mxu0 0.0
    %9147 = vmatpush1.msra.mxu0 0.0
    %9148 = vmatprep.mubr.f32.mxu0 0.0
    %9149 = vmatmul.mubr.f32.gmra.mrb[0].mxu0 %v9082
    %v9150 = vpop.f32.mrb[0].mxu0
    %v9151 = vadd.f32 0.0, %v9150
    %v9152 = vpop.f32.mrb[0].mxu0
    %9153 = vdwg.mxu0
    %v9154 = vadd.f32 %v9047, %v9151
    %v9155 = vld [vmem:[%s8616 + $0x2] sm:$0x3]
    %v9156 = vld [vmem:[%s8616 + $0x6] sm:$0x3]
    %v9157 = vld [vmem:[%s8616 + $0x12] sm:$0x3]
    %v9158 = vld [vmem:[%s8616 + $0x16] sm:$0x3]
    %s9159 = scalar_lea.vmem %s13, 320
    %v9160 = vld [vmem:[%s9159] sm:$0xff]
    %v9161 = vld [vmem:[%s9159 + $0x8] sm:$0xff]
    %v9162 = vld [vmem:[%s9159 + $0x10] sm:$0xff]
    %v9163 = vld [vmem:[%s9159 + $0x18] sm:$0xff]
    %v9164 = vld [vmem:[%s9159 + $0x20] sm:$0xff]
    %v9165 = vld [vmem:[%s9159 + $0x28] sm:$0xff]
    %v9166 = vld [vmem:[%s9159 + $0x30] sm:$0xff]
    %v9167 = vld [vmem:[%s9159 + $0x38] sm:$0xff]
    %v9172 = vcombine.low %v9155, %v9156
    %v9173 = vcombine.low %v9157, %v9158
    %v9175 = vunpack.c.l.s4 1983009808
    %v9176 = vunpack.c.0.s8 %v9175
    %v9177 = vlaneseq
    %v9178 = vshrl.u32 %v9177, 7
    %v9179 = vsub.s32 %v9176, %v9178
    %v9180 = vrot.slane %v9172, %v9179
    %v9182 = vunpack.c.l.s4 1983009808
    %v9183 = vunpack.c.0.s8 %v9182
    %v9184 = vlaneseq
    %v9185 = vshrl.u32 %v9184, 7
    %v9186 = vsub.s32 %v9183, %v9185
    %v9187 = vrot.slane %v9173, %v9186
    %v9188 = vcombine.low %v9180, %v9187
    %v9189 = vsel %vm8668, %v9188, 0
    %9191 = vmatprep.subr.mxu0 0.0
    %9192 = vmatpush1.msra.mxu0 %v9160
    %9193 = vmatprep.subr.mxu0 0.0
    %9194 = vmatpush1.msra.mxu0 %v9161
    %9195 = vmatprep.subr.mxu0 0.0
    %9196 = vmatpush1.msra.mxu0 %v9162
    %9197 = vmatprep.subr.mxu0 0.0
    %9198 = vmatpush1.msra.mxu0 %v9163
    %9199 = vmatprep.subr.mxu0 0.0
    %9200 = vmatpush1.msra.mxu0 %v9164
    %9201 = vmatprep.subr.mxu0 0.0
    %9202 = vmatpush1.msra.mxu0 %v9165
    %9203 = vmatprep.subr.mxu0 0.0
    %9204 = vmatpush1.msra.mxu0 %v9166
    %9205 = vmatprep.subr.mxu0 0.0
    %9206 = vmatpush1.msra.mxu0 %v9167
    %9207 = vmatprep.subr.mxu0 0.0
    %9208 = vmatpush1.msra.mxu0 0.0
    %9209 = vmatprep.subr.mxu0 0.0
    %9210 = vmatpush1.msra.mxu0 0.0
    %9211 = vmatprep.subr.mxu0 0.0
    %9212 = vmatpush1.msra.mxu0 0.0
    %9213 = vmatprep.subr.mxu0 0.0
    %9214 = vmatpush1.msra.mxu0 0.0
    %9215 = vmatprep.subr.mxu0 0.0
    %9216 = vmatpush1.msra.mxu0 0.0
    %9217 = vmatprep.subr.mxu0 0.0
    %9218 = vmatpush1.msra.mxu0 0.0
    %9219 = vmatprep.subr.mxu0 0.0
    %9220 = vmatpush1.msra.mxu0 0.0
    %9221 = vmatprep.subr.mxu0 0.0
    %9222 = vmatpush1.msra.mxu0 0.0
    %9223 = vmatprep.subr.mxu0 0.0
    %9224 = vmatpush1.msra.mxu0 0.0
    %9225 = vmatprep.subr.mxu0 0.0
    %9226 = vmatpush1.msra.mxu0 0.0
    %9227 = vmatprep.subr.mxu0 0.0
    %9228 = vmatpush1.msra.mxu0 0.0
    %9229 = vmatprep.subr.mxu0 0.0
    %9230 = vmatpush1.msra.mxu0 0.0
    %9231 = vmatprep.subr.mxu0 0.0
    %9232 = vmatpush1.msra.mxu0 0.0
    %9233 = vmatprep.subr.mxu0 0.0
    %9234 = vmatpush1.msra.mxu0 0.0
    %9235 = vmatprep.subr.mxu0 0.0
    %9236 = vmatpush1.msra.mxu0 0.0
    %9237 = vmatprep.subr.mxu0 0.0
    %9238 = vmatpush1.msra.mxu0 0.0
    %9239 = vmatprep.subr.mxu0 0.0
    %9240 = vmatpush1.msra.mxu0 0.0
    %9241 = vmatprep.subr.mxu0 0.0
    %9242 = vmatpush1.msra.mxu0 0.0
    %9243 = vmatprep.subr.mxu0 0.0
    %9244 = vmatpush1.msra.mxu0 0.0
    %9245 = vmatprep.subr.mxu0 0.0
    %9246 = vmatpush1.msra.mxu0 0.0
    %9247 = vmatprep.subr.mxu0 0.0
    %9248 = vmatpush1.msra.mxu0 0.0
    %9249 = vmatprep.subr.mxu0 0.0
    %9250 = vmatpush1.msra.mxu0 0.0
    %9251 = vmatprep.subr.mxu0 0.0
    %9252 = vmatpush1.msra.mxu0 0.0
    %9253 = vmatprep.subr.mxu0 0.0
    %9254 = vmatpush1.msra.mxu0 0.0
    %9255 = vmatprep.mubr.f32.mxu0 0.0
    %9256 = vmatmul.mubr.f32.gmra.mrb[0].mxu0 %v9189
    %v9257 = vpop.f32.mrb[0].mxu0
    %v9258 = vadd.f32 0.0, %v9257
    %v9259 = vpop.f32.mrb[0].mxu0
    %9260 = vdwg.mxu0
    %v9261 = vadd.f32 %v9154, %v9258
    %s9262 = scalar_lea.vmem [#allocation5], 8
    %v9263 = vld [vmem:[%s9262] sm:$0x3]
    %v9264 = vld [vmem:[%s9262 + $0x4] sm:$0x3]
    %v9265 = vld [vmem:[%s9262 + $0x10] sm:$0x3]
    %v9266 = vld [vmem:[%s9262 + $0x14] sm:$0x3]
    %s9267 = scalar_lea.vmem %s13, 384
    %v9268 = vld [vmem:[%s9267] sm:$0xff]
    %v9269 = vld [vmem:[%s9267 + $0x8] sm:$0xff]
    %v9270 = vld [vmem:[%s9267 + $0x10] sm:$0xff]
    %v9271 = vld [vmem:[%s9267 + $0x18] sm:$0xff]
    %v9272 = vld [vmem:[%s9267 + $0x20] sm:$0xff]
    %v9273 = vld [vmem:[%s9267 + $0x28] sm:$0xff]
    %v9274 = vld [vmem:[%s9267 + $0x30] sm:$0xff]
    %v9275 = vld [vmem:[%s9267 + $0x38] sm:$0xff]
    %v9280 = vcombine.low %v9263, %v9264
    %v9281 = vcombine.low %v9265, %v9266
    %v9283 = vunpack.c.l.s4 1983009808
    %v9284 = vunpack.c.0.s8 %v9283
    %v9285 = vlaneseq
    %v9286 = vshrl.u32 %v9285, 7
    %v9287 = vsub.s32 %v9284, %v9286
    %v9288 = vrot.slane %v9280, %v9287
    %v9290 = vunpack.c.l.s4 1983009808
    %v9291 = vunpack.c.0.s8 %v9290
    %v9292 = vlaneseq
    %v9293 = vshrl.u32 %v9292, 7
    %v9294 = vsub.s32 %v9291, %v9293
    %v9295 = vrot.slane %v9281, %v9294
    %v9296 = vcombine.low %v9288, %v9295
    %v9297 = vsel %vm8668, %v9296, 0
    %9299 = vmatprep.subr.mxu0 0.0
    %9300 = vmatpush1.msra.mxu0 %v9268
    %9301 = vmatprep.subr.mxu0 0.0
    %9302 = vmatpush1.msra.mxu0 %v9269
    %9303 = vmatprep.subr.mxu0 0.0
    %9304 = vmatpush1.msra.mxu0 %v9270
    %9305 = vmatprep.subr.mxu0 0.0
    %9306 = vmatpush1.msra.mxu0 %v9271
    %9307 = vmatprep.subr.mxu0 0.0
    %9308 = vmatpush1.msra.mxu0 %v9272
    %9309 = vmatprep.subr.mxu0 0.0
    %9310 = vmatpush1.msra.mxu0 %v9273
    %9311 = vmatprep.subr.mxu0 0.0
    %9312 = vmatpush1.msra.mxu0 %v9274
    %9313 = vmatprep.subr.mxu0 0.0
    %9314 = vmatpush1.msra.mxu0 %v9275
    %9315 = vmatprep.subr.mxu0 0.0
    %9316 = vmatpush1.msra.mxu0 0.0
    %9317 = vmatprep.subr.mxu0 0.0
    %9318 = vmatpush1.msra.mxu0 0.0
    %9319 = vmatprep.subr.mxu0 0.0
    %9320 = vmatpush1.msra.mxu0 0.0
    %9321 = vmatprep.subr.mxu0 0.0
    %9322 = vmatpush1.msra.mxu0 0.0
    %9323 = vmatprep.subr.mxu0 0.0
    %9324 = vmatpush1.msra.mxu0 0.0
    %9325 = vmatprep.subr.mxu0 0.0
    %9326 = vmatpush1.msra.mxu0 0.0
    %9327 = vmatprep.subr.mxu0 0.0
    %9328 = vmatpush1.msra.mxu0 0.0
    %9329 = vmatprep.subr.mxu0 0.0
    %9330 = vmatpush1.msra.mxu0 0.0
    %9331 = vmatprep.subr.mxu0 0.0
    %9332 = vmatpush1.msra.mxu0 0.0
    %9333 = vmatprep.subr.mxu0 0.0
    %9334 = vmatpush1.msra.mxu0 0.0
    %9335 = vmatprep.subr.mxu0 0.0
    %9336 = vmatpush1.msra.mxu0 0.0
    %9337 = vmatprep.subr.mxu0 0.0
    %9338 = vmatpush1.msra.mxu0 0.0
    %9339 = vmatprep.subr.mxu0 0.0
    %9340 = vmatpush1.msra.mxu0 0.0
    %9341 = vmatprep.subr.mxu0 0.0
    %9342 = vmatpush1.msra.mxu0 0.0
    %9343 = vmatprep.subr.mxu0 0.0
    %9344 = vmatpush1.msra.mxu0 0.0
    %9345 = vmatprep.subr.mxu0 0.0
    %9346 = vmatpush1.msra.mxu0 0.0
    %9347 = vmatprep.subr.mxu0 0.0
    %9348 = vmatpush1.msra.mxu0 0.0
    %9349 = vmatprep.subr.mxu0 0.0
    %9350 = vmatpush1.msra.mxu0 0.0
    %9351 = vmatprep.subr.mxu0 0.0
    %9352 = vmatpush1.msra.mxu0 0.0
    %9353 = vmatprep.subr.mxu0 0.0
    %9354 = vmatpush1.msra.mxu0 0.0
    %9355 = vmatprep.subr.mxu0 0.0
    %9356 = vmatpush1.msra.mxu0 0.0
    %9357 = vmatprep.subr.mxu0 0.0
    %9358 = vmatpush1.msra.mxu0 0.0
    %9359 = vmatprep.subr.mxu0 0.0
    %9360 = vmatpush1.msra.mxu0 0.0
    %9361 = vmatprep.subr.mxu0 0.0
    %9362 = vmatpush1.msra.mxu0 0.0
    %9363 = vmatprep.mubr.f32.mxu0 0.0
    %9364 = vmatmul.mubr.f32.gmra.mrb[0].mxu0 %v9297
    %v9365 = vpop.f32.mrb[0].mxu0
    %v9366 = vadd.f32 0.0, %v9365
    %v9367 = vpop.f32.mrb[0].mxu0
    %9368 = vdwg.mxu0
    %v9369 = vadd.f32 %v9261, %v9366
    %v9370 = vld [vmem:[%s9262 + $0x1] sm:$0x3]
    %v9371 = vld [vmem:[%s9262 + $0x5] sm:$0x3]
    %v9372 = vld [vmem:[%s9262 + $0x11] sm:$0x3]
    %v9373 = vld [vmem:[%s9262 + $0x15] sm:$0x3]
    %s9374 = scalar_lea.vmem %s13, 448
    %v9375 = vld [vmem:[%s9374] sm:$0xff]
    %v9376 = vld [vmem:[%s9374 + $0x8] sm:$0xff]
    %v9377 = vld [vmem:[%s9374 + $0x10] sm:$0xff]
    %v9378 = vld [vmem:[%s9374 + $0x18] sm:$0xff]
    %v9379 = vld [vmem:[%s9374 + $0x20] sm:$0xff]
    %v9380 = vld [vmem:[%s9374 + $0x28] sm:$0xff]
    %v9381 = vld [vmem:[%s9374 + $0x30] sm:$0xff]
    %v9382 = vld [vmem:[%s9374 + $0x38] sm:$0xff]
    %v9387 = vcombine.low %v9370, %v9371
    %v9388 = vcombine.low %v9372, %v9373
    %v9390 = vunpack.c.l.s4 1983009808
    %v9391 = vunpack.c.0.s8 %v9390
    %v9392 = vlaneseq
    %v9393 = vshrl.u32 %v9392, 7
    %v9394 = vsub.s32 %v9391, %v9393
    %v9395 = vrot.slane %v9387, %v9394
    %v9397 = vunpack.c.l.s4 1983009808
    %v9398 = vunpack.c.0.s8 %v9397
    %v9399 = vlaneseq
    %v9400 = vshrl.u32 %v9399, 7
    %v9401 = vsub.s32 %v9398, %v9400
    %v9402 = vrot.slane %v9388, %v9401
    %v9403 = vcombine.low %v9395, %v9402
    %v9404 = vsel %vm8668, %v9403, 0
    %9406 = vmatprep.subr.mxu0 0.0
    %9407 = vmatpush1.msra.mxu0 %v9375
    %9408 = vmatprep.subr.mxu0 0.0
    %9409 = vmatpush1.msra.mxu0 %v9376
    %9410 = vmatprep.subr.mxu0 0.0
    %9411 = vmatpush1.msra.mxu0 %v9377
    %9412 = vmatprep.subr.mxu0 0.0
    %9413 = vmatpush1.msra.mxu0 %v9378
    %9414 = vmatprep.subr.mxu0 0.0
    %9415 = vmatpush1.msra.mxu0 %v9379
    %9416 = vmatprep.subr.mxu0 0.0
    %9417 = vmatpush1.msra.mxu0 %v9380
    %9418 = vmatprep.subr.mxu0 0.0
    %9419 = vmatpush1.msra.mxu0 %v9381
    %9420 = vmatprep.subr.mxu0 0.0
    %9421 = vmatpush1.msra.mxu0 %v9382
    %9422 = vmatprep.subr.mxu0 0.0
    %9423 = vmatpush1.msra.mxu0 0.0
    %9424 = vmatprep.subr.mxu0 0.0
    %9425 = vmatpush1.msra.mxu0 0.0
    %9426 = vmatprep.subr.mxu0 0.0
    %9427 = vmatpush1.msra.mxu0 0.0
    %9428 = vmatprep.subr.mxu0 0.0
    %9429 = vmatpush1.msra.mxu0 0.0
    %9430 = vmatprep.subr.mxu0 0.0
    %9431 = vmatpush1.msra.mxu0 0.0
    %9432 = vmatprep.subr.mxu0 0.0
    %9433 = vmatpush1.msra.mxu0 0.0
    %9434 = vmatprep.subr.mxu0 0.0
    %9435 = vmatpush1.msra.mxu0 0.0
    %9436 = vmatprep.subr.mxu0 0.0
    %9437 = vmatpush1.msra.mxu0 0.0
    %9438 = vmatprep.subr.mxu0 0.0
    %9439 = vmatpush1.msra.mxu0 0.0
    %9440 = vmatprep.subr.mxu0 0.0
    %9441 = vmatpush1.msra.mxu0 0.0
    %9442 = vmatprep.subr.mxu0 0.0
    %9443 = vmatpush1.msra.mxu0 0.0
    %9444 = vmatprep.subr.mxu0 0.0
    %9445 = vmatpush1.msra.mxu0 0.0
    %9446 = vmatprep.subr.mxu0 0.0
    %9447 = vmatpush1.msra.mxu0 0.0
    %9448 = vmatprep.subr.mxu0 0.0
    %9449 = vmatpush1.msra.mxu0 0.0
    %9450 = vmatprep.subr.mxu0 0.0
    %9451 = vmatpush1.msra.mxu0 0.0
    %9452 = vmatprep.subr.mxu0 0.0
    %9453 = vmatpush1.msra.mxu0 0.0
    %9454 = vmatprep.subr.mxu0 0.0
    %9455 = vmatpush1.msra.mxu0 0.0
    %9456 = vmatprep.subr.mxu0 0.0
    %9457 = vmatpush1.msra.mxu0 0.0
    %9458 = vmatprep.subr.mxu0 0.0
    %9459 = vmatpush1.msra.mxu0 0.0
    %9460 = vmatprep.subr.mxu0 0.0
    %9461 = vmatpush1.msra.mxu0 0.0
    %9462 = vmatprep.subr.mxu0 0.0
    %9463 = vmatpush1.msra.mxu0 0.0
    %9464 = vmatprep.subr.mxu0 0.0
    %9465 = vmatpush1.msra.mxu0 0.0
    %9466 = vmatprep.subr.mxu0 0.0
    %9467 = vmatpush1.msra.mxu0 0.0
    %9468 = vmatprep.subr.mxu0 0.0
    %9469 = vmatpush1.msra.mxu0 0.0
    %9470 = vmatprep.mubr.f32.mxu0 0.0
    %9471 = vmatmul.mubr.f32.gmra.mrb[0].mxu0 %v9404
    %v9472 = vpop.f32.mrb[0].mxu0
    %v9473 = vadd.f32 0.0, %v9472
    %v9474 = vpop.f32.mrb[0].mxu0
    %9475 = vdwg.mxu0
    %v9476 = vadd.f32 %v9369, %v9473
    %v9477 = vld [vmem:[%s9262 + $0x2] sm:$0x3]
    %v9478 = vld [vmem:[%s9262 + $0x6] sm:$0x3]
    %v9479 = vld [vmem:[%s9262 + $0x12] sm:$0x3]
    %v9480 = vld [vmem:[%s9262 + $0x16] sm:$0x3]
    %s9481 = scalar_lea.vmem %s13, 512
    %v9482 = vld [vmem:[%s9481] sm:$0xff]
    %v9483 = vld [vmem:[%s9481 + $0x8] sm:$0xff]
    %v9484 = vld [vmem:[%s9481 + $0x10] sm:$0xff]
    %v9485 = vld [vmem:[%s9481 + $0x18] sm:$0xff]
    %v9486 = vld [vmem:[%s9481 + $0x20] sm:$0xff]
    %v9487 = vld [vmem:[%s9481 + $0x28] sm:$0xff]
    %v9488 = vld [vmem:[%s9481 + $0x30] sm:$0xff]
    %v9489 = vld [vmem:[%s9481 + $0x38] sm:$0xff]
    %v9494 = vcombine.low %v9477, %v9478
    %v9495 = vcombine.low %v9479, %v9480
    %v9497 = vunpack.c.l.s4 1983009808
    %v9498 = vunpack.c.0.s8 %v9497
    %v9499 = vlaneseq
    %v9500 = vshrl.u32 %v9499, 7
    %v9501 = vsub.s32 %v9498, %v9500
    %v9502 = vrot.slane %v9494, %v9501
    %v9504 = vunpack.c.l.s4 1983009808
    %v9505 = vunpack.c.0.s8 %v9504
    %v9506 = vlaneseq
    %v9507 = vshrl.u32 %v9506, 7
    %v9508 = vsub.s32 %v9505, %v9507
    %v9509 = vrot.slane %v9495, %v9508
    %v9510 = vcombine.low %v9502, %v9509
    %v9511 = vsel %vm8668, %v9510, 0
    %9513 = vmatprep.subr.mxu0 0.0
    %9514 = vmatpush1.msra.mxu0 %v9482
    %9515 = vmatprep.subr.mxu0 0.0
    %9516 = vmatpush1.msra.mxu0 %v9483
    %9517 = vmatprep.subr.mxu0 0.0
    %9518 = vmatpush1.msra.mxu0 %v9484
    %9519 = vmatprep.subr.mxu0 0.0
    %9520 = vmatpush1.msra.mxu0 %v9485
    %9521 = vmatprep.subr.mxu0 0.0
    %9522 = vmatpush1.msra.mxu0 %v9486
    %9523 = vmatprep.subr.mxu0 0.0
    %9524 = vmatpush1.msra.mxu0 %v9487
    %9525 = vmatprep.subr.mxu0 0.0
    %9526 = vmatpush1.msra.mxu0 %v9488
    %9527 = vmatprep.subr.mxu0 0.0
    %9528 = vmatpush1.msra.mxu0 %v9489
    %9529 = vmatprep.subr.mxu0 0.0
    %9530 = vmatpush1.msra.mxu0 0.0
    %9531 = vmatprep.subr.mxu0 0.0
    %9532 = vmatpush1.msra.mxu0 0.0
    %9533 = vmatprep.subr.mxu0 0.0
    %9534 = vmatpush1.msra.mxu0 0.0
    %9535 = vmatprep.subr.mxu0 0.0
    %9536 = vmatpush1.msra.mxu0 0.0
    %9537 = vmatprep.subr.mxu0 0.0
    %9538 = vmatpush1.msra.mxu0 0.0
    %9539 = vmatprep.subr.mxu0 0.0
    %9540 = vmatpush1.msra.mxu0 0.0
    %9541 = vmatprep.subr.mxu0 0.0
    %9542 = vmatpush1.msra.mxu0 0.0
    %9543 = vmatprep.subr.mxu0 0.0
    %9544 = vmatpush1.msra.mxu0 0.0
    %9545 = vmatprep.subr.mxu0 0.0
    %9546 = vmatpush1.msra.mxu0 0.0
    %9547 = vmatprep.subr.mxu0 0.0
    %9548 = vmatpush1.msra.mxu0 0.0
    %9549 = vmatprep.subr.mxu0 0.0
    %9550 = vmatpush1.msra.mxu0 0.0
    %9551 = vmatprep.subr.mxu0 0.0
    %9552 = vmatpush1.msra.mxu0 0.0
    %9553 = vmatprep.subr.mxu0 0.0
    %9554 = vmatpush1.msra.mxu0 0.0
    %9555 = vmatprep.subr.mxu0 0.0
    %9556 = vmatpush1.msra.mxu0 0.0
    %9557 = vmatprep.subr.mxu0 0.0
    %9558 = vmatpush1.msra.mxu0 0.0
    %9559 = vmatprep.subr.mxu0 0.0
    %9560 = vmatpush1.msra.mxu0 0.0
    %9561 = vmatprep.subr.mxu0 0.0
    %9562 = vmatpush1.msra.mxu0 0.0
    %9563 = vmatprep.subr.mxu0 0.0
    %9564 = vmatpush1.msra.mxu0 0.0
    %9565 = vmatprep.subr.mxu0 0.0
    %9566 = vmatpush1.msra.mxu0 0.0
    %9567 = vmatprep.subr.mxu0 0.0
    %9568 = vmatpush1.msra.mxu0 0.0
    %9569 = vmatprep.subr.mxu0 0.0
    %9570 = vmatpush1.msra.mxu0 0.0
    %9571 = vmatprep.subr.mxu0 0.0
    %9572 = vmatpush1.msra.mxu0 0.0
    %9573 = vmatprep.subr.mxu0 0.0
    %9574 = vmatpush1.msra.mxu0 0.0
    %9575 = vmatprep.subr.mxu0 0.0
    %9576 = vmatpush1.msra.mxu0 0.0
    %9577 = vmatprep.mubr.f32.mxu0 0.0
    %9578 = vmatmul.mubr.f32.gmra.mrb[0].mxu0 %v9511
    %v9579 = vpop.f32.mrb[0].mxu0
    %v9580 = vadd.f32 0.0, %v9579
    %v9581 = vpop.f32.mrb[0].mxu0
    %9582 = vdwg.mxu0
    %v9583 = vadd.f32 %v9476, %v9580
    %v9584 = vld [vmem:[%s14] sm:$0x1]
    %v9586 = vlaneseq
    %v9587 = vshrl.u32 %v9586, 7
    %v9588 = vsub.s32 0, %v9587
    %v9589 = vrot.slane %v9584, %v9588
    %v9591 = vadd.f32 %v9583, %v9589
    %v9592 = vmax.f32 %v9591, 0.0
    %v9594 = vcombine.high %v9592, %v9592
    %v9596 = vunpack.c.l.s4 1983009808
    %v9597 = vunpack.c.0.s8 %v9596
    %v9598 = vlaneseq
    %v9599 = vshrl.u32 %v9598, 7
    %v9600 = vsub.s32 %v9597, %v9599
    %v9601 = vrot.slane %v9592, %v9600
    %v9603 = vunpack.c.l.s4 1983009808
    %v9604 = vunpack.c.0.s8 %v9603
    %v9605 = vlaneseq
    %v9606 = vshrl.u32 %v9605, 7
    %v9607 = vsub.s32 %v9604, %v9606
    %v9608 = vrot.slane %v9594, %v9607
    %v9609 = vcombine.high %v9601, %v9601
    %v9610 = vcombine.high %v9608, %v9608
    %9615 = vst.msk [vmem:[%s8616 + $0x1] sm:$0x3] %vm8617, %v9601
    %9616 = vst.msk [vmem:[%s8616 + $0x5] sm:$0x3] %vm8617, %v9609
    %9617 = vst.msk [vmem:[%s8616 + $0x11] sm:$0x3] %vm8617, %v9608
    %9618 = vst.msk [vmem:[%s8616 + $0x15] sm:$0x3] %vm8617, %v9610
    %v9619 = vld [vmem:[#allocation5] sm:$0x3]
    %v9620 = vld [vmem:[#allocation5 + $0x4] sm:$0x3]
    %v9621 = vld [vmem:[#allocation5 + $0x10] sm:$0x3]
    %v9622 = vld [vmem:[#allocation5 + $0x14] sm:$0x3]
    %v9623 = vld [vmem:[%s15] sm:$0xff]
    %v9624 = vld [vmem:[%s15 + $0x8] sm:$0xff]
    %v9625 = vld [vmem:[%s15 + $0x10] sm:$0xff]
    %v9626 = vld [vmem:[%s15 + $0x18] sm:$0xff]
    %v9627 = vld [vmem:[%s15 + $0x20] sm:$0xff]
    %v9628 = vld [vmem:[%s15 + $0x28] sm:$0xff]
    %v9629 = vld [vmem:[%s15 + $0x30] sm:$0xff]
    %v9630 = vld [vmem:[%s15 + $0x38] sm:$0xff]
    %v9631 = vld [vmem:[#allocation5 + $0x1] sm:$0x3]
    %v9632 = vld [vmem:[#allocation5 + $0x5] sm:$0x3]
    %v9633 = vld [vmem:[#allocation5 + $0x11] sm:$0x3]
    %v9634 = vld [vmem:[#allocation5 + $0x15] sm:$0x3]
    %s9635 = scalar_lea.vmem %s15, 64
    %v9636 = vld [vmem:[%s9635] sm:$0xff]
    %v9637 = vld [vmem:[%s9635 + $0x8] sm:$0xff]
    %v9638 = vld [vmem:[%s9635 + $0x10] sm:$0xff]
    %v9639 = vld [vmem:[%s9635 + $0x18] sm:$0xff]
    %v9640 = vld [vmem:[%s9635 + $0x20] sm:$0xff]
    %v9641 = vld [vmem:[%s9635 + $0x28] sm:$0xff]
    %v9642 = vld [vmem:[%s9635 + $0x30] sm:$0xff]
    %v9643 = vld [vmem:[%s9635 + $0x38] sm:$0xff]
    %v9648 = vcombine.low %v9631, %v9632
    %v9649 = vcombine.low %v9633, %v9634
    %v9651 = vunpack.c.l.s4 1983009808
    %v9652 = vunpack.c.0.s8 %v9651
    %v9653 = vlaneseq
    %v9654 = vshrl.u32 %v9653, 7
    %v9655 = vsub.s32 %v9652, %v9654
    %v9656 = vrot.slane %v9648, %v9655
    %v9658 = vunpack.c.l.s4 1983009808
    %v9659 = vunpack.c.0.s8 %v9658
    %v9660 = vlaneseq
    %v9661 = vshrl.u32 %v9660, 7
    %v9662 = vsub.s32 %v9659, %v9661
    %v9663 = vrot.slane %v9649, %v9662
    %v9664 = vcombine.low %v9656, %v9663
    %v9665 = vsel %vm8668, %v9664, 0
    %9667 = vmatprep.subr.mxu0 0.0
    %9668 = vmatpush1.msra.mxu0 %v9636
    %9669 = vmatprep.subr.mxu0 0.0
    %9670 = vmatpush1.msra.mxu0 %v9637
    %9671 = vmatprep.subr.mxu0 0.0
    %9672 = vmatpush1.msra.mxu0 %v9638
    %9673 = vmatprep.subr.mxu0 0.0
    %9674 = vmatpush1.msra.mxu0 %v9639
    %9675 = vmatprep.subr.mxu0 0.0
    %9676 = vmatpush1.msra.mxu0 %v9640
    %9677 = vmatprep.subr.mxu0 0.0
    %9678 = vmatpush1.msra.mxu0 %v9641
    %9679 = vmatprep.subr.mxu0 0.0
    %9680 = vmatpush1.msra.mxu0 %v9642
    %9681 = vmatprep.subr.mxu0 0.0
    %9682 = vmatpush1.msra.mxu0 %v9643
    %9683 = vmatprep.subr.mxu0 0.0
    %9684 = vmatpush1.msra.mxu0 0.0
    %9685 = vmatprep.subr.mxu0 0.0
    %9686 = vmatpush1.msra.mxu0 0.0
    %9687 = vmatprep.subr.mxu0 0.0
    %9688 = vmatpush1.msra.mxu0 0.0
    %9689 = vmatprep.subr.mxu0 0.0
    %9690 = vmatpush1.msra.mxu0 0.0
    %9691 = vmatprep.subr.mxu0 0.0
    %9692 = vmatpush1.msra.mxu0 0.0
    %9693 = vmatprep.subr.mxu0 0.0
    %9694 = vmatpush1.msra.mxu0 0.0
    %9695 = vmatprep.subr.mxu0 0.0
    %9696 = vmatpush1.msra.mxu0 0.0
    %9697 = vmatprep.subr.mxu0 0.0
    %9698 = vmatpush1.msra.mxu0 0.0
    %9699 = vmatprep.subr.mxu0 0.0
    %9700 = vmatpush1.msra.mxu0 0.0
    %9701 = vmatprep.subr.mxu0 0.0
    %9702 = vmatpush1.msra.mxu0 0.0
    %9703 = vmatprep.subr.mxu0 0.0
    %9704 = vmatpush1.msra.mxu0 0.0
    %9705 = vmatprep.subr.mxu0 0.0
    %9706 = vmatpush1.msra.mxu0 0.0
    %9707 = vmatprep.subr.mxu0 0.0
    %9708 = vmatpush1.msra.mxu0 0.0
    %9709 = vmatprep.subr.mxu0 0.0
    %9710 = vmatpush1.msra.mxu0 0.0
    %9711 = vmatprep.subr.mxu0 0.0
    %9712 = vmatpush1.msra.mxu0 0.0
    %9713 = vmatprep.subr.mxu0 0.0
    %9714 = vmatpush1.msra.mxu0 0.0
    %9715 = vmatprep.subr.mxu0 0.0
    %9716 = vmatpush1.msra.mxu0 0.0
    %9717 = vmatprep.subr.mxu0 0.0
    %9718 = vmatpush1.msra.mxu0 0.0
    %9719 = vmatprep.subr.mxu0 0.0
    %9720 = vmatpush1.msra.mxu0 0.0
    %9721 = vmatprep.subr.mxu0 0.0
    %9722 = vmatpush1.msra.mxu0 0.0
    %9723 = vmatprep.subr.mxu0 0.0
    %9724 = vmatpush1.msra.mxu0 0.0
    %9725 = vmatprep.subr.mxu0 0.0
    %9726 = vmatpush1.msra.mxu0 0.0
    %9727 = vmatprep.subr.mxu0 0.0
    %9728 = vmatpush1.msra.mxu0 0.0
    %9729 = vmatprep.subr.mxu0 0.0
    %9730 = vmatpush1.msra.mxu0 0.0
    %9731 = vmatprep.mubr.f32.mxu0 0.0
    %9732 = vmatmul.mubr.f32.gmra.mrb[0].mxu0 %v9665
    %v9733 = vpop.f32.mrb[0].mxu0
    %v9734 = vadd.f32 0.0, %v9733
    %v9735 = vpop.f32.mrb[0].mxu0
    %9736 = vdwg.mxu0
    %v9741 = vcombine.low %v9619, %v9620
    %v9742 = vcombine.low %v9621, %v9622
    %v9744 = vunpack.c.l.s4 1983009808
    %v9745 = vunpack.c.0.s8 %v9744
    %v9746 = vlaneseq
    %v9747 = vshrl.u32 %v9746, 7
    %v9748 = vsub.s32 %v9745, %v9747
    %v9749 = vrot.slane %v9741, %v9748
    %v9751 = vunpack.c.l.s4 1983009808
    %v9752 = vunpack.c.0.s8 %v9751
    %v9753 = vlaneseq
    %v9754 = vshrl.u32 %v9753, 7
    %v9755 = vsub.s32 %v9752, %v9754
    %v9756 = vrot.slane %v9742, %v9755
    %v9757 = vcombine.low %v9749, %v9756
    %v9758 = vsel %vm8668, %v9757, 0
    %9760 = vmatprep.subr.mxu0 0.0
    %9761 = vmatpush1.msra.mxu0 %v9623
    %9762 = vmatprep.subr.mxu0 0.0
    %9763 = vmatpush1.msra.mxu0 %v9624
    %9764 = vmatprep.subr.mxu0 0.0
    %9765 = vmatpush1.msra.mxu0 %v9625
    %9766 = vmatprep.subr.mxu0 0.0
    %9767 = vmatpush1.msra.mxu0 %v9626
    %9768 = vmatprep.subr.mxu0 0.0
    %9769 = vmatpush1.msra.mxu0 %v9627
    %9770 = vmatprep.subr.mxu0 0.0
    %9771 = vmatpush1.msra.mxu0 %v9628
    %9772 = vmatprep.subr.mxu0 0.0
    %9773 = vmatpush1.msra.mxu0 %v9629
    %9774 = vmatprep.subr.mxu0 0.0
    %9775 = vmatpush1.msra.mxu0 %v9630
    %9776 = vmatprep.subr.mxu0 0.0
    %9777 = vmatpush1.msra.mxu0 0.0
    %9778 = vmatprep.subr.mxu0 0.0
    %9779 = vmatpush1.msra.mxu0 0.0
    %9780 = vmatprep.subr.mxu0 0.0
    %9781 = vmatpush1.msra.mxu0 0.0
    %9782 = vmatprep.subr.mxu0 0.0
    %9783 = vmatpush1.msra.mxu0 0.0
    %9784 = vmatprep.subr.mxu0 0.0
    %9785 = vmatpush1.msra.mxu0 0.0
    %9786 = vmatprep.subr.mxu0 0.0
    %9787 = vmatpush1.msra.mxu0 0.0
    %9788 = vmatprep.subr.mxu0 0.0
    %9789 = vmatpush1.msra.mxu0 0.0
    %9790 = vmatprep.subr.mxu0 0.0
    %9791 = vmatpush1.msra.mxu0 0.0
    %9792 = vmatprep.subr.mxu0 0.0
    %9793 = vmatpush1.msra.mxu0 0.0
    %9794 = vmatprep.subr.mxu0 0.0
    %9795 = vmatpush1.msra.mxu0 0.0
    %9796 = vmatprep.subr.mxu0 0.0
    %9797 = vmatpush1.msra.mxu0 0.0
    %9798 = vmatprep.subr.mxu0 0.0
    %9799 = vmatpush1.msra.mxu0 0.0
    %9800 = vmatprep.subr.mxu0 0.0
    %9801 = vmatpush1.msra.mxu0 0.0
    %9802 = vmatprep.subr.mxu0 0.0
    %9803 = vmatpush1.msra.mxu0 0.0
    %9804 = vmatprep.subr.mxu0 0.0
    %9805 = vmatpush1.msra.mxu0 0.0
    %9806 = vmatprep.subr.mxu0 0.0
    %9807 = vmatpush1.msra.mxu0 0.0
    %9808 = vmatprep.subr.mxu0 0.0
    %9809 = vmatpush1.msra.mxu0 0.0
    %9810 = vmatprep.subr.mxu0 0.0
    %9811 = vmatpush1.msra.mxu0 0.0
    %9812 = vmatprep.subr.mxu0 0.0
    %9813 = vmatpush1.msra.mxu0 0.0
    %9814 = vmatprep.subr.mxu0 0.0
    %9815 = vmatpush1.msra.mxu0 0.0
    %9816 = vmatprep.subr.mxu0 0.0
    %9817 = vmatpush1.msra.mxu0 0.0
    %9818 = vmatprep.subr.mxu0 0.0
    %9819 = vmatpush1.msra.mxu0 0.0
    %9820 = vmatprep.subr.mxu0 0.0
    %9821 = vmatpush1.msra.mxu0 0.0
    %9822 = vmatprep.subr.mxu0 0.0
    %9823 = vmatpush1.msra.mxu0 0.0
    %9824 = vmatprep.mubr.f32.mxu0 0.0
    %9825 = vmatmul.mubr.f32.gmra.mrb[0].mxu0 %v9758
    %v9826 = vpop.f32.mrb[0].mxu0
    %v9827 = vadd.f32 %v9734, %v9826
    %v9828 = vpop.f32.mrb[0].mxu0
    %9829 = vdwg.mxu0
    %v9830 = vld [vmem:[#allocation5 + $0x2] sm:$0x3]
    %v9831 = vld [vmem:[#allocation5 + $0x6] sm:$0x3]
    %v9832 = vld [vmem:[#allocation5 + $0x12] sm:$0x3]
    %v9833 = vld [vmem:[#allocation5 + $0x16] sm:$0x3]
    %s9834 = scalar_lea.vmem %s15, 128
    %v9835 = vld [vmem:[%s9834] sm:$0xff]
    %v9836 = vld [vmem:[%s9834 + $0x8] sm:$0xff]
    %v9837 = vld [vmem:[%s9834 + $0x10] sm:$0xff]
    %v9838 = vld [vmem:[%s9834 + $0x18] sm:$0xff]
    %v9839 = vld [vmem:[%s9834 + $0x20] sm:$0xff]
    %v9840 = vld [vmem:[%s9834 + $0x28] sm:$0xff]
    %v9841 = vld [vmem:[%s9834 + $0x30] sm:$0xff]
    %v9842 = vld [vmem:[%s9834 + $0x38] sm:$0xff]
    %v9847 = vcombine.low %v9830, %v9831
    %v9848 = vcombine.low %v9832, %v9833
    %v9850 = vunpack.c.l.s4 1983009808
    %v9851 = vunpack.c.0.s8 %v9850
    %v9852 = vlaneseq
    %v9853 = vshrl.u32 %v9852, 7
    %v9854 = vsub.s32 %v9851, %v9853
    %v9855 = vrot.slane %v9847, %v9854
    %v9857 = vunpack.c.l.s4 1983009808
    %v9858 = vunpack.c.0.s8 %v9857
    %v9859 = vlaneseq
    %v9860 = vshrl.u32 %v9859, 7
    %v9861 = vsub.s32 %v9858, %v9860
    %v9862 = vrot.slane %v9848, %v9861
    %v9863 = vcombine.low %v9855, %v9862
    %v9864 = vsel %vm8668, %v9863, 0
    %9866 = vmatprep.subr.mxu0 0.0
    %9867 = vmatpush1.msra.mxu0 %v9835
    %9868 = vmatprep.subr.mxu0 0.0
    %9869 = vmatpush1.msra.mxu0 %v9836
    %9870 = vmatprep.subr.mxu0 0.0
    %9871 = vmatpush1.msra.mxu0 %v9837
    %9872 = vmatprep.subr.mxu0 0.0
    %9873 = vmatpush1.msra.mxu0 %v9838
    %9874 = vmatprep.subr.mxu0 0.0
    %9875 = vmatpush1.msra.mxu0 %v9839
    %9876 = vmatprep.subr.mxu0 0.0
    %9877 = vmatpush1.msra.mxu0 %v9840
    %9878 = vmatprep.subr.mxu0 0.0
    %9879 = vmatpush1.msra.mxu0 %v9841
    %9880 = vmatprep.subr.mxu0 0.0
    %9881 = vmatpush1.msra.mxu0 %v9842
    %9882 = vmatprep.subr.mxu0 0.0
    %9883 = vmatpush1.msra.mxu0 0.0
    %9884 = vmatprep.subr.mxu0 0.0
    %9885 = vmatpush1.msra.mxu0 0.0
    %9886 = vmatprep.subr.mxu0 0.0
    %9887 = vmatpush1.msra.mxu0 0.0
    %9888 = vmatprep.subr.mxu0 0.0
    %9889 = vmatpush1.msra.mxu0 0.0
    %9890 = vmatprep.subr.mxu0 0.0
    %9891 = vmatpush1.msra.mxu0 0.0
    %9892 = vmatprep.subr.mxu0 0.0
    %9893 = vmatpush1.msra.mxu0 0.0
    %9894 = vmatprep.subr.mxu0 0.0
    %9895 = vmatpush1.msra.mxu0 0.0
    %9896 = vmatprep.subr.mxu0 0.0
    %9897 = vmatpush1.msra.mxu0 0.0
    %9898 = vmatprep.subr.mxu0 0.0
    %9899 = vmatpush1.msra.mxu0 0.0
    %9900 = vmatprep.subr.mxu0 0.0
    %9901 = vmatpush1.msra.mxu0 0.0
    %9902 = vmatprep.subr.mxu0 0.0
    %9903 = vmatpush1.msra.mxu0 0.0
    %9904 = vmatprep.subr.mxu0 0.0
    %9905 = vmatpush1.msra.mxu0 0.0
    %9906 = vmatprep.subr.mxu0 0.0
    %9907 = vmatpush1.msra.mxu0 0.0
    %9908 = vmatprep.subr.mxu0 0.0
    %9909 = vmatpush1.msra.mxu0 0.0
    %9910 = vmatprep.subr.mxu0 0.0
    %9911 = vmatpush1.msra.mxu0 0.0
    %9912 = vmatprep.subr.mxu0 0.0
    %9913 = vmatpush1.msra.mxu0 0.0
    %9914 = vmatprep.subr.mxu0 0.0
    %9915 = vmatpush1.msra.mxu0 0.0
    %9916 = vmatprep.subr.mxu0 0.0
    %9917 = vmatpush1.msra.mxu0 0.0
    %9918 = vmatprep.subr.mxu0 0.0
    %9919 = vmatpush1.msra.mxu0 0.0
    %9920 = vmatprep.subr.mxu0 0.0
    %9921 = vmatpush1.msra.mxu0 0.0
    %9922 = vmatprep.subr.mxu0 0.0
    %9923 = vmatpush1.msra.mxu0 0.0
    %9924 = vmatprep.subr.mxu0 0.0
    %9925 = vmatpush1.msra.mxu0 0.0
    %9926 = vmatprep.subr.mxu0 0.0
    %9927 = vmatpush1.msra.mxu0 0.0
    %9928 = vmatprep.subr.mxu0 0.0
    %9929 = vmatpush1.msra.mxu0 0.0
    %9930 = vmatprep.mubr.f32.mxu0 0.0
    %9931 = vmatmul.mubr.f32.gmra.mrb[0].mxu0 %v9864
    %v9932 = vpop.f32.mrb[0].mxu0
    %v9933 = vadd.f32 0.0, %v9932
    %v9934 = vpop.f32.mrb[0].mxu0
    %9935 = vdwg.mxu0
    %v9936 = vadd.f32 %v9827, %v9933
    %v9937 = vld [vmem:[%s8616] sm:$0x3]
    %v9938 = vld [vmem:[%s8616 + $0x4] sm:$0x3]
    %v9939 = vld [vmem:[%s8616 + $0x10] sm:$0x3]
    %v9940 = vld [vmem:[%s8616 + $0x14] sm:$0x3]
    %s9941 = scalar_lea.vmem %s15, 192
    %v9942 = vld [vmem:[%s9941] sm:$0xff]
    %v9943 = vld [vmem:[%s9941 + $0x8] sm:$0xff]
    %v9944 = vld [vmem:[%s9941 + $0x10] sm:$0xff]
    %v9945 = vld [vmem:[%s9941 + $0x18] sm:$0xff]
    %v9946 = vld [vmem:[%s9941 + $0x20] sm:$0xff]
    %v9947 = vld [vmem:[%s9941 + $0x28] sm:$0xff]
    %v9948 = vld [vmem:[%s9941 + $0x30] sm:$0xff]
    %v9949 = vld [vmem:[%s9941 + $0x38] sm:$0xff]
    %v9954 = vcombine.low %v9937, %v9938
    %v9955 = vcombine.low %v9939, %v9940
    %v9957 = vunpack.c.l.s4 1983009808
    %v9958 = vunpack.c.0.s8 %v9957
    %v9959 = vlaneseq
    %v9960 = vshrl.u32 %v9959, 7
    %v9961 = vsub.s32 %v9958, %v9960
    %v9962 = vrot.slane %v9954, %v9961
    %v9964 = vunpack.c.l.s4 1983009808
    %v9965 = vunpack.c.0.s8 %v9964
    %v9966 = vlaneseq
    %v9967 = vshrl.u32 %v9966, 7
    %v9968 = vsub.s32 %v9965, %v9967
    %v9969 = vrot.slane %v9955, %v9968
    %v9970 = vcombine.low %v9962, %v9969
    %v9971 = vsel %vm8668, %v9970, 0
    %9973 = vmatprep.subr.mxu0 0.0
    %9974 = vmatpush1.msra.mxu0 %v9942
    %9975 = vmatprep.subr.mxu0 0.0
    %9976 = vmatpush1.msra.mxu0 %v9943
    %9977 = vmatprep.subr.mxu0 0.0
    %9978 = vmatpush1.msra.mxu0 %v9944
    %9979 = vmatprep.subr.mxu0 0.0
    %9980 = vmatpush1.msra.mxu0 %v9945
    %9981 = vmatprep.subr.mxu0 0.0
    %9982 = vmatpush1.msra.mxu0 %v9946
    %9983 = vmatprep.subr.mxu0 0.0
    %9984 = vmatpush1.msra.mxu0 %v9947
    %9985 = vmatprep.subr.mxu0 0.0
    %9986 = vmatpush1.msra.mxu0 %v9948
    %9987 = vmatprep.subr.mxu0 0.0
    %9988 = vmatpush1.msra.mxu0 %v9949
    %9989 = vmatprep.subr.mxu0 0.0
    %9990 = vmatpush1.msra.mxu0 0.0
    %9991 = vmatprep.subr.mxu0 0.0
    %9992 = vmatpush1.msra.mxu0 0.0
    %9993 = vmatprep.subr.mxu0 0.0
    %9994 = vmatpush1.msra.mxu0 0.0
    %9995 = vmatprep.subr.mxu0 0.0
    %9996 = vmatpush1.msra.mxu0 0.0
    %9997 = vmatprep.subr.mxu0 0.0
    %9998 = vmatpush1.msra.mxu0 0.0
    %9999 = vmatprep.subr.mxu0 0.0
    %10000 = vmatpush1.msra.mxu0 0.0
    %10001 = vmatprep.subr.mxu0 0.0
    %10002 = vmatpush1.msra.mxu0 0.0
    %10003 = vmatprep.subr.mxu0 0.0
    %10004 = vmatpush1.msra.mxu0 0.0
    %10005 = vmatprep.subr.mxu0 0.0
    %10006 = vmatpush1.msra.mxu0 0.0
    %10007 = vmatprep.subr.mxu0 0.0
    %10008 = vmatpush1.msra.mxu0 0.0
    %10009 = vmatprep.subr.mxu0 0.0
    %10010 = vmatpush1.msra.mxu0 0.0
    %10011 = vmatprep.subr.mxu0 0.0
    %10012 = vmatpush1.msra.mxu0 0.0
    %10013 = vmatprep.subr.mxu0 0.0
    %10014 = vmatpush1.msra.mxu0 0.0
    %10015 = vmatprep.subr.mxu0 0.0
    %10016 = vmatpush1.msra.mxu0 0.0
    %10017 = vmatprep.subr.mxu0 0.0
    %10018 = vmatpush1.msra.mxu0 0.0
    %10019 = vmatprep.subr.mxu0 0.0
    %10020 = vmatpush1.msra.mxu0 0.0
    %10021 = vmatprep.subr.mxu0 0.0
    %10022 = vmatpush1.msra.mxu0 0.0
    %10023 = vmatprep.subr.mxu0 0.0
    %10024 = vmatpush1.msra.mxu0 0.0
    %10025 = vmatprep.subr.mxu0 0.0
    %10026 = vmatpush1.msra.mxu0 0.0
    %10027 = vmatprep.subr.mxu0 0.0
    %10028 = vmatpush1.msra.mxu0 0.0
    %10029 = vmatprep.subr.mxu0 0.0
    %10030 = vmatpush1.msra.mxu0 0.0
    %10031 = vmatprep.subr.mxu0 0.0
    %10032 = vmatpush1.msra.mxu0 0.0
    %10033 = vmatprep.subr.mxu0 0.0
    %10034 = vmatpush1.msra.mxu0 0.0
    %10035 = vmatprep.subr.mxu0 0.0
    %10036 = vmatpush1.msra.mxu0 0.0
    %10037 = vmatprep.mubr.f32.mxu0 0.0
    %10038 = vmatmul.mubr.f32.gmra.mrb[0].mxu0 %v9971
    %v10039 = vpop.f32.mrb[0].mxu0
    %v10040 = vadd.f32 0.0, %v10039
    %v10041 = vpop.f32.mrb[0].mxu0
    %10042 = vdwg.mxu0
    %v10043 = vadd.f32 %v9936, %v10040
    %v10044 = vld [vmem:[%s8616 + $0x1] sm:$0x3]
    %v10045 = vld [vmem:[%s8616 + $0x5] sm:$0x3]
    %v10046 = vld [vmem:[%s8616 + $0x11] sm:$0x3]
    %v10047 = vld [vmem:[%s8616 + $0x15] sm:$0x3]
    %s10048 = scalar_lea.vmem %s15, 256
    %v10049 = vld [vmem:[%s10048] sm:$0xff]
    %v10050 = vld [vmem:[%s10048 + $0x8] sm:$0xff]
    %v10051 = vld [vmem:[%s10048 + $0x10] sm:$0xff]
    %v10052 = vld [vmem:[%s10048 + $0x18] sm:$0xff]
    %v10053 = vld [vmem:[%s10048 + $0x20] sm:$0xff]
    %v10054 = vld [vmem:[%s10048 + $0x28] sm:$0xff]
    %v10055 = vld [vmem:[%s10048 + $0x30] sm:$0xff]
    %v10056 = vld [vmem:[%s10048 + $0x38] sm:$0xff]
    %v10061 = vcombine.low %v10044, %v10045
    %v10062 = vcombine.low %v10046, %v10047
    %v10064 = vunpack.c.l.s4 1983009808
    %v10065 = vunpack.c.0.s8 %v10064
    %v10066 = vlaneseq
    %v10067 = vshrl.u32 %v10066, 7
    %v10068 = vsub.s32 %v10065, %v10067
    %v10069 = vrot.slane %v10061, %v10068
    %v10071 = vunpack.c.l.s4 1983009808
    %v10072 = vunpack.c.0.s8 %v10071
    %v10073 = vlaneseq
    %v10074 = vshrl.u32 %v10073, 7
    %v10075 = vsub.s32 %v10072, %v10074
    %v10076 = vrot.slane %v10062, %v10075
    %v10077 = vcombine.low %v10069, %v10076
    %v10078 = vsel %vm8668, %v10077, 0
    %10080 = vmatprep.subr.mxu0 0.0
    %10081 = vmatpush1.msra.mxu0 %v10049
    %10082 = vmatprep.subr.mxu0 0.0
    %10083 = vmatpush1.msra.mxu0 %v10050
    %10084 = vmatprep.subr.mxu0 0.0
    %10085 = vmatpush1.msra.mxu0 %v10051
    %10086 = vmatprep.subr.mxu0 0.0
    %10087 = vmatpush1.msra.mxu0 %v10052
    %10088 = vmatprep.subr.mxu0 0.0
    %10089 = vmatpush1.msra.mxu0 %v10053
    %10090 = vmatprep.subr.mxu0 0.0
    %10091 = vmatpush1.msra.mxu0 %v10054
    %10092 = vmatprep.subr.mxu0 0.0
    %10093 = vmatpush1.msra.mxu0 %v10055
    %10094 = vmatprep.subr.mxu0 0.0
    %10095 = vmatpush1.msra.mxu0 %v10056
    %10096 = vmatprep.subr.mxu0 0.0
    %10097 = vmatpush1.msra.mxu0 0.0
    %10098 = vmatprep.subr.mxu0 0.0
    %10099 = vmatpush1.msra.mxu0 0.0
    %10100 = vmatprep.subr.mxu0 0.0
    %10101 = vmatpush1.msra.mxu0 0.0
    %10102 = vmatprep.subr.mxu0 0.0
    %10103 = vmatpush1.msra.mxu0 0.0
    %10104 = vmatprep.subr.mxu0 0.0
    %10105 = vmatpush1.msra.mxu0 0.0
    %10106 = vmatprep.subr.mxu0 0.0
    %10107 = vmatpush1.msra.mxu0 0.0
    %10108 = vmatprep.subr.mxu0 0.0
    %10109 = vmatpush1.msra.mxu0 0.0
    %10110 = vmatprep.subr.mxu0 0.0
    %10111 = vmatpush1.msra.mxu0 0.0
    %10112 = vmatprep.subr.mxu0 0.0
    %10113 = vmatpush1.msra.mxu0 0.0
    %10114 = vmatprep.subr.mxu0 0.0
    %10115 = vmatpush1.msra.mxu0 0.0
    %10116 = vmatprep.subr.mxu0 0.0
    %10117 = vmatpush1.msra.mxu0 0.0
    %10118 = vmatprep.subr.mxu0 0.0
    %10119 = vmatpush1.msra.mxu0 0.0
    %10120 = vmatprep.subr.mxu0 0.0
    %10121 = vmatpush1.msra.mxu0 0.0
    %10122 = vmatprep.subr.mxu0 0.0
    %10123 = vmatpush1.msra.mxu0 0.0
    %10124 = vmatprep.subr.mxu0 0.0
    %10125 = vmatpush1.msra.mxu0 0.0
    %10126 = vmatprep.subr.mxu0 0.0
    %10127 = vmatpush1.msra.mxu0 0.0
    %10128 = vmatprep.subr.mxu0 0.0
    %10129 = vmatpush1.msra.mxu0 0.0
    %10130 = vmatprep.subr.mxu0 0.0
    %10131 = vmatpush1.msra.mxu0 0.0
    %10132 = vmatprep.subr.mxu0 0.0
    %10133 = vmatpush1.msra.mxu0 0.0
    %10134 = vmatprep.subr.mxu0 0.0
    %10135 = vmatpush1.msra.mxu0 0.0
    %10136 = vmatprep.subr.mxu0 0.0
    %10137 = vmatpush1.msra.mxu0 0.0
    %10138 = vmatprep.subr.mxu0 0.0
    %10139 = vmatpush1.msra.mxu0 0.0
    %10140 = vmatprep.subr.mxu0 0.0
    %10141 = vmatpush1.msra.mxu0 0.0
    %10142 = vmatprep.subr.mxu0 0.0
    %10143 = vmatpush1.msra.mxu0 0.0
    %10144 = vmatprep.mubr.f32.mxu0 0.0
    %10145 = vmatmul.mubr.f32.gmra.mrb[0].mxu0 %v10078
    %v10146 = vpop.f32.mrb[0].mxu0
    %v10147 = vadd.f32 0.0, %v10146
    %v10148 = vpop.f32.mrb[0].mxu0
    %10149 = vdwg.mxu0
    %v10150 = vadd.f32 %v10043, %v10147
    %v10151 = vld [vmem:[%s8616 + $0x2] sm:$0x3]
    %v10152 = vld [vmem:[%s8616 + $0x6] sm:$0x3]
    %v10153 = vld [vmem:[%s8616 + $0x12] sm:$0x3]
    %v10154 = vld [vmem:[%s8616 + $0x16] sm:$0x3]
    %s10155 = scalar_lea.vmem %s15, 320
    %v10156 = vld [vmem:[%s10155] sm:$0xff]
    %v10157 = vld [vmem:[%s10155 + $0x8] sm:$0xff]
    %v10158 = vld [vmem:[%s10155 + $0x10] sm:$0xff]
    %v10159 = vld [vmem:[%s10155 + $0x18] sm:$0xff]
    %v10160 = vld [vmem:[%s10155 + $0x20] sm:$0xff]
    %v10161 = vld [vmem:[%s10155 + $0x28] sm:$0xff]
    %v10162 = vld [vmem:[%s10155 + $0x30] sm:$0xff]
    %v10163 = vld [vmem:[%s10155 + $0x38] sm:$0xff]
    %v10168 = vcombine.low %v10151, %v10152
    %v10169 = vcombine.low %v10153, %v10154
    %v10171 = vunpack.c.l.s4 1983009808
    %v10172 = vunpack.c.0.s8 %v10171
    %v10173 = vlaneseq
    %v10174 = vshrl.u32 %v10173, 7
    %v10175 = vsub.s32 %v10172, %v10174
    %v10176 = vrot.slane %v10168, %v10175
    %v10178 = vunpack.c.l.s4 1983009808
    %v10179 = vunpack.c.0.s8 %v10178
    %v10180 = vlaneseq
    %v10181 = vshrl.u32 %v10180, 7
    %v10182 = vsub.s32 %v10179, %v10181
    %v10183 = vrot.slane %v10169, %v10182
    %v10184 = vcombine.low %v10176, %v10183
    %v10185 = vsel %vm8668, %v10184, 0
    %10187 = vmatprep.subr.mxu0 0.0
    %10188 = vmatpush1.msra.mxu0 %v10156
    %10189 = vmatprep.subr.mxu0 0.0
    %10190 = vmatpush1.msra.mxu0 %v10157
    %10191 = vmatprep.subr.mxu0 0.0
    %10192 = vmatpush1.msra.mxu0 %v10158
    %10193 = vmatprep.subr.mxu0 0.0
    %10194 = vmatpush1.msra.mxu0 %v10159
    %10195 = vmatprep.subr.mxu0 0.0
    %10196 = vmatpush1.msra.mxu0 %v10160
    %10197 = vmatprep.subr.mxu0 0.0
    %10198 = vmatpush1.msra.mxu0 %v10161
    %10199 = vmatprep.subr.mxu0 0.0
    %10200 = vmatpush1.msra.mxu0 %v10162
    %10201 = vmatprep.subr.mxu0 0.0
    %10202 = vmatpush1.msra.mxu0 %v10163
    %10203 = vmatprep.subr.mxu0 0.0
    %10204 = vmatpush1.msra.mxu0 0.0
    %10205 = vmatprep.subr.mxu0 0.0
    %10206 = vmatpush1.msra.mxu0 0.0
    %10207 = vmatprep.subr.mxu0 0.0
    %10208 = vmatpush1.msra.mxu0 0.0
    %10209 = vmatprep.subr.mxu0 0.0
    %10210 = vmatpush1.msra.mxu0 0.0
    %10211 = vmatprep.subr.mxu0 0.0
    %10212 = vmatpush1.msra.mxu0 0.0
    %10213 = vmatprep.subr.mxu0 0.0
    %10214 = vmatpush1.msra.mxu0 0.0
    %10215 = vmatprep.subr.mxu0 0.0
    %10216 = vmatpush1.msra.mxu0 0.0
    %10217 = vmatprep.subr.mxu0 0.0
    %10218 = vmatpush1.msra.mxu0 0.0
    %10219 = vmatprep.subr.mxu0 0.0
    %10220 = vmatpush1.msra.mxu0 0.0
    %10221 = vmatprep.subr.mxu0 0.0
    %10222 = vmatpush1.msra.mxu0 0.0
    %10223 = vmatprep.subr.mxu0 0.0
    %10224 = vmatpush1.msra.mxu0 0.0
    %10225 = vmatprep.subr.mxu0 0.0
    %10226 = vmatpush1.msra.mxu0 0.0
    %10227 = vmatprep.subr.mxu0 0.0
    %10228 = vmatpush1.msra.mxu0 0.0
    %10229 = vmatprep.subr.mxu0 0.0
    %10230 = vmatpush1.msra.mxu0 0.0
    %10231 = vmatprep.subr.mxu0 0.0
    %10232 = vmatpush1.msra.mxu0 0.0
    %10233 = vmatprep.subr.mxu0 0.0
    %10234 = vmatpush1.msra.mxu0 0.0
    %10235 = vmatprep.subr.mxu0 0.0
    %10236 = vmatpush1.msra.mxu0 0.0
    %10237 = vmatprep.subr.mxu0 0.0
    %10238 = vmatpush1.msra.mxu0 0.0
    %10239 = vmatprep.subr.mxu0 0.0
    %10240 = vmatpush1.msra.mxu0 0.0
    %10241 = vmatprep.subr.mxu0 0.0
    %10242 = vmatpush1.msra.mxu0 0.0
    %10243 = vmatprep.subr.mxu0 0.0
    %10244 = vmatpush1.msra.mxu0 0.0
    %10245 = vmatprep.subr.mxu0 0.0
    %10246 = vmatpush1.msra.mxu0 0.0
    %10247 = vmatprep.subr.mxu0 0.0
    %10248 = vmatpush1.msra.mxu0 0.0
    %10249 = vmatprep.subr.mxu0 0.0
    %10250 = vmatpush1.msra.mxu0 0.0
    %10251 = vmatprep.mubr.f32.mxu0 0.0
    %10252 = vmatmul.mubr.f32.gmra.mrb[0].mxu0 %v10185
    %v10253 = vpop.f32.mrb[0].mxu0
    %v10254 = vadd.f32 0.0, %v10253
    %v10255 = vpop.f32.mrb[0].mxu0
    %10256 = vdwg.mxu0
    %v10257 = vadd.f32 %v10150, %v10254
    %v10258 = vld [vmem:[%s9262] sm:$0x3]
    %v10259 = vld [vmem:[%s9262 + $0x4] sm:$0x3]
    %v10260 = vld [vmem:[%s9262 + $0x10] sm:$0x3]
    %v10261 = vld [vmem:[%s9262 + $0x14] sm:$0x3]
    %s10262 = scalar_lea.vmem %s15, 384
    %v10263 = vld [vmem:[%s10262] sm:$0xff]
    %v10264 = vld [vmem:[%s10262 + $0x8] sm:$0xff]
    %v10265 = vld [vmem:[%s10262 + $0x10] sm:$0xff]
    %v10266 = vld [vmem:[%s10262 + $0x18] sm:$0xff]
    %v10267 = vld [vmem:[%s10262 + $0x20] sm:$0xff]
    %v10268 = vld [vmem:[%s10262 + $0x28] sm:$0xff]
    %v10269 = vld [vmem:[%s10262 + $0x30] sm:$0xff]
    %v10270 = vld [vmem:[%s10262 + $0x38] sm:$0xff]
    %v10275 = vcombine.low %v10258, %v10259
    %v10276 = vcombine.low %v10260, %v10261
    %v10278 = vunpack.c.l.s4 1983009808
    %v10279 = vunpack.c.0.s8 %v10278
    %v10280 = vlaneseq
    %v10281 = vshrl.u32 %v10280, 7
    %v10282 = vsub.s32 %v10279, %v10281
    %v10283 = vrot.slane %v10275, %v10282
    %v10285 = vunpack.c.l.s4 1983009808
    %v10286 = vunpack.c.0.s8 %v10285
    %v10287 = vlaneseq
    %v10288 = vshrl.u32 %v10287, 7
    %v10289 = vsub.s32 %v10286, %v10288
    %v10290 = vrot.slane %v10276, %v10289
    %v10291 = vcombine.low %v10283, %v10290
    %v10292 = vsel %vm8668, %v10291, 0
    %10294 = vmatprep.subr.mxu0 0.0
    %10295 = vmatpush1.msra.mxu0 %v10263
    %10296 = vmatprep.subr.mxu0 0.0
    %10297 = vmatpush1.msra.mxu0 %v10264
    %10298 = vmatprep.subr.mxu0 0.0
    %10299 = vmatpush1.msra.mxu0 %v10265
    %10300 = vmatprep.subr.mxu0 0.0
    %10301 = vmatpush1.msra.mxu0 %v10266
    %10302 = vmatprep.subr.mxu0 0.0
    %10303 = vmatpush1.msra.mxu0 %v10267
    %10304 = vmatprep.subr.mxu0 0.0
    %10305 = vmatpush1.msra.mxu0 %v10268
    %10306 = vmatprep.subr.mxu0 0.0
    %10307 = vmatpush1.msra.mxu0 %v10269
    %10308 = vmatprep.subr.mxu0 0.0
    %10309 = vmatpush1.msra.mxu0 %v10270
    %10310 = vmatprep.subr.mxu0 0.0
    %10311 = vmatpush1.msra.mxu0 0.0
    %10312 = vmatprep.subr.mxu0 0.0
    %10313 = vmatpush1.msra.mxu0 0.0
    %10314 = vmatprep.subr.mxu0 0.0
    %10315 = vmatpush1.msra.mxu0 0.0
    %10316 = vmatprep.subr.mxu0 0.0
    %10317 = vmatpush1.msra.mxu0 0.0
    %10318 = vmatprep.subr.mxu0 0.0
    %10319 = vmatpush1.msra.mxu0 0.0
    %10320 = vmatprep.subr.mxu0 0.0
    %10321 = vmatpush1.msra.mxu0 0.0
    %10322 = vmatprep.subr.mxu0 0.0
    %10323 = vmatpush1.msra.mxu0 0.0
    %10324 = vmatprep.subr.mxu0 0.0
    %10325 = vmatpush1.msra.mxu0 0.0
    %10326 = vmatprep.subr.mxu0 0.0
    %10327 = vmatpush1.msra.mxu0 0.0
    %10328 = vmatprep.subr.mxu0 0.0
    %10329 = vmatpush1.msra.mxu0 0.0
    %10330 = vmatprep.subr.mxu0 0.0
    %10331 = vmatpush1.msra.mxu0 0.0
    %10332 = vmatprep.subr.mxu0 0.0
    %10333 = vmatpush1.msra.mxu0 0.0
    %10334 = vmatprep.subr.mxu0 0.0
    %10335 = vmatpush1.msra.mxu0 0.0
    %10336 = vmatprep.subr.mxu0 0.0
    %10337 = vmatpush1.msra.mxu0 0.0
    %10338 = vmatprep.subr.mxu0 0.0
    %10339 = vmatpush1.msra.mxu0 0.0
    %10340 = vmatprep.subr.mxu0 0.0
    %10341 = vmatpush1.msra.mxu0 0.0
    %10342 = vmatprep.subr.mxu0 0.0
    %10343 = vmatpush1.msra.mxu0 0.0
    %10344 = vmatprep.subr.mxu0 0.0
    %10345 = vmatpush1.msra.mxu0 0.0
    %10346 = vmatprep.subr.mxu0 0.0
    %10347 = vmatpush1.msra.mxu0 0.0
    %10348 = vmatprep.subr.mxu0 0.0
    %10349 = vmatpush1.msra.mxu0 0.0
    %10350 = vmatprep.subr.mxu0 0.0
    %10351 = vmatpush1.msra.mxu0 0.0
    %10352 = vmatprep.subr.mxu0 0.0
    %10353 = vmatpush1.msra.mxu0 0.0
    %10354 = vmatprep.subr.mxu0 0.0
    %10355 = vmatpush1.msra.mxu0 0.0
    %10356 = vmatprep.subr.mxu0 0.0
    %10357 = vmatpush1.msra.mxu0 0.0
    %10358 = vmatprep.mubr.f32.mxu0 0.0
    %10359 = vmatmul.mubr.f32.gmra.mrb[0].mxu0 %v10292
    %v10360 = vpop.f32.mrb[0].mxu0
    %v10361 = vadd.f32 0.0, %v10360
    %v10362 = vpop.f32.mrb[0].mxu0
    %10363 = vdwg.mxu0
    %v10364 = vadd.f32 %v10257, %v10361
    %v10365 = vld [vmem:[%s9262 + $0x1] sm:$0x3]
    %v10366 = vld [vmem:[%s9262 + $0x5] sm:$0x3]
    %v10367 = vld [vmem:[%s9262 + $0x11] sm:$0x3]
    %v10368 = vld [vmem:[%s9262 + $0x15] sm:$0x3]
    %s10369 = scalar_lea.vmem %s15, 448
    %v10370 = vld [vmem:[%s10369] sm:$0xff]
    %v10371 = vld [vmem:[%s10369 + $0x8] sm:$0xff]
    %v10372 = vld [vmem:[%s10369 + $0x10] sm:$0xff]
    %v10373 = vld [vmem:[%s10369 + $0x18] sm:$0xff]
    %v10374 = vld [vmem:[%s10369 + $0x20] sm:$0xff]
    %v10375 = vld [vmem:[%s10369 + $0x28] sm:$0xff]
    %v10376 = vld [vmem:[%s10369 + $0x30] sm:$0xff]
    %v10377 = vld [vmem:[%s10369 + $0x38] sm:$0xff]
    %v10382 = vcombine.low %v10365, %v10366
    %v10383 = vcombine.low %v10367, %v10368
    %v10385 = vunpack.c.l.s4 1983009808
    %v10386 = vunpack.c.0.s8 %v10385
    %v10387 = vlaneseq
    %v10388 = vshrl.u32 %v10387, 7
    %v10389 = vsub.s32 %v10386, %v10388
    %v10390 = vrot.slane %v10382, %v10389
    %v10392 = vunpack.c.l.s4 1983009808
    %v10393 = vunpack.c.0.s8 %v10392
    %v10394 = vlaneseq
    %v10395 = vshrl.u32 %v10394, 7
    %v10396 = vsub.s32 %v10393, %v10395
    %v10397 = vrot.slane %v10383, %v10396
    %v10398 = vcombine.low %v10390, %v10397
    %v10399 = vsel %vm8668, %v10398, 0
    %10401 = vmatprep.subr.mxu0 0.0
    %10402 = vmatpush1.msra.mxu0 %v10370
    %10403 = vmatprep.subr.mxu0 0.0
    %10404 = vmatpush1.msra.mxu0 %v10371
    %10405 = vmatprep.subr.mxu0 0.0
    %10406 = vmatpush1.msra.mxu0 %v10372
    %10407 = vmatprep.subr.mxu0 0.0
    %10408 = vmatpush1.msra.mxu0 %v10373
    %10409 = vmatprep.subr.mxu0 0.0
    %10410 = vmatpush1.msra.mxu0 %v10374
    %10411 = vmatprep.subr.mxu0 0.0
    %10412 = vmatpush1.msra.mxu0 %v10375
    %10413 = vmatprep.subr.mxu0 0.0
    %10414 = vmatpush1.msra.mxu0 %v10376
    %10415 = vmatprep.subr.mxu0 0.0
    %10416 = vmatpush1.msra.mxu0 %v10377
    %10417 = vmatprep.subr.mxu0 0.0
    %10418 = vmatpush1.msra.mxu0 0.0
    %10419 = vmatprep.subr.mxu0 0.0
    %10420 = vmatpush1.msra.mxu0 0.0
    %10421 = vmatprep.subr.mxu0 0.0
    %10422 = vmatpush1.msra.mxu0 0.0
    %10423 = vmatprep.subr.mxu0 0.0
    %10424 = vmatpush1.msra.mxu0 0.0
    %10425 = vmatprep.subr.mxu0 0.0
    %10426 = vmatpush1.msra.mxu0 0.0
    %10427 = vmatprep.subr.mxu0 0.0
    %10428 = vmatpush1.msra.mxu0 0.0
    %10429 = vmatprep.subr.mxu0 0.0
    %10430 = vmatpush1.msra.mxu0 0.0
    %10431 = vmatprep.subr.mxu0 0.0
    %10432 = vmatpush1.msra.mxu0 0.0
    %10433 = vmatprep.subr.mxu0 0.0
    %10434 = vmatpush1.msra.mxu0 0.0
    %10435 = vmatprep.subr.mxu0 0.0
    %10436 = vmatpush1.msra.mxu0 0.0
    %10437 = vmatprep.subr.mxu0 0.0
    %10438 = vmatpush1.msra.mxu0 0.0
    %10439 = vmatprep.subr.mxu0 0.0
    %10440 = vmatpush1.msra.mxu0 0.0
    %10441 = vmatprep.subr.mxu0 0.0
    %10442 = vmatpush1.msra.mxu0 0.0
    %10443 = vmatprep.subr.mxu0 0.0
    %10444 = vmatpush1.msra.mxu0 0.0
    %10445 = vmatprep.subr.mxu0 0.0
    %10446 = vmatpush1.msra.mxu0 0.0
    %10447 = vmatprep.subr.mxu0 0.0
    %10448 = vmatpush1.msra.mxu0 0.0
    %10449 = vmatprep.subr.mxu0 0.0
    %10450 = vmatpush1.msra.mxu0 0.0
    %10451 = vmatprep.subr.mxu0 0.0
    %10452 = vmatpush1.msra.mxu0 0.0
    %10453 = vmatprep.subr.mxu0 0.0
    %10454 = vmatpush1.msra.mxu0 0.0
    %10455 = vmatprep.subr.mxu0 0.0
    %10456 = vmatpush1.msra.mxu0 0.0
    %10457 = vmatprep.subr.mxu0 0.0
    %10458 = vmatpush1.msra.mxu0 0.0
    %10459 = vmatprep.subr.mxu0 0.0
    %10460 = vmatpush1.msra.mxu0 0.0
    %10461 = vmatprep.subr.mxu0 0.0
    %10462 = vmatpush1.msra.mxu0 0.0
    %10463 = vmatprep.subr.mxu0 0.0
    %10464 = vmatpush1.msra.mxu0 0.0
    %10465 = vmatprep.mubr.f32.mxu0 0.0
    %10466 = vmatmul.mubr.f32.gmra.mrb[0].mxu0 %v10399
    %v10467 = vpop.f32.mrb[0].mxu0
    %v10468 = vadd.f32 0.0, %v10467
    %v10469 = vpop.f32.mrb[0].mxu0
    %10470 = vdwg.mxu0
    %v10471 = vadd.f32 %v10364, %v10468
    %v10472 = vld [vmem:[%s9262 + $0x2] sm:$0x3]
    %v10473 = vld [vmem:[%s9262 + $0x6] sm:$0x3]
    %v10474 = vld [vmem:[%s9262 + $0x12] sm:$0x3]
    %v10475 = vld [vmem:[%s9262 + $0x16] sm:$0x3]
    %s10476 = scalar_lea.vmem %s15, 512
    %v10477 = vld [vmem:[%s10476] sm:$0xff]
    %v10478 = vld [vmem:[%s10476 + $0x8] sm:$0xff]
    %v10479 = vld [vmem:[%s10476 + $0x10] sm:$0xff]
    %v10480 = vld [vmem:[%s10476 + $0x18] sm:$0xff]
    %v10481 = vld [vmem:[%s10476 + $0x20] sm:$0xff]
    %v10482 = vld [vmem:[%s10476 + $0x28] sm:$0xff]
    %v10483 = vld [vmem:[%s10476 + $0x30] sm:$0xff]
    %v10484 = vld [vmem:[%s10476 + $0x38] sm:$0xff]
    %v10489 = vcombine.low %v10472, %v10473
    %v10490 = vcombine.low %v10474, %v10475
    %v10492 = vunpack.c.l.s4 1983009808
    %v10493 = vunpack.c.0.s8 %v10492
    %v10494 = vlaneseq
    %v10495 = vshrl.u32 %v10494, 7
    %v10496 = vsub.s32 %v10493, %v10495
    %v10497 = vrot.slane %v10489, %v10496
    %v10499 = vunpack.c.l.s4 1983009808
    %v10500 = vunpack.c.0.s8 %v10499
    %v10501 = vlaneseq
    %v10502 = vshrl.u32 %v10501, 7
    %v10503 = vsub.s32 %v10500, %v10502
    %v10504 = vrot.slane %v10490, %v10503
    %v10505 = vcombine.low %v10497, %v10504
    %v10506 = vsel %vm8668, %v10505, 0
    %10508 = vmatprep.subr.mxu0 0.0
    %10509 = vmatpush1.msra.mxu0 %v10477
    %10510 = vmatprep.subr.mxu0 0.0
    %10511 = vmatpush1.msra.mxu0 %v10478
    %10512 = vmatprep.subr.mxu0 0.0
    %10513 = vmatpush1.msra.mxu0 %v10479
    %10514 = vmatprep.subr.mxu0 0.0
    %10515 = vmatpush1.msra.mxu0 %v10480
    %10516 = vmatprep.subr.mxu0 0.0
    %10517 = vmatpush1.msra.mxu0 %v10481
    %10518 = vmatprep.subr.mxu0 0.0
    %10519 = vmatpush1.msra.mxu0 %v10482
    %10520 = vmatprep.subr.mxu0 0.0
    %10521 = vmatpush1.msra.mxu0 %v10483
    %10522 = vmatprep.subr.mxu0 0.0
    %10523 = vmatpush1.msra.mxu0 %v10484
    %10524 = vmatprep.subr.mxu0 0.0
    %10525 = vmatpush1.msra.mxu0 0.0
    %10526 = vmatprep.subr.mxu0 0.0
    %10527 = vmatpush1.msra.mxu0 0.0
    %10528 = vmatprep.subr.mxu0 0.0
    %10529 = vmatpush1.msra.mxu0 0.0
    %10530 = vmatprep.subr.mxu0 0.0
    %10531 = vmatpush1.msra.mxu0 0.0
    %10532 = vmatprep.subr.mxu0 0.0
    %10533 = vmatpush1.msra.mxu0 0.0
    %10534 = vmatprep.subr.mxu0 0.0
    %10535 = vmatpush1.msra.mxu0 0.0
    %10536 = vmatprep.subr.mxu0 0.0
    %10537 = vmatpush1.msra.mxu0 0.0
    %10538 = vmatprep.subr.mxu0 0.0
    %10539 = vmatpush1.msra.mxu0 0.0
    %10540 = vmatprep.subr.mxu0 0.0
    %10541 = vmatpush1.msra.mxu0 0.0
    %10542 = vmatprep.subr.mxu0 0.0
    %10543 = vmatpush1.msra.mxu0 0.0
    %10544 = vmatprep.subr.mxu0 0.0
    %10545 = vmatpush1.msra.mxu0 0.0
    %10546 = vmatprep.subr.mxu0 0.0
    %10547 = vmatpush1.msra.mxu0 0.0
    %10548 = vmatprep.subr.mxu0 0.0
    %10549 = vmatpush1.msra.mxu0 0.0
    %10550 = vmatprep.subr.mxu0 0.0
    %10551 = vmatpush1.msra.mxu0 0.0
    %10552 = vmatprep.subr.mxu0 0.0
    %10553 = vmatpush1.msra.mxu0 0.0
    %10554 = vmatprep.subr.mxu0 0.0
    %10555 = vmatpush1.msra.mxu0 0.0
    %10556 = vmatprep.subr.mxu0 0.0
    %10557 = vmatpush1.msra.mxu0 0.0
    %10558 = vmatprep.subr.mxu0 0.0
    %10559 = vmatpush1.msra.mxu0 0.0
    %10560 = vmatprep.subr.mxu0 0.0
    %10561 = vmatpush1.msra.mxu0 0.0
    %10562 = vmatprep.subr.mxu0 0.0
    %10563 = vmatpush1.msra.mxu0 0.0
    %10564 = vmatprep.subr.mxu0 0.0
    %10565 = vmatpush1.msra.mxu0 0.0
    %10566 = vmatprep.subr.mxu0 0.0
    %10567 = vmatpush1.msra.mxu0 0.0
    %10568 = vmatprep.subr.mxu0 0.0
    %10569 = vmatpush1.msra.mxu0 0.0
    %10570 = vmatprep.subr.mxu0 0.0
    %10571 = vmatpush1.msra.mxu0 0.0
    %10572 = vmatprep.mubr.f32.mxu0 0.0
    %10573 = vmatmul.mubr.f32.gmra.mrb[0].mxu0 %v10506
    %v10574 = vpop.f32.mrb[0].mxu0
    %v10575 = vadd.f32 0.0, %v10574
    %v10576 = vpop.f32.mrb[0].mxu0
    %10577 = vdwg.mxu0
    %v10578 = vadd.f32 %v10471, %v10575
    %v10579 = vld [vmem:[%s16] sm:$0x1]
    %v10581 = vlaneseq
    %v10582 = vshrl.u32 %v10581, 7
    %v10583 = vsub.s32 0, %v10582
    %v10584 = vrot.slane %v10579, %v10583
    %v10586 = vadd.f32 %v10578, %v10584
    %v10587 = vmax.f32 %v10586, 0.0
    %v10589 = vcombine.high %v10587, %v10587
    %v10591 = vunpack.c.l.s4 1983009808
    %v10592 = vunpack.c.0.s8 %v10591
    %v10593 = vlaneseq
    %v10594 = vshrl.u32 %v10593, 7
    %v10595 = vsub.s32 %v10592, %v10594
    %v10596 = vrot.slane %v10587, %v10595
    %v10598 = vunpack.c.l.s4 1983009808
    %v10599 = vunpack.c.0.s8 %v10598
    %v10600 = vlaneseq
    %v10601 = vshrl.u32 %v10600, 7
    %v10602 = vsub.s32 %v10599, %v10601
    %v10603 = vrot.slane %v10589, %v10602
    %v10604 = vcombine.high %v10596, %v10596
    %v10605 = vcombine.high %v10603, %v10603
    %10610 = vst [vmem:[#allocation6] sm:$0x3] %v10596
    %10611 = vst [vmem:[#allocation6 + $0x2] sm:$0x3] %v10604
    %10612 = vst [vmem:[#allocation6 + $0x4] sm:$0x3] %v10603
    %10613 = vst [vmem:[#allocation6 + $0x6] sm:$0x3] %v10605
    %vm10615 = vcmask 1043456
    %v10616 = vsel %vm10615, %v10587, 0.0
    %v10617 = vrot.slane %v10616, 4
    %v10618 = vadd.f32 %v10616, %v10617
    %v10619 = vrot.slane %v10618, 2
    %v10620 = vadd.f32 %v10618, %v10619
    %v10621 = vrot.slane %v10620, 1
    %v10622 = vadd.f32 %v10620, %v10621
    %v10623 = vsel %vm10615, %v10589, 0.0
    %v10624 = vrot.slane %v10623, 4
    %v10625 = vadd.f32 %v10623, %v10624
    %v10626 = vrot.slane %v10625, 2
    %v10627 = vadd.f32 %v10625, %v10626
    %v10628 = vrot.slane %v10627, 1
    %v10629 = vadd.f32 %v10627, %v10628
    %v10630 = vrcp.pop 4.0
    %v10631 = vmul.f32 %v10622, %v10630
    %v10632 = vmul.f32 %v10629, %v10630
    %v10633 = vld [vmem:[%s17] sm:$0x1]
    %v10635 = vlaneseq
    %v10636 = vshrl.u32 %v10635, 7
    %v10637 = vsub.s32 0, %v10636
    %v10638 = vrot.slane %v10633, %v10637
    %v10640 = vmul.f32 %v10631, %v10638
    %v10641 = vmul.f32 %v10632, %v10638
    %v10644 = vrot.slane %v10641, 7
    %vm10645 = vcmask 1041409
    %v10646 = vsel %vm10645, %v10644, %v10640
    %vm10648 = vcmask 1041408
    %v10649 = vsel %vm10648, %v10646, 0.0
    %10650 = vadd.xlane.f32.xlu0 %v10649
    %v10651 = vpop.xlane.xlu0 %10650
    %vm10652 = vcmask 1024
    %10653 = vst.msk [vmem:[%s18] sm:$0x3] %vm10652, %v10651
    // Predicated region
    $region74: #{gradcampp_forward.1} parent=1 // pred_check
      _
    $region75: #{gradcampp_forward.1} parent=1 // pred_check_branch
      %10655 = sbr.rel (0) target = $region77
    $region76: #{gradcampp_forward.1} parent=1 // pred_region
      _
    $region77: #{gradcampp_forward.1} parent=1 // pred_fallthru
      _
    // Predicated region
    $region78: #{gradcampp_forward.1} parent=1 // pred_check
      _
    $region79: #{gradcampp_forward.1} parent=1 // pred_check_branch
      %10657 = sbr.rel (0) target = $region81
    $region80: #{gradcampp_forward.1} parent=1 // pred_region
      %s10659 = ssub.s32 128, 128
      %10660 = vsyncadd [#allocation7], %s10659
      %s10661 = sshll.u32 [#allocation6], 4
      %s10662 = int_to_ptr.vmem [resolvable:$true] %s10661
      %10667 = dma.vmem_to_hbm [thread:$0]  %s10662, 128, %s19, [#allocation7], 32, 32, 2
    $region81: #{gradcampp_forward.1} parent=1 // pred_fallthru
      _
    // Predicated region
    $region82: #{gradcampp_forward.1} parent=1 // pred_check
      _
    $region83: #{gradcampp_forward.1} parent=1 // pred_check_branch
      %10669 = sbr.rel (0) target = $region85
    $region84: #{gradcampp_forward.1} parent=1 // pred_region
      _
    $region85: #{gradcampp_forward.1} parent=1 // pred_fallthru
      _
    // Predicated region
    $region86: #{gradcampp_forward.1} parent=1 // pred_check
      _
    $region87: #{gradcampp_forward.1} parent=1 // pred_check_branch
      %10671 = sbr.rel (0) target = $region89
    $region88: #{gradcampp_forward.1} parent=1 // pred_region
      %10672 = dma.done [#allocation7], 128
    $region89: #{gradcampp_forward.1} parent=1 // pred_fallthru
      _
    %10673 = vsyncpa [#allocation7], 1

</llo_original>
